<compile_context>
chip_gen: v7x
topology: tpu7x:2x2x1
jax: 0.10.0
libtpu: 0.0.40
codegen_flags: <defaults>
</compile_context>

<pallas_src>
import functools

import jax
import jax.numpy as jnp
from jax.experimental import pallas as pl
from jax.experimental.pallas import tpu as pltpu

# f32-accurate matmuls everywhere (kernel dots AND the JAX reference); the default
# TPU matmul precision is bf16 single-pass, which would break f32 parity checks.
jax.config.update("jax_default_matmul_precision", "float32")

LANE = 128  # lane-group width


# --------------------------------- kernel -----------------------------------

def inference_kernel(ln_active, E, R, RF,
                     q_ref, tpr_ref,
                     w1_ref, b1_ref, w2_ref, b2_ref,
                     ln_g_ref, ln_b_ref,
                     expand3_ref, collapse_ref, z_ref,
                     logits_ref):
    f32 = jnp.float32
    q = q_ref[...]                                                    # (TB, S)

    # ---- fused first layers (entity MLP + 3 role MLPs): 1 matmul + 1 tanh --
    h = jnp.tanh(jnp.dot(q, w1_ref[...], preferred_element_type=f32)
                 + b1_ref[...])                                       # (TB, 4H)

    # ---- fused, lane-group-aligned second layers ----------------------------
    #   lane group 0 (lanes   0..127): e1 in lanes 0..E-1
    #   lane group 1 (lanes 128..255): [r1 | r2 | r3] in lanes 0..3R-1
    er = jnp.dot(h, w2_ref[...], preferred_element_type=f32) + b2_ref[...]
    e1 = er[:, 0:E]                                                   # aligned slice
    r_all = er[:, LANE:LANE + 3 * R]                                  # aligned slice

    # ---- off-critical-path: all three role expansions in ONE matmul ---------
    r_exp_all = jnp.dot(r_all, expand3_ref[...],
                        preferred_element_type=f32)                   # (TB, 3*RF)
    r_exp = (r_exp_all[:, 0:RF],
             r_exp_all[:, RF:2 * RF],
             r_exp_all[:, 2 * RF:3 * RF])

    # ---- TPR tile: loaded & promoted bf16 -> f32 exactly once ---------------
    tpr = tpr_ref[...].astype(f32)                                    # (TB, E, RF)
    collapse = collapse_ref[...]                                      # (RF, F)

    def infer(prev_e, k):
        # einsum('be,br,berf->bf') on the lane-dense (TB, E, R*F) tile:
        # contract E via broadcast-multiply + sublane reduce, contract R via the
        # precomputed role expansion and one tiny lane-dense matmul.
        t1 = jnp.sum(tpr * prev_e[:, :, None], axis=1)                # (TB, RF)
        return jnp.dot(t1 * r_exp[k], collapse,
                       preferred_element_type=f32)                    # (TB, F)

    def maybe_ln(x, k):
        if not ln_active:
            return x
        # qamodel.py custom LayerNorm: unbiased std (n-1), eps added to sigma.
        n = x.shape[-1]
        mean = jnp.mean(x, axis=-1, keepdims=True)
        var = jnp.sum((x - mean) ** 2, axis=-1, keepdims=True) / (n - 1)
        inv = pl.reciprocal(jnp.sqrt(var) + 1e-6, approx=False)       # EUP slot
        return (x - mean) * inv * ln_g_ref[k] + ln_b_ref[k]

    i1 = maybe_ln(infer(e1, 0), 0)
    i2 = maybe_ln(infer(i1, 1), 1)
    i3 = maybe_ln(infer(i2, 2), 2)

    logits_ref[...] = jnp.dot(i1 + i2 + i3, z_ref[...],
                              preferred_element_type=f32)             # (TB, Vpad)


# -------------------------------- wrapper ------------------------------------

def _pick_block_b(B):
    """Batch tile: full batch on single-TC chips (v5e/v6e), split in two on
    multi-TC chips (v7x-class / megacore) so both cores get a grid step."""
    try:
        kind = jax.devices()[0].device_kind.lower()
    except Exception:
        kind = ""
    single_tc = any(t in kind for t in ("v5e", "v5 lite", "v5lite", "v6e", "v6 lite", "lite"))
    if single_tc or B % 16 != 0:
        return B if B % 8 == 0 else 8
    return B // 2                                                     # multiple of 8


def inference_module(query_embed, tpr, params, ln_active=True, block_b=None):
    B, S = query_embed.shape
    Bt, E, R, F = tpr.shape
    assert Bt == B
    assert F == E, "chained inference requires TPR feature dim == entity_size"
    assert E <= LANE and 3 * R <= LANE
    H = params['e_w1'].shape[1]
    V = params['Z'].shape[1]
    RF = R * F
    f32 = jnp.float32

    if block_b is None:
        block_b = _pick_block_b(B)
    TB = block_b
    assert B % TB == 0 and TB % 8 == 0, "batch tile must divide B and be a multiple of 8"

    # ---- fused layer-1: entity + 3 role MLPs share one (S, 4H) matmul --------
    w1_all = jnp.concatenate([params['e_w1']] + [params['r_w1'][k] for k in range(3)],
                             axis=1).astype(f32)                      # (S, 4H)
    b1_all = jnp.concatenate([params['e_b1']] + [params['r_b1'][k] for k in range(3)],
                             axis=1).astype(f32)                      # (1, 4H)

    # ---- fused layer-2 on 128-lane group boundaries --------------------------
    W2C = 2 * LANE                                                    # 2 lane groups
    w2_all = jnp.zeros((4 * H, W2C), f32)
    b2_all = jnp.zeros((1, W2C), f32)
    w2_all = w2_all.at[0:H, 0:E].set(params['e_w2'].astype(f32))
    b2_all = b2_all.at[:, 0:E].set(params['e_b2'].astype(f32))
    for k in range(3):
        c0 = LANE + k * R
        w2_all = w2_all.at[(k + 1) * H:(k + 2) * H, c0:c0 + R].set(
            params['r_w2'][k].astype(f32))
        b2_all = b2_all.at[:, c0:c0 + R].set(params['r_b2'][k].astype(f32))

    # ---- constant 0/1 contraction helpers ------------------------------------
    expand = jnp.repeat(jnp.eye(R, dtype=f32), F, axis=1)             # (R, RF)
    expand3 = jnp.zeros((3 * R, 3 * RF), f32)                         # block-diag
    for k in range(3):
        expand3 = expand3.at[k * R:(k + 1) * R, k * RF:(k + 1) * RF].set(expand)
    collapse = jnp.tile(jnp.eye(F, dtype=f32), (R, 1))                # (RF, F)

    # ---- lane-dense (zero-padded) vocab projection ---------------------------
    Vp = ((V + LANE - 1) // LANE) * LANE
    z_pad = jnp.zeros((E, Vp), f32).at[:, :V].set(params['Z'].astype(f32))

    ln_g = params['ln_gain'].reshape(3, 1, E).astype(f32)
    ln_b = params['ln_bias'].reshape(3, 1, E).astype(f32)

    # lane-dense TPR layout, streamed as bf16 (all accumulation stays f32)
    tpr_flat = tpr.reshape(B, E, RF).astype(jnp.bfloat16)
    q = query_embed.astype(f32)

    const2 = lambda b: (0, 0)
    const3 = lambda b: (0, 0, 0)

    grid_spec = pltpu.PrefetchScalarGridSpec(
        num_scalar_prefetch=0,
        grid=(B // TB,),
        in_specs=[
            pl.BlockSpec((TB, S), lambda b: (b, 0)),                  # query rows
            pl.BlockSpec((TB, E, RF), lambda b: (b, 0, 0)),           # TPR tile (bf16)
            pl.BlockSpec((S, 4 * H), const2),                         # fused layer-1 W
            pl.BlockSpec((1, 4 * H), const2),                         # fused layer-1 b
            pl.BlockSpec((4 * H, W2C), const2),                       # fused layer-2 W
            pl.BlockSpec((1, W2C), const2),                           # fused layer-2 b
            pl.BlockSpec((3, 1, E), const3),                          # LN gains
            pl.BlockSpec((3, 1, E), const3),                          # LN biases
            pl.BlockSpec((3 * R, 3 * RF), const2),                    # fused expand
            pl.BlockSpec((RF, F), const2),                            # collapse
            pl.BlockSpec((E, Vp), const2),                            # Z (padded)
        ],
        out_specs=pl.BlockSpec((TB, Vp), lambda b: (b, 0)),
    )

    # advisory cost hint so XLA schedules around this tiny custom call sensibly
    flops = 2 * B * (S * 4 * H + 4 * H * W2C + 3 * R * 3 * RF
                     + 3 * (E * RF + RF * F) + E * Vp) + 4 * B * 3 * RF
    transcendentals = B * 4 * H + 6 * B
    bytes_accessed = (q.size * 4 + tpr_flat.size * 2
                      + (w1_all.size + b1_all.size + w2_all.size + b2_all.size) * 4
                      + (ln_g.size + ln_b.size + expand3.size + collapse.size
                         + z_pad.size) * 4
                      + B * Vp * 4)

    kernel = functools.partial(inference_kernel, ln_active, E, R, RF)
    logits_padded = pl.pallas_call(
        kernel,
        grid_spec=grid_spec,
        out_shape=jax.ShapeDtypeStruct((B, Vp), f32),
        compiler_params=pltpu.CompilerParams(dimension_semantics=("parallel",)),
        cost_estimate=pl.CostEstimate(flops=int(flops),
                                      transcendentals=int(transcendentals),
                                      bytes_accessed=int(bytes_accessed)),
    )(q, tpr_flat,
      w1_all, b1_all, w2_all, b2_all,
      ln_g, ln_b, expand3, collapse, z_pad)
    return logits_padded[:, :V]


# --------------------------- pure-JAX reference ------------------------------

def reference_forward(q, tpr, p, ln_active=True):
    def mlp(x, w1, b1, w2, b2):
        return jnp.tanh(x @ w1 + b1) @ w2 + b2

    def ln(x, g, b):
        if not ln_active:
            return x
        mean = x.mean(-1, keepdims=True)
        var = ((x - mean) ** 2).sum(-1, keepdims=True) / (x.shape[-1] - 1)
        return (x - mean) / (jnp.sqrt(var) + 1e-6) * g + b

    e1 = mlp(q, p['e_w1'], p['e_b1'], p['e_w2'], p['e_b2'])
    rs = [mlp(q, p['r_w1'][k], p['r_b1'][k], p['r_w2'][k], p['r_b2'][k])
          for k in range(3)]
    i1 = ln(jnp.einsum('be,br,berf->bf', e1, rs[0], tpr),
            p['ln_gain'][0], p['ln_bias'][0])
    i2 = ln(jnp.einsum('be,br,berf->bf', i1, rs[1], tpr),
            p['ln_gain'][1], p['ln_bias'][1])
    i3 = ln(jnp.einsum('be,br,berf->bf', i2, rs[2], tpr),
            p['ln_gain'][2], p['ln_bias'][2])
    return (i1 + i2 + i3) @ p['Z']


# ----------------------------------- main ------------------------------------

def _xavier_uniform(key, shape):
    fan_in, fan_out = shape[-2], shape[-1]
    a = (6.0 / (fan_in + fan_out)) ** 0.5
    return jax.random.uniform(key, shape, jnp.float32, minval=-a, maxval=a)


if __name__ == "__main__":
    # forward requires F (last TPR dim) == entity_size
    B = 16
    config = dict(hidden_size=32, entity_size=16, role_size=16,
                  symbol_size=32, vocab_size=32, LN=True)
    S, H = config['symbol_size'], config['hidden_size']
    E, R, V = config['entity_size'], config['role_size'], config['vocab_size']

    key = jax.random.PRNGKey(0)
    keys = jax.random.split(key, 20)

    params = {
        # entity MLP (self.e[0]; self.e[1] is dead code in forward)
        'e_w1': _xavier_uniform(keys[0], (S, H)),
        'e_b1': 0.1 * jax.random.normal(keys[1], (1, H), jnp.float32),
        'e_w2': _xavier_uniform(keys[2], (H, E)),
        'e_b2': 0.1 * jax.random.normal(keys[3], (1, E), jnp.float32),
        # three role MLPs, stacked on a leading axis
        'r_w1': jnp.stack([_xavier_uniform(keys[4 + k], (S, H)) for k in range(3)]),
        'r_b1': 0.1 * jax.random.normal(keys[7], (3, 1, H), jnp.float32),
        'r_w2': jnp.stack([_xavier_uniform(keys[8 + k], (H, R)) for k in range(3)]),
        'r_b2': 0.1 * jax.random.normal(keys[11], (3, 1, R), jnp.float32),
        # self.Z
        'Z': _xavier_uniform(keys[12], (E, V)),
        # the three OptionalLayer(LayerNorm) gains/biases
        'ln_gain': 1.0 + 0.1 * jax.random.normal(keys[13], (3, E), jnp.float32),
        'ln_bias': 0.1 * jax.random.normal(keys[14], (3, E), jnp.float32),
    }

    query_embed = jax.random.normal(keys[15], (B, S), jnp.float32)
    TPR = 0.1 * jax.random.normal(keys[16], (B, E, R, E), jnp.float32)

    logits = inference_module(query_embed, TPR, params, ln_active=config['LN'])
    logits = jax.block_until_ready(logits)

    # reference uses the same bf16-rounded TPR the kernel streams (math in f32)
    tpr_for_ref = TPR.astype(jnp.bfloat16).astype(jnp.float32)
    ref = reference_forward(query_embed, tpr_for_ref, params, ln_active=config['LN'])
    ref = jax.block_until_ready(ref)

    assert logits.shape == (B, V)
    max_err = float(jnp.max(jnp.abs(logits - ref)))
    assert jnp.allclose(logits, ref, rtol=1e-4, atol=1e-4), max_err
    print("KERNEL_OK")
</pallas_src>

<mosaic_0001>
module attributes {stable_mosaic.version = 11 : i64} {
  func.func @inference_kernel(%arg0: i32, %arg1: memref<8x32xf32, #tpu.memory_space<vmem>>, %arg2: memref<8x16x256xbf16, #tpu.memory_space<vmem>>, %arg3: memref<32x128xf32, #tpu.memory_space<vmem>>, %arg4: memref<1x128xf32, #tpu.memory_space<vmem>>, %arg5: memref<128x256xf32, #tpu.memory_space<vmem>>, %arg6: memref<1x256xf32, #tpu.memory_space<vmem>>, %arg7: memref<3x1x16xf32, #tpu.memory_space<vmem>>, %arg8: memref<3x1x16xf32, #tpu.memory_space<vmem>>, %arg9: memref<48x768xf32, #tpu.memory_space<vmem>>, %arg10: memref<256x16xf32, #tpu.memory_space<vmem>>, %arg11: memref<16x128xf32, #tpu.memory_space<vmem>>, %arg12: memref<8x128xf32, #tpu.memory_space<vmem>>) attributes {dimension_semantics = [#tpu.dimension_semantics<parallel>], iteration_bounds = array<i64: 2>, scalar_prefetch = 0 : i64, scratch_operands = 0 : i64, tpu.core_type = #tpu.core_type<tc>, window_params = [{transform_indices = @transform_0, window_bounds = array<i64: 8, 32>}, {transform_indices = @transform_1, window_bounds = array<i64: 8, 16, 256>}, {pipeline_mode = #tpu.pipeline_mode<synchronous>, transform_indices = @transform_2, window_bounds = array<i64: 32, 128>}, {pipeline_mode = #tpu.pipeline_mode<synchronous>, transform_indices = @transform_3, window_bounds = array<i64: 1, 128>}, {pipeline_mode = #tpu.pipeline_mode<synchronous>, transform_indices = @transform_4, window_bounds = array<i64: 128, 256>}, {pipeline_mode = #tpu.pipeline_mode<synchronous>, transform_indices = @transform_5, window_bounds = array<i64: 1, 256>}, {pipeline_mode = #tpu.pipeline_mode<synchronous>, transform_indices = @transform_6, window_bounds = array<i64: 3, 1, 16>}, {pipeline_mode = #tpu.pipeline_mode<synchronous>, transform_indices = @transform_7, window_bounds = array<i64: 3, 1, 16>}, {pipeline_mode = #tpu.pipeline_mode<synchronous>, transform_indices = @transform_8, window_bounds = array<i64: 48, 768>}, {pipeline_mode = #tpu.pipeline_mode<synchronous>, transform_indices = @transform_9, window_bounds = array<i64: 256, 16>}, {pipeline_mode = #tpu.pipeline_mode<synchronous>, transform_indices = @transform_10, window_bounds = array<i64: 16, 128>}, {transform_indices = @transform_11, window_bounds = array<i64: 8, 128>}]} {
    %c0 = arith.constant 0 : index
    %c0_0 = arith.constant 0 : index
    %0 = vector.load %arg1[%c0, %c0_0] : memref<8x32xf32, #tpu.memory_space<vmem>>, vector<8x32xf32>
    %c0_1 = arith.constant 0 : index
    %c0_2 = arith.constant 0 : index
    %1 = vector.load %arg3[%c0_1, %c0_2] : memref<32x128xf32, #tpu.memory_space<vmem>>, vector<32x128xf32>
    %cst = arith.constant dense<0.000000e+00> : vector<8x128xf32>
    %2 = tpu.matmul %0, %1, %cst {dimension_numbers = #tpu.dot_dimension_numbers<[1], [0], [0], [1], [0, 0, 1, 1], [], []>, precision = #tpu.contract_precision<fp32>} : vector<8x32xf32>, vector<32x128xf32>, vector<8x128xf32> -> vector<8x128xf32>
    %c0_3 = arith.constant 0 : index
    %c0_4 = arith.constant 0 : index
    %3 = vector.load %arg4[%c0_3, %c0_4] : memref<1x128xf32, #tpu.memory_space<vmem>>, vector<1x128xf32>
    %4 = vector.broadcast %3 : vector<1x128xf32> to vector<8x128xf32>
    %5 = arith.addf %2, %4 : vector<8x128xf32>
    %6 = math.tanh %5 : vector<8x128xf32>
    %c0_5 = arith.constant 0 : index
    %c0_6 = arith.constant 0 : index
    %7 = vector.load %arg5[%c0_5, %c0_6] : memref<128x256xf32, #tpu.memory_space<vmem>>, vector<128x256xf32>
    %cst_7 = arith.constant dense<0.000000e+00> : vector<8x256xf32>
    %8 = tpu.matmul %6, %7, %cst_7 {dimension_numbers = #tpu.dot_dimension_numbers<[1], [0], [0], [1], [0, 0, 1, 1], [], []>, precision = #tpu.contract_precision<fp32>} : vector<8x128xf32>, vector<128x256xf32>, vector<8x256xf32> -> vector<8x256xf32>
    %c0_8 = arith.constant 0 : index
    %c0_9 = arith.constant 0 : index
    %9 = vector.load %arg6[%c0_8, %c0_9] : memref<1x256xf32, #tpu.memory_space<vmem>>, vector<1x256xf32>
    %10 = vector.broadcast %9 : vector<1x256xf32> to vector<8x256xf32>
    %11 = arith.addf %8, %10 : vector<8x256xf32>
    %12 = vector.extract_strided_slice %11 {offsets = [0, 0], sizes = [8, 16], strides = [1, 1]} : vector<8x256xf32> to vector<8x16xf32>
    %13 = vector.extract_strided_slice %11 {offsets = [0, 128], sizes = [8, 48], strides = [1, 1]} : vector<8x256xf32> to vector<8x48xf32>
    %c0_10 = arith.constant 0 : index
    %c0_11 = arith.constant 0 : index
    %14 = vector.load %arg9[%c0_10, %c0_11] : memref<48x768xf32, #tpu.memory_space<vmem>>, vector<48x768xf32>
    %cst_12 = arith.constant dense<0.000000e+00> : vector<8x768xf32>
    %15 = tpu.matmul %13, %14, %cst_12 {dimension_numbers = #tpu.dot_dimension_numbers<[1], [0], [0], [1], [0, 0, 1, 1], [], []>, precision = #tpu.contract_precision<fp32>} : vector<8x48xf32>, vector<48x768xf32>, vector<8x768xf32> -> vector<8x768xf32>
    %16 = vector.extract_strided_slice %15 {offsets = [0, 0], sizes = [8, 256], strides = [1, 1]} : vector<8x768xf32> to vector<8x256xf32>
    %17 = vector.extract_strided_slice %15 {offsets = [0, 256], sizes = [8, 256], strides = [1, 1]} : vector<8x768xf32> to vector<8x256xf32>
    %18 = vector.extract_strided_slice %15 {offsets = [0, 512], sizes = [8, 256], strides = [1, 1]} : vector<8x768xf32> to vector<8x256xf32>
    %c0_13 = arith.constant 0 : index
    %c0_14 = arith.constant 0 : index
    %c0_15 = arith.constant 0 : index
    %19 = vector.load %arg2[%c0_13, %c0_14, %c0_15] : memref<8x16x256xbf16, #tpu.memory_space<vmem>>, vector<8x16x256xbf16>
    %20 = arith.extf %19 : vector<8x16x256xbf16> to vector<8x16x256xf32>
    %c0_16 = arith.constant 0 : index
    %c0_17 = arith.constant 0 : index
    %21 = vector.load %arg10[%c0_16, %c0_17] : memref<256x16xf32, #tpu.memory_space<vmem>>, vector<256x16xf32>
    %22 = vector.shape_cast %12 : vector<8x16xf32> to vector<8x16x1xf32>
    %23 = vector.broadcast %22 : vector<8x16x1xf32> to vector<8x16x256xf32>
    %24 = arith.mulf %20, %23 : vector<8x16x256xf32>
    %cst_18 = arith.constant dense<0.000000e+00> : vector<8x256xf32>
    %25 = vector.multi_reduction <add>, %24, %cst_18 [1] : vector<8x16x256xf32> to vector<8x256xf32>
    %26 = arith.mulf %25, %16 : vector<8x256xf32>
    %cst_19 = arith.constant dense<0.000000e+00> : vector<8x16xf32>
    %27 = tpu.matmul %26, %21, %cst_19 {dimension_numbers = #tpu.dot_dimension_numbers<[1], [0], [0], [1], [0, 0, 1, 1], [], []>, precision = #tpu.contract_precision<fp32>} : vector<8x256xf32>, vector<256x16xf32>, vector<8x16xf32> -> vector<8x16xf32>
    %cst_20 = arith.constant dense<0.000000e+00> : vector<8xf32>
    %28 = vector.multi_reduction <add>, %27, %cst_20 [1] : vector<8x16xf32> to vector<8xf32>
    %29 = vector.shape_cast %28 : vector<8xf32> to vector<8x1xf32>
    %cst_21 = arith.constant 1.600000e+01 : f32
    %30 = vector.broadcast %cst_21 : f32 to vector<8x1xf32>
    %31 = arith.divf %29, %30 : vector<8x1xf32>
    %32 = vector.broadcast %31 : vector<8x1xf32> to vector<8x16xf32>
    %33 = arith.subf %27, %32 : vector<8x16xf32>
    %34 = arith.mulf %33, %33 : vector<8x16xf32>
    %cst_22 = arith.constant dense<0.000000e+00> : vector<8xf32>
    %35 = vector.multi_reduction <add>, %34, %cst_22 [1] : vector<8x16xf32> to vector<8xf32>
    %36 = vector.shape_cast %35 : vector<8xf32> to vector<8x1xf32>
    %cst_23 = arith.constant 1.500000e+01 : f32
    %37 = vector.broadcast %cst_23 : f32 to vector<8x1xf32>
    %38 = arith.divf %36, %37 : vector<8x1xf32>
    %39 = math.sqrt %38 : vector<8x1xf32>
    %cst_24 = arith.constant 9.99999997E-7 : f32
    %40 = vector.broadcast %cst_24 : f32 to vector<8x1xf32>
    %41 = arith.addf %39, %40 : vector<8x1xf32>
    %42 = tpu.reciprocal %41 : vector<8x1xf32> -> vector<8x1xf32>
    %43 = vector.broadcast %31 : vector<8x1xf32> to vector<8x16xf32>
    %44 = arith.subf %27, %43 : vector<8x16xf32>
    %45 = vector.broadcast %42 : vector<8x1xf32> to vector<8x16xf32>
    %46 = arith.mulf %44, %45 : vector<8x16xf32>
    %c0_25 = arith.constant 0 : index
    %c0_26 = arith.constant 0 : index
    %c0_27 = arith.constant 0 : index
    %47 = vector.load %arg7[%c0_25, %c0_26, %c0_27] : memref<3x1x16xf32, #tpu.memory_space<vmem>>, vector<1x1x16xf32>
    %48 = vector.shape_cast %47 : vector<1x1x16xf32> to vector<1x16xf32>
    %49 = vector.broadcast %48 : vector<1x16xf32> to vector<8x16xf32>
    %50 = arith.mulf %46, %49 : vector<8x16xf32>
    %c0_28 = arith.constant 0 : index
    %c0_29 = arith.constant 0 : index
    %c0_30 = arith.constant 0 : index
    %51 = vector.load %arg8[%c0_28, %c0_29, %c0_30] : memref<3x1x16xf32, #tpu.memory_space<vmem>>, vector<1x1x16xf32>
    %52 = vector.shape_cast %51 : vector<1x1x16xf32> to vector<1x16xf32>
    %53 = vector.broadcast %52 : vector<1x16xf32> to vector<8x16xf32>
    %54 = arith.addf %50, %53 : vector<8x16xf32>
    %55 = vector.shape_cast %54 : vector<8x16xf32> to vector<8x16x1xf32>
    %56 = vector.broadcast %55 : vector<8x16x1xf32> to vector<8x16x256xf32>
    %57 = arith.mulf %20, %56 : vector<8x16x256xf32>
    %cst_31 = arith.constant dense<0.000000e+00> : vector<8x256xf32>
    %58 = vector.multi_reduction <add>, %57, %cst_31 [1] : vector<8x16x256xf32> to vector<8x256xf32>
    %59 = arith.mulf %58, %17 : vector<8x256xf32>
    %cst_32 = arith.constant dense<0.000000e+00> : vector<8x16xf32>
    %60 = tpu.matmul %59, %21, %cst_32 {dimension_numbers = #tpu.dot_dimension_numbers<[1], [0], [0], [1], [0, 0, 1, 1], [], []>, precision = #tpu.contract_precision<fp32>} : vector<8x256xf32>, vector<256x16xf32>, vector<8x16xf32> -> vector<8x16xf32>
    %cst_33 = arith.constant dense<0.000000e+00> : vector<8xf32>
    %61 = vector.multi_reduction <add>, %60, %cst_33 [1] : vector<8x16xf32> to vector<8xf32>
    %62 = vector.shape_cast %61 : vector<8xf32> to vector<8x1xf32>
    %cst_34 = arith.constant 1.600000e+01 : f32
    %63 = vector.broadcast %cst_34 : f32 to vector<8x1xf32>
    %64 = arith.divf %62, %63 : vector<8x1xf32>
    %65 = vector.broadcast %64 : vector<8x1xf32> to vector<8x16xf32>
    %66 = arith.subf %60, %65 : vector<8x16xf32>
    %67 = arith.mulf %66, %66 : vector<8x16xf32>
    %cst_35 = arith.constant dense<0.000000e+00> : vector<8xf32>
    %68 = vector.multi_reduction <add>, %67, %cst_35 [1] : vector<8x16xf32> to vector<8xf32>
    %69 = vector.shape_cast %68 : vector<8xf32> to vector<8x1xf32>
    %cst_36 = arith.constant 1.500000e+01 : f32
    %70 = vector.broadcast %cst_36 : f32 to vector<8x1xf32>
    %71 = arith.divf %69, %70 : vector<8x1xf32>
    %72 = math.sqrt %71 : vector<8x1xf32>
    %cst_37 = arith.constant 9.99999997E-7 : f32
    %73 = vector.broadcast %cst_37 : f32 to vector<8x1xf32>
    %74 = arith.addf %72, %73 : vector<8x1xf32>
    %75 = tpu.reciprocal %74 : vector<8x1xf32> -> vector<8x1xf32>
    %76 = vector.broadcast %64 : vector<8x1xf32> to vector<8x16xf32>
    %77 = arith.subf %60, %76 : vector<8x16xf32>
    %78 = vector.broadcast %75 : vector<8x1xf32> to vector<8x16xf32>
    %79 = arith.mulf %77, %78 : vector<8x16xf32>
    %c1 = arith.constant 1 : index
    %c0_38 = arith.constant 0 : index
    %c0_39 = arith.constant 0 : index
    %80 = vector.load %arg7[%c1, %c0_38, %c0_39] : memref<3x1x16xf32, #tpu.memory_space<vmem>>, vector<1x1x16xf32>
    %81 = vector.shape_cast %80 : vector<1x1x16xf32> to vector<1x16xf32>
    %82 = vector.broadcast %81 : vector<1x16xf32> to vector<8x16xf32>
    %83 = arith.mulf %79, %82 : vector<8x16xf32>
    %c1_40 = arith.constant 1 : index
    %c0_41 = arith.constant 0 : index
    %c0_42 = arith.constant 0 : index
    %84 = vector.load %arg8[%c1_40, %c0_41, %c0_42] : memref<3x1x16xf32, #tpu.memory_space<vmem>>, vector<1x1x16xf32>
    %85 = vector.shape_cast %84 : vector<1x1x16xf32> to vector<1x16xf32>
    %86 = vector.broadcast %85 : vector<1x16xf32> to vector<8x16xf32>
    %87 = arith.addf %83, %86 : vector<8x16xf32>
    %88 = vector.shape_cast %87 : vector<8x16xf32> to vector<8x16x1xf32>
    %89 = vector.broadcast %88 : vector<8x16x1xf32> to vector<8x16x256xf32>
    %90 = arith.mulf %20, %89 : vector<8x16x256xf32>
    %cst_43 = arith.constant dense<0.000000e+00> : vector<8x256xf32>
    %91 = vector.multi_reduction <add>, %90, %cst_43 [1] : vector<8x16x256xf32> to vector<8x256xf32>
    %92 = arith.mulf %91, %18 : vector<8x256xf32>
    %cst_44 = arith.constant dense<0.000000e+00> : vector<8x16xf32>
    %93 = tpu.matmul %92, %21, %cst_44 {dimension_numbers = #tpu.dot_dimension_numbers<[1], [0], [0], [1], [0, 0, 1, 1], [], []>, precision = #tpu.contract_precision<fp32>} : vector<8x256xf32>, vector<256x16xf32>, vector<8x16xf32> -> vector<8x16xf32>
    %cst_45 = arith.constant dense<0.000000e+00> : vector<8xf32>
    %94 = vector.multi_reduction <add>, %93, %cst_45 [1] : vector<8x16xf32> to vector<8xf32>
    %95 = vector.shape_cast %94 : vector<8xf32> to vector<8x1xf32>
    %cst_46 = arith.constant 1.600000e+01 : f32
    %96 = vector.broadcast %cst_46 : f32 to vector<8x1xf32>
    %97 = arith.divf %95, %96 : vector<8x1xf32>
    %98 = vector.broadcast %97 : vector<8x1xf32> to vector<8x16xf32>
    %99 = arith.subf %93, %98 : vector<8x16xf32>
    %100 = arith.mulf %99, %99 : vector<8x16xf32>
    %cst_47 = arith.constant dense<0.000000e+00> : vector<8xf32>
    %101 = vector.multi_reduction <add>, %100, %cst_47 [1] : vector<8x16xf32> to vector<8xf32>
    %102 = vector.shape_cast %101 : vector<8xf32> to vector<8x1xf32>
    %cst_48 = arith.constant 1.500000e+01 : f32
    %103 = vector.broadcast %cst_48 : f32 to vector<8x1xf32>
    %104 = arith.divf %102, %103 : vector<8x1xf32>
    %105 = math.sqrt %104 : vector<8x1xf32>
    %cst_49 = arith.constant 9.99999997E-7 : f32
    %106 = vector.broadcast %cst_49 : f32 to vector<8x1xf32>
    %107 = arith.addf %105, %106 : vector<8x1xf32>
    %108 = tpu.reciprocal %107 : vector<8x1xf32> -> vector<8x1xf32>
    %109 = vector.broadcast %97 : vector<8x1xf32> to vector<8x16xf32>
    %110 = arith.subf %93, %109 : vector<8x16xf32>
    %111 = vector.broadcast %108 : vector<8x1xf32> to vector<8x16xf32>
    %112 = arith.mulf %110, %111 : vector<8x16xf32>
    %c2 = arith.constant 2 : index
    %c0_50 = arith.constant 0 : index
    %c0_51 = arith.constant 0 : index
    %113 = vector.load %arg7[%c2, %c0_50, %c0_51] : memref<3x1x16xf32, #tpu.memory_space<vmem>>, vector<1x1x16xf32>
    %114 = vector.shape_cast %113 : vector<1x1x16xf32> to vector<1x16xf32>
    %115 = vector.broadcast %114 : vector<1x16xf32> to vector<8x16xf32>
    %116 = arith.mulf %112, %115 : vector<8x16xf32>
    %c2_52 = arith.constant 2 : index
    %c0_53 = arith.constant 0 : index
    %c0_54 = arith.constant 0 : index
    %117 = vector.load %arg8[%c2_52, %c0_53, %c0_54] : memref<3x1x16xf32, #tpu.memory_space<vmem>>, vector<1x1x16xf32>
    %118 = vector.shape_cast %117 : vector<1x1x16xf32> to vector<1x16xf32>
    %119 = vector.broadcast %118 : vector<1x16xf32> to vector<8x16xf32>
    %120 = arith.addf %116, %119 : vector<8x16xf32>
    %121 = arith.addf %54, %87 : vector<8x16xf32>
    %122 = arith.addf %121, %120 : vector<8x16xf32>
    %c0_55 = arith.constant 0 : index
    %c0_56 = arith.constant 0 : index
    %123 = vector.load %arg11[%c0_55, %c0_56] : memref<16x128xf32, #tpu.memory_space<vmem>>, vector<16x128xf32>
    %cst_57 = arith.constant dense<0.000000e+00> : vector<8x128xf32>
    %124 = tpu.matmul %122, %123, %cst_57 {dimension_numbers = #tpu.dot_dimension_numbers<[1], [0], [0], [1], [0, 0, 1, 1], [], []>, precision = #tpu.contract_precision<fp32>} : vector<8x16xf32>, vector<16x128xf32>, vector<8x128xf32> -> vector<8x128xf32>
    %c0_58 = arith.constant 0 : index
    %c0_59 = arith.constant 0 : index
    %125 = vector.load %arg12[%c0_58, %c0_59] : memref<8x128xf32, #tpu.memory_space<vmem>>, vector<8x128xf32>
    tpu.vector_store %arg12[%c0_58, %c0_59], %124 {strides = array<i32>} : memref<8x128xf32, #tpu.memory_space<vmem>>, vector<8x128xf32>,
    return
  }
  func.func @transform_0(%arg0: i32) -> (i32, i32) {
    %c0_i32 = arith.constant 0 : i32
    %c0_i32_0 = arith.constant 0 : i32
    return %arg0, %c0_i32 : i32, i32
  }
  func.func @transform_1(%arg0: i32) -> (i32, i32, i32) {
    %c0_i32 = arith.constant 0 : i32
    %c0_i32_0 = arith.constant 0 : i32
    %c0_i32_1 = arith.constant 0 : i32
    return %arg0, %c0_i32, %c0_i32_0 : i32, i32, i32
  }
  func.func @transform_2(%arg0: i32) -> (i32, i32) {
    %c0_i32 = arith.constant 0 : i32
    %c0_i32_0 = arith.constant 0 : i32
    %c0_i32_1 = arith.constant 0 : i32
    return %c0_i32, %c0_i32_0 : i32, i32
  }
  func.func @transform_3(%arg0: i32) -> (i32, i32) {
    %c0_i32 = arith.constant 0 : i32
    %c0_i32_0 = arith.constant 0 : i32
    %c0_i32_1 = arith.constant 0 : i32
    return %c0_i32, %c0_i32_0 : i32, i32
  }
  func.func @transform_4(%arg0: i32) -> (i32, i32) {
    %c0_i32 = arith.constant 0 : i32
    %c0_i32_0 = arith.constant 0 : i32
    %c0_i32_1 = arith.constant 0 : i32
    return %c0_i32, %c0_i32_0 : i32, i32
  }
  func.func @transform_5(%arg0: i32) -> (i32, i32) {
    %c0_i32 = arith.constant 0 : i32
    %c0_i32_0 = arith.constant 0 : i32
    %c0_i32_1 = arith.constant 0 : i32
    return %c0_i32, %c0_i32_0 : i32, i32
  }
  func.func @transform_6(%arg0: i32) -> (i32, i32, i32) {
    %c0_i32 = arith.constant 0 : i32
    %c0_i32_0 = arith.constant 0 : i32
    %c0_i32_1 = arith.constant 0 : i32
    %c0_i32_2 = arith.constant 0 : i32
    return %c0_i32, %c0_i32_0, %c0_i32_1 : i32, i32, i32
  }
  func.func @transform_7(%arg0: i32) -> (i32, i32, i32) {
    %c0_i32 = arith.constant 0 : i32
    %c0_i32_0 = arith.constant 0 : i32
    %c0_i32_1 = arith.constant 0 : i32
    %c0_i32_2 = arith.constant 0 : i32
    return %c0_i32, %c0_i32_0, %c0_i32_1 : i32, i32, i32
  }
  func.func @transform_8(%arg0: i32) -> (i32, i32) {
    %c0_i32 = arith.constant 0 : i32
    %c0_i32_0 = arith.constant 0 : i32
    %c0_i32_1 = arith.constant 0 : i32
    return %c0_i32, %c0_i32_0 : i32, i32
  }
  func.func @transform_9(%arg0: i32) -> (i32, i32) {
    %c0_i32 = arith.constant 0 : i32
    %c0_i32_0 = arith.constant 0 : i32
    %c0_i32_1 = arith.constant 0 : i32
    return %c0_i32, %c0_i32_0 : i32, i32
  }
  func.func @transform_10(%arg0: i32) -> (i32, i32) {
    %c0_i32 = arith.constant 0 : i32
    %c0_i32_0 = arith.constant 0 : i32
    %c0_i32_1 = arith.constant 0 : i32
    return %c0_i32, %c0_i32_0 : i32, i32
  }
  func.func @transform_11(%arg0: i32) -> (i32, i32) {
    %c0_i32 = arith.constant 0 : i32
    %c0_i32_0 = arith.constant 0 : i32
    return %arg0, %c0_i32 : i32, i32
  }
}

</mosaic_0001>

<llo_original>
// kernel: tpu_custom_call.1
$region0: #{tpu_custom_call.1}
  #allocation0 [shape = 'u32[]', space=smem, size = 0x4, offset = 0x4, fixed_abs, tag = 'smem constant byte address 0x4 - core index']
  #allocation1 [shape = 'u32[144,128]{1,0:T(1,128)}', space=vmem, size = 0x12000, scoped, tag = 'internal scratch']
  %s0 = inlined_call_operand.hbm [shape: f32[16,32], index: 0, kind: input, shape index: {}]
  %s1 = inlined_call_operand.hbm [shape: bf16[16,16,256], index: 1, kind: input, shape index: {}]
  %s2 = inlined_call_operand.hbm [shape: f32[32,128], index: 2, kind: input, shape index: {}]
  %s3 = inlined_call_operand.hbm [shape: f32[1,128], index: 3, kind: input, shape index: {}]
  %s4 = inlined_call_operand.hbm [shape: f32[128,256], index: 4, kind: input, shape index: {}]
  %s5 = inlined_call_operand.vmem [shape: f32[1,256], index: 5, kind: input, shape index: {}]
  %s6 = inlined_call_operand.hbm [shape: f32[3,1,16], index: 6, kind: input, shape index: {}]
  %s7 = inlined_call_operand.hbm [shape: f32[3,1,16], index: 7, kind: input, shape index: {}]
  %s8 = inlined_call_operand.vmem [shape: f32[48,768], index: 8, kind: input, shape index: {}]
  %s9 = inlined_call_operand.vmem [shape: f32[256,16], index: 9, kind: input, shape index: {}]
  %s10 = inlined_call_operand.hbm [shape: f32[16,128], index: 10, kind: input, shape index: {}]
  %s11 = inlined_call_operand.hbm [shape: f32[16,128], index: 11, kind: output, shape index: {}]
  %s12 = sld [smem:[#allocation0]]
  $region109: #{tpu_custom_call.1} parent=0
    _
  %s14 = ssub.s32 1, %s12
  %s15 = scalar_select 0, %s14, %s12
  $region1: #{tpu_custom_call.1} parent=0
    #allocation2 [shape = 'u8[8192]{0}', space=vmem, size = 0x2000, scoped, tag = 'input window, operand 0']
    #allocation3 [shape = 's32[2]{0}', space=sflag, size = 0x8, scoped, tag = 'scoped memory for tpu_custom_call.1']
    #allocation4 [shape = 's32[2]{0}', space=sflag, size = 0x8, scoped, tag = 'scoped memory for tpu_custom_call.1']
    #allocation5 [shape = 'u8[131072]{0}', space=vmem, size = 0x20000, scoped, tag = 'input window, operand 1']
    #allocation6 [shape = 's32[2]{0}', space=sflag, size = 0x8, scoped, tag = 'scoped memory for tpu_custom_call.1']
    #allocation7 [shape = 'u8[16384]{0}', space=vmem, size = 0x4000, scoped, tag = 'input window, operand 2, single buffered']
    #allocation8 [shape = 'u8[512]{0}', space=vmem, size = 0x400, scoped, tag = 'input window, operand 3, single buffered']
    #allocation9 [shape = 's32[1]{0}', space=sflag, size = 0x4, scoped, tag = 'scoped memory for tpu_custom_call.1']
    #allocation10 [shape = 'u8[131072]{0}', space=vmem, size = 0x20000, scoped, tag = 'input window, operand 4, single buffered']
    #allocation11 [shape = 'u8[1536]{0}', space=vmem, size = 0x800, scoped, tag = 'input window, operand 6, single buffered']
    #allocation12 [shape = 's32[1]{0}', space=sflag, size = 0x4, scoped, tag = 'scoped memory for tpu_custom_call.1']
    #allocation13 [shape = 'u8[1536]{0}', space=vmem, size = 0x800, scoped, tag = 'input window, operand 7, single buffered']
    #allocation14 [shape = 'u8[8192]{0}', space=vmem, size = 0x2000, scoped, tag = 'input window, operand 10, single buffered']
    #allocation15 [shape = 's32[1]{0}', space=sflag, size = 0x4, scoped, tag = 'scoped memory for tpu_custom_call.1']
    #allocation16 [shape = 'u8[8192]{0}', space=vmem, size = 0x2000, scoped, tag = 'output window, operand 0']
    %16 = vsyncpa [#allocation3], 0
    %s17 = scalar_lea.sflag [#allocation3], 1
    %18 = vsyncpa %s17, 0
    %19 = vsyncpa [#allocation6], 0
    %s20 = scalar_lea.sflag [#allocation6], 1
    %21 = vsyncpa %s20, 0
    %22 = vsyncpa [#allocation9], 0
    %23 = vsyncpa [#allocation12], 0
    %24 = vsyncpa [#allocation15], 0
    %25 = vsyncpa [#allocation4], 0
    %s26 = scalar_lea.sflag [#allocation4], 1
    %27 = vsyncpa %s26, 0
    loop: start=0, step=1, limit=4
    $region2: #{tpu_custom_call.1} parent=1 // loop_pre_header
      _
    $region3: #{tpu_custom_call.1} parent=1 // loop_header
      %s29 = sphi 0, %s33
      %p30 = scmp.ge.s32.totalorder %s29, 4
      %s39 = sphi 0, %s41
      %s42 = sphi 0, %s39
      %s43 = sphi 0, %s42
      %s59 = sphi 0, %s43
      %s65 = sphi 0, %s67
      %s68 = sphi 0, %s65
      %s69 = sphi 0, %s68
      %s85 = sphi 0, %s69
      %s89 = sphi 0, %s89
      %s91 = sphi 0, %s89
      %s92 = sphi 0, %s91
      %s106 = sphi 0, %s92
      %s110 = sphi 0, %s110
      %s112 = sphi 0, %s110
      %s113 = sphi 0, %s112
      %s127 = sphi 0, %s113
      %s131 = sphi 0, %s131
      %s133 = sphi 0, %s131
      %s134 = sphi 0, %s133
      %s148 = sphi 0, %s134
      %s152 = sphi 0, %s152
      %s154 = sphi 0, %s152
      %s155 = sphi 0, %s154
      %s169 = sphi 0, %s155
      %s173 = sphi 0, %s173
      %s175 = sphi 0, %s173
      %s176 = sphi 0, %s175
      %s190 = sphi 0, %s176
      %s194 = sphi 0, %s194
      %s196 = sphi 0, %s194
      %s197 = sphi 0, %s196
      %s211 = sphi 0, %s197
      %s215 = sphi 0, %s215
      %s217 = sphi 0, %s215
      %s218 = sphi 0, %s217
      %s232 = sphi 0, %s218
      %s236 = sphi 0, %s236
      %s238 = sphi 0, %s236
      %s239 = sphi 0, %s238
      %s253 = sphi 0, %s239
      %s257 = sphi 0, %s257
      %s259 = sphi 0, %s257
      %s260 = sphi 0, %s259
      %s274 = sphi 0, %s260
      %s280 = sphi 0, %s282
      %s283 = sphi 0, %s280
      %s284 = sphi 0, %s283
      %s300 = sphi 0, %s284
    $region4: #{tpu_custom_call.1} parent=1 // loop_header_branch
      %32 = sbr.rel (%p30) target = $region8
    $region5: #{tpu_custom_call.1} parent=1 // loop_body
      %s34 = ssub.s32 %s29, 1
      %s35 = ssub.s32 %s29, 2
      %s36 = sadd.s32 %s29, 1
      %s37 = ssub.s32 %s29, %s36
      %p38 = scmp.eq.s32.totalorder %s37, 0
      %s40 = sadd.s32 %s39, 1
      %s41 = scalar_select %p38, %s39, %s40
      %p44 = pneg %p38
      %p45 = scmp.eq.s32.totalorder %s29, 1
      %p46 = por %p44, %p45
      %p47 = scmp.ne.s32.totalorder %s39, %s42
      %p48 = scmp.eq.s32.totalorder %s29, 0
      %p49 = por %p47, %p48
      %p50 = scmp.ne.s32.totalorder %s39, %s42
      %p51 = scmp.eq.s32.totalorder %s34, 1
      %p52 = por %p50, %p51
      %p53 = scmp.ne.s32.totalorder %s42, %s43
      %p54 = scmp.eq.s32.totalorder %s34, 0
      %p55 = por %p53, %p54
      %p56 = scmp.ne.s32.totalorder %s42, %s43
      %p57 = scmp.eq.s32.totalorder %s35, 1
      %p58 = por %p56, %p57
      %p60 = scmp.ne.s32.totalorder %s43, %s59
      %p61 = scmp.eq.s32.totalorder %s35, 0
      %p62 = por %p60, %p61
      %s63 = ssub.s32 %s29, %s36
      %p64 = scmp.eq.s32.totalorder %s63, 0
      %s66 = sadd.s32 %s65, 1
      %s67 = scalar_select %p64, %s65, %s66
      %p70 = pneg %p64
      %p71 = scmp.eq.s32.totalorder %s29, 1
      %p72 = por %p70, %p71
      %p73 = scmp.ne.s32.totalorder %s65, %s68
      %p74 = scmp.eq.s32.totalorder %s29, 0
      %p75 = por %p73, %p74
      %p76 = scmp.ne.s32.totalorder %s65, %s68
      %p77 = scmp.eq.s32.totalorder %s34, 1
      %p78 = por %p76, %p77
      %p79 = scmp.ne.s32.totalorder %s68, %s69
      %p80 = scmp.eq.s32.totalorder %s34, 0
      %p81 = por %p79, %p80
      %p82 = scmp.ne.s32.totalorder %s68, %s69
      %p83 = scmp.eq.s32.totalorder %s35, 1
      %p84 = por %p82, %p83
      %p86 = scmp.ne.s32.totalorder %s69, %s85
      %p87 = scmp.eq.s32.totalorder %s35, 0
      %p88 = por %p86, %p87
      %s90 = sadd.s32 %s89, 1
      %p93 = scmp.eq.s32.totalorder %s29, 1
      %p94 = scmp.ne.s32.totalorder %s89, %s91
      %p95 = scmp.eq.s32.totalorder %s29, 0
      %p96 = por %p94, %p95
      %p97 = scmp.ne.s32.totalorder %s89, %s91
      %p98 = scmp.eq.s32.totalorder %s34, 1
      %p99 = por %p97, %p98
      %p100 = scmp.ne.s32.totalorder %s91, %s92
      %p101 = scmp.eq.s32.totalorder %s34, 0
      %p102 = por %p100, %p101
      %p103 = scmp.ne.s32.totalorder %s91, %s92
      %p104 = scmp.eq.s32.totalorder %s35, 1
      %p105 = por %p103, %p104
      %p107 = scmp.ne.s32.totalorder %s92, %s106
      %p108 = scmp.eq.s32.totalorder %s35, 0
      %p109 = por %p107, %p108
      %s111 = sadd.s32 %s110, 1
      %p114 = scmp.eq.s32.totalorder %s29, 1
      %p115 = scmp.ne.s32.totalorder %s110, %s112
      %p116 = scmp.eq.s32.totalorder %s29, 0
      %p117 = por %p115, %p116
      %p118 = scmp.ne.s32.totalorder %s110, %s112
      %p119 = scmp.eq.s32.totalorder %s34, 1
      %p120 = por %p118, %p119
      %p121 = scmp.ne.s32.totalorder %s112, %s113
      %p122 = scmp.eq.s32.totalorder %s34, 0
      %p123 = por %p121, %p122
      %p124 = scmp.ne.s32.totalorder %s112, %s113
      %p125 = scmp.eq.s32.totalorder %s35, 1
      %p126 = por %p124, %p125
      %p128 = scmp.ne.s32.totalorder %s113, %s127
      %p129 = scmp.eq.s32.totalorder %s35, 0
      %p130 = por %p128, %p129
      %s132 = sadd.s32 %s131, 1
      %p135 = scmp.eq.s32.totalorder %s29, 1
      %p136 = scmp.ne.s32.totalorder %s131, %s133
      %p137 = scmp.eq.s32.totalorder %s29, 0
      %p138 = por %p136, %p137
      %p139 = scmp.ne.s32.totalorder %s131, %s133
      %p140 = scmp.eq.s32.totalorder %s34, 1
      %p141 = por %p139, %p140
      %p142 = scmp.ne.s32.totalorder %s133, %s134
      %p143 = scmp.eq.s32.totalorder %s34, 0
      %p144 = por %p142, %p143
      %p145 = scmp.ne.s32.totalorder %s133, %s134
      %p146 = scmp.eq.s32.totalorder %s35, 1
      %p147 = por %p145, %p146
      %p149 = scmp.ne.s32.totalorder %s134, %s148
      %p150 = scmp.eq.s32.totalorder %s35, 0
      %p151 = por %p149, %p150
      %s153 = sadd.s32 %s152, 1
      %p156 = scmp.eq.s32.totalorder %s29, 1
      %p157 = scmp.ne.s32.totalorder %s152, %s154
      %p158 = scmp.eq.s32.totalorder %s29, 0
      %p159 = por %p157, %p158
      %p160 = scmp.ne.s32.totalorder %s152, %s154
      %p161 = scmp.eq.s32.totalorder %s34, 1
      %p162 = por %p160, %p161
      %p163 = scmp.ne.s32.totalorder %s154, %s155
      %p164 = scmp.eq.s32.totalorder %s34, 0
      %p165 = por %p163, %p164
      %p166 = scmp.ne.s32.totalorder %s154, %s155
      %p167 = scmp.eq.s32.totalorder %s35, 1
      %p168 = por %p166, %p167
      %p170 = scmp.ne.s32.totalorder %s155, %s169
      %p171 = scmp.eq.s32.totalorder %s35, 0
      %p172 = por %p170, %p171
      %s174 = sadd.s32 %s173, 1
      %p177 = scmp.eq.s32.totalorder %s29, 1
      %p178 = scmp.ne.s32.totalorder %s173, %s175
      %p179 = scmp.eq.s32.totalorder %s29, 0
      %p180 = por %p178, %p179
      %p181 = scmp.ne.s32.totalorder %s173, %s175
      %p182 = scmp.eq.s32.totalorder %s34, 1
      %p183 = por %p181, %p182
      %p184 = scmp.ne.s32.totalorder %s175, %s176
      %p185 = scmp.eq.s32.totalorder %s34, 0
      %p186 = por %p184, %p185
      %p187 = scmp.ne.s32.totalorder %s175, %s176
      %p188 = scmp.eq.s32.totalorder %s35, 1
      %p189 = por %p187, %p188
      %p191 = scmp.ne.s32.totalorder %s176, %s190
      %p192 = scmp.eq.s32.totalorder %s35, 0
      %p193 = por %p191, %p192
      %s195 = sadd.s32 %s194, 1
      %p198 = scmp.eq.s32.totalorder %s29, 1
      %p199 = scmp.ne.s32.totalorder %s194, %s196
      %p200 = scmp.eq.s32.totalorder %s29, 0
      %p201 = por %p199, %p200
      %p202 = scmp.ne.s32.totalorder %s194, %s196
      %p203 = scmp.eq.s32.totalorder %s34, 1
      %p204 = por %p202, %p203
      %p205 = scmp.ne.s32.totalorder %s196, %s197
      %p206 = scmp.eq.s32.totalorder %s34, 0
      %p207 = por %p205, %p206
      %p208 = scmp.ne.s32.totalorder %s196, %s197
      %p209 = scmp.eq.s32.totalorder %s35, 1
      %p210 = por %p208, %p209
      %p212 = scmp.ne.s32.totalorder %s197, %s211
      %p213 = scmp.eq.s32.totalorder %s35, 0
      %p214 = por %p212, %p213
      %s216 = sadd.s32 %s215, 1
      %p219 = scmp.eq.s32.totalorder %s29, 1
      %p220 = scmp.ne.s32.totalorder %s215, %s217
      %p221 = scmp.eq.s32.totalorder %s29, 0
      %p222 = por %p220, %p221
      %p223 = scmp.ne.s32.totalorder %s215, %s217
      %p224 = scmp.eq.s32.totalorder %s34, 1
      %p225 = por %p223, %p224
      %p226 = scmp.ne.s32.totalorder %s217, %s218
      %p227 = scmp.eq.s32.totalorder %s34, 0
      %p228 = por %p226, %p227
      %p229 = scmp.ne.s32.totalorder %s217, %s218
      %p230 = scmp.eq.s32.totalorder %s35, 1
      %p231 = por %p229, %p230
      %p233 = scmp.ne.s32.totalorder %s218, %s232
      %p234 = scmp.eq.s32.totalorder %s35, 0
      %p235 = por %p233, %p234
      %s237 = sadd.s32 %s236, 1
      %p240 = scmp.eq.s32.totalorder %s29, 1
      %p241 = scmp.ne.s32.totalorder %s236, %s238
      %p242 = scmp.eq.s32.totalorder %s29, 0
      %p243 = por %p241, %p242
      %p244 = scmp.ne.s32.totalorder %s236, %s238
      %p245 = scmp.eq.s32.totalorder %s34, 1
      %p246 = por %p244, %p245
      %p247 = scmp.ne.s32.totalorder %s238, %s239
      %p248 = scmp.eq.s32.totalorder %s34, 0
      %p249 = por %p247, %p248
      %p250 = scmp.ne.s32.totalorder %s238, %s239
      %p251 = scmp.eq.s32.totalorder %s35, 1
      %p252 = por %p250, %p251
      %p254 = scmp.ne.s32.totalorder %s239, %s253
      %p255 = scmp.eq.s32.totalorder %s35, 0
      %p256 = por %p254, %p255
      %s258 = sadd.s32 %s257, 1
      %p261 = scmp.eq.s32.totalorder %s29, 1
      %p262 = scmp.ne.s32.totalorder %s257, %s259
      %p263 = scmp.eq.s32.totalorder %s29, 0
      %p264 = por %p262, %p263
      %p265 = scmp.ne.s32.totalorder %s257, %s259
      %p266 = scmp.eq.s32.totalorder %s34, 1
      %p267 = por %p265, %p266
      %p268 = scmp.ne.s32.totalorder %s259, %s260
      %p269 = scmp.eq.s32.totalorder %s34, 0
      %p270 = por %p268, %p269
      %p271 = scmp.ne.s32.totalorder %s259, %s260
      %p272 = scmp.eq.s32.totalorder %s35, 1
      %p273 = por %p271, %p272
      %p275 = scmp.ne.s32.totalorder %s260, %s274
      %p276 = scmp.eq.s32.totalorder %s35, 0
      %p277 = por %p275, %p276
      %s278 = ssub.s32 %s29, %s36
      %p279 = scmp.eq.s32.totalorder %s278, 0
      %s281 = sadd.s32 %s280, 1
      %s282 = scalar_select %p279, %s280, %s281
      %p285 = pneg %p279
      %p286 = scmp.eq.s32.totalorder %s29, 1
      %p287 = por %p285, %p286
      %p288 = scmp.ne.s32.totalorder %s280, %s283
      %p289 = scmp.eq.s32.totalorder %s29, 0
      %p290 = por %p288, %p289
      %p291 = scmp.ne.s32.totalorder %s280, %s283
      %p292 = scmp.eq.s32.totalorder %s34, 1
      %p293 = por %p291, %p292
      %p294 = scmp.ne.s32.totalorder %s283, %s284
      %p295 = scmp.eq.s32.totalorder %s34, 0
      %p296 = por %p294, %p295
      %p297 = scmp.ne.s32.totalorder %s283, %s284
      %p298 = scmp.eq.s32.totalorder %s35, 1
      %p299 = por %p297, %p298
      %p301 = scmp.ne.s32.totalorder %s284, %s300
      %p302 = scmp.eq.s32.totalorder %s35, 0
      %p303 = por %p301, %p302
      %p304 = scmp.le.s32.totalorder 1, %s29
      %p305 = scmp.lt.s32.totalorder %s29, 3
      %p306 = pnand %p304, %p305
      %p307 = pneg %p306
      // Predicated region
      $region9: #{tpu_custom_call.1} parent=5 // pred_check
        _
      $region10: #{tpu_custom_call.1} parent=5 // pred_check_branch
        %309 = sbr.rel (%p306) target = $region12
      $region11: #{tpu_custom_call.1} parent=5 // pred_region
        %s310 = ssub.s32 %s29, 1
        // Predicated region
        $region13: #{tpu_custom_call.1} parent=11 // pred_check
          %p311 = pneg %p102
        $region14: #{tpu_custom_call.1} parent=11 // pred_check_branch
          %313 = sbr.rel (%p311) target = $region16
        $region15: #{tpu_custom_call.1} parent=11 // pred_region
          %s315 = ssub.s32 512, 512
          %316 = vsyncadd [#allocation6], %s315
          %s317 = sshll.u32 [#allocation7], 4
          %s318 = int_to_ptr.vmem [resolvable:$true] %s317
          %323 = dma.hbm_to_vmem [thread:$0]  %s2, 512, %s318, [#allocation6], 128, 128, 8
        $region16: #{tpu_custom_call.1} parent=11 // pred_fallthru
          _
        // Predicated region
        $region17: #{tpu_custom_call.1} parent=11 // pred_check
          %p324 = pneg %p123
        $region18: #{tpu_custom_call.1} parent=11 // pred_check_branch
          %326 = sbr.rel (%p324) target = $region20
        $region19: #{tpu_custom_call.1} parent=11 // pred_region
          %s328 = ssub.s32 16, 16
          %329 = vsyncadd [#allocation9], %s328
          %s331 = sshll.u32 [#allocation8], 4
          %s332 = int_to_ptr.vmem [resolvable:$true] %s331
          %334 = dma.hbm_to_vmem [thread:$0]  %s3, 16, %s332, [#allocation9]
        $region20: #{tpu_custom_call.1} parent=11 // pred_fallthru
          _
        // Predicated region
        $region21: #{tpu_custom_call.1} parent=11 // pred_check
          %p335 = pneg %p144
        $region22: #{tpu_custom_call.1} parent=11 // pred_check_branch
          %337 = sbr.rel (%p335) target = $region24
        $region23: #{tpu_custom_call.1} parent=11 // pred_region
          %s339 = ssub.s32 4096, 4096
          %340 = vsyncadd [#allocation9], %s339
          %s341 = sshll.u32 [#allocation10], 4
          %s342 = int_to_ptr.vmem [resolvable:$true] %s341
          %347 = dma.hbm_to_vmem [thread:$0]  %s4, 4096, %s342, [#allocation9], 256, 256, 16
        $region24: #{tpu_custom_call.1} parent=11 // pred_fallthru
          _
        // Predicated region
        $region25: #{tpu_custom_call.1} parent=11 // pred_check
          %p348 = pneg %p165
        $region26: #{tpu_custom_call.1} parent=11 // pred_check_branch
          %350 = sbr.rel (%p348) target = $region28
        $region27: #{tpu_custom_call.1} parent=11 // pred_region
          _
        $region28: #{tpu_custom_call.1} parent=11 // pred_fallthru
          _
        // Predicated region
        $region29: #{tpu_custom_call.1} parent=11 // pred_check
          %p351 = pneg %p186
        $region30: #{tpu_custom_call.1} parent=11 // pred_check_branch
          %353 = sbr.rel (%p351) target = $region32
        $region31: #{tpu_custom_call.1} parent=11 // pred_region
          %s355 = ssub.s32 48, 48
          %356 = vsyncadd [#allocation12], %s355
          %s357 = sshll.u32 [#allocation11], 4
          %s358 = int_to_ptr.vmem [resolvable:$true] %s357
          %363 = dma.hbm_to_vmem [thread:$0]  %s6, 48, %s358, [#allocation12], 16, 16, 1
        $region32: #{tpu_custom_call.1} parent=11 // pred_fallthru
          _
        // Predicated region
        $region33: #{tpu_custom_call.1} parent=11 // pred_check
          %p364 = pneg %p207
        $region34: #{tpu_custom_call.1} parent=11 // pred_check_branch
          %366 = sbr.rel (%p364) target = $region36
        $region35: #{tpu_custom_call.1} parent=11 // pred_region
          %s368 = ssub.s32 48, 48
          %369 = vsyncadd [#allocation12], %s368
          %s370 = sshll.u32 [#allocation13], 4
          %s371 = int_to_ptr.vmem [resolvable:$true] %s370
          %376 = dma.hbm_to_vmem [thread:$0]  %s7, 48, %s371, [#allocation12], 16, 16, 1
        $region36: #{tpu_custom_call.1} parent=11 // pred_fallthru
          _
        // Predicated region
        $region37: #{tpu_custom_call.1} parent=11 // pred_check
          %p377 = pneg %p228
        $region38: #{tpu_custom_call.1} parent=11 // pred_check_branch
          %379 = sbr.rel (%p377) target = $region40
        $region39: #{tpu_custom_call.1} parent=11 // pred_region
          _
        $region40: #{tpu_custom_call.1} parent=11 // pred_fallthru
          _
        // Predicated region
        $region41: #{tpu_custom_call.1} parent=11 // pred_check
          %p380 = pneg %p249
        $region42: #{tpu_custom_call.1} parent=11 // pred_check_branch
          %382 = sbr.rel (%p380) target = $region44
        $region43: #{tpu_custom_call.1} parent=11 // pred_region
          _
        $region44: #{tpu_custom_call.1} parent=11 // pred_fallthru
          _
        // Predicated region
        $region45: #{tpu_custom_call.1} parent=11 // pred_check
          %p383 = pneg %p270
        $region46: #{tpu_custom_call.1} parent=11 // pred_check_branch
          %385 = sbr.rel (%p383) target = $region48
        $region47: #{tpu_custom_call.1} parent=11 // pred_region
          %s387 = ssub.s32 256, 256
          %388 = vsyncadd [#allocation15], %s387
          %s389 = sshll.u32 [#allocation14], 4
          %s390 = int_to_ptr.vmem [resolvable:$true] %s389
          %395 = dma.hbm_to_vmem [thread:$0]  %s10, 256, %s390, [#allocation15], 128, 128, 8
        $region48: #{tpu_custom_call.1} parent=11 // pred_fallthru
          _
      $region12: #{tpu_custom_call.1} parent=5 // pred_fallthru
        _
      %p396 = scmp.lt.s32.totalorder %s29, 2
      // Predicated region
      $region49: #{tpu_custom_call.1} parent=5 // pred_check
        %p397 = pneg %p396
      $region50: #{tpu_custom_call.1} parent=5 // pred_check_branch
        %399 = sbr.rel (%p397) target = $region52
      $region51: #{tpu_custom_call.1} parent=5 // pred_region
        // Predicated region
        $region53: #{tpu_custom_call.1} parent=51 // pred_check
          %p400 = pneg %p49
        $region54: #{tpu_custom_call.1} parent=51 // pred_check_branch
          %402 = sbr.rel (%p400) target = $region56
        $region55: #{tpu_custom_call.1} parent=51 // pred_region
          %s403 = sand.u32 %s39, 1
          %s404 = scalar_lea.sflag [#allocation3], %s403
          %s405 = sand.u32 %s39, 1
          %s406 = smul.addr %s405, 8
          %s407 = scalar_lea.vmem [#allocation2], %s406
          %s409 = ssub.s32 128, 128
          %410 = vsyncadd %s404, %s409
          %s411 = smul.addr %s29, 128
          %s412 = scalar_lea.hbm %s0, %s411
          %s414 = sshll.u32 %s407, 4
          %s415 = int_to_ptr.vmem [resolvable:$true] %s414
          %417 = dma.hbm_to_vmem [thread:$0]  %s412, 128, %s415, %s404
        $region56: #{tpu_custom_call.1} parent=51 // pred_fallthru
          _
        // Predicated region
        $region57: #{tpu_custom_call.1} parent=51 // pred_check
          %p418 = pneg %p75
        $region58: #{tpu_custom_call.1} parent=51 // pred_check_branch
          %420 = sbr.rel (%p418) target = $region60
        $region59: #{tpu_custom_call.1} parent=51 // pred_region
          %s421 = sand.u32 %s29, 1
          %s422 = scalar_lea.sflag [#allocation6], %s421
          %s423 = sand.u32 %s65, 1
          %s424 = smul.addr %s423, 128
          %s425 = scalar_lea.vmem [#allocation5], %s424
          %s426 = smul.u32 8, %s29
          %s428 = ssub.s32 2048, 2048
          %429 = vsyncadd %s422, %s428
          %s430 = smul.addr %s426, 4
          %s431 = smul.addr %s430, 64
          %s432 = scalar_lea.hbm %s1, %s431
          %s433 = sshll.u32 %s425, 4
          %s434 = int_to_ptr.vmem [resolvable:$true] %s433
          %439 = dma.hbm_to_vmem [thread:$0]  %s432, 2048, %s434, %s422, 128, 128, 8
        $region60: #{tpu_custom_call.1} parent=51 // pred_fallthru
          _
      $region52: #{tpu_custom_call.1} parent=5 // pred_fallthru
        _
      %p440 = scmp.le.s32.totalorder 1, %s29
      %p441 = scmp.lt.s32.totalorder %s29, 3
      %p442 = pnand %p440, %p441
      %p443 = pneg %p442
      // Predicated region
      $region61: #{tpu_custom_call.1} parent=5 // pred_check
        _
      $region62: #{tpu_custom_call.1} parent=5 // pred_check_branch
        %445 = sbr.rel (%p442) target = $region64
      $region63: #{tpu_custom_call.1} parent=5 // pred_region
        %s446 = ssub.s32 %s29, 1
        %s447 = sand.u32 %s42, 1
        %s448 = scalar_lea.sflag [#allocation3], %s447
        %s449 = sand.u32 %s42, 1
        %s450 = smul.addr %s449, 8
        %s451 = scalar_lea.vmem [#allocation2], %s450
        // Predicated region
        $region65: #{tpu_custom_call.1} parent=63 // pred_check
          %p452 = pneg %p55
        $region66: #{tpu_custom_call.1} parent=63 // pred_check_branch
          %454 = sbr.rel (%p452) target = $region68
        $region67: #{tpu_custom_call.1} parent=63 // pred_region
          %455 = dma.done %s448, 128
        $region68: #{tpu_custom_call.1} parent=63 // pred_fallthru
          _
        %s456 = sand.u32 %s34, 1
        %s457 = scalar_lea.sflag [#allocation6], %s456
        %s458 = sand.u32 %s68, 1
        %s459 = smul.addr %s458, 128
        %s460 = scalar_lea.vmem [#allocation5], %s459
        // Predicated region
        $region69: #{tpu_custom_call.1} parent=63 // pred_check
          %p461 = pneg %p81
        $region70: #{tpu_custom_call.1} parent=63 // pred_check_branch
          %463 = sbr.rel (%p461) target = $region72
        $region71: #{tpu_custom_call.1} parent=63 // pred_region
          %464 = dma.done %s457, 2048
        $region72: #{tpu_custom_call.1} parent=63 // pred_fallthru
          _
        // Predicated region
        $region73: #{tpu_custom_call.1} parent=63 // pred_check
          %p465 = pneg %p102
        $region74: #{tpu_custom_call.1} parent=63 // pred_check_branch
          %467 = sbr.rel (%p465) target = $region76
        $region75: #{tpu_custom_call.1} parent=63 // pred_region
          %468 = dma.done [#allocation6], 512
        $region76: #{tpu_custom_call.1} parent=63 // pred_fallthru
          _
        // Predicated region
        $region77: #{tpu_custom_call.1} parent=63 // pred_check
          %p469 = pneg %p123
        $region78: #{tpu_custom_call.1} parent=63 // pred_check_branch
          %471 = sbr.rel (%p469) target = $region80
        $region79: #{tpu_custom_call.1} parent=63 // pred_region
          %472 = dma.done [#allocation9], 16
        $region80: #{tpu_custom_call.1} parent=63 // pred_fallthru
          _
        // Predicated region
        $region81: #{tpu_custom_call.1} parent=63 // pred_check
          %p473 = pneg %p144
        $region82: #{tpu_custom_call.1} parent=63 // pred_check_branch
          %475 = sbr.rel (%p473) target = $region84
        $region83: #{tpu_custom_call.1} parent=63 // pred_region
          %476 = dma.done [#allocation9], 4096
        $region84: #{tpu_custom_call.1} parent=63 // pred_fallthru
          _
        // Predicated region
        $region85: #{tpu_custom_call.1} parent=63 // pred_check
          %p477 = pneg %p186
        $region86: #{tpu_custom_call.1} parent=63 // pred_check_branch
          %479 = sbr.rel (%p477) target = $region88
        $region87: #{tpu_custom_call.1} parent=63 // pred_region
          %480 = dma.done [#allocation12], 48
        $region88: #{tpu_custom_call.1} parent=63 // pred_fallthru
          _
        // Predicated region
        $region89: #{tpu_custom_call.1} parent=63 // pred_check
          %p481 = pneg %p207
        $region90: #{tpu_custom_call.1} parent=63 // pred_check_branch
          %483 = sbr.rel (%p481) target = $region92
        $region91: #{tpu_custom_call.1} parent=63 // pred_region
          %484 = dma.done [#allocation12], 48
        $region92: #{tpu_custom_call.1} parent=63 // pred_fallthru
          _
        // Predicated region
        $region93: #{tpu_custom_call.1} parent=63 // pred_check
          %p485 = pneg %p270
        $region94: #{tpu_custom_call.1} parent=63 // pred_check_branch
          %487 = sbr.rel (%p485) target = $region96
        $region95: #{tpu_custom_call.1} parent=63 // pred_region
          %488 = dma.done [#allocation15], 256
        $region96: #{tpu_custom_call.1} parent=63 // pred_fallthru
          _
        %s489 = sand.u32 %s42, 1
        %s490 = scalar_lea.sflag [#allocation3], %s489
        %s491 = sand.u32 %s42, 1
        %s492 = smul.addr %s491, 8
        %s493 = scalar_lea.vmem [#allocation2], %s492
        %p494 = pneg %p55
        %p495 = pneg %p52
        %s496 = sand.u32 %s34, 1
        %s497 = scalar_lea.sflag [#allocation6], %s496
        %s498 = sand.u32 %s68, 1
        %s499 = smul.addr %s498, 128
        %s500 = scalar_lea.vmem [#allocation5], %s499
        %p501 = pneg %p81
        %p502 = pneg %p78
        %p503 = pneg %p102
        %p504 = pneg %p99
        %p505 = pneg %p123
        %p506 = pneg %p120
        %p507 = pneg %p144
        %p508 = pneg %p141
        %p509 = pneg %p165
        %p510 = pneg %p162
        %p511 = pneg %p186
        %p512 = pneg %p183
        %p513 = pneg %p207
        %p514 = pneg %p204
        %p515 = pneg %p228
        %p516 = pneg %p225
        %p517 = pneg %p249
        %p518 = pneg %p246
        %p519 = pneg %p270
        %p520 = pneg %p267
        %p521 = pneg %p296
        %p522 = pneg %p293
        %s523 = sand.u32 %s283, 1
        %s524 = scalar_lea.sflag [#allocation4], %s523
        %s525 = sand.u32 %s283, 1
        %s526 = smul.addr %s525, 8
        %s527 = scalar_lea.vmem [#allocation16], %s526
        %s528 = smul.u32 8, %s34
        %v529 = vld [vmem:[%s451] sm:$0xff]
        %v530 = vld [vmem:[#allocation7] sm:$0xff]
        %v531 = vld [vmem:[#allocation7 + $0x8] sm:$0xff]
        %v532 = vld [vmem:[#allocation7 + $0x10] sm:$0xff]
        %v533 = vld [vmem:[#allocation7 + $0x18] sm:$0xff]
        %v534 = vld [vmem:[#allocation8] sm:$0x1]
        %v536 = vlaneseq
        %v537 = vshrl.u32 %v536, 7
        %v538 = vsub.s32 0, %v537
        %v539 = vrot.slane %v534, %v538
        %vm541 = vcmask 261120
        %v543 = vsel %vm541, %v529, 0
        %545 = vmatprep.subr.mxu0 0.0
        %v546 = vand.u32 %v530, 4294901760
        %547 = vmatpush1.msra.mxu0 %v546
        %548 = vmatprep.subr.mxu0 0.0
        %v549 = vand.u32 %v531, 4294901760
        %550 = vmatpush1.msra.mxu0 %v549
        %551 = vmatprep.subr.mxu0 0.0
        %v552 = vand.u32 %v532, 4294901760
        %553 = vmatpush1.msra.mxu0 %v552
        %554 = vmatprep.subr.mxu0 0.0
        %v555 = vand.u32 %v533, 4294901760
        %556 = vmatpush1.msra.mxu0 %v555
        %557 = vmatprep.subr.mxu0 0.0
        %558 = vmatpush1.msra.mxu0 0.0
        %559 = vmatprep.subr.mxu0 0.0
        %560 = vmatpush1.msra.mxu0 0.0
        %561 = vmatprep.subr.mxu0 0.0
        %562 = vmatpush1.msra.mxu0 0.0
        %563 = vmatprep.subr.mxu0 0.0
        %564 = vmatpush1.msra.mxu0 0.0
        %565 = vmatprep.subr.mxu0 0.0
        %566 = vmatpush1.msra.mxu0 0.0
        %567 = vmatprep.subr.mxu0 0.0
        %568 = vmatpush1.msra.mxu0 0.0
        %569 = vmatprep.subr.mxu0 0.0
        %570 = vmatpush1.msra.mxu0 0.0
        %571 = vmatprep.subr.mxu0 0.0
        %572 = vmatpush1.msra.mxu0 0.0
        %573 = vmatprep.subr.mxu0 0.0
        %574 = vmatpush1.msra.mxu0 0.0
        %575 = vmatprep.subr.mxu0 0.0
        %576 = vmatpush1.msra.mxu0 0.0
        %577 = vmatprep.subr.mxu0 0.0
        %578 = vmatpush1.msra.mxu0 0.0
        %579 = vmatprep.subr.mxu0 0.0
        %580 = vmatpush1.msra.mxu0 0.0
        %581 = vmatprep.subr.mxu0 0.0
        %582 = vmatpush1.msra.mxu0 0.0
        %583 = vmatprep.subr.mxu0 0.0
        %584 = vmatpush1.msra.mxu0 0.0
        %585 = vmatprep.subr.mxu0 0.0
        %586 = vmatpush1.msra.mxu0 0.0
        %587 = vmatprep.subr.mxu0 0.0
        %588 = vmatpush1.msra.mxu0 0.0
        %589 = vmatprep.subr.mxu0 0.0
        %590 = vmatpush1.msra.mxu0 0.0
        %591 = vmatprep.subr.mxu0 0.0
        %592 = vmatpush1.msra.mxu0 0.0
        %593 = vmatprep.subr.mxu0 0.0
        %594 = vmatpush1.msra.mxu0 0.0
        %595 = vmatprep.subr.mxu0 0.0
        %596 = vmatpush1.msra.mxu0 0.0
        %597 = vmatprep.subr.mxu0 0.0
        %598 = vmatpush1.msra.mxu0 0.0
        %599 = vmatprep.subr.mxu0 0.0
        %600 = vmatpush1.msra.mxu0 0.0
        %601 = vmatprep.subr.mxu0 0.0
        %602 = vmatpush1.msra.mxu0 0.0
        %603 = vmatprep.subr.mxu0 0.0
        %604 = vmatpush1.msra.mxu0 0.0
        %605 = vmatprep.subr.mxu0 0.0
        %606 = vmatpush1.msra.mxu0 0.0
        %607 = vmatprep.subr.mxu0 0.0
        %608 = vmatpush1.msra.mxu0 0.0
        %609 = vmatprep.subr.mxu0 0.0
        %610 = vmatpush1.msra.mxu0 0.0
        %611 = vmatprep.subr.mxu0 0.0
        %612 = vmatpush1.msra.mxu0 0.0
        %613 = vmatprep.mubr.f32.mxu0 0.0
        %v614 = vand.u32 %v543, 4294901760
        %v615 = vsub.f32 %v543, %v614
        %v616 = vand.u32 %v615, 4294901760
        %v617 = vsub.f32 %v615, %v616
        %v618 = vand.u32 %v617, 4294901760
        %619 = vmatmul.mubr.f32.gmra.mrb[0].mxu0 %v618
        %v620 = vpop.f32.mrb[0].mxu0
        %v621 = vadd.f32 %v539, %v620
        %v622 = vpop.f32.mrb[0].mxu0
        %623 = vdwg.mxu0
        %624 = vmatprep.subr.mxu0 0.0
        %v625 = vand.u32 %v530, 4294901760
        %v626 = vsub.f32 %v530, %v625
        %v627 = vand.u32 %v626, 4294901760
        %v628 = vsub.f32 %v626, %v627
        %v629 = vand.u32 %v628, 4294901760
        %630 = vmatpush1.msra.mxu0 %v629
        %631 = vmatprep.subr.mxu0 0.0
        %v632 = vand.u32 %v531, 4294901760
        %v633 = vsub.f32 %v531, %v632
        %v634 = vand.u32 %v633, 4294901760
        %v635 = vsub.f32 %v633, %v634
        %v636 = vand.u32 %v635, 4294901760
        %637 = vmatpush1.msra.mxu0 %v636
        %638 = vmatprep.subr.mxu0 0.0
        %v639 = vand.u32 %v532, 4294901760
        %v640 = vsub.f32 %v532, %v639
        %v641 = vand.u32 %v640, 4294901760
        %v642 = vsub.f32 %v640, %v641
        %v643 = vand.u32 %v642, 4294901760
        %644 = vmatpush1.msra.mxu0 %v643
        %645 = vmatprep.subr.mxu0 0.0
        %v646 = vand.u32 %v533, 4294901760
        %v647 = vsub.f32 %v533, %v646
        %v648 = vand.u32 %v647, 4294901760
        %v649 = vsub.f32 %v647, %v648
        %v650 = vand.u32 %v649, 4294901760
        %651 = vmatpush1.msra.mxu0 %v650
        %652 = vmatprep.subr.mxu0 0.0
        %653 = vmatpush1.msra.mxu0 0.0
        %654 = vmatprep.subr.mxu0 0.0
        %655 = vmatpush1.msra.mxu0 0.0
        %656 = vmatprep.subr.mxu0 0.0
        %657 = vmatpush1.msra.mxu0 0.0
        %658 = vmatprep.subr.mxu0 0.0
        %659 = vmatpush1.msra.mxu0 0.0
        %660 = vmatprep.subr.mxu0 0.0
        %661 = vmatpush1.msra.mxu0 0.0
        %662 = vmatprep.subr.mxu0 0.0
        %663 = vmatpush1.msra.mxu0 0.0
        %664 = vmatprep.subr.mxu0 0.0
        %665 = vmatpush1.msra.mxu0 0.0
        %666 = vmatprep.subr.mxu0 0.0
        %667 = vmatpush1.msra.mxu0 0.0
        %668 = vmatprep.subr.mxu0 0.0
        %669 = vmatpush1.msra.mxu0 0.0
        %670 = vmatprep.subr.mxu0 0.0
        %671 = vmatpush1.msra.mxu0 0.0
        %672 = vmatprep.subr.mxu0 0.0
        %673 = vmatpush1.msra.mxu0 0.0
        %674 = vmatprep.subr.mxu0 0.0
        %675 = vmatpush1.msra.mxu0 0.0
        %676 = vmatprep.subr.mxu0 0.0
        %677 = vmatpush1.msra.mxu0 0.0
        %678 = vmatprep.subr.mxu0 0.0
        %679 = vmatpush1.msra.mxu0 0.0
        %680 = vmatprep.subr.mxu0 0.0
        %681 = vmatpush1.msra.mxu0 0.0
        %682 = vmatprep.subr.mxu0 0.0
        %683 = vmatpush1.msra.mxu0 0.0
        %684 = vmatprep.subr.mxu0 0.0
        %685 = vmatpush1.msra.mxu0 0.0
        %686 = vmatprep.subr.mxu0 0.0
        %687 = vmatpush1.msra.mxu0 0.0
        %688 = vmatprep.subr.mxu0 0.0
        %689 = vmatpush1.msra.mxu0 0.0
        %690 = vmatprep.subr.mxu0 0.0
        %691 = vmatpush1.msra.mxu0 0.0
        %692 = vmatprep.subr.mxu0 0.0
        %693 = vmatpush1.msra.mxu0 0.0
        %694 = vmatprep.subr.mxu0 0.0
        %695 = vmatpush1.msra.mxu0 0.0
        %696 = vmatprep.subr.mxu0 0.0
        %697 = vmatpush1.msra.mxu0 0.0
        %698 = vmatprep.subr.mxu0 0.0
        %699 = vmatpush1.msra.mxu0 0.0
        %700 = vmatprep.subr.mxu0 0.0
        %701 = vmatpush1.msra.mxu0 0.0
        %702 = vmatprep.subr.mxu0 0.0
        %703 = vmatpush1.msra.mxu0 0.0
        %704 = vmatprep.subr.mxu0 0.0
        %705 = vmatpush1.msra.mxu0 0.0
        %706 = vmatprep.subr.mxu0 0.0
        %707 = vmatpush1.msra.mxu0 0.0
        %708 = vmatprep.mubr.f32.mxu0 0.0
        %v709 = vand.u32 %v543, 4294901760
        %710 = vmatmul.mubr.f32.gmra.mrb[0].mxu0 %v709
        %v711 = vpop.f32.mrb[0].mxu0
        %v712 = vadd.f32 %v621, %v711
        %v713 = vpop.f32.mrb[0].mxu0
        %714 = vdwg.mxu0
        %715 = vmatprep.subr.mxu0 0.0
        %v716 = vand.u32 %v530, 4294901760
        %v717 = vsub.f32 %v530, %v716
        %718 = vmatpush1.msra.mxu0 %v717
        %719 = vmatprep.subr.mxu0 0.0
        %v720 = vand.u32 %v531, 4294901760
        %v721 = vsub.f32 %v531, %v720
        %722 = vmatpush1.msra.mxu0 %v721
        %723 = vmatprep.subr.mxu0 0.0
        %v724 = vand.u32 %v532, 4294901760
        %v725 = vsub.f32 %v532, %v724
        %726 = vmatpush1.msra.mxu0 %v725
        %727 = vmatprep.subr.mxu0 0.0
        %v728 = vand.u32 %v533, 4294901760
        %v729 = vsub.f32 %v533, %v728
        %730 = vmatpush1.msra.mxu0 %v729
        %731 = vmatprep.subr.mxu0 0.0
        %732 = vmatpush1.msra.mxu0 0.0
        %733 = vmatprep.subr.mxu0 0.0
        %734 = vmatpush1.msra.mxu0 0.0
        %735 = vmatprep.subr.mxu0 0.0
        %736 = vmatpush1.msra.mxu0 0.0
        %737 = vmatprep.subr.mxu0 0.0
        %738 = vmatpush1.msra.mxu0 0.0
        %739 = vmatprep.subr.mxu0 0.0
        %740 = vmatpush1.msra.mxu0 0.0
        %741 = vmatprep.subr.mxu0 0.0
        %742 = vmatpush1.msra.mxu0 0.0
        %743 = vmatprep.subr.mxu0 0.0
        %744 = vmatpush1.msra.mxu0 0.0
        %745 = vmatprep.subr.mxu0 0.0
        %746 = vmatpush1.msra.mxu0 0.0
        %747 = vmatprep.subr.mxu0 0.0
        %748 = vmatpush1.msra.mxu0 0.0
        %749 = vmatprep.subr.mxu0 0.0
        %750 = vmatpush1.msra.mxu0 0.0
        %751 = vmatprep.subr.mxu0 0.0
        %752 = vmatpush1.msra.mxu0 0.0
        %753 = vmatprep.subr.mxu0 0.0
        %754 = vmatpush1.msra.mxu0 0.0
        %755 = vmatprep.subr.mxu0 0.0
        %756 = vmatpush1.msra.mxu0 0.0
        %757 = vmatprep.subr.mxu0 0.0
        %758 = vmatpush1.msra.mxu0 0.0
        %759 = vmatprep.subr.mxu0 0.0
        %760 = vmatpush1.msra.mxu0 0.0
        %761 = vmatprep.subr.mxu0 0.0
        %762 = vmatpush1.msra.mxu0 0.0
        %763 = vmatprep.subr.mxu0 0.0
        %764 = vmatpush1.msra.mxu0 0.0
        %765 = vmatprep.subr.mxu0 0.0
        %766 = vmatpush1.msra.mxu0 0.0
        %767 = vmatprep.subr.mxu0 0.0
        %768 = vmatpush1.msra.mxu0 0.0
        %769 = vmatprep.subr.mxu0 0.0
        %770 = vmatpush1.msra.mxu0 0.0
        %771 = vmatprep.subr.mxu0 0.0
        %772 = vmatpush1.msra.mxu0 0.0
        %773 = vmatprep.subr.mxu0 0.0
        %774 = vmatpush1.msra.mxu0 0.0
        %775 = vmatprep.subr.mxu0 0.0
        %776 = vmatpush1.msra.mxu0 0.0
        %777 = vmatprep.subr.mxu0 0.0
        %778 = vmatpush1.msra.mxu0 0.0
        %779 = vmatprep.subr.mxu0 0.0
        %780 = vmatpush1.msra.mxu0 0.0
        %781 = vmatprep.subr.mxu0 0.0
        %782 = vmatpush1.msra.mxu0 0.0
        %783 = vmatprep.subr.mxu0 0.0
        %784 = vmatpush1.msra.mxu0 0.0
        %785 = vmatprep.subr.mxu0 0.0
        %786 = vmatpush1.msra.mxu0 0.0
        %787 = vmatprep.mubr.f32.mxu0 0.0
        %v788 = vand.u32 %v543, 4294901760
        %v789 = vsub.f32 %v543, %v788
        %790 = vmatmul.mubr.f32.gmra.mrb[0].mxu0 %v789
        %v791 = vpop.f32.mrb[0].mxu0
        %v792 = vadd.f32 %v712, %v791
        %v793 = vpop.f32.mrb[0].mxu0
        %794 = vdwg.mxu0
        %795 = vmatprep.subr.mxu0 0.0
        %v796 = vand.u32 %v530, 4294901760
        %797 = vmatpush1.msra.mxu0 %v796
        %798 = vmatprep.subr.mxu0 0.0
        %v799 = vand.u32 %v531, 4294901760
        %800 = vmatpush1.msra.mxu0 %v799
        %801 = vmatprep.subr.mxu0 0.0
        %v802 = vand.u32 %v532, 4294901760
        %803 = vmatpush1.msra.mxu0 %v802
        %804 = vmatprep.subr.mxu0 0.0
        %v805 = vand.u32 %v533, 4294901760
        %806 = vmatpush1.msra.mxu0 %v805
        %807 = vmatprep.subr.mxu0 0.0
        %808 = vmatpush1.msra.mxu0 0.0
        %809 = vmatprep.subr.mxu0 0.0
        %810 = vmatpush1.msra.mxu0 0.0
        %811 = vmatprep.subr.mxu0 0.0
        %812 = vmatpush1.msra.mxu0 0.0
        %813 = vmatprep.subr.mxu0 0.0
        %814 = vmatpush1.msra.mxu0 0.0
        %815 = vmatprep.subr.mxu0 0.0
        %816 = vmatpush1.msra.mxu0 0.0
        %817 = vmatprep.subr.mxu0 0.0
        %818 = vmatpush1.msra.mxu0 0.0
        %819 = vmatprep.subr.mxu0 0.0
        %820 = vmatpush1.msra.mxu0 0.0
        %821 = vmatprep.subr.mxu0 0.0
        %822 = vmatpush1.msra.mxu0 0.0
        %823 = vmatprep.subr.mxu0 0.0
        %824 = vmatpush1.msra.mxu0 0.0
        %825 = vmatprep.subr.mxu0 0.0
        %826 = vmatpush1.msra.mxu0 0.0
        %827 = vmatprep.subr.mxu0 0.0
        %828 = vmatpush1.msra.mxu0 0.0
        %829 = vmatprep.subr.mxu0 0.0
        %830 = vmatpush1.msra.mxu0 0.0
        %831 = vmatprep.subr.mxu0 0.0
        %832 = vmatpush1.msra.mxu0 0.0
        %833 = vmatprep.subr.mxu0 0.0
        %834 = vmatpush1.msra.mxu0 0.0
        %835 = vmatprep.subr.mxu0 0.0
        %836 = vmatpush1.msra.mxu0 0.0
        %837 = vmatprep.subr.mxu0 0.0
        %838 = vmatpush1.msra.mxu0 0.0
        %839 = vmatprep.subr.mxu0 0.0
        %840 = vmatpush1.msra.mxu0 0.0
        %841 = vmatprep.subr.mxu0 0.0
        %842 = vmatpush1.msra.mxu0 0.0
        %843 = vmatprep.subr.mxu0 0.0
        %844 = vmatpush1.msra.mxu0 0.0
        %845 = vmatprep.subr.mxu0 0.0
        %846 = vmatpush1.msra.mxu0 0.0
        %847 = vmatprep.subr.mxu0 0.0
        %848 = vmatpush1.msra.mxu0 0.0
        %849 = vmatprep.subr.mxu0 0.0
        %850 = vmatpush1.msra.mxu0 0.0
        %851 = vmatprep.subr.mxu0 0.0
        %852 = vmatpush1.msra.mxu0 0.0
        %853 = vmatprep.subr.mxu0 0.0
        %854 = vmatpush1.msra.mxu0 0.0
        %855 = vmatprep.subr.mxu0 0.0
        %856 = vmatpush1.msra.mxu0 0.0
        %857 = vmatprep.subr.mxu0 0.0
        %858 = vmatpush1.msra.mxu0 0.0
        %859 = vmatprep.subr.mxu0 0.0
        %860 = vmatpush1.msra.mxu0 0.0
        %861 = vmatprep.subr.mxu0 0.0
        %862 = vmatpush1.msra.mxu0 0.0
        %863 = vmatprep.mubr.f32.mxu0 0.0
        %v864 = vand.u32 %v543, 4294901760
        %v865 = vsub.f32 %v543, %v864
        %v866 = vand.u32 %v865, 4294901760
        %867 = vmatmul.mubr.f32.gmra.mrb[0].mxu0 %v866
        %v868 = vpop.f32.mrb[0].mxu0
        %v869 = vadd.f32 %v792, %v868
        %v870 = vpop.f32.mrb[0].mxu0
        %871 = vdwg.mxu0
        %872 = vmatprep.subr.mxu0 0.0
        %v873 = vand.u32 %v530, 4294901760
        %v874 = vsub.f32 %v530, %v873
        %v875 = vand.u32 %v874, 4294901760
        %876 = vmatpush1.msra.mxu0 %v875
        %877 = vmatprep.subr.mxu0 0.0
        %v878 = vand.u32 %v531, 4294901760
        %v879 = vsub.f32 %v531, %v878
        %v880 = vand.u32 %v879, 4294901760
        %881 = vmatpush1.msra.mxu0 %v880
        %882 = vmatprep.subr.mxu0 0.0
        %v883 = vand.u32 %v532, 4294901760
        %v884 = vsub.f32 %v532, %v883
        %v885 = vand.u32 %v884, 4294901760
        %886 = vmatpush1.msra.mxu0 %v885
        %887 = vmatprep.subr.mxu0 0.0
        %v888 = vand.u32 %v533, 4294901760
        %v889 = vsub.f32 %v533, %v888
        %v890 = vand.u32 %v889, 4294901760
        %891 = vmatpush1.msra.mxu0 %v890
        %892 = vmatprep.subr.mxu0 0.0
        %893 = vmatpush1.msra.mxu0 0.0
        %894 = vmatprep.subr.mxu0 0.0
        %895 = vmatpush1.msra.mxu0 0.0
        %896 = vmatprep.subr.mxu0 0.0
        %897 = vmatpush1.msra.mxu0 0.0
        %898 = vmatprep.subr.mxu0 0.0
        %899 = vmatpush1.msra.mxu0 0.0
        %900 = vmatprep.subr.mxu0 0.0
        %901 = vmatpush1.msra.mxu0 0.0
        %902 = vmatprep.subr.mxu0 0.0
        %903 = vmatpush1.msra.mxu0 0.0
        %904 = vmatprep.subr.mxu0 0.0
        %905 = vmatpush1.msra.mxu0 0.0
        %906 = vmatprep.subr.mxu0 0.0
        %907 = vmatpush1.msra.mxu0 0.0
        %908 = vmatprep.subr.mxu0 0.0
        %909 = vmatpush1.msra.mxu0 0.0
        %910 = vmatprep.subr.mxu0 0.0
        %911 = vmatpush1.msra.mxu0 0.0
        %912 = vmatprep.subr.mxu0 0.0
        %913 = vmatpush1.msra.mxu0 0.0
        %914 = vmatprep.subr.mxu0 0.0
        %915 = vmatpush1.msra.mxu0 0.0
        %916 = vmatprep.subr.mxu0 0.0
        %917 = vmatpush1.msra.mxu0 0.0
        %918 = vmatprep.subr.mxu0 0.0
        %919 = vmatpush1.msra.mxu0 0.0
        %920 = vmatprep.subr.mxu0 0.0
        %921 = vmatpush1.msra.mxu0 0.0
        %922 = vmatprep.subr.mxu0 0.0
        %923 = vmatpush1.msra.mxu0 0.0
        %924 = vmatprep.subr.mxu0 0.0
        %925 = vmatpush1.msra.mxu0 0.0
        %926 = vmatprep.subr.mxu0 0.0
        %927 = vmatpush1.msra.mxu0 0.0
        %928 = vmatprep.subr.mxu0 0.0
        %929 = vmatpush1.msra.mxu0 0.0
        %930 = vmatprep.subr.mxu0 0.0
        %931 = vmatpush1.msra.mxu0 0.0
        %932 = vmatprep.subr.mxu0 0.0
        %933 = vmatpush1.msra.mxu0 0.0
        %934 = vmatprep.subr.mxu0 0.0
        %935 = vmatpush1.msra.mxu0 0.0
        %936 = vmatprep.subr.mxu0 0.0
        %937 = vmatpush1.msra.mxu0 0.0
        %938 = vmatprep.subr.mxu0 0.0
        %939 = vmatpush1.msra.mxu0 0.0
        %940 = vmatprep.subr.mxu0 0.0
        %941 = vmatpush1.msra.mxu0 0.0
        %942 = vmatprep.subr.mxu0 0.0
        %943 = vmatpush1.msra.mxu0 0.0
        %944 = vmatprep.subr.mxu0 0.0
        %945 = vmatpush1.msra.mxu0 0.0
        %946 = vmatprep.subr.mxu0 0.0
        %947 = vmatpush1.msra.mxu0 0.0
        %948 = vmatprep.mubr.f32.mxu0 0.0
        %v949 = vand.u32 %v543, 4294901760
        %950 = vmatmul.mubr.f32.gmra.mrb[0].mxu0 %v949
        %v951 = vpop.f32.mrb[0].mxu0
        %v952 = vadd.f32 %v869, %v951
        %v953 = vpop.f32.mrb[0].mxu0
        %954 = vdwg.mxu0
        %955 = vmatprep.subr.mxu0 0.0
        %v956 = vand.u32 %v530, 4294901760
        %957 = vmatpush1.msra.mxu0 %v956
        %958 = vmatprep.subr.mxu0 0.0
        %v959 = vand.u32 %v531, 4294901760
        %960 = vmatpush1.msra.mxu0 %v959
        %961 = vmatprep.subr.mxu0 0.0
        %v962 = vand.u32 %v532, 4294901760
        %963 = vmatpush1.msra.mxu0 %v962
        %964 = vmatprep.subr.mxu0 0.0
        %v965 = vand.u32 %v533, 4294901760
        %966 = vmatpush1.msra.mxu0 %v965
        %967 = vmatprep.subr.mxu0 0.0
        %968 = vmatpush1.msra.mxu0 0.0
        %969 = vmatprep.subr.mxu0 0.0
        %970 = vmatpush1.msra.mxu0 0.0
        %971 = vmatprep.subr.mxu0 0.0
        %972 = vmatpush1.msra.mxu0 0.0
        %973 = vmatprep.subr.mxu0 0.0
        %974 = vmatpush1.msra.mxu0 0.0
        %975 = vmatprep.subr.mxu0 0.0
        %976 = vmatpush1.msra.mxu0 0.0
        %977 = vmatprep.subr.mxu0 0.0
        %978 = vmatpush1.msra.mxu0 0.0
        %979 = vmatprep.subr.mxu0 0.0
        %980 = vmatpush1.msra.mxu0 0.0
        %981 = vmatprep.subr.mxu0 0.0
        %982 = vmatpush1.msra.mxu0 0.0
        %983 = vmatprep.subr.mxu0 0.0
        %984 = vmatpush1.msra.mxu0 0.0
        %985 = vmatprep.subr.mxu0 0.0
        %986 = vmatpush1.msra.mxu0 0.0
        %987 = vmatprep.subr.mxu0 0.0
        %988 = vmatpush1.msra.mxu0 0.0
        %989 = vmatprep.subr.mxu0 0.0
        %990 = vmatpush1.msra.mxu0 0.0
        %991 = vmatprep.subr.mxu0 0.0
        %992 = vmatpush1.msra.mxu0 0.0
        %993 = vmatprep.subr.mxu0 0.0
        %994 = vmatpush1.msra.mxu0 0.0
        %995 = vmatprep.subr.mxu0 0.0
        %996 = vmatpush1.msra.mxu0 0.0
        %997 = vmatprep.subr.mxu0 0.0
        %998 = vmatpush1.msra.mxu0 0.0
        %999 = vmatprep.subr.mxu0 0.0
        %1000 = vmatpush1.msra.mxu0 0.0
        %1001 = vmatprep.subr.mxu0 0.0
        %1002 = vmatpush1.msra.mxu0 0.0
        %1003 = vmatprep.subr.mxu0 0.0
        %1004 = vmatpush1.msra.mxu0 0.0
        %1005 = vmatprep.subr.mxu0 0.0
        %1006 = vmatpush1.msra.mxu0 0.0
        %1007 = vmatprep.subr.mxu0 0.0
        %1008 = vmatpush1.msra.mxu0 0.0
        %1009 = vmatprep.subr.mxu0 0.0
        %1010 = vmatpush1.msra.mxu0 0.0
        %1011 = vmatprep.subr.mxu0 0.0
        %1012 = vmatpush1.msra.mxu0 0.0
        %1013 = vmatprep.subr.mxu0 0.0
        %1014 = vmatpush1.msra.mxu0 0.0
        %1015 = vmatprep.subr.mxu0 0.0
        %1016 = vmatpush1.msra.mxu0 0.0
        %1017 = vmatprep.subr.mxu0 0.0
        %1018 = vmatpush1.msra.mxu0 0.0
        %1019 = vmatprep.subr.mxu0 0.0
        %1020 = vmatpush1.msra.mxu0 0.0
        %1021 = vmatprep.subr.mxu0 0.0
        %1022 = vmatpush1.msra.mxu0 0.0
        %1023 = vmatprep.mubr.f32.mxu0 0.0
        %v1024 = vand.u32 %v543, 4294901760
        %1025 = vmatmul.mubr.f32.gmra.mrb[0].mxu0 %v1024
        %v1026 = vpop.f32.mrb[0].mxu0
        %v1027 = vadd.f32 %v952, %v1026
        %v1028 = vpop.f32.mrb[0].mxu0
        %1029 = vdwg.mxu0
        %v1030 = vtanh.pop %v1027
        %v1031 = vld [vmem:[#allocation10] sm:$0xff]
        %v1032 = vld [vmem:[#allocation10 + $0x8] sm:$0xff]
        %v1033 = vld [vmem:[#allocation10 + $0x10] sm:$0xff]
        %v1034 = vld [vmem:[#allocation10 + $0x18] sm:$0xff]
        %v1035 = vld [vmem:[#allocation10 + $0x20] sm:$0xff]
        %v1036 = vld [vmem:[#allocation10 + $0x28] sm:$0xff]
        %v1037 = vld [vmem:[#allocation10 + $0x30] sm:$0xff]
        %v1038 = vld [vmem:[#allocation10 + $0x38] sm:$0xff]
        %v1039 = vld [vmem:[#allocation10 + $0x40] sm:$0xff]
        %v1040 = vld [vmem:[#allocation10 + $0x48] sm:$0xff]
        %v1041 = vld [vmem:[#allocation10 + $0x50] sm:$0xff]
        %v1042 = vld [vmem:[#allocation10 + $0x58] sm:$0xff]
        %v1043 = vld [vmem:[#allocation10 + $0x60] sm:$0xff]
        %v1044 = vld [vmem:[#allocation10 + $0x68] sm:$0xff]
        %v1045 = vld [vmem:[#allocation10 + $0x70] sm:$0xff]
        %v1046 = vld [vmem:[#allocation10 + $0x78] sm:$0xff]
        %v1047 = vld [vmem:[#allocation10 + $0x80] sm:$0xff]
        %v1048 = vld [vmem:[#allocation10 + $0x88] sm:$0xff]
        %v1049 = vld [vmem:[#allocation10 + $0x90] sm:$0xff]
        %v1050 = vld [vmem:[#allocation10 + $0x98] sm:$0xff]
        %v1051 = vld [vmem:[#allocation10 + $0xa0] sm:$0xff]
        %v1052 = vld [vmem:[#allocation10 + $0xa8] sm:$0xff]
        %v1053 = vld [vmem:[#allocation10 + $0xb0] sm:$0xff]
        %v1054 = vld [vmem:[#allocation10 + $0xb8] sm:$0xff]
        %v1055 = vld [vmem:[#allocation10 + $0xc0] sm:$0xff]
        %v1056 = vld [vmem:[#allocation10 + $0xc8] sm:$0xff]
        %v1057 = vld [vmem:[#allocation10 + $0xd0] sm:$0xff]
        %v1058 = vld [vmem:[#allocation10 + $0xd8] sm:$0xff]
        %v1059 = vld [vmem:[#allocation10 + $0xe0] sm:$0xff]
        %v1060 = vld [vmem:[#allocation10 + $0xe8] sm:$0xff]
        %v1061 = vld [vmem:[#allocation10 + $0xf0] sm:$0xff]
        %v1062 = vld [vmem:[#allocation10 + $0xf8] sm:$0xff]
        %v1063 = vld [vmem:[%s5] sm:$0x3]
        %v1065 = vlaneseq
        %v1066 = vshrl.u32 %v1065, 7
        %v1067 = vsub.s32 0, %v1066
        %v1068 = vrot.slane %v1063, %v1067
        %v1069 = vlaneseq
        %v1070 = vshrl.u32 %v1069, 7
        %v1071 = vsub.s32 1, %v1070
        %v1072 = vrot.slane %v1063, %v1071
        %v1075 = vand.u32 %v1032, 4294901760
        %1076 = vmatprep.subr.mxu0 %v1075
        %v1077 = vand.u32 %v1031, 4294901760
        %1078 = vmatpush1.msra.mxu0 %v1077
        %v1079 = vand.u32 %v1034, 4294901760
        %1080 = vmatprep.subr.mxu0 %v1079
        %v1081 = vand.u32 %v1033, 4294901760
        %1082 = vmatpush1.msra.mxu0 %v1081
        %v1083 = vand.u32 %v1036, 4294901760
        %1084 = vmatprep.subr.mxu0 %v1083
        %v1085 = vand.u32 %v1035, 4294901760
        %1086 = vmatpush1.msra.mxu0 %v1085
        %v1087 = vand.u32 %v1038, 4294901760
        %1088 = vmatprep.subr.mxu0 %v1087
        %v1089 = vand.u32 %v1037, 4294901760
        %1090 = vmatpush1.msra.mxu0 %v1089
        %v1091 = vand.u32 %v1040, 4294901760
        %1092 = vmatprep.subr.mxu0 %v1091
        %v1093 = vand.u32 %v1039, 4294901760
        %1094 = vmatpush1.msra.mxu0 %v1093
        %v1095 = vand.u32 %v1042, 4294901760
        %1096 = vmatprep.subr.mxu0 %v1095
        %v1097 = vand.u32 %v1041, 4294901760
        %1098 = vmatpush1.msra.mxu0 %v1097
        %v1099 = vand.u32 %v1044, 4294901760
        %1100 = vmatprep.subr.mxu0 %v1099
        %v1101 = vand.u32 %v1043, 4294901760
        %1102 = vmatpush1.msra.mxu0 %v1101
        %v1103 = vand.u32 %v1046, 4294901760
        %1104 = vmatprep.subr.mxu0 %v1103
        %v1105 = vand.u32 %v1045, 4294901760
        %1106 = vmatpush1.msra.mxu0 %v1105
        %v1107 = vand.u32 %v1048, 4294901760
        %1108 = vmatprep.subr.mxu0 %v1107
        %v1109 = vand.u32 %v1047, 4294901760
        %1110 = vmatpush1.msra.mxu0 %v1109
        %v1111 = vand.u32 %v1050, 4294901760
        %1112 = vmatprep.subr.mxu0 %v1111
        %v1113 = vand.u32 %v1049, 4294901760
        %1114 = vmatpush1.msra.mxu0 %v1113
        %v1115 = vand.u32 %v1052, 4294901760
        %1116 = vmatprep.subr.mxu0 %v1115
        %v1117 = vand.u32 %v1051, 4294901760
        %1118 = vmatpush1.msra.mxu0 %v1117
        %v1119 = vand.u32 %v1054, 4294901760
        %1120 = vmatprep.subr.mxu0 %v1119
        %v1121 = vand.u32 %v1053, 4294901760
        %1122 = vmatpush1.msra.mxu0 %v1121
        %v1123 = vand.u32 %v1056, 4294901760
        %1124 = vmatprep.subr.mxu0 %v1123
        %v1125 = vand.u32 %v1055, 4294901760
        %1126 = vmatpush1.msra.mxu0 %v1125
        %v1127 = vand.u32 %v1058, 4294901760
        %1128 = vmatprep.subr.mxu0 %v1127
        %v1129 = vand.u32 %v1057, 4294901760
        %1130 = vmatpush1.msra.mxu0 %v1129
        %v1131 = vand.u32 %v1060, 4294901760
        %1132 = vmatprep.subr.mxu0 %v1131
        %v1133 = vand.u32 %v1059, 4294901760
        %1134 = vmatpush1.msra.mxu0 %v1133
        %v1135 = vand.u32 %v1062, 4294901760
        %1136 = vmatprep.subr.mxu0 %v1135
        %v1137 = vand.u32 %v1061, 4294901760
        %1138 = vmatpush1.msra.mxu0 %v1137
        %1139 = vmatprep.subr.mxu0 0.0
        %1140 = vmatpush1.msra.mxu0 0.0
        %1141 = vmatprep.subr.mxu0 0.0
        %1142 = vmatpush1.msra.mxu0 0.0
        %1143 = vmatprep.subr.mxu0 0.0
        %1144 = vmatpush1.msra.mxu0 0.0
        %1145 = vmatprep.subr.mxu0 0.0
        %1146 = vmatpush1.msra.mxu0 0.0
        %1147 = vmatprep.subr.mxu0 0.0
        %1148 = vmatpush1.msra.mxu0 0.0
        %1149 = vmatprep.subr.mxu0 0.0
        %1150 = vmatpush1.msra.mxu0 0.0
        %1151 = vmatprep.subr.mxu0 0.0
        %1152 = vmatpush1.msra.mxu0 0.0
        %1153 = vmatprep.subr.mxu0 0.0
        %1154 = vmatpush1.msra.mxu0 0.0
        %1155 = vmatprep.subr.mxu0 0.0
        %1156 = vmatpush1.msra.mxu0 0.0
        %1157 = vmatprep.subr.mxu0 0.0
        %1158 = vmatpush1.msra.mxu0 0.0
        %1159 = vmatprep.subr.mxu0 0.0
        %1160 = vmatpush1.msra.mxu0 0.0
        %1161 = vmatprep.subr.mxu0 0.0
        %1162 = vmatpush1.msra.mxu0 0.0
        %1163 = vmatprep.subr.mxu0 0.0
        %1164 = vmatpush1.msra.mxu0 0.0
        %1165 = vmatprep.subr.mxu0 0.0
        %1166 = vmatpush1.msra.mxu0 0.0
        %1167 = vmatprep.subr.mxu0 0.0
        %1168 = vmatpush1.msra.mxu0 0.0
        %1169 = vmatprep.subr.mxu0 0.0
        %1170 = vmatpush1.msra.mxu0 0.0
        %1171 = vmatprep.mubr.f32.mxu0 0.0
        %v1172 = vand.u32 %v1030, 4294901760
        %v1173 = vsub.f32 %v1030, %v1172
        %v1174 = vand.u32 %v1173, 4294901760
        %v1175 = vsub.f32 %v1173, %v1174
        %v1176 = vand.u32 %v1175, 4294901760
        %1177 = vmatmul.mubr.f32.gmra.mrb[0].mxu0 %v1176
        %v1178 = vpop.f32.mrb[0].mxu0
        %v1179 = vadd.f32 %v1068, %v1178
        %v1180 = vpop.f32.mrb[0].mxu0
        %v1181 = vadd.f32 %v1072, %v1180
        %1182 = vdwg.mxu0
        %v1183 = vand.u32 %v1032, 4294901760
        %v1184 = vsub.f32 %v1032, %v1183
        %v1185 = vand.u32 %v1184, 4294901760
        %v1186 = vsub.f32 %v1184, %v1185
        %v1187 = vand.u32 %v1186, 4294901760
        %1188 = vmatprep.subr.mxu0 %v1187
        %v1189 = vand.u32 %v1031, 4294901760
        %v1190 = vsub.f32 %v1031, %v1189
        %v1191 = vand.u32 %v1190, 4294901760
        %v1192 = vsub.f32 %v1190, %v1191
        %v1193 = vand.u32 %v1192, 4294901760
        %1194 = vmatpush1.msra.mxu0 %v1193
        %v1195 = vand.u32 %v1034, 4294901760
        %v1196 = vsub.f32 %v1034, %v1195
        %v1197 = vand.u32 %v1196, 4294901760
        %v1198 = vsub.f32 %v1196, %v1197
        %v1199 = vand.u32 %v1198, 4294901760
        %1200 = vmatprep.subr.mxu0 %v1199
        %v1201 = vand.u32 %v1033, 4294901760
        %v1202 = vsub.f32 %v1033, %v1201
        %v1203 = vand.u32 %v1202, 4294901760
        %v1204 = vsub.f32 %v1202, %v1203
        %v1205 = vand.u32 %v1204, 4294901760
        %1206 = vmatpush1.msra.mxu0 %v1205
        %v1207 = vand.u32 %v1036, 4294901760
        %v1208 = vsub.f32 %v1036, %v1207
        %v1209 = vand.u32 %v1208, 4294901760
        %v1210 = vsub.f32 %v1208, %v1209
        %v1211 = vand.u32 %v1210, 4294901760
        %1212 = vmatprep.subr.mxu0 %v1211
        %v1213 = vand.u32 %v1035, 4294901760
        %v1214 = vsub.f32 %v1035, %v1213
        %v1215 = vand.u32 %v1214, 4294901760
        %v1216 = vsub.f32 %v1214, %v1215
        %v1217 = vand.u32 %v1216, 4294901760
        %1218 = vmatpush1.msra.mxu0 %v1217
        %v1219 = vand.u32 %v1038, 4294901760
        %v1220 = vsub.f32 %v1038, %v1219
        %v1221 = vand.u32 %v1220, 4294901760
        %v1222 = vsub.f32 %v1220, %v1221
        %v1223 = vand.u32 %v1222, 4294901760
        %1224 = vmatprep.subr.mxu0 %v1223
        %v1225 = vand.u32 %v1037, 4294901760
        %v1226 = vsub.f32 %v1037, %v1225
        %v1227 = vand.u32 %v1226, 4294901760
        %v1228 = vsub.f32 %v1226, %v1227
        %v1229 = vand.u32 %v1228, 4294901760
        %1230 = vmatpush1.msra.mxu0 %v1229
        %v1231 = vand.u32 %v1040, 4294901760
        %v1232 = vsub.f32 %v1040, %v1231
        %v1233 = vand.u32 %v1232, 4294901760
        %v1234 = vsub.f32 %v1232, %v1233
        %v1235 = vand.u32 %v1234, 4294901760
        %1236 = vmatprep.subr.mxu0 %v1235
        %v1237 = vand.u32 %v1039, 4294901760
        %v1238 = vsub.f32 %v1039, %v1237
        %v1239 = vand.u32 %v1238, 4294901760
        %v1240 = vsub.f32 %v1238, %v1239
        %v1241 = vand.u32 %v1240, 4294901760
        %1242 = vmatpush1.msra.mxu0 %v1241
        %v1243 = vand.u32 %v1042, 4294901760
        %v1244 = vsub.f32 %v1042, %v1243
        %v1245 = vand.u32 %v1244, 4294901760
        %v1246 = vsub.f32 %v1244, %v1245
        %v1247 = vand.u32 %v1246, 4294901760
        %1248 = vmatprep.subr.mxu0 %v1247
        %v1249 = vand.u32 %v1041, 4294901760
        %v1250 = vsub.f32 %v1041, %v1249
        %v1251 = vand.u32 %v1250, 4294901760
        %v1252 = vsub.f32 %v1250, %v1251
        %v1253 = vand.u32 %v1252, 4294901760
        %1254 = vmatpush1.msra.mxu0 %v1253
        %v1255 = vand.u32 %v1044, 4294901760
        %v1256 = vsub.f32 %v1044, %v1255
        %v1257 = vand.u32 %v1256, 4294901760
        %v1258 = vsub.f32 %v1256, %v1257
        %v1259 = vand.u32 %v1258, 4294901760
        %1260 = vmatprep.subr.mxu0 %v1259
        %v1261 = vand.u32 %v1043, 4294901760
        %v1262 = vsub.f32 %v1043, %v1261
        %v1263 = vand.u32 %v1262, 4294901760
        %v1264 = vsub.f32 %v1262, %v1263
        %v1265 = vand.u32 %v1264, 4294901760
        %1266 = vmatpush1.msra.mxu0 %v1265
        %v1267 = vand.u32 %v1046, 4294901760
        %v1268 = vsub.f32 %v1046, %v1267
        %v1269 = vand.u32 %v1268, 4294901760
        %v1270 = vsub.f32 %v1268, %v1269
        %v1271 = vand.u32 %v1270, 4294901760
        %1272 = vmatprep.subr.mxu0 %v1271
        %v1273 = vand.u32 %v1045, 4294901760
        %v1274 = vsub.f32 %v1045, %v1273
        %v1275 = vand.u32 %v1274, 4294901760
        %v1276 = vsub.f32 %v1274, %v1275
        %v1277 = vand.u32 %v1276, 4294901760
        %1278 = vmatpush1.msra.mxu0 %v1277
        %v1279 = vand.u32 %v1048, 4294901760
        %v1280 = vsub.f32 %v1048, %v1279
        %v1281 = vand.u32 %v1280, 4294901760
        %v1282 = vsub.f32 %v1280, %v1281
        %v1283 = vand.u32 %v1282, 4294901760
        %1284 = vmatprep.subr.mxu0 %v1283
        %v1285 = vand.u32 %v1047, 4294901760
        %v1286 = vsub.f32 %v1047, %v1285
        %v1287 = vand.u32 %v1286, 4294901760
        %v1288 = vsub.f32 %v1286, %v1287
        %v1289 = vand.u32 %v1288, 4294901760
        %1290 = vmatpush1.msra.mxu0 %v1289
        %v1291 = vand.u32 %v1050, 4294901760
        %v1292 = vsub.f32 %v1050, %v1291
        %v1293 = vand.u32 %v1292, 4294901760
        %v1294 = vsub.f32 %v1292, %v1293
        %v1295 = vand.u32 %v1294, 4294901760
        %1296 = vmatprep.subr.mxu0 %v1295
        %v1297 = vand.u32 %v1049, 4294901760
        %v1298 = vsub.f32 %v1049, %v1297
        %v1299 = vand.u32 %v1298, 4294901760
        %v1300 = vsub.f32 %v1298, %v1299
        %v1301 = vand.u32 %v1300, 4294901760
        %1302 = vmatpush1.msra.mxu0 %v1301
        %v1303 = vand.u32 %v1052, 4294901760
        %v1304 = vsub.f32 %v1052, %v1303
        %v1305 = vand.u32 %v1304, 4294901760
        %v1306 = vsub.f32 %v1304, %v1305
        %v1307 = vand.u32 %v1306, 4294901760
        %1308 = vmatprep.subr.mxu0 %v1307
        %v1309 = vand.u32 %v1051, 4294901760
        %v1310 = vsub.f32 %v1051, %v1309
        %v1311 = vand.u32 %v1310, 4294901760
        %v1312 = vsub.f32 %v1310, %v1311
        %v1313 = vand.u32 %v1312, 4294901760
        %1314 = vmatpush1.msra.mxu0 %v1313
        %v1315 = vand.u32 %v1054, 4294901760
        %v1316 = vsub.f32 %v1054, %v1315
        %v1317 = vand.u32 %v1316, 4294901760
        %v1318 = vsub.f32 %v1316, %v1317
        %v1319 = vand.u32 %v1318, 4294901760
        %1320 = vmatprep.subr.mxu0 %v1319
        %v1321 = vand.u32 %v1053, 4294901760
        %v1322 = vsub.f32 %v1053, %v1321
        %v1323 = vand.u32 %v1322, 4294901760
        %v1324 = vsub.f32 %v1322, %v1323
        %v1325 = vand.u32 %v1324, 4294901760
        %1326 = vmatpush1.msra.mxu0 %v1325
        %v1327 = vand.u32 %v1056, 4294901760
        %v1328 = vsub.f32 %v1056, %v1327
        %v1329 = vand.u32 %v1328, 4294901760
        %v1330 = vsub.f32 %v1328, %v1329
        %v1331 = vand.u32 %v1330, 4294901760
        %1332 = vmatprep.subr.mxu0 %v1331
        %v1333 = vand.u32 %v1055, 4294901760
        %v1334 = vsub.f32 %v1055, %v1333
        %v1335 = vand.u32 %v1334, 4294901760
        %v1336 = vsub.f32 %v1334, %v1335
        %v1337 = vand.u32 %v1336, 4294901760
        %1338 = vmatpush1.msra.mxu0 %v1337
        %v1339 = vand.u32 %v1058, 4294901760
        %v1340 = vsub.f32 %v1058, %v1339
        %v1341 = vand.u32 %v1340, 4294901760
        %v1342 = vsub.f32 %v1340, %v1341
        %v1343 = vand.u32 %v1342, 4294901760
        %1344 = vmatprep.subr.mxu0 %v1343
        %v1345 = vand.u32 %v1057, 4294901760
        %v1346 = vsub.f32 %v1057, %v1345
        %v1347 = vand.u32 %v1346, 4294901760
        %v1348 = vsub.f32 %v1346, %v1347
        %v1349 = vand.u32 %v1348, 4294901760
        %1350 = vmatpush1.msra.mxu0 %v1349
        %v1351 = vand.u32 %v1060, 4294901760
        %v1352 = vsub.f32 %v1060, %v1351
        %v1353 = vand.u32 %v1352, 4294901760
        %v1354 = vsub.f32 %v1352, %v1353
        %v1355 = vand.u32 %v1354, 4294901760
        %1356 = vmatprep.subr.mxu0 %v1355
        %v1357 = vand.u32 %v1059, 4294901760
        %v1358 = vsub.f32 %v1059, %v1357
        %v1359 = vand.u32 %v1358, 4294901760
        %v1360 = vsub.f32 %v1358, %v1359
        %v1361 = vand.u32 %v1360, 4294901760
        %1362 = vmatpush1.msra.mxu0 %v1361
        %v1363 = vand.u32 %v1062, 4294901760
        %v1364 = vsub.f32 %v1062, %v1363
        %v1365 = vand.u32 %v1364, 4294901760
        %v1366 = vsub.f32 %v1364, %v1365
        %v1367 = vand.u32 %v1366, 4294901760
        %1368 = vmatprep.subr.mxu0 %v1367
        %v1369 = vand.u32 %v1061, 4294901760
        %v1370 = vsub.f32 %v1061, %v1369
        %v1371 = vand.u32 %v1370, 4294901760
        %v1372 = vsub.f32 %v1370, %v1371
        %v1373 = vand.u32 %v1372, 4294901760
        %1374 = vmatpush1.msra.mxu0 %v1373
        %1375 = vmatprep.subr.mxu0 0.0
        %1376 = vmatpush1.msra.mxu0 0.0
        %1377 = vmatprep.subr.mxu0 0.0
        %1378 = vmatpush1.msra.mxu0 0.0
        %1379 = vmatprep.subr.mxu0 0.0
        %1380 = vmatpush1.msra.mxu0 0.0
        %1381 = vmatprep.subr.mxu0 0.0
        %1382 = vmatpush1.msra.mxu0 0.0
        %1383 = vmatprep.subr.mxu0 0.0
        %1384 = vmatpush1.msra.mxu0 0.0
        %1385 = vmatprep.subr.mxu0 0.0
        %1386 = vmatpush1.msra.mxu0 0.0
        %1387 = vmatprep.subr.mxu0 0.0
        %1388 = vmatpush1.msra.mxu0 0.0
        %1389 = vmatprep.subr.mxu0 0.0
        %1390 = vmatpush1.msra.mxu0 0.0
        %1391 = vmatprep.subr.mxu0 0.0
        %1392 = vmatpush1.msra.mxu0 0.0
        %1393 = vmatprep.subr.mxu0 0.0
        %1394 = vmatpush1.msra.mxu0 0.0
        %1395 = vmatprep.subr.mxu0 0.0
        %1396 = vmatpush1.msra.mxu0 0.0
        %1397 = vmatprep.subr.mxu0 0.0
        %1398 = vmatpush1.msra.mxu0 0.0
        %1399 = vmatprep.subr.mxu0 0.0
        %1400 = vmatpush1.msra.mxu0 0.0
        %1401 = vmatprep.subr.mxu0 0.0
        %1402 = vmatpush1.msra.mxu0 0.0
        %1403 = vmatprep.subr.mxu0 0.0
        %1404 = vmatpush1.msra.mxu0 0.0
        %1405 = vmatprep.subr.mxu0 0.0
        %1406 = vmatpush1.msra.mxu0 0.0
        %1407 = vmatprep.mubr.f32.mxu0 0.0
        %v1408 = vand.u32 %v1030, 4294901760
        %1409 = vmatmul.mubr.f32.gmra.mrb[0].mxu0 %v1408
        %v1410 = vpop.f32.mrb[0].mxu0
        %v1411 = vadd.f32 %v1179, %v1410
        %v1412 = vpop.f32.mrb[0].mxu0
        %v1413 = vadd.f32 %v1181, %v1412
        %1414 = vdwg.mxu0
        %v1415 = vand.u32 %v1032, 4294901760
        %v1416 = vsub.f32 %v1032, %v1415
        %1417 = vmatprep.subr.mxu0 %v1416
        %v1418 = vand.u32 %v1031, 4294901760
        %v1419 = vsub.f32 %v1031, %v1418
        %1420 = vmatpush1.msra.mxu0 %v1419
        %v1421 = vand.u32 %v1034, 4294901760
        %v1422 = vsub.f32 %v1034, %v1421
        %1423 = vmatprep.subr.mxu0 %v1422
        %v1424 = vand.u32 %v1033, 4294901760
        %v1425 = vsub.f32 %v1033, %v1424
        %1426 = vmatpush1.msra.mxu0 %v1425
        %v1427 = vand.u32 %v1036, 4294901760
        %v1428 = vsub.f32 %v1036, %v1427
        %1429 = vmatprep.subr.mxu0 %v1428
        %v1430 = vand.u32 %v1035, 4294901760
        %v1431 = vsub.f32 %v1035, %v1430
        %1432 = vmatpush1.msra.mxu0 %v1431
        %v1433 = vand.u32 %v1038, 4294901760
        %v1434 = vsub.f32 %v1038, %v1433
        %1435 = vmatprep.subr.mxu0 %v1434
        %v1436 = vand.u32 %v1037, 4294901760
        %v1437 = vsub.f32 %v1037, %v1436
        %1438 = vmatpush1.msra.mxu0 %v1437
        %v1439 = vand.u32 %v1040, 4294901760
        %v1440 = vsub.f32 %v1040, %v1439
        %1441 = vmatprep.subr.mxu0 %v1440
        %v1442 = vand.u32 %v1039, 4294901760
        %v1443 = vsub.f32 %v1039, %v1442
        %1444 = vmatpush1.msra.mxu0 %v1443
        %v1445 = vand.u32 %v1042, 4294901760
        %v1446 = vsub.f32 %v1042, %v1445
        %1447 = vmatprep.subr.mxu0 %v1446
        %v1448 = vand.u32 %v1041, 4294901760
        %v1449 = vsub.f32 %v1041, %v1448
        %1450 = vmatpush1.msra.mxu0 %v1449
        %v1451 = vand.u32 %v1044, 4294901760
        %v1452 = vsub.f32 %v1044, %v1451
        %1453 = vmatprep.subr.mxu0 %v1452
        %v1454 = vand.u32 %v1043, 4294901760
        %v1455 = vsub.f32 %v1043, %v1454
        %1456 = vmatpush1.msra.mxu0 %v1455
        %v1457 = vand.u32 %v1046, 4294901760
        %v1458 = vsub.f32 %v1046, %v1457
        %1459 = vmatprep.subr.mxu0 %v1458
        %v1460 = vand.u32 %v1045, 4294901760
        %v1461 = vsub.f32 %v1045, %v1460
        %1462 = vmatpush1.msra.mxu0 %v1461
        %v1463 = vand.u32 %v1048, 4294901760
        %v1464 = vsub.f32 %v1048, %v1463
        %1465 = vmatprep.subr.mxu0 %v1464
        %v1466 = vand.u32 %v1047, 4294901760
        %v1467 = vsub.f32 %v1047, %v1466
        %1468 = vmatpush1.msra.mxu0 %v1467
        %v1469 = vand.u32 %v1050, 4294901760
        %v1470 = vsub.f32 %v1050, %v1469
        %1471 = vmatprep.subr.mxu0 %v1470
        %v1472 = vand.u32 %v1049, 4294901760
        %v1473 = vsub.f32 %v1049, %v1472
        %1474 = vmatpush1.msra.mxu0 %v1473
        %v1475 = vand.u32 %v1052, 4294901760
        %v1476 = vsub.f32 %v1052, %v1475
        %1477 = vmatprep.subr.mxu0 %v1476
        %v1478 = vand.u32 %v1051, 4294901760
        %v1479 = vsub.f32 %v1051, %v1478
        %1480 = vmatpush1.msra.mxu0 %v1479
        %v1481 = vand.u32 %v1054, 4294901760
        %v1482 = vsub.f32 %v1054, %v1481
        %1483 = vmatprep.subr.mxu0 %v1482
        %v1484 = vand.u32 %v1053, 4294901760
        %v1485 = vsub.f32 %v1053, %v1484
        %1486 = vmatpush1.msra.mxu0 %v1485
        %v1487 = vand.u32 %v1056, 4294901760
        %v1488 = vsub.f32 %v1056, %v1487
        %1489 = vmatprep.subr.mxu0 %v1488
        %v1490 = vand.u32 %v1055, 4294901760
        %v1491 = vsub.f32 %v1055, %v1490
        %1492 = vmatpush1.msra.mxu0 %v1491
        %v1493 = vand.u32 %v1058, 4294901760
        %v1494 = vsub.f32 %v1058, %v1493
        %1495 = vmatprep.subr.mxu0 %v1494
        %v1496 = vand.u32 %v1057, 4294901760
        %v1497 = vsub.f32 %v1057, %v1496
        %1498 = vmatpush1.msra.mxu0 %v1497
        %v1499 = vand.u32 %v1060, 4294901760
        %v1500 = vsub.f32 %v1060, %v1499
        %1501 = vmatprep.subr.mxu0 %v1500
        %v1502 = vand.u32 %v1059, 4294901760
        %v1503 = vsub.f32 %v1059, %v1502
        %1504 = vmatpush1.msra.mxu0 %v1503
        %v1505 = vand.u32 %v1062, 4294901760
        %v1506 = vsub.f32 %v1062, %v1505
        %1507 = vmatprep.subr.mxu0 %v1506
        %v1508 = vand.u32 %v1061, 4294901760
        %v1509 = vsub.f32 %v1061, %v1508
        %1510 = vmatpush1.msra.mxu0 %v1509
        %1511 = vmatprep.subr.mxu0 0.0
        %1512 = vmatpush1.msra.mxu0 0.0
        %1513 = vmatprep.subr.mxu0 0.0
        %1514 = vmatpush1.msra.mxu0 0.0
        %1515 = vmatprep.subr.mxu0 0.0
        %1516 = vmatpush1.msra.mxu0 0.0
        %1517 = vmatprep.subr.mxu0 0.0
        %1518 = vmatpush1.msra.mxu0 0.0
        %1519 = vmatprep.subr.mxu0 0.0
        %1520 = vmatpush1.msra.mxu0 0.0
        %1521 = vmatprep.subr.mxu0 0.0
        %1522 = vmatpush1.msra.mxu0 0.0
        %1523 = vmatprep.subr.mxu0 0.0
        %1524 = vmatpush1.msra.mxu0 0.0
        %1525 = vmatprep.subr.mxu0 0.0
        %1526 = vmatpush1.msra.mxu0 0.0
        %1527 = vmatprep.subr.mxu0 0.0
        %1528 = vmatpush1.msra.mxu0 0.0
        %1529 = vmatprep.subr.mxu0 0.0
        %1530 = vmatpush1.msra.mxu0 0.0
        %1531 = vmatprep.subr.mxu0 0.0
        %1532 = vmatpush1.msra.mxu0 0.0
        %1533 = vmatprep.subr.mxu0 0.0
        %1534 = vmatpush1.msra.mxu0 0.0
        %1535 = vmatprep.subr.mxu0 0.0
        %1536 = vmatpush1.msra.mxu0 0.0
        %1537 = vmatprep.subr.mxu0 0.0
        %1538 = vmatpush1.msra.mxu0 0.0
        %1539 = vmatprep.subr.mxu0 0.0
        %1540 = vmatpush1.msra.mxu0 0.0
        %1541 = vmatprep.subr.mxu0 0.0
        %1542 = vmatpush1.msra.mxu0 0.0
        %1543 = vmatprep.mubr.f32.mxu0 0.0
        %v1544 = vand.u32 %v1030, 4294901760
        %v1545 = vsub.f32 %v1030, %v1544
        %1546 = vmatmul.mubr.f32.gmra.mrb[0].mxu0 %v1545
        %v1547 = vpop.f32.mrb[0].mxu0
        %v1548 = vadd.f32 %v1411, %v1547
        %v1549 = vpop.f32.mrb[0].mxu0
        %v1550 = vadd.f32 %v1413, %v1549
        %1551 = vdwg.mxu0
        %v1552 = vand.u32 %v1032, 4294901760
        %1553 = vmatprep.subr.mxu0 %v1552
        %v1554 = vand.u32 %v1031, 4294901760
        %1555 = vmatpush1.msra.mxu0 %v1554
        %v1556 = vand.u32 %v1034, 4294901760
        %1557 = vmatprep.subr.mxu0 %v1556
        %v1558 = vand.u32 %v1033, 4294901760
        %1559 = vmatpush1.msra.mxu0 %v1558
        %v1560 = vand.u32 %v1036, 4294901760
        %1561 = vmatprep.subr.mxu0 %v1560
        %v1562 = vand.u32 %v1035, 4294901760
        %1563 = vmatpush1.msra.mxu0 %v1562
        %v1564 = vand.u32 %v1038, 4294901760
        %1565 = vmatprep.subr.mxu0 %v1564
        %v1566 = vand.u32 %v1037, 4294901760
        %1567 = vmatpush1.msra.mxu0 %v1566
        %v1568 = vand.u32 %v1040, 4294901760
        %1569 = vmatprep.subr.mxu0 %v1568
        %v1570 = vand.u32 %v1039, 4294901760
        %1571 = vmatpush1.msra.mxu0 %v1570
        %v1572 = vand.u32 %v1042, 4294901760
        %1573 = vmatprep.subr.mxu0 %v1572
        %v1574 = vand.u32 %v1041, 4294901760
        %1575 = vmatpush1.msra.mxu0 %v1574
        %v1576 = vand.u32 %v1044, 4294901760
        %1577 = vmatprep.subr.mxu0 %v1576
        %v1578 = vand.u32 %v1043, 4294901760
        %1579 = vmatpush1.msra.mxu0 %v1578
        %v1580 = vand.u32 %v1046, 4294901760
        %1581 = vmatprep.subr.mxu0 %v1580
        %v1582 = vand.u32 %v1045, 4294901760
        %1583 = vmatpush1.msra.mxu0 %v1582
        %v1584 = vand.u32 %v1048, 4294901760
        %1585 = vmatprep.subr.mxu0 %v1584
        %v1586 = vand.u32 %v1047, 4294901760
        %1587 = vmatpush1.msra.mxu0 %v1586
        %v1588 = vand.u32 %v1050, 4294901760
        %1589 = vmatprep.subr.mxu0 %v1588
        %v1590 = vand.u32 %v1049, 4294901760
        %1591 = vmatpush1.msra.mxu0 %v1590
        %v1592 = vand.u32 %v1052, 4294901760
        %1593 = vmatprep.subr.mxu0 %v1592
        %v1594 = vand.u32 %v1051, 4294901760
        %1595 = vmatpush1.msra.mxu0 %v1594
        %v1596 = vand.u32 %v1054, 4294901760
        %1597 = vmatprep.subr.mxu0 %v1596
        %v1598 = vand.u32 %v1053, 4294901760
        %1599 = vmatpush1.msra.mxu0 %v1598
        %v1600 = vand.u32 %v1056, 4294901760
        %1601 = vmatprep.subr.mxu0 %v1600
        %v1602 = vand.u32 %v1055, 4294901760
        %1603 = vmatpush1.msra.mxu0 %v1602
        %v1604 = vand.u32 %v1058, 4294901760
        %1605 = vmatprep.subr.mxu0 %v1604
        %v1606 = vand.u32 %v1057, 4294901760
        %1607 = vmatpush1.msra.mxu0 %v1606
        %v1608 = vand.u32 %v1060, 4294901760
        %1609 = vmatprep.subr.mxu0 %v1608
        %v1610 = vand.u32 %v1059, 4294901760
        %1611 = vmatpush1.msra.mxu0 %v1610
        %v1612 = vand.u32 %v1062, 4294901760
        %1613 = vmatprep.subr.mxu0 %v1612
        %v1614 = vand.u32 %v1061, 4294901760
        %1615 = vmatpush1.msra.mxu0 %v1614
        %1616 = vmatprep.subr.mxu0 0.0
        %1617 = vmatpush1.msra.mxu0 0.0
        %1618 = vmatprep.subr.mxu0 0.0
        %1619 = vmatpush1.msra.mxu0 0.0
        %1620 = vmatprep.subr.mxu0 0.0
        %1621 = vmatpush1.msra.mxu0 0.0
        %1622 = vmatprep.subr.mxu0 0.0
        %1623 = vmatpush1.msra.mxu0 0.0
        %1624 = vmatprep.subr.mxu0 0.0
        %1625 = vmatpush1.msra.mxu0 0.0
        %1626 = vmatprep.subr.mxu0 0.0
        %1627 = vmatpush1.msra.mxu0 0.0
        %1628 = vmatprep.subr.mxu0 0.0
        %1629 = vmatpush1.msra.mxu0 0.0
        %1630 = vmatprep.subr.mxu0 0.0
        %1631 = vmatpush1.msra.mxu0 0.0
        %1632 = vmatprep.subr.mxu0 0.0
        %1633 = vmatpush1.msra.mxu0 0.0
        %1634 = vmatprep.subr.mxu0 0.0
        %1635 = vmatpush1.msra.mxu0 0.0
        %1636 = vmatprep.subr.mxu0 0.0
        %1637 = vmatpush1.msra.mxu0 0.0
        %1638 = vmatprep.subr.mxu0 0.0
        %1639 = vmatpush1.msra.mxu0 0.0
        %1640 = vmatprep.subr.mxu0 0.0
        %1641 = vmatpush1.msra.mxu0 0.0
        %1642 = vmatprep.subr.mxu0 0.0
        %1643 = vmatpush1.msra.mxu0 0.0
        %1644 = vmatprep.subr.mxu0 0.0
        %1645 = vmatpush1.msra.mxu0 0.0
        %1646 = vmatprep.subr.mxu0 0.0
        %1647 = vmatpush1.msra.mxu0 0.0
        %1648 = vmatprep.mubr.f32.mxu0 0.0
        %v1649 = vand.u32 %v1030, 4294901760
        %v1650 = vsub.f32 %v1030, %v1649
        %v1651 = vand.u32 %v1650, 4294901760
        %1652 = vmatmul.mubr.f32.gmra.mrb[0].mxu0 %v1651
        %v1653 = vpop.f32.mrb[0].mxu0
        %v1654 = vadd.f32 %v1548, %v1653
        %v1655 = vpop.f32.mrb[0].mxu0
        %v1656 = vadd.f32 %v1550, %v1655
        %1657 = vdwg.mxu0
        %v1658 = vand.u32 %v1032, 4294901760
        %v1659 = vsub.f32 %v1032, %v1658
        %v1660 = vand.u32 %v1659, 4294901760
        %1661 = vmatprep.subr.mxu0 %v1660
        %v1662 = vand.u32 %v1031, 4294901760
        %v1663 = vsub.f32 %v1031, %v1662
        %v1664 = vand.u32 %v1663, 4294901760
        %1665 = vmatpush1.msra.mxu0 %v1664
        %v1666 = vand.u32 %v1034, 4294901760
        %v1667 = vsub.f32 %v1034, %v1666
        %v1668 = vand.u32 %v1667, 4294901760
        %1669 = vmatprep.subr.mxu0 %v1668
        %v1670 = vand.u32 %v1033, 4294901760
        %v1671 = vsub.f32 %v1033, %v1670
        %v1672 = vand.u32 %v1671, 4294901760
        %1673 = vmatpush1.msra.mxu0 %v1672
        %v1674 = vand.u32 %v1036, 4294901760
        %v1675 = vsub.f32 %v1036, %v1674
        %v1676 = vand.u32 %v1675, 4294901760
        %1677 = vmatprep.subr.mxu0 %v1676
        %v1678 = vand.u32 %v1035, 4294901760
        %v1679 = vsub.f32 %v1035, %v1678
        %v1680 = vand.u32 %v1679, 4294901760
        %1681 = vmatpush1.msra.mxu0 %v1680
        %v1682 = vand.u32 %v1038, 4294901760
        %v1683 = vsub.f32 %v1038, %v1682
        %v1684 = vand.u32 %v1683, 4294901760
        %1685 = vmatprep.subr.mxu0 %v1684
        %v1686 = vand.u32 %v1037, 4294901760
        %v1687 = vsub.f32 %v1037, %v1686
        %v1688 = vand.u32 %v1687, 4294901760
        %1689 = vmatpush1.msra.mxu0 %v1688
        %v1690 = vand.u32 %v1040, 4294901760
        %v1691 = vsub.f32 %v1040, %v1690
        %v1692 = vand.u32 %v1691, 4294901760
        %1693 = vmatprep.subr.mxu0 %v1692
        %v1694 = vand.u32 %v1039, 4294901760
        %v1695 = vsub.f32 %v1039, %v1694
        %v1696 = vand.u32 %v1695, 4294901760
        %1697 = vmatpush1.msra.mxu0 %v1696
        %v1698 = vand.u32 %v1042, 4294901760
        %v1699 = vsub.f32 %v1042, %v1698
        %v1700 = vand.u32 %v1699, 4294901760
        %1701 = vmatprep.subr.mxu0 %v1700
        %v1702 = vand.u32 %v1041, 4294901760
        %v1703 = vsub.f32 %v1041, %v1702
        %v1704 = vand.u32 %v1703, 4294901760
        %1705 = vmatpush1.msra.mxu0 %v1704
        %v1706 = vand.u32 %v1044, 4294901760
        %v1707 = vsub.f32 %v1044, %v1706
        %v1708 = vand.u32 %v1707, 4294901760
        %1709 = vmatprep.subr.mxu0 %v1708
        %v1710 = vand.u32 %v1043, 4294901760
        %v1711 = vsub.f32 %v1043, %v1710
        %v1712 = vand.u32 %v1711, 4294901760
        %1713 = vmatpush1.msra.mxu0 %v1712
        %v1714 = vand.u32 %v1046, 4294901760
        %v1715 = vsub.f32 %v1046, %v1714
        %v1716 = vand.u32 %v1715, 4294901760
        %1717 = vmatprep.subr.mxu0 %v1716
        %v1718 = vand.u32 %v1045, 4294901760
        %v1719 = vsub.f32 %v1045, %v1718
        %v1720 = vand.u32 %v1719, 4294901760
        %1721 = vmatpush1.msra.mxu0 %v1720
        %v1722 = vand.u32 %v1048, 4294901760
        %v1723 = vsub.f32 %v1048, %v1722
        %v1724 = vand.u32 %v1723, 4294901760
        %1725 = vmatprep.subr.mxu0 %v1724
        %v1726 = vand.u32 %v1047, 4294901760
        %v1727 = vsub.f32 %v1047, %v1726
        %v1728 = vand.u32 %v1727, 4294901760
        %1729 = vmatpush1.msra.mxu0 %v1728
        %v1730 = vand.u32 %v1050, 4294901760
        %v1731 = vsub.f32 %v1050, %v1730
        %v1732 = vand.u32 %v1731, 4294901760
        %1733 = vmatprep.subr.mxu0 %v1732
        %v1734 = vand.u32 %v1049, 4294901760
        %v1735 = vsub.f32 %v1049, %v1734
        %v1736 = vand.u32 %v1735, 4294901760
        %1737 = vmatpush1.msra.mxu0 %v1736
        %v1738 = vand.u32 %v1052, 4294901760
        %v1739 = vsub.f32 %v1052, %v1738
        %v1740 = vand.u32 %v1739, 4294901760
        %1741 = vmatprep.subr.mxu0 %v1740
        %v1742 = vand.u32 %v1051, 4294901760
        %v1743 = vsub.f32 %v1051, %v1742
        %v1744 = vand.u32 %v1743, 4294901760
        %1745 = vmatpush1.msra.mxu0 %v1744
        %v1746 = vand.u32 %v1054, 4294901760
        %v1747 = vsub.f32 %v1054, %v1746
        %v1748 = vand.u32 %v1747, 4294901760
        %1749 = vmatprep.subr.mxu0 %v1748
        %v1750 = vand.u32 %v1053, 4294901760
        %v1751 = vsub.f32 %v1053, %v1750
        %v1752 = vand.u32 %v1751, 4294901760
        %1753 = vmatpush1.msra.mxu0 %v1752
        %v1754 = vand.u32 %v1056, 4294901760
        %v1755 = vsub.f32 %v1056, %v1754
        %v1756 = vand.u32 %v1755, 4294901760
        %1757 = vmatprep.subr.mxu0 %v1756
        %v1758 = vand.u32 %v1055, 4294901760
        %v1759 = vsub.f32 %v1055, %v1758
        %v1760 = vand.u32 %v1759, 4294901760
        %1761 = vmatpush1.msra.mxu0 %v1760
        %v1762 = vand.u32 %v1058, 4294901760
        %v1763 = vsub.f32 %v1058, %v1762
        %v1764 = vand.u32 %v1763, 4294901760
        %1765 = vmatprep.subr.mxu0 %v1764
        %v1766 = vand.u32 %v1057, 4294901760
        %v1767 = vsub.f32 %v1057, %v1766
        %v1768 = vand.u32 %v1767, 4294901760
        %1769 = vmatpush1.msra.mxu0 %v1768
        %v1770 = vand.u32 %v1060, 4294901760
        %v1771 = vsub.f32 %v1060, %v1770
        %v1772 = vand.u32 %v1771, 4294901760
        %1773 = vmatprep.subr.mxu0 %v1772
        %v1774 = vand.u32 %v1059, 4294901760
        %v1775 = vsub.f32 %v1059, %v1774
        %v1776 = vand.u32 %v1775, 4294901760
        %1777 = vmatpush1.msra.mxu0 %v1776
        %v1778 = vand.u32 %v1062, 4294901760
        %v1779 = vsub.f32 %v1062, %v1778
        %v1780 = vand.u32 %v1779, 4294901760
        %1781 = vmatprep.subr.mxu0 %v1780
        %v1782 = vand.u32 %v1061, 4294901760
        %v1783 = vsub.f32 %v1061, %v1782
        %v1784 = vand.u32 %v1783, 4294901760
        %1785 = vmatpush1.msra.mxu0 %v1784
        %1786 = vmatprep.subr.mxu0 0.0
        %1787 = vmatpush1.msra.mxu0 0.0
        %1788 = vmatprep.subr.mxu0 0.0
        %1789 = vmatpush1.msra.mxu0 0.0
        %1790 = vmatprep.subr.mxu0 0.0
        %1791 = vmatpush1.msra.mxu0 0.0
        %1792 = vmatprep.subr.mxu0 0.0
        %1793 = vmatpush1.msra.mxu0 0.0
        %1794 = vmatprep.subr.mxu0 0.0
        %1795 = vmatpush1.msra.mxu0 0.0
        %1796 = vmatprep.subr.mxu0 0.0
        %1797 = vmatpush1.msra.mxu0 0.0
        %1798 = vmatprep.subr.mxu0 0.0
        %1799 = vmatpush1.msra.mxu0 0.0
        %1800 = vmatprep.subr.mxu0 0.0
        %1801 = vmatpush1.msra.mxu0 0.0
        %1802 = vmatprep.subr.mxu0 0.0
        %1803 = vmatpush1.msra.mxu0 0.0
        %1804 = vmatprep.subr.mxu0 0.0
        %1805 = vmatpush1.msra.mxu0 0.0
        %1806 = vmatprep.subr.mxu0 0.0
        %1807 = vmatpush1.msra.mxu0 0.0
        %1808 = vmatprep.subr.mxu0 0.0
        %1809 = vmatpush1.msra.mxu0 0.0
        %1810 = vmatprep.subr.mxu0 0.0
        %1811 = vmatpush1.msra.mxu0 0.0
        %1812 = vmatprep.subr.mxu0 0.0
        %1813 = vmatpush1.msra.mxu0 0.0
        %1814 = vmatprep.subr.mxu0 0.0
        %1815 = vmatpush1.msra.mxu0 0.0
        %1816 = vmatprep.subr.mxu0 0.0
        %1817 = vmatpush1.msra.mxu0 0.0
        %1818 = vmatprep.mubr.f32.mxu0 0.0
        %v1819 = vand.u32 %v1030, 4294901760
        %1820 = vmatmul.mubr.f32.gmra.mrb[0].mxu0 %v1819
        %v1821 = vpop.f32.mrb[0].mxu0
        %v1822 = vadd.f32 %v1654, %v1821
        %v1823 = vpop.f32.mrb[0].mxu0
        %v1824 = vadd.f32 %v1656, %v1823
        %1825 = vdwg.mxu0
        %v1826 = vand.u32 %v1032, 4294901760
        %1827 = vmatprep.subr.mxu0 %v1826
        %v1828 = vand.u32 %v1031, 4294901760
        %1829 = vmatpush1.msra.mxu0 %v1828
        %v1830 = vand.u32 %v1034, 4294901760
        %1831 = vmatprep.subr.mxu0 %v1830
        %v1832 = vand.u32 %v1033, 4294901760
        %1833 = vmatpush1.msra.mxu0 %v1832
        %v1834 = vand.u32 %v1036, 4294901760
        %1835 = vmatprep.subr.mxu0 %v1834
        %v1836 = vand.u32 %v1035, 4294901760
        %1837 = vmatpush1.msra.mxu0 %v1836
        %v1838 = vand.u32 %v1038, 4294901760
        %1839 = vmatprep.subr.mxu0 %v1838
        %v1840 = vand.u32 %v1037, 4294901760
        %1841 = vmatpush1.msra.mxu0 %v1840
        %v1842 = vand.u32 %v1040, 4294901760
        %1843 = vmatprep.subr.mxu0 %v1842
        %v1844 = vand.u32 %v1039, 4294901760
        %1845 = vmatpush1.msra.mxu0 %v1844
        %v1846 = vand.u32 %v1042, 4294901760
        %1847 = vmatprep.subr.mxu0 %v1846
        %v1848 = vand.u32 %v1041, 4294901760
        %1849 = vmatpush1.msra.mxu0 %v1848
        %v1850 = vand.u32 %v1044, 4294901760
        %1851 = vmatprep.subr.mxu0 %v1850
        %v1852 = vand.u32 %v1043, 4294901760
        %1853 = vmatpush1.msra.mxu0 %v1852
        %v1854 = vand.u32 %v1046, 4294901760
        %1855 = vmatprep.subr.mxu0 %v1854
        %v1856 = vand.u32 %v1045, 4294901760
        %1857 = vmatpush1.msra.mxu0 %v1856
        %v1858 = vand.u32 %v1048, 4294901760
        %1859 = vmatprep.subr.mxu0 %v1858
        %v1860 = vand.u32 %v1047, 4294901760
        %1861 = vmatpush1.msra.mxu0 %v1860
        %v1862 = vand.u32 %v1050, 4294901760
        %1863 = vmatprep.subr.mxu0 %v1862
        %v1864 = vand.u32 %v1049, 4294901760
        %1865 = vmatpush1.msra.mxu0 %v1864
        %v1866 = vand.u32 %v1052, 4294901760
        %1867 = vmatprep.subr.mxu0 %v1866
        %v1868 = vand.u32 %v1051, 4294901760
        %1869 = vmatpush1.msra.mxu0 %v1868
        %v1870 = vand.u32 %v1054, 4294901760
        %1871 = vmatprep.subr.mxu0 %v1870
        %v1872 = vand.u32 %v1053, 4294901760
        %1873 = vmatpush1.msra.mxu0 %v1872
        %v1874 = vand.u32 %v1056, 4294901760
        %1875 = vmatprep.subr.mxu0 %v1874
        %v1876 = vand.u32 %v1055, 4294901760
        %1877 = vmatpush1.msra.mxu0 %v1876
        %v1878 = vand.u32 %v1058, 4294901760
        %1879 = vmatprep.subr.mxu0 %v1878
        %v1880 = vand.u32 %v1057, 4294901760
        %1881 = vmatpush1.msra.mxu0 %v1880
        %v1882 = vand.u32 %v1060, 4294901760
        %1883 = vmatprep.subr.mxu0 %v1882
        %v1884 = vand.u32 %v1059, 4294901760
        %1885 = vmatpush1.msra.mxu0 %v1884
        %v1886 = vand.u32 %v1062, 4294901760
        %1887 = vmatprep.subr.mxu0 %v1886
        %v1888 = vand.u32 %v1061, 4294901760
        %1889 = vmatpush1.msra.mxu0 %v1888
        %1890 = vmatprep.subr.mxu0 0.0
        %1891 = vmatpush1.msra.mxu0 0.0
        %1892 = vmatprep.subr.mxu0 0.0
        %1893 = vmatpush1.msra.mxu0 0.0
        %1894 = vmatprep.subr.mxu0 0.0
        %1895 = vmatpush1.msra.mxu0 0.0
        %1896 = vmatprep.subr.mxu0 0.0
        %1897 = vmatpush1.msra.mxu0 0.0
        %1898 = vmatprep.subr.mxu0 0.0
        %1899 = vmatpush1.msra.mxu0 0.0
        %1900 = vmatprep.subr.mxu0 0.0
        %1901 = vmatpush1.msra.mxu0 0.0
        %1902 = vmatprep.subr.mxu0 0.0
        %1903 = vmatpush1.msra.mxu0 0.0
        %1904 = vmatprep.subr.mxu0 0.0
        %1905 = vmatpush1.msra.mxu0 0.0
        %1906 = vmatprep.subr.mxu0 0.0
        %1907 = vmatpush1.msra.mxu0 0.0
        %1908 = vmatprep.subr.mxu0 0.0
        %1909 = vmatpush1.msra.mxu0 0.0
        %1910 = vmatprep.subr.mxu0 0.0
        %1911 = vmatpush1.msra.mxu0 0.0
        %1912 = vmatprep.subr.mxu0 0.0
        %1913 = vmatpush1.msra.mxu0 0.0
        %1914 = vmatprep.subr.mxu0 0.0
        %1915 = vmatpush1.msra.mxu0 0.0
        %1916 = vmatprep.subr.mxu0 0.0
        %1917 = vmatpush1.msra.mxu0 0.0
        %1918 = vmatprep.subr.mxu0 0.0
        %1919 = vmatpush1.msra.mxu0 0.0
        %1920 = vmatprep.subr.mxu0 0.0
        %1921 = vmatpush1.msra.mxu0 0.0
        %1922 = vmatprep.mubr.f32.mxu0 0.0
        %v1923 = vand.u32 %v1030, 4294901760
        %1924 = vmatmul.mubr.f32.gmra.mrb[0].mxu0 %v1923
        %v1925 = vpop.f32.mrb[0].mxu0
        %v1926 = vadd.f32 %v1822, %v1925
        %v1927 = vpop.f32.mrb[0].mxu0
        %v1928 = vadd.f32 %v1824, %v1927
        %1929 = vdwg.mxu0
        %v1930 = vld [vmem:[%s8] sm:$0xff]
        %v1931 = vld [vmem:[%s8 + $0x8] sm:$0xff]
        %v1932 = vld [vmem:[%s8 + $0x10] sm:$0xff]
        %v1933 = vld [vmem:[%s8 + $0x18] sm:$0xff]
        %v1934 = vld [vmem:[%s8 + $0x20] sm:$0xff]
        %v1935 = vld [vmem:[%s8 + $0x28] sm:$0xff]
        %v1936 = vld [vmem:[%s8 + $0x30] sm:$0xff]
        %v1937 = vld [vmem:[%s8 + $0x38] sm:$0xff]
        %v1938 = vld [vmem:[%s8 + $0x40] sm:$0xff]
        %v1939 = vld [vmem:[%s8 + $0x48] sm:$0xff]
        %v1940 = vld [vmem:[%s8 + $0x50] sm:$0xff]
        %v1941 = vld [vmem:[%s8 + $0x58] sm:$0xff]
        %v1942 = vld [vmem:[%s8 + $0x60] sm:$0xff]
        %v1943 = vld [vmem:[%s8 + $0x68] sm:$0xff]
        %v1944 = vld [vmem:[%s8 + $0x70] sm:$0xff]
        %v1945 = vld [vmem:[%s8 + $0x78] sm:$0xff]
        %v1946 = vld [vmem:[%s8 + $0x80] sm:$0xff]
        %v1947 = vld [vmem:[%s8 + $0x88] sm:$0xff]
        %v1948 = vld [vmem:[%s8 + $0x90] sm:$0xff]
        %v1949 = vld [vmem:[%s8 + $0x98] sm:$0xff]
        %v1950 = vld [vmem:[%s8 + $0xa0] sm:$0xff]
        %v1951 = vld [vmem:[%s8 + $0xa8] sm:$0xff]
        %v1952 = vld [vmem:[%s8 + $0xb0] sm:$0xff]
        %v1953 = vld [vmem:[%s8 + $0xb8] sm:$0xff]
        %v1954 = vld [vmem:[%s8 + $0xc0] sm:$0xff]
        %v1955 = vld [vmem:[%s8 + $0xc8] sm:$0xff]
        %v1956 = vld [vmem:[%s8 + $0xd0] sm:$0xff]
        %v1957 = vld [vmem:[%s8 + $0xd8] sm:$0xff]
        %v1958 = vld [vmem:[%s8 + $0xe0] sm:$0xff]
        %v1959 = vld [vmem:[%s8 + $0xe8] sm:$0xff]
        %v1960 = vld [vmem:[%s8 + $0xf0] sm:$0xff]
        %v1961 = vld [vmem:[%s8 + $0xf8] sm:$0xff]
        %v1962 = vld [vmem:[%s8 + $0x100] sm:$0xff]
        %v1963 = vld [vmem:[%s8 + $0x108] sm:$0xff]
        %v1964 = vld [vmem:[%s8 + $0x110] sm:$0xff]
        %v1965 = vld [vmem:[%s8 + $0x118] sm:$0xff]
        %vm1966 = vcmask 392192
        %v1968 = vsel %vm1966, %v1928, 0
        %v1970 = vand.u32 %v1931, 4294901760
        %1971 = vmatprep.subr.mxu0 %v1970
        %v1972 = vand.u32 %v1930, 4294901760
        %1973 = vmatpush1.msra.mxu0 %v1972
        %v1974 = vand.u32 %v1937, 4294901760
        %1975 = vmatprep.subr.mxu0 %v1974
        %v1976 = vand.u32 %v1936, 4294901760
        %1977 = vmatpush1.msra.mxu0 %v1976
        %v1978 = vand.u32 %v1943, 4294901760
        %1979 = vmatprep.subr.mxu0 %v1978
        %v1980 = vand.u32 %v1942, 4294901760
        %1981 = vmatpush1.msra.mxu0 %v1980
        %v1982 = vand.u32 %v1949, 4294901760
        %1983 = vmatprep.subr.mxu0 %v1982
        %v1984 = vand.u32 %v1948, 4294901760
        %1985 = vmatpush1.msra.mxu0 %v1984
        %v1986 = vand.u32 %v1955, 4294901760
        %1987 = vmatprep.subr.mxu0 %v1986
        %v1988 = vand.u32 %v1954, 4294901760
        %1989 = vmatpush1.msra.mxu0 %v1988
        %v1990 = vand.u32 %v1961, 4294901760
        %1991 = vmatprep.subr.mxu0 %v1990
        %v1992 = vand.u32 %v1960, 4294901760
        %1993 = vmatpush1.msra.mxu0 %v1992
        %1994 = vmatprep.subr.mxu0 0.0
        %1995 = vmatpush1.msra.mxu0 0.0
        %1996 = vmatprep.subr.mxu0 0.0
        %1997 = vmatpush1.msra.mxu0 0.0
        %1998 = vmatprep.subr.mxu0 0.0
        %1999 = vmatpush1.msra.mxu0 0.0
        %2000 = vmatprep.subr.mxu0 0.0
        %2001 = vmatpush1.msra.mxu0 0.0
        %2002 = vmatprep.subr.mxu0 0.0
        %2003 = vmatpush1.msra.mxu0 0.0
        %2004 = vmatprep.subr.mxu0 0.0
        %2005 = vmatpush1.msra.mxu0 0.0
        %2006 = vmatprep.subr.mxu0 0.0
        %2007 = vmatpush1.msra.mxu0 0.0
        %2008 = vmatprep.subr.mxu0 0.0
        %2009 = vmatpush1.msra.mxu0 0.0
        %2010 = vmatprep.subr.mxu0 0.0
        %2011 = vmatpush1.msra.mxu0 0.0
        %2012 = vmatprep.subr.mxu0 0.0
        %2013 = vmatpush1.msra.mxu0 0.0
        %2014 = vmatprep.subr.mxu0 0.0
        %2015 = vmatpush1.msra.mxu0 0.0
        %2016 = vmatprep.subr.mxu0 0.0
        %2017 = vmatpush1.msra.mxu0 0.0
        %2018 = vmatprep.subr.mxu0 0.0
        %2019 = vmatpush1.msra.mxu0 0.0
        %2020 = vmatprep.subr.mxu0 0.0
        %2021 = vmatpush1.msra.mxu0 0.0
        %2022 = vmatprep.subr.mxu0 0.0
        %2023 = vmatpush1.msra.mxu0 0.0
        %2024 = vmatprep.subr.mxu0 0.0
        %2025 = vmatpush1.msra.mxu0 0.0
        %2026 = vmatprep.subr.mxu0 0.0
        %2027 = vmatpush1.msra.mxu0 0.0
        %2028 = vmatprep.subr.mxu0 0.0
        %2029 = vmatpush1.msra.mxu0 0.0
        %2030 = vmatprep.subr.mxu0 0.0
        %2031 = vmatpush1.msra.mxu0 0.0
        %2032 = vmatprep.subr.mxu0 0.0
        %2033 = vmatpush1.msra.mxu0 0.0
        %2034 = vmatprep.subr.mxu0 0.0
        %2035 = vmatpush1.msra.mxu0 0.0
        %2036 = vmatprep.subr.mxu0 0.0
        %2037 = vmatpush1.msra.mxu0 0.0
        %2038 = vmatprep.subr.mxu0 0.0
        %2039 = vmatpush1.msra.mxu0 0.0
        %2040 = vmatprep.subr.mxu0 0.0
        %2041 = vmatpush1.msra.mxu0 0.0
        %2042 = vmatprep.subr.mxu0 0.0
        %2043 = vmatpush1.msra.mxu0 0.0
        %2044 = vmatprep.subr.mxu0 0.0
        %2045 = vmatpush1.msra.mxu0 0.0
        %2046 = vmatprep.mubr.f32.mxu0 0.0
        %v2047 = vand.u32 %v1968, 4294901760
        %v2048 = vsub.f32 %v1968, %v2047
        %v2049 = vand.u32 %v2048, 4294901760
        %v2050 = vsub.f32 %v2048, %v2049
        %v2051 = vand.u32 %v2050, 4294901760
        %2052 = vmatmul.mubr.f32.gmra.mrb[0].mxu0 %v2051
        %v2053 = vpop.f32.mrb[0].mxu0
        %v2054 = vadd.f32 0.0, %v2053
        %v2055 = vpop.f32.mrb[0].mxu0
        %v2056 = vadd.f32 0.0, %v2055
        %2057 = vdwg.mxu0
        %v2058 = vand.u32 %v1931, 4294901760
        %v2059 = vsub.f32 %v1931, %v2058
        %v2060 = vand.u32 %v2059, 4294901760
        %v2061 = vsub.f32 %v2059, %v2060
        %v2062 = vand.u32 %v2061, 4294901760
        %2063 = vmatprep.subr.mxu0 %v2062
        %v2064 = vand.u32 %v1930, 4294901760
        %v2065 = vsub.f32 %v1930, %v2064
        %v2066 = vand.u32 %v2065, 4294901760
        %v2067 = vsub.f32 %v2065, %v2066
        %v2068 = vand.u32 %v2067, 4294901760
        %2069 = vmatpush1.msra.mxu0 %v2068
        %v2070 = vand.u32 %v1937, 4294901760
        %v2071 = vsub.f32 %v1937, %v2070
        %v2072 = vand.u32 %v2071, 4294901760
        %v2073 = vsub.f32 %v2071, %v2072
        %v2074 = vand.u32 %v2073, 4294901760
        %2075 = vmatprep.subr.mxu0 %v2074
        %v2076 = vand.u32 %v1936, 4294901760
        %v2077 = vsub.f32 %v1936, %v2076
        %v2078 = vand.u32 %v2077, 4294901760
        %v2079 = vsub.f32 %v2077, %v2078
        %v2080 = vand.u32 %v2079, 4294901760
        %2081 = vmatpush1.msra.mxu0 %v2080
        %v2082 = vand.u32 %v1943, 4294901760
        %v2083 = vsub.f32 %v1943, %v2082
        %v2084 = vand.u32 %v2083, 4294901760
        %v2085 = vsub.f32 %v2083, %v2084
        %v2086 = vand.u32 %v2085, 4294901760
        %2087 = vmatprep.subr.mxu0 %v2086
        %v2088 = vand.u32 %v1942, 4294901760
        %v2089 = vsub.f32 %v1942, %v2088
        %v2090 = vand.u32 %v2089, 4294901760
        %v2091 = vsub.f32 %v2089, %v2090
        %v2092 = vand.u32 %v2091, 4294901760
        %2093 = vmatpush1.msra.mxu0 %v2092
        %v2094 = vand.u32 %v1949, 4294901760
        %v2095 = vsub.f32 %v1949, %v2094
        %v2096 = vand.u32 %v2095, 4294901760
        %v2097 = vsub.f32 %v2095, %v2096
        %v2098 = vand.u32 %v2097, 4294901760
        %2099 = vmatprep.subr.mxu0 %v2098
        %v2100 = vand.u32 %v1948, 4294901760
        %v2101 = vsub.f32 %v1948, %v2100
        %v2102 = vand.u32 %v2101, 4294901760
        %v2103 = vsub.f32 %v2101, %v2102
        %v2104 = vand.u32 %v2103, 4294901760
        %2105 = vmatpush1.msra.mxu0 %v2104
        %v2106 = vand.u32 %v1955, 4294901760
        %v2107 = vsub.f32 %v1955, %v2106
        %v2108 = vand.u32 %v2107, 4294901760
        %v2109 = vsub.f32 %v2107, %v2108
        %v2110 = vand.u32 %v2109, 4294901760
        %2111 = vmatprep.subr.mxu0 %v2110
        %v2112 = vand.u32 %v1954, 4294901760
        %v2113 = vsub.f32 %v1954, %v2112
        %v2114 = vand.u32 %v2113, 4294901760
        %v2115 = vsub.f32 %v2113, %v2114
        %v2116 = vand.u32 %v2115, 4294901760
        %2117 = vmatpush1.msra.mxu0 %v2116
        %v2118 = vand.u32 %v1961, 4294901760
        %v2119 = vsub.f32 %v1961, %v2118
        %v2120 = vand.u32 %v2119, 4294901760
        %v2121 = vsub.f32 %v2119, %v2120
        %v2122 = vand.u32 %v2121, 4294901760
        %2123 = vmatprep.subr.mxu0 %v2122
        %v2124 = vand.u32 %v1960, 4294901760
        %v2125 = vsub.f32 %v1960, %v2124
        %v2126 = vand.u32 %v2125, 4294901760
        %v2127 = vsub.f32 %v2125, %v2126
        %v2128 = vand.u32 %v2127, 4294901760
        %2129 = vmatpush1.msra.mxu0 %v2128
        %2130 = vmatprep.subr.mxu0 0.0
        %2131 = vmatpush1.msra.mxu0 0.0
        %2132 = vmatprep.subr.mxu0 0.0
        %2133 = vmatpush1.msra.mxu0 0.0
        %2134 = vmatprep.subr.mxu0 0.0
        %2135 = vmatpush1.msra.mxu0 0.0
        %2136 = vmatprep.subr.mxu0 0.0
        %2137 = vmatpush1.msra.mxu0 0.0
        %2138 = vmatprep.subr.mxu0 0.0
        %2139 = vmatpush1.msra.mxu0 0.0
        %2140 = vmatprep.subr.mxu0 0.0
        %2141 = vmatpush1.msra.mxu0 0.0
        %2142 = vmatprep.subr.mxu0 0.0
        %2143 = vmatpush1.msra.mxu0 0.0
        %2144 = vmatprep.subr.mxu0 0.0
        %2145 = vmatpush1.msra.mxu0 0.0
        %2146 = vmatprep.subr.mxu0 0.0
        %2147 = vmatpush1.msra.mxu0 0.0
        %2148 = vmatprep.subr.mxu0 0.0
        %2149 = vmatpush1.msra.mxu0 0.0
        %2150 = vmatprep.subr.mxu0 0.0
        %2151 = vmatpush1.msra.mxu0 0.0
        %2152 = vmatprep.subr.mxu0 0.0
        %2153 = vmatpush1.msra.mxu0 0.0
        %2154 = vmatprep.subr.mxu0 0.0
        %2155 = vmatpush1.msra.mxu0 0.0
        %2156 = vmatprep.subr.mxu0 0.0
        %2157 = vmatpush1.msra.mxu0 0.0
        %2158 = vmatprep.subr.mxu0 0.0
        %2159 = vmatpush1.msra.mxu0 0.0
        %2160 = vmatprep.subr.mxu0 0.0
        %2161 = vmatpush1.msra.mxu0 0.0
        %2162 = vmatprep.subr.mxu0 0.0
        %2163 = vmatpush1.msra.mxu0 0.0
        %2164 = vmatprep.subr.mxu0 0.0
        %2165 = vmatpush1.msra.mxu0 0.0
        %2166 = vmatprep.subr.mxu0 0.0
        %2167 = vmatpush1.msra.mxu0 0.0
        %2168 = vmatprep.subr.mxu0 0.0
        %2169 = vmatpush1.msra.mxu0 0.0
        %2170 = vmatprep.subr.mxu0 0.0
        %2171 = vmatpush1.msra.mxu0 0.0
        %2172 = vmatprep.subr.mxu0 0.0
        %2173 = vmatpush1.msra.mxu0 0.0
        %2174 = vmatprep.subr.mxu0 0.0
        %2175 = vmatpush1.msra.mxu0 0.0
        %2176 = vmatprep.subr.mxu0 0.0
        %2177 = vmatpush1.msra.mxu0 0.0
        %2178 = vmatprep.subr.mxu0 0.0
        %2179 = vmatpush1.msra.mxu0 0.0
        %2180 = vmatprep.subr.mxu0 0.0
        %2181 = vmatpush1.msra.mxu0 0.0
        %2182 = vmatprep.mubr.f32.mxu0 0.0
        %v2183 = vand.u32 %v1968, 4294901760
        %2184 = vmatmul.mubr.f32.gmra.mrb[0].mxu0 %v2183
        %v2185 = vpop.f32.mrb[0].mxu0
        %v2186 = vadd.f32 %v2054, %v2185
        %v2187 = vpop.f32.mrb[0].mxu0
        %v2188 = vadd.f32 %v2056, %v2187
        %2189 = vdwg.mxu0
        %v2190 = vand.u32 %v1931, 4294901760
        %v2191 = vsub.f32 %v1931, %v2190
        %2192 = vmatprep.subr.mxu0 %v2191
        %v2193 = vand.u32 %v1930, 4294901760
        %v2194 = vsub.f32 %v1930, %v2193
        %2195 = vmatpush1.msra.mxu0 %v2194
        %v2196 = vand.u32 %v1937, 4294901760
        %v2197 = vsub.f32 %v1937, %v2196
        %2198 = vmatprep.subr.mxu0 %v2197
        %v2199 = vand.u32 %v1936, 4294901760
        %v2200 = vsub.f32 %v1936, %v2199
        %2201 = vmatpush1.msra.mxu0 %v2200
        %v2202 = vand.u32 %v1943, 4294901760
        %v2203 = vsub.f32 %v1943, %v2202
        %2204 = vmatprep.subr.mxu0 %v2203
        %v2205 = vand.u32 %v1942, 4294901760
        %v2206 = vsub.f32 %v1942, %v2205
        %2207 = vmatpush1.msra.mxu0 %v2206
        %v2208 = vand.u32 %v1949, 4294901760
        %v2209 = vsub.f32 %v1949, %v2208
        %2210 = vmatprep.subr.mxu0 %v2209
        %v2211 = vand.u32 %v1948, 4294901760
        %v2212 = vsub.f32 %v1948, %v2211
        %2213 = vmatpush1.msra.mxu0 %v2212
        %v2214 = vand.u32 %v1955, 4294901760
        %v2215 = vsub.f32 %v1955, %v2214
        %2216 = vmatprep.subr.mxu0 %v2215
        %v2217 = vand.u32 %v1954, 4294901760
        %v2218 = vsub.f32 %v1954, %v2217
        %2219 = vmatpush1.msra.mxu0 %v2218
        %v2220 = vand.u32 %v1961, 4294901760
        %v2221 = vsub.f32 %v1961, %v2220
        %2222 = vmatprep.subr.mxu0 %v2221
        %v2223 = vand.u32 %v1960, 4294901760
        %v2224 = vsub.f32 %v1960, %v2223
        %2225 = vmatpush1.msra.mxu0 %v2224
        %2226 = vmatprep.subr.mxu0 0.0
        %2227 = vmatpush1.msra.mxu0 0.0
        %2228 = vmatprep.subr.mxu0 0.0
        %2229 = vmatpush1.msra.mxu0 0.0
        %2230 = vmatprep.subr.mxu0 0.0
        %2231 = vmatpush1.msra.mxu0 0.0
        %2232 = vmatprep.subr.mxu0 0.0
        %2233 = vmatpush1.msra.mxu0 0.0
        %2234 = vmatprep.subr.mxu0 0.0
        %2235 = vmatpush1.msra.mxu0 0.0
        %2236 = vmatprep.subr.mxu0 0.0
        %2237 = vmatpush1.msra.mxu0 0.0
        %2238 = vmatprep.subr.mxu0 0.0
        %2239 = vmatpush1.msra.mxu0 0.0
        %2240 = vmatprep.subr.mxu0 0.0
        %2241 = vmatpush1.msra.mxu0 0.0
        %2242 = vmatprep.subr.mxu0 0.0
        %2243 = vmatpush1.msra.mxu0 0.0
        %2244 = vmatprep.subr.mxu0 0.0
        %2245 = vmatpush1.msra.mxu0 0.0
        %2246 = vmatprep.subr.mxu0 0.0
        %2247 = vmatpush1.msra.mxu0 0.0
        %2248 = vmatprep.subr.mxu0 0.0
        %2249 = vmatpush1.msra.mxu0 0.0
        %2250 = vmatprep.subr.mxu0 0.0
        %2251 = vmatpush1.msra.mxu0 0.0
        %2252 = vmatprep.subr.mxu0 0.0
        %2253 = vmatpush1.msra.mxu0 0.0
        %2254 = vmatprep.subr.mxu0 0.0
        %2255 = vmatpush1.msra.mxu0 0.0
        %2256 = vmatprep.subr.mxu0 0.0
        %2257 = vmatpush1.msra.mxu0 0.0
        %2258 = vmatprep.subr.mxu0 0.0
        %2259 = vmatpush1.msra.mxu0 0.0
        %2260 = vmatprep.subr.mxu0 0.0
        %2261 = vmatpush1.msra.mxu0 0.0
        %2262 = vmatprep.subr.mxu0 0.0
        %2263 = vmatpush1.msra.mxu0 0.0
        %2264 = vmatprep.subr.mxu0 0.0
        %2265 = vmatpush1.msra.mxu0 0.0
        %2266 = vmatprep.subr.mxu0 0.0
        %2267 = vmatpush1.msra.mxu0 0.0
        %2268 = vmatprep.subr.mxu0 0.0
        %2269 = vmatpush1.msra.mxu0 0.0
        %2270 = vmatprep.subr.mxu0 0.0
        %2271 = vmatpush1.msra.mxu0 0.0
        %2272 = vmatprep.subr.mxu0 0.0
        %2273 = vmatpush1.msra.mxu0 0.0
        %2274 = vmatprep.subr.mxu0 0.0
        %2275 = vmatpush1.msra.mxu0 0.0
        %2276 = vmatprep.subr.mxu0 0.0
        %2277 = vmatpush1.msra.mxu0 0.0
        %2278 = vmatprep.mubr.f32.mxu0 0.0
        %v2279 = vand.u32 %v1968, 4294901760
        %v2280 = vsub.f32 %v1968, %v2279
        %2281 = vmatmul.mubr.f32.gmra.mrb[0].mxu0 %v2280
        %v2282 = vpop.f32.mrb[0].mxu0
        %v2283 = vadd.f32 %v2186, %v2282
        %v2284 = vpop.f32.mrb[0].mxu0
        %v2285 = vadd.f32 %v2188, %v2284
        %2286 = vdwg.mxu0
        %v2287 = vand.u32 %v1931, 4294901760
        %2288 = vmatprep.subr.mxu0 %v2287
        %v2289 = vand.u32 %v1930, 4294901760
        %2290 = vmatpush1.msra.mxu0 %v2289
        %v2291 = vand.u32 %v1937, 4294901760
        %2292 = vmatprep.subr.mxu0 %v2291
        %v2293 = vand.u32 %v1936, 4294901760
        %2294 = vmatpush1.msra.mxu0 %v2293
        %v2295 = vand.u32 %v1943, 4294901760
        %2296 = vmatprep.subr.mxu0 %v2295
        %v2297 = vand.u32 %v1942, 4294901760
        %2298 = vmatpush1.msra.mxu0 %v2297
        %v2299 = vand.u32 %v1949, 4294901760
        %2300 = vmatprep.subr.mxu0 %v2299
        %v2301 = vand.u32 %v1948, 4294901760
        %2302 = vmatpush1.msra.mxu0 %v2301
        %v2303 = vand.u32 %v1955, 4294901760
        %2304 = vmatprep.subr.mxu0 %v2303
        %v2305 = vand.u32 %v1954, 4294901760
        %2306 = vmatpush1.msra.mxu0 %v2305
        %v2307 = vand.u32 %v1961, 4294901760
        %2308 = vmatprep.subr.mxu0 %v2307
        %v2309 = vand.u32 %v1960, 4294901760
        %2310 = vmatpush1.msra.mxu0 %v2309
        %2311 = vmatprep.subr.mxu0 0.0
        %2312 = vmatpush1.msra.mxu0 0.0
        %2313 = vmatprep.subr.mxu0 0.0
        %2314 = vmatpush1.msra.mxu0 0.0
        %2315 = vmatprep.subr.mxu0 0.0
        %2316 = vmatpush1.msra.mxu0 0.0
        %2317 = vmatprep.subr.mxu0 0.0
        %2318 = vmatpush1.msra.mxu0 0.0
        %2319 = vmatprep.subr.mxu0 0.0
        %2320 = vmatpush1.msra.mxu0 0.0
        %2321 = vmatprep.subr.mxu0 0.0
        %2322 = vmatpush1.msra.mxu0 0.0
        %2323 = vmatprep.subr.mxu0 0.0
        %2324 = vmatpush1.msra.mxu0 0.0
        %2325 = vmatprep.subr.mxu0 0.0
        %2326 = vmatpush1.msra.mxu0 0.0
        %2327 = vmatprep.subr.mxu0 0.0
        %2328 = vmatpush1.msra.mxu0 0.0
        %2329 = vmatprep.subr.mxu0 0.0
        %2330 = vmatpush1.msra.mxu0 0.0
        %2331 = vmatprep.subr.mxu0 0.0
        %2332 = vmatpush1.msra.mxu0 0.0
        %2333 = vmatprep.subr.mxu0 0.0
        %2334 = vmatpush1.msra.mxu0 0.0
        %2335 = vmatprep.subr.mxu0 0.0
        %2336 = vmatpush1.msra.mxu0 0.0
        %2337 = vmatprep.subr.mxu0 0.0
        %2338 = vmatpush1.msra.mxu0 0.0
        %2339 = vmatprep.subr.mxu0 0.0
        %2340 = vmatpush1.msra.mxu0 0.0
        %2341 = vmatprep.subr.mxu0 0.0
        %2342 = vmatpush1.msra.mxu0 0.0
        %2343 = vmatprep.subr.mxu0 0.0
        %2344 = vmatpush1.msra.mxu0 0.0
        %2345 = vmatprep.subr.mxu0 0.0
        %2346 = vmatpush1.msra.mxu0 0.0
        %2347 = vmatprep.subr.mxu0 0.0
        %2348 = vmatpush1.msra.mxu0 0.0
        %2349 = vmatprep.subr.mxu0 0.0
        %2350 = vmatpush1.msra.mxu0 0.0
        %2351 = vmatprep.subr.mxu0 0.0
        %2352 = vmatpush1.msra.mxu0 0.0
        %2353 = vmatprep.subr.mxu0 0.0
        %2354 = vmatpush1.msra.mxu0 0.0
        %2355 = vmatprep.subr.mxu0 0.0
        %2356 = vmatpush1.msra.mxu0 0.0
        %2357 = vmatprep.subr.mxu0 0.0
        %2358 = vmatpush1.msra.mxu0 0.0
        %2359 = vmatprep.subr.mxu0 0.0
        %2360 = vmatpush1.msra.mxu0 0.0
        %2361 = vmatprep.subr.mxu0 0.0
        %2362 = vmatpush1.msra.mxu0 0.0
        %2363 = vmatprep.mubr.f32.mxu0 0.0
        %v2364 = vand.u32 %v1968, 4294901760
        %v2365 = vsub.f32 %v1968, %v2364
        %v2366 = vand.u32 %v2365, 4294901760
        %2367 = vmatmul.mubr.f32.gmra.mrb[0].mxu0 %v2366
        %v2368 = vpop.f32.mrb[0].mxu0
        %v2369 = vadd.f32 %v2283, %v2368
        %v2370 = vpop.f32.mrb[0].mxu0
        %v2371 = vadd.f32 %v2285, %v2370
        %2372 = vdwg.mxu0
        %v2373 = vand.u32 %v1931, 4294901760
        %v2374 = vsub.f32 %v1931, %v2373
        %v2375 = vand.u32 %v2374, 4294901760
        %2376 = vmatprep.subr.mxu0 %v2375
        %v2377 = vand.u32 %v1930, 4294901760
        %v2378 = vsub.f32 %v1930, %v2377
        %v2379 = vand.u32 %v2378, 4294901760
        %2380 = vmatpush1.msra.mxu0 %v2379
        %v2381 = vand.u32 %v1937, 4294901760
        %v2382 = vsub.f32 %v1937, %v2381
        %v2383 = vand.u32 %v2382, 4294901760
        %2384 = vmatprep.subr.mxu0 %v2383
        %v2385 = vand.u32 %v1936, 4294901760
        %v2386 = vsub.f32 %v1936, %v2385
        %v2387 = vand.u32 %v2386, 4294901760
        %2388 = vmatpush1.msra.mxu0 %v2387
        %v2389 = vand.u32 %v1943, 4294901760
        %v2390 = vsub.f32 %v1943, %v2389
        %v2391 = vand.u32 %v2390, 4294901760
        %2392 = vmatprep.subr.mxu0 %v2391
        %v2393 = vand.u32 %v1942, 4294901760
        %v2394 = vsub.f32 %v1942, %v2393
        %v2395 = vand.u32 %v2394, 4294901760
        %2396 = vmatpush1.msra.mxu0 %v2395
        %v2397 = vand.u32 %v1949, 4294901760
        %v2398 = vsub.f32 %v1949, %v2397
        %v2399 = vand.u32 %v2398, 4294901760
        %2400 = vmatprep.subr.mxu0 %v2399
        %v2401 = vand.u32 %v1948, 4294901760
        %v2402 = vsub.f32 %v1948, %v2401
        %v2403 = vand.u32 %v2402, 4294901760
        %2404 = vmatpush1.msra.mxu0 %v2403
        %v2405 = vand.u32 %v1955, 4294901760
        %v2406 = vsub.f32 %v1955, %v2405
        %v2407 = vand.u32 %v2406, 4294901760
        %2408 = vmatprep.subr.mxu0 %v2407
        %v2409 = vand.u32 %v1954, 4294901760
        %v2410 = vsub.f32 %v1954, %v2409
        %v2411 = vand.u32 %v2410, 4294901760
        %2412 = vmatpush1.msra.mxu0 %v2411
        %v2413 = vand.u32 %v1961, 4294901760
        %v2414 = vsub.f32 %v1961, %v2413
        %v2415 = vand.u32 %v2414, 4294901760
        %2416 = vmatprep.subr.mxu0 %v2415
        %v2417 = vand.u32 %v1960, 4294901760
        %v2418 = vsub.f32 %v1960, %v2417
        %v2419 = vand.u32 %v2418, 4294901760
        %2420 = vmatpush1.msra.mxu0 %v2419
        %2421 = vmatprep.subr.mxu0 0.0
        %2422 = vmatpush1.msra.mxu0 0.0
        %2423 = vmatprep.subr.mxu0 0.0
        %2424 = vmatpush1.msra.mxu0 0.0
        %2425 = vmatprep.subr.mxu0 0.0
        %2426 = vmatpush1.msra.mxu0 0.0
        %2427 = vmatprep.subr.mxu0 0.0
        %2428 = vmatpush1.msra.mxu0 0.0
        %2429 = vmatprep.subr.mxu0 0.0
        %2430 = vmatpush1.msra.mxu0 0.0
        %2431 = vmatprep.subr.mxu0 0.0
        %2432 = vmatpush1.msra.mxu0 0.0
        %2433 = vmatprep.subr.mxu0 0.0
        %2434 = vmatpush1.msra.mxu0 0.0
        %2435 = vmatprep.subr.mxu0 0.0
        %2436 = vmatpush1.msra.mxu0 0.0
        %2437 = vmatprep.subr.mxu0 0.0
        %2438 = vmatpush1.msra.mxu0 0.0
        %2439 = vmatprep.subr.mxu0 0.0
        %2440 = vmatpush1.msra.mxu0 0.0
        %2441 = vmatprep.subr.mxu0 0.0
        %2442 = vmatpush1.msra.mxu0 0.0
        %2443 = vmatprep.subr.mxu0 0.0
        %2444 = vmatpush1.msra.mxu0 0.0
        %2445 = vmatprep.subr.mxu0 0.0
        %2446 = vmatpush1.msra.mxu0 0.0
        %2447 = vmatprep.subr.mxu0 0.0
        %2448 = vmatpush1.msra.mxu0 0.0
        %2449 = vmatprep.subr.mxu0 0.0
        %2450 = vmatpush1.msra.mxu0 0.0
        %2451 = vmatprep.subr.mxu0 0.0
        %2452 = vmatpush1.msra.mxu0 0.0
        %2453 = vmatprep.subr.mxu0 0.0
        %2454 = vmatpush1.msra.mxu0 0.0
        %2455 = vmatprep.subr.mxu0 0.0
        %2456 = vmatpush1.msra.mxu0 0.0
        %2457 = vmatprep.subr.mxu0 0.0
        %2458 = vmatpush1.msra.mxu0 0.0
        %2459 = vmatprep.subr.mxu0 0.0
        %2460 = vmatpush1.msra.mxu0 0.0
        %2461 = vmatprep.subr.mxu0 0.0
        %2462 = vmatpush1.msra.mxu0 0.0
        %2463 = vmatprep.subr.mxu0 0.0
        %2464 = vmatpush1.msra.mxu0 0.0
        %2465 = vmatprep.subr.mxu0 0.0
        %2466 = vmatpush1.msra.mxu0 0.0
        %2467 = vmatprep.subr.mxu0 0.0
        %2468 = vmatpush1.msra.mxu0 0.0
        %2469 = vmatprep.subr.mxu0 0.0
        %2470 = vmatpush1.msra.mxu0 0.0
        %2471 = vmatprep.subr.mxu0 0.0
        %2472 = vmatpush1.msra.mxu0 0.0
        %2473 = vmatprep.mubr.f32.mxu0 0.0
        %v2474 = vand.u32 %v1968, 4294901760
        %2475 = vmatmul.mubr.f32.gmra.mrb[0].mxu0 %v2474
        %v2476 = vpop.f32.mrb[0].mxu0
        %v2477 = vadd.f32 %v2369, %v2476
        %v2478 = vpop.f32.mrb[0].mxu0
        %v2479 = vadd.f32 %v2371, %v2478
        %2480 = vdwg.mxu0
        %v2481 = vand.u32 %v1931, 4294901760
        %2482 = vmatprep.subr.mxu0 %v2481
        %v2483 = vand.u32 %v1930, 4294901760
        %2484 = vmatpush1.msra.mxu0 %v2483
        %v2485 = vand.u32 %v1937, 4294901760
        %2486 = vmatprep.subr.mxu0 %v2485
        %v2487 = vand.u32 %v1936, 4294901760
        %2488 = vmatpush1.msra.mxu0 %v2487
        %v2489 = vand.u32 %v1943, 4294901760
        %2490 = vmatprep.subr.mxu0 %v2489
        %v2491 = vand.u32 %v1942, 4294901760
        %2492 = vmatpush1.msra.mxu0 %v2491
        %v2493 = vand.u32 %v1949, 4294901760
        %2494 = vmatprep.subr.mxu0 %v2493
        %v2495 = vand.u32 %v1948, 4294901760
        %2496 = vmatpush1.msra.mxu0 %v2495
        %v2497 = vand.u32 %v1955, 4294901760
        %2498 = vmatprep.subr.mxu0 %v2497
        %v2499 = vand.u32 %v1954, 4294901760
        %2500 = vmatpush1.msra.mxu0 %v2499
        %v2501 = vand.u32 %v1961, 4294901760
        %2502 = vmatprep.subr.mxu0 %v2501
        %v2503 = vand.u32 %v1960, 4294901760
        %2504 = vmatpush1.msra.mxu0 %v2503
        %2505 = vmatprep.subr.mxu0 0.0
        %2506 = vmatpush1.msra.mxu0 0.0
        %2507 = vmatprep.subr.mxu0 0.0
        %2508 = vmatpush1.msra.mxu0 0.0
        %2509 = vmatprep.subr.mxu0 0.0
        %2510 = vmatpush1.msra.mxu0 0.0
        %2511 = vmatprep.subr.mxu0 0.0
        %2512 = vmatpush1.msra.mxu0 0.0
        %2513 = vmatprep.subr.mxu0 0.0
        %2514 = vmatpush1.msra.mxu0 0.0
        %2515 = vmatprep.subr.mxu0 0.0
        %2516 = vmatpush1.msra.mxu0 0.0
        %2517 = vmatprep.subr.mxu0 0.0
        %2518 = vmatpush1.msra.mxu0 0.0
        %2519 = vmatprep.subr.mxu0 0.0
        %2520 = vmatpush1.msra.mxu0 0.0
        %2521 = vmatprep.subr.mxu0 0.0
        %2522 = vmatpush1.msra.mxu0 0.0
        %2523 = vmatprep.subr.mxu0 0.0
        %2524 = vmatpush1.msra.mxu0 0.0
        %2525 = vmatprep.subr.mxu0 0.0
        %2526 = vmatpush1.msra.mxu0 0.0
        %2527 = vmatprep.subr.mxu0 0.0
        %2528 = vmatpush1.msra.mxu0 0.0
        %2529 = vmatprep.subr.mxu0 0.0
        %2530 = vmatpush1.msra.mxu0 0.0
        %2531 = vmatprep.subr.mxu0 0.0
        %2532 = vmatpush1.msra.mxu0 0.0
        %2533 = vmatprep.subr.mxu0 0.0
        %2534 = vmatpush1.msra.mxu0 0.0
        %2535 = vmatprep.subr.mxu0 0.0
        %2536 = vmatpush1.msra.mxu0 0.0
        %2537 = vmatprep.subr.mxu0 0.0
        %2538 = vmatpush1.msra.mxu0 0.0
        %2539 = vmatprep.subr.mxu0 0.0
        %2540 = vmatpush1.msra.mxu0 0.0
        %2541 = vmatprep.subr.mxu0 0.0
        %2542 = vmatpush1.msra.mxu0 0.0
        %2543 = vmatprep.subr.mxu0 0.0
        %2544 = vmatpush1.msra.mxu0 0.0
        %2545 = vmatprep.subr.mxu0 0.0
        %2546 = vmatpush1.msra.mxu0 0.0
        %2547 = vmatprep.subr.mxu0 0.0
        %2548 = vmatpush1.msra.mxu0 0.0
        %2549 = vmatprep.subr.mxu0 0.0
        %2550 = vmatpush1.msra.mxu0 0.0
        %2551 = vmatprep.subr.mxu0 0.0
        %2552 = vmatpush1.msra.mxu0 0.0
        %2553 = vmatprep.subr.mxu0 0.0
        %2554 = vmatpush1.msra.mxu0 0.0
        %2555 = vmatprep.subr.mxu0 0.0
        %2556 = vmatpush1.msra.mxu0 0.0
        %2557 = vmatprep.mubr.f32.mxu0 0.0
        %v2558 = vand.u32 %v1968, 4294901760
        %2559 = vmatmul.mubr.f32.gmra.mrb[0].mxu0 %v2558
        %v2560 = vpop.f32.mrb[0].mxu0
        %v2561 = vadd.f32 %v2477, %v2560
        %v2562 = vpop.f32.mrb[0].mxu0
        %v2563 = vadd.f32 %v2479, %v2562
        %2564 = vdwg.mxu0
        %v2565 = vand.u32 %v1933, 4294901760
        %2566 = vmatprep.subr.mxu0 %v2565
        %v2567 = vand.u32 %v1932, 4294901760
        %2568 = vmatpush1.msra.mxu0 %v2567
        %v2569 = vand.u32 %v1939, 4294901760
        %2570 = vmatprep.subr.mxu0 %v2569
        %v2571 = vand.u32 %v1938, 4294901760
        %2572 = vmatpush1.msra.mxu0 %v2571
        %v2573 = vand.u32 %v1945, 4294901760
        %2574 = vmatprep.subr.mxu0 %v2573
        %v2575 = vand.u32 %v1944, 4294901760
        %2576 = vmatpush1.msra.mxu0 %v2575
        %v2577 = vand.u32 %v1951, 4294901760
        %2578 = vmatprep.subr.mxu0 %v2577
        %v2579 = vand.u32 %v1950, 4294901760
        %2580 = vmatpush1.msra.mxu0 %v2579
        %v2581 = vand.u32 %v1957, 4294901760
        %2582 = vmatprep.subr.mxu0 %v2581
        %v2583 = vand.u32 %v1956, 4294901760
        %2584 = vmatpush1.msra.mxu0 %v2583
        %v2585 = vand.u32 %v1963, 4294901760
        %2586 = vmatprep.subr.mxu0 %v2585
        %v2587 = vand.u32 %v1962, 4294901760
        %2588 = vmatpush1.msra.mxu0 %v2587
        %2589 = vmatprep.subr.mxu0 0.0
        %2590 = vmatpush1.msra.mxu0 0.0
        %2591 = vmatprep.subr.mxu0 0.0
        %2592 = vmatpush1.msra.mxu0 0.0
        %2593 = vmatprep.subr.mxu0 0.0
        %2594 = vmatpush1.msra.mxu0 0.0
        %2595 = vmatprep.subr.mxu0 0.0
        %2596 = vmatpush1.msra.mxu0 0.0
        %2597 = vmatprep.subr.mxu0 0.0
        %2598 = vmatpush1.msra.mxu0 0.0
        %2599 = vmatprep.subr.mxu0 0.0
        %2600 = vmatpush1.msra.mxu0 0.0
        %2601 = vmatprep.subr.mxu0 0.0
        %2602 = vmatpush1.msra.mxu0 0.0
        %2603 = vmatprep.subr.mxu0 0.0
        %2604 = vmatpush1.msra.mxu0 0.0
        %2605 = vmatprep.subr.mxu0 0.0
        %2606 = vmatpush1.msra.mxu0 0.0
        %2607 = vmatprep.subr.mxu0 0.0
        %2608 = vmatpush1.msra.mxu0 0.0
        %2609 = vmatprep.subr.mxu0 0.0
        %2610 = vmatpush1.msra.mxu0 0.0
        %2611 = vmatprep.subr.mxu0 0.0
        %2612 = vmatpush1.msra.mxu0 0.0
        %2613 = vmatprep.subr.mxu0 0.0
        %2614 = vmatpush1.msra.mxu0 0.0
        %2615 = vmatprep.subr.mxu0 0.0
        %2616 = vmatpush1.msra.mxu0 0.0
        %2617 = vmatprep.subr.mxu0 0.0
        %2618 = vmatpush1.msra.mxu0 0.0
        %2619 = vmatprep.subr.mxu0 0.0
        %2620 = vmatpush1.msra.mxu0 0.0
        %2621 = vmatprep.subr.mxu0 0.0
        %2622 = vmatpush1.msra.mxu0 0.0
        %2623 = vmatprep.subr.mxu0 0.0
        %2624 = vmatpush1.msra.mxu0 0.0
        %2625 = vmatprep.subr.mxu0 0.0
        %2626 = vmatpush1.msra.mxu0 0.0
        %2627 = vmatprep.subr.mxu0 0.0
        %2628 = vmatpush1.msra.mxu0 0.0
        %2629 = vmatprep.subr.mxu0 0.0
        %2630 = vmatpush1.msra.mxu0 0.0
        %2631 = vmatprep.subr.mxu0 0.0
        %2632 = vmatpush1.msra.mxu0 0.0
        %2633 = vmatprep.subr.mxu0 0.0
        %2634 = vmatpush1.msra.mxu0 0.0
        %2635 = vmatprep.subr.mxu0 0.0
        %2636 = vmatpush1.msra.mxu0 0.0
        %2637 = vmatprep.subr.mxu0 0.0
        %2638 = vmatpush1.msra.mxu0 0.0
        %2639 = vmatprep.subr.mxu0 0.0
        %2640 = vmatpush1.msra.mxu0 0.0
        %2641 = vmatprep.mubr.f32.mxu0 0.0
        %v2642 = vand.u32 %v1968, 4294901760
        %v2643 = vsub.f32 %v1968, %v2642
        %v2644 = vand.u32 %v2643, 4294901760
        %v2645 = vsub.f32 %v2643, %v2644
        %v2646 = vand.u32 %v2645, 4294901760
        %2647 = vmatmul.mubr.f32.gmra.mrb[0].mxu0 %v2646
        %v2648 = vpop.f32.mrb[0].mxu0
        %v2649 = vadd.f32 0.0, %v2648
        %v2650 = vpop.f32.mrb[0].mxu0
        %v2651 = vadd.f32 0.0, %v2650
        %2652 = vdwg.mxu0
        %v2653 = vand.u32 %v1933, 4294901760
        %v2654 = vsub.f32 %v1933, %v2653
        %v2655 = vand.u32 %v2654, 4294901760
        %v2656 = vsub.f32 %v2654, %v2655
        %v2657 = vand.u32 %v2656, 4294901760
        %2658 = vmatprep.subr.mxu0 %v2657
        %v2659 = vand.u32 %v1932, 4294901760
        %v2660 = vsub.f32 %v1932, %v2659
        %v2661 = vand.u32 %v2660, 4294901760
        %v2662 = vsub.f32 %v2660, %v2661
        %v2663 = vand.u32 %v2662, 4294901760
        %2664 = vmatpush1.msra.mxu0 %v2663
        %v2665 = vand.u32 %v1939, 4294901760
        %v2666 = vsub.f32 %v1939, %v2665
        %v2667 = vand.u32 %v2666, 4294901760
        %v2668 = vsub.f32 %v2666, %v2667
        %v2669 = vand.u32 %v2668, 4294901760
        %2670 = vmatprep.subr.mxu0 %v2669
        %v2671 = vand.u32 %v1938, 4294901760
        %v2672 = vsub.f32 %v1938, %v2671
        %v2673 = vand.u32 %v2672, 4294901760
        %v2674 = vsub.f32 %v2672, %v2673
        %v2675 = vand.u32 %v2674, 4294901760
        %2676 = vmatpush1.msra.mxu0 %v2675
        %v2677 = vand.u32 %v1945, 4294901760
        %v2678 = vsub.f32 %v1945, %v2677
        %v2679 = vand.u32 %v2678, 4294901760
        %v2680 = vsub.f32 %v2678, %v2679
        %v2681 = vand.u32 %v2680, 4294901760
        %2682 = vmatprep.subr.mxu0 %v2681
        %v2683 = vand.u32 %v1944, 4294901760
        %v2684 = vsub.f32 %v1944, %v2683
        %v2685 = vand.u32 %v2684, 4294901760
        %v2686 = vsub.f32 %v2684, %v2685
        %v2687 = vand.u32 %v2686, 4294901760
        %2688 = vmatpush1.msra.mxu0 %v2687
        %v2689 = vand.u32 %v1951, 4294901760
        %v2690 = vsub.f32 %v1951, %v2689
        %v2691 = vand.u32 %v2690, 4294901760
        %v2692 = vsub.f32 %v2690, %v2691
        %v2693 = vand.u32 %v2692, 4294901760
        %2694 = vmatprep.subr.mxu0 %v2693
        %v2695 = vand.u32 %v1950, 4294901760
        %v2696 = vsub.f32 %v1950, %v2695
        %v2697 = vand.u32 %v2696, 4294901760
        %v2698 = vsub.f32 %v2696, %v2697
        %v2699 = vand.u32 %v2698, 4294901760
        %2700 = vmatpush1.msra.mxu0 %v2699
        %v2701 = vand.u32 %v1957, 4294901760
        %v2702 = vsub.f32 %v1957, %v2701
        %v2703 = vand.u32 %v2702, 4294901760
        %v2704 = vsub.f32 %v2702, %v2703
        %v2705 = vand.u32 %v2704, 4294901760
        %2706 = vmatprep.subr.mxu0 %v2705
        %v2707 = vand.u32 %v1956, 4294901760
        %v2708 = vsub.f32 %v1956, %v2707
        %v2709 = vand.u32 %v2708, 4294901760
        %v2710 = vsub.f32 %v2708, %v2709
        %v2711 = vand.u32 %v2710, 4294901760
        %2712 = vmatpush1.msra.mxu0 %v2711
        %v2713 = vand.u32 %v1963, 4294901760
        %v2714 = vsub.f32 %v1963, %v2713
        %v2715 = vand.u32 %v2714, 4294901760
        %v2716 = vsub.f32 %v2714, %v2715
        %v2717 = vand.u32 %v2716, 4294901760
        %2718 = vmatprep.subr.mxu0 %v2717
        %v2719 = vand.u32 %v1962, 4294901760
        %v2720 = vsub.f32 %v1962, %v2719
        %v2721 = vand.u32 %v2720, 4294901760
        %v2722 = vsub.f32 %v2720, %v2721
        %v2723 = vand.u32 %v2722, 4294901760
        %2724 = vmatpush1.msra.mxu0 %v2723
        %2725 = vmatprep.subr.mxu0 0.0
        %2726 = vmatpush1.msra.mxu0 0.0
        %2727 = vmatprep.subr.mxu0 0.0
        %2728 = vmatpush1.msra.mxu0 0.0
        %2729 = vmatprep.subr.mxu0 0.0
        %2730 = vmatpush1.msra.mxu0 0.0
        %2731 = vmatprep.subr.mxu0 0.0
        %2732 = vmatpush1.msra.mxu0 0.0
        %2733 = vmatprep.subr.mxu0 0.0
        %2734 = vmatpush1.msra.mxu0 0.0
        %2735 = vmatprep.subr.mxu0 0.0
        %2736 = vmatpush1.msra.mxu0 0.0
        %2737 = vmatprep.subr.mxu0 0.0
        %2738 = vmatpush1.msra.mxu0 0.0
        %2739 = vmatprep.subr.mxu0 0.0
        %2740 = vmatpush1.msra.mxu0 0.0
        %2741 = vmatprep.subr.mxu0 0.0
        %2742 = vmatpush1.msra.mxu0 0.0
        %2743 = vmatprep.subr.mxu0 0.0
        %2744 = vmatpush1.msra.mxu0 0.0
        %2745 = vmatprep.subr.mxu0 0.0
        %2746 = vmatpush1.msra.mxu0 0.0
        %2747 = vmatprep.subr.mxu0 0.0
        %2748 = vmatpush1.msra.mxu0 0.0
        %2749 = vmatprep.subr.mxu0 0.0
        %2750 = vmatpush1.msra.mxu0 0.0
        %2751 = vmatprep.subr.mxu0 0.0
        %2752 = vmatpush1.msra.mxu0 0.0
        %2753 = vmatprep.subr.mxu0 0.0
        %2754 = vmatpush1.msra.mxu0 0.0
        %2755 = vmatprep.subr.mxu0 0.0
        %2756 = vmatpush1.msra.mxu0 0.0
        %2757 = vmatprep.subr.mxu0 0.0
        %2758 = vmatpush1.msra.mxu0 0.0
        %2759 = vmatprep.subr.mxu0 0.0
        %2760 = vmatpush1.msra.mxu0 0.0
        %2761 = vmatprep.subr.mxu0 0.0
        %2762 = vmatpush1.msra.mxu0 0.0
        %2763 = vmatprep.subr.mxu0 0.0
        %2764 = vmatpush1.msra.mxu0 0.0
        %2765 = vmatprep.subr.mxu0 0.0
        %2766 = vmatpush1.msra.mxu0 0.0
        %2767 = vmatprep.subr.mxu0 0.0
        %2768 = vmatpush1.msra.mxu0 0.0
        %2769 = vmatprep.subr.mxu0 0.0
        %2770 = vmatpush1.msra.mxu0 0.0
        %2771 = vmatprep.subr.mxu0 0.0
        %2772 = vmatpush1.msra.mxu0 0.0
        %2773 = vmatprep.subr.mxu0 0.0
        %2774 = vmatpush1.msra.mxu0 0.0
        %2775 = vmatprep.subr.mxu0 0.0
        %2776 = vmatpush1.msra.mxu0 0.0
        %2777 = vmatprep.mubr.f32.mxu0 0.0
        %v2778 = vand.u32 %v1968, 4294901760
        %2779 = vmatmul.mubr.f32.gmra.mrb[0].mxu0 %v2778
        %v2780 = vpop.f32.mrb[0].mxu0
        %v2781 = vadd.f32 %v2649, %v2780
        %v2782 = vpop.f32.mrb[0].mxu0
        %v2783 = vadd.f32 %v2651, %v2782
        %2784 = vdwg.mxu0
        %v2785 = vand.u32 %v1933, 4294901760
        %v2786 = vsub.f32 %v1933, %v2785
        %2787 = vmatprep.subr.mxu0 %v2786
        %v2788 = vand.u32 %v1932, 4294901760
        %v2789 = vsub.f32 %v1932, %v2788
        %2790 = vmatpush1.msra.mxu0 %v2789
        %v2791 = vand.u32 %v1939, 4294901760
        %v2792 = vsub.f32 %v1939, %v2791
        %2793 = vmatprep.subr.mxu0 %v2792
        %v2794 = vand.u32 %v1938, 4294901760
        %v2795 = vsub.f32 %v1938, %v2794
        %2796 = vmatpush1.msra.mxu0 %v2795
        %v2797 = vand.u32 %v1945, 4294901760
        %v2798 = vsub.f32 %v1945, %v2797
        %2799 = vmatprep.subr.mxu0 %v2798
        %v2800 = vand.u32 %v1944, 4294901760
        %v2801 = vsub.f32 %v1944, %v2800
        %2802 = vmatpush1.msra.mxu0 %v2801
        %v2803 = vand.u32 %v1951, 4294901760
        %v2804 = vsub.f32 %v1951, %v2803
        %2805 = vmatprep.subr.mxu0 %v2804
        %v2806 = vand.u32 %v1950, 4294901760
        %v2807 = vsub.f32 %v1950, %v2806
        %2808 = vmatpush1.msra.mxu0 %v2807
        %v2809 = vand.u32 %v1957, 4294901760
        %v2810 = vsub.f32 %v1957, %v2809
        %2811 = vmatprep.subr.mxu0 %v2810
        %v2812 = vand.u32 %v1956, 4294901760
        %v2813 = vsub.f32 %v1956, %v2812
        %2814 = vmatpush1.msra.mxu0 %v2813
        %v2815 = vand.u32 %v1963, 4294901760
        %v2816 = vsub.f32 %v1963, %v2815
        %2817 = vmatprep.subr.mxu0 %v2816
        %v2818 = vand.u32 %v1962, 4294901760
        %v2819 = vsub.f32 %v1962, %v2818
        %2820 = vmatpush1.msra.mxu0 %v2819
        %2821 = vmatprep.subr.mxu0 0.0
        %2822 = vmatpush1.msra.mxu0 0.0
        %2823 = vmatprep.subr.mxu0 0.0
        %2824 = vmatpush1.msra.mxu0 0.0
        %2825 = vmatprep.subr.mxu0 0.0
        %2826 = vmatpush1.msra.mxu0 0.0
        %2827 = vmatprep.subr.mxu0 0.0
        %2828 = vmatpush1.msra.mxu0 0.0
        %2829 = vmatprep.subr.mxu0 0.0
        %2830 = vmatpush1.msra.mxu0 0.0
        %2831 = vmatprep.subr.mxu0 0.0
        %2832 = vmatpush1.msra.mxu0 0.0
        %2833 = vmatprep.subr.mxu0 0.0
        %2834 = vmatpush1.msra.mxu0 0.0
        %2835 = vmatprep.subr.mxu0 0.0
        %2836 = vmatpush1.msra.mxu0 0.0
        %2837 = vmatprep.subr.mxu0 0.0
        %2838 = vmatpush1.msra.mxu0 0.0
        %2839 = vmatprep.subr.mxu0 0.0
        %2840 = vmatpush1.msra.mxu0 0.0
        %2841 = vmatprep.subr.mxu0 0.0
        %2842 = vmatpush1.msra.mxu0 0.0
        %2843 = vmatprep.subr.mxu0 0.0
        %2844 = vmatpush1.msra.mxu0 0.0
        %2845 = vmatprep.subr.mxu0 0.0
        %2846 = vmatpush1.msra.mxu0 0.0
        %2847 = vmatprep.subr.mxu0 0.0
        %2848 = vmatpush1.msra.mxu0 0.0
        %2849 = vmatprep.subr.mxu0 0.0
        %2850 = vmatpush1.msra.mxu0 0.0
        %2851 = vmatprep.subr.mxu0 0.0
        %2852 = vmatpush1.msra.mxu0 0.0
        %2853 = vmatprep.subr.mxu0 0.0
        %2854 = vmatpush1.msra.mxu0 0.0
        %2855 = vmatprep.subr.mxu0 0.0
        %2856 = vmatpush1.msra.mxu0 0.0
        %2857 = vmatprep.subr.mxu0 0.0
        %2858 = vmatpush1.msra.mxu0 0.0
        %2859 = vmatprep.subr.mxu0 0.0
        %2860 = vmatpush1.msra.mxu0 0.0
        %2861 = vmatprep.subr.mxu0 0.0
        %2862 = vmatpush1.msra.mxu0 0.0
        %2863 = vmatprep.subr.mxu0 0.0
        %2864 = vmatpush1.msra.mxu0 0.0
        %2865 = vmatprep.subr.mxu0 0.0
        %2866 = vmatpush1.msra.mxu0 0.0
        %2867 = vmatprep.subr.mxu0 0.0
        %2868 = vmatpush1.msra.mxu0 0.0
        %2869 = vmatprep.subr.mxu0 0.0
        %2870 = vmatpush1.msra.mxu0 0.0
        %2871 = vmatprep.subr.mxu0 0.0
        %2872 = vmatpush1.msra.mxu0 0.0
        %2873 = vmatprep.mubr.f32.mxu0 0.0
        %v2874 = vand.u32 %v1968, 4294901760
        %v2875 = vsub.f32 %v1968, %v2874
        %2876 = vmatmul.mubr.f32.gmra.mrb[0].mxu0 %v2875
        %v2877 = vpop.f32.mrb[0].mxu0
        %v2878 = vadd.f32 %v2781, %v2877
        %v2879 = vpop.f32.mrb[0].mxu0
        %v2880 = vadd.f32 %v2783, %v2879
        %2881 = vdwg.mxu0
        %v2882 = vand.u32 %v1933, 4294901760
        %2883 = vmatprep.subr.mxu0 %v2882
        %v2884 = vand.u32 %v1932, 4294901760
        %2885 = vmatpush1.msra.mxu0 %v2884
        %v2886 = vand.u32 %v1939, 4294901760
        %2887 = vmatprep.subr.mxu0 %v2886
        %v2888 = vand.u32 %v1938, 4294901760
        %2889 = vmatpush1.msra.mxu0 %v2888
        %v2890 = vand.u32 %v1945, 4294901760
        %2891 = vmatprep.subr.mxu0 %v2890
        %v2892 = vand.u32 %v1944, 4294901760
        %2893 = vmatpush1.msra.mxu0 %v2892
        %v2894 = vand.u32 %v1951, 4294901760
        %2895 = vmatprep.subr.mxu0 %v2894
        %v2896 = vand.u32 %v1950, 4294901760
        %2897 = vmatpush1.msra.mxu0 %v2896
        %v2898 = vand.u32 %v1957, 4294901760
        %2899 = vmatprep.subr.mxu0 %v2898
        %v2900 = vand.u32 %v1956, 4294901760
        %2901 = vmatpush1.msra.mxu0 %v2900
        %v2902 = vand.u32 %v1963, 4294901760
        %2903 = vmatprep.subr.mxu0 %v2902
        %v2904 = vand.u32 %v1962, 4294901760
        %2905 = vmatpush1.msra.mxu0 %v2904
        %2906 = vmatprep.subr.mxu0 0.0
        %2907 = vmatpush1.msra.mxu0 0.0
        %2908 = vmatprep.subr.mxu0 0.0
        %2909 = vmatpush1.msra.mxu0 0.0
        %2910 = vmatprep.subr.mxu0 0.0
        %2911 = vmatpush1.msra.mxu0 0.0
        %2912 = vmatprep.subr.mxu0 0.0
        %2913 = vmatpush1.msra.mxu0 0.0
        %2914 = vmatprep.subr.mxu0 0.0
        %2915 = vmatpush1.msra.mxu0 0.0
        %2916 = vmatprep.subr.mxu0 0.0
        %2917 = vmatpush1.msra.mxu0 0.0
        %2918 = vmatprep.subr.mxu0 0.0
        %2919 = vmatpush1.msra.mxu0 0.0
        %2920 = vmatprep.subr.mxu0 0.0
        %2921 = vmatpush1.msra.mxu0 0.0
        %2922 = vmatprep.subr.mxu0 0.0
        %2923 = vmatpush1.msra.mxu0 0.0
        %2924 = vmatprep.subr.mxu0 0.0
        %2925 = vmatpush1.msra.mxu0 0.0
        %2926 = vmatprep.subr.mxu0 0.0
        %2927 = vmatpush1.msra.mxu0 0.0
        %2928 = vmatprep.subr.mxu0 0.0
        %2929 = vmatpush1.msra.mxu0 0.0
        %2930 = vmatprep.subr.mxu0 0.0
        %2931 = vmatpush1.msra.mxu0 0.0
        %2932 = vmatprep.subr.mxu0 0.0
        %2933 = vmatpush1.msra.mxu0 0.0
        %2934 = vmatprep.subr.mxu0 0.0
        %2935 = vmatpush1.msra.mxu0 0.0
        %2936 = vmatprep.subr.mxu0 0.0
        %2937 = vmatpush1.msra.mxu0 0.0
        %2938 = vmatprep.subr.mxu0 0.0
        %2939 = vmatpush1.msra.mxu0 0.0
        %2940 = vmatprep.subr.mxu0 0.0
        %2941 = vmatpush1.msra.mxu0 0.0
        %2942 = vmatprep.subr.mxu0 0.0
        %2943 = vmatpush1.msra.mxu0 0.0
        %2944 = vmatprep.subr.mxu0 0.0
        %2945 = vmatpush1.msra.mxu0 0.0
        %2946 = vmatprep.subr.mxu0 0.0
        %2947 = vmatpush1.msra.mxu0 0.0
        %2948 = vmatprep.subr.mxu0 0.0
        %2949 = vmatpush1.msra.mxu0 0.0
        %2950 = vmatprep.subr.mxu0 0.0
        %2951 = vmatpush1.msra.mxu0 0.0
        %2952 = vmatprep.subr.mxu0 0.0
        %2953 = vmatpush1.msra.mxu0 0.0
        %2954 = vmatprep.subr.mxu0 0.0
        %2955 = vmatpush1.msra.mxu0 0.0
        %2956 = vmatprep.subr.mxu0 0.0
        %2957 = vmatpush1.msra.mxu0 0.0
        %2958 = vmatprep.mubr.f32.mxu0 0.0
        %v2959 = vand.u32 %v1968, 4294901760
        %v2960 = vsub.f32 %v1968, %v2959
        %v2961 = vand.u32 %v2960, 4294901760
        %2962 = vmatmul.mubr.f32.gmra.mrb[0].mxu0 %v2961
        %v2963 = vpop.f32.mrb[0].mxu0
        %v2964 = vadd.f32 %v2878, %v2963
        %v2965 = vpop.f32.mrb[0].mxu0
        %v2966 = vadd.f32 %v2880, %v2965
        %2967 = vdwg.mxu0
        %v2968 = vand.u32 %v1933, 4294901760
        %v2969 = vsub.f32 %v1933, %v2968
        %v2970 = vand.u32 %v2969, 4294901760
        %2971 = vmatprep.subr.mxu0 %v2970
        %v2972 = vand.u32 %v1932, 4294901760
        %v2973 = vsub.f32 %v1932, %v2972
        %v2974 = vand.u32 %v2973, 4294901760
        %2975 = vmatpush1.msra.mxu0 %v2974
        %v2976 = vand.u32 %v1939, 4294901760
        %v2977 = vsub.f32 %v1939, %v2976
        %v2978 = vand.u32 %v2977, 4294901760
        %2979 = vmatprep.subr.mxu0 %v2978
        %v2980 = vand.u32 %v1938, 4294901760
        %v2981 = vsub.f32 %v1938, %v2980
        %v2982 = vand.u32 %v2981, 4294901760
        %2983 = vmatpush1.msra.mxu0 %v2982
        %v2984 = vand.u32 %v1945, 4294901760
        %v2985 = vsub.f32 %v1945, %v2984
        %v2986 = vand.u32 %v2985, 4294901760
        %2987 = vmatprep.subr.mxu0 %v2986
        %v2988 = vand.u32 %v1944, 4294901760
        %v2989 = vsub.f32 %v1944, %v2988
        %v2990 = vand.u32 %v2989, 4294901760
        %2991 = vmatpush1.msra.mxu0 %v2990
        %v2992 = vand.u32 %v1951, 4294901760
        %v2993 = vsub.f32 %v1951, %v2992
        %v2994 = vand.u32 %v2993, 4294901760
        %2995 = vmatprep.subr.mxu0 %v2994
        %v2996 = vand.u32 %v1950, 4294901760
        %v2997 = vsub.f32 %v1950, %v2996
        %v2998 = vand.u32 %v2997, 4294901760
        %2999 = vmatpush1.msra.mxu0 %v2998
        %v3000 = vand.u32 %v1957, 4294901760
        %v3001 = vsub.f32 %v1957, %v3000
        %v3002 = vand.u32 %v3001, 4294901760
        %3003 = vmatprep.subr.mxu0 %v3002
        %v3004 = vand.u32 %v1956, 4294901760
        %v3005 = vsub.f32 %v1956, %v3004
        %v3006 = vand.u32 %v3005, 4294901760
        %3007 = vmatpush1.msra.mxu0 %v3006
        %v3008 = vand.u32 %v1963, 4294901760
        %v3009 = vsub.f32 %v1963, %v3008
        %v3010 = vand.u32 %v3009, 4294901760
        %3011 = vmatprep.subr.mxu0 %v3010
        %v3012 = vand.u32 %v1962, 4294901760
        %v3013 = vsub.f32 %v1962, %v3012
        %v3014 = vand.u32 %v3013, 4294901760
        %3015 = vmatpush1.msra.mxu0 %v3014
        %3016 = vmatprep.subr.mxu0 0.0
        %3017 = vmatpush1.msra.mxu0 0.0
        %3018 = vmatprep.subr.mxu0 0.0
        %3019 = vmatpush1.msra.mxu0 0.0
        %3020 = vmatprep.subr.mxu0 0.0
        %3021 = vmatpush1.msra.mxu0 0.0
        %3022 = vmatprep.subr.mxu0 0.0
        %3023 = vmatpush1.msra.mxu0 0.0
        %3024 = vmatprep.subr.mxu0 0.0
        %3025 = vmatpush1.msra.mxu0 0.0
        %3026 = vmatprep.subr.mxu0 0.0
        %3027 = vmatpush1.msra.mxu0 0.0
        %3028 = vmatprep.subr.mxu0 0.0
        %3029 = vmatpush1.msra.mxu0 0.0
        %3030 = vmatprep.subr.mxu0 0.0
        %3031 = vmatpush1.msra.mxu0 0.0
        %3032 = vmatprep.subr.mxu0 0.0
        %3033 = vmatpush1.msra.mxu0 0.0
        %3034 = vmatprep.subr.mxu0 0.0
        %3035 = vmatpush1.msra.mxu0 0.0
        %3036 = vmatprep.subr.mxu0 0.0
        %3037 = vmatpush1.msra.mxu0 0.0
        %3038 = vmatprep.subr.mxu0 0.0
        %3039 = vmatpush1.msra.mxu0 0.0
        %3040 = vmatprep.subr.mxu0 0.0
        %3041 = vmatpush1.msra.mxu0 0.0
        %3042 = vmatprep.subr.mxu0 0.0
        %3043 = vmatpush1.msra.mxu0 0.0
        %3044 = vmatprep.subr.mxu0 0.0
        %3045 = vmatpush1.msra.mxu0 0.0
        %3046 = vmatprep.subr.mxu0 0.0
        %3047 = vmatpush1.msra.mxu0 0.0
        %3048 = vmatprep.subr.mxu0 0.0
        %3049 = vmatpush1.msra.mxu0 0.0
        %3050 = vmatprep.subr.mxu0 0.0
        %3051 = vmatpush1.msra.mxu0 0.0
        %3052 = vmatprep.subr.mxu0 0.0
        %3053 = vmatpush1.msra.mxu0 0.0
        %3054 = vmatprep.subr.mxu0 0.0
        %3055 = vmatpush1.msra.mxu0 0.0
        %3056 = vmatprep.subr.mxu0 0.0
        %3057 = vmatpush1.msra.mxu0 0.0
        %3058 = vmatprep.subr.mxu0 0.0
        %3059 = vmatpush1.msra.mxu0 0.0
        %3060 = vmatprep.subr.mxu0 0.0
        %3061 = vmatpush1.msra.mxu0 0.0
        %3062 = vmatprep.subr.mxu0 0.0
        %3063 = vmatpush1.msra.mxu0 0.0
        %3064 = vmatprep.subr.mxu0 0.0
        %3065 = vmatpush1.msra.mxu0 0.0
        %3066 = vmatprep.subr.mxu0 0.0
        %3067 = vmatpush1.msra.mxu0 0.0
        %3068 = vmatprep.mubr.f32.mxu0 0.0
        %v3069 = vand.u32 %v1968, 4294901760
        %3070 = vmatmul.mubr.f32.gmra.mrb[0].mxu0 %v3069
        %v3071 = vpop.f32.mrb[0].mxu0
        %v3072 = vadd.f32 %v2964, %v3071
        %v3073 = vpop.f32.mrb[0].mxu0
        %v3074 = vadd.f32 %v2966, %v3073
        %3075 = vdwg.mxu0
        %v3076 = vand.u32 %v1933, 4294901760
        %3077 = vmatprep.subr.mxu0 %v3076
        %v3078 = vand.u32 %v1932, 4294901760
        %3079 = vmatpush1.msra.mxu0 %v3078
        %v3080 = vand.u32 %v1939, 4294901760
        %3081 = vmatprep.subr.mxu0 %v3080
        %v3082 = vand.u32 %v1938, 4294901760
        %3083 = vmatpush1.msra.mxu0 %v3082
        %v3084 = vand.u32 %v1945, 4294901760
        %3085 = vmatprep.subr.mxu0 %v3084
        %v3086 = vand.u32 %v1944, 4294901760
        %3087 = vmatpush1.msra.mxu0 %v3086
        %v3088 = vand.u32 %v1951, 4294901760
        %3089 = vmatprep.subr.mxu0 %v3088
        %v3090 = vand.u32 %v1950, 4294901760
        %3091 = vmatpush1.msra.mxu0 %v3090
        %v3092 = vand.u32 %v1957, 4294901760
        %3093 = vmatprep.subr.mxu0 %v3092
        %v3094 = vand.u32 %v1956, 4294901760
        %3095 = vmatpush1.msra.mxu0 %v3094
        %v3096 = vand.u32 %v1963, 4294901760
        %3097 = vmatprep.subr.mxu0 %v3096
        %v3098 = vand.u32 %v1962, 4294901760
        %3099 = vmatpush1.msra.mxu0 %v3098
        %3100 = vmatprep.subr.mxu0 0.0
        %3101 = vmatpush1.msra.mxu0 0.0
        %3102 = vmatprep.subr.mxu0 0.0
        %3103 = vmatpush1.msra.mxu0 0.0
        %3104 = vmatprep.subr.mxu0 0.0
        %3105 = vmatpush1.msra.mxu0 0.0
        %3106 = vmatprep.subr.mxu0 0.0
        %3107 = vmatpush1.msra.mxu0 0.0
        %3108 = vmatprep.subr.mxu0 0.0
        %3109 = vmatpush1.msra.mxu0 0.0
        %3110 = vmatprep.subr.mxu0 0.0
        %3111 = vmatpush1.msra.mxu0 0.0
        %3112 = vmatprep.subr.mxu0 0.0
        %3113 = vmatpush1.msra.mxu0 0.0
        %3114 = vmatprep.subr.mxu0 0.0
        %3115 = vmatpush1.msra.mxu0 0.0
        %3116 = vmatprep.subr.mxu0 0.0
        %3117 = vmatpush1.msra.mxu0 0.0
        %3118 = vmatprep.subr.mxu0 0.0
        %3119 = vmatpush1.msra.mxu0 0.0
        %3120 = vmatprep.subr.mxu0 0.0
        %3121 = vmatpush1.msra.mxu0 0.0
        %3122 = vmatprep.subr.mxu0 0.0
        %3123 = vmatpush1.msra.mxu0 0.0
        %3124 = vmatprep.subr.mxu0 0.0
        %3125 = vmatpush1.msra.mxu0 0.0
        %3126 = vmatprep.subr.mxu0 0.0
        %3127 = vmatpush1.msra.mxu0 0.0
        %3128 = vmatprep.subr.mxu0 0.0
        %3129 = vmatpush1.msra.mxu0 0.0
        %3130 = vmatprep.subr.mxu0 0.0
        %3131 = vmatpush1.msra.mxu0 0.0
        %3132 = vmatprep.subr.mxu0 0.0
        %3133 = vmatpush1.msra.mxu0 0.0
        %3134 = vmatprep.subr.mxu0 0.0
        %3135 = vmatpush1.msra.mxu0 0.0
        %3136 = vmatprep.subr.mxu0 0.0
        %3137 = vmatpush1.msra.mxu0 0.0
        %3138 = vmatprep.subr.mxu0 0.0
        %3139 = vmatpush1.msra.mxu0 0.0
        %3140 = vmatprep.subr.mxu0 0.0
        %3141 = vmatpush1.msra.mxu0 0.0
        %3142 = vmatprep.subr.mxu0 0.0
        %3143 = vmatpush1.msra.mxu0 0.0
        %3144 = vmatprep.subr.mxu0 0.0
        %3145 = vmatpush1.msra.mxu0 0.0
        %3146 = vmatprep.subr.mxu0 0.0
        %3147 = vmatpush1.msra.mxu0 0.0
        %3148 = vmatprep.subr.mxu0 0.0
        %3149 = vmatpush1.msra.mxu0 0.0
        %3150 = vmatprep.subr.mxu0 0.0
        %3151 = vmatpush1.msra.mxu0 0.0
        %3152 = vmatprep.mubr.f32.mxu0 0.0
        %v3153 = vand.u32 %v1968, 4294901760
        %3154 = vmatmul.mubr.f32.gmra.mrb[0].mxu0 %v3153
        %v3155 = vpop.f32.mrb[0].mxu0
        %v3156 = vadd.f32 %v3072, %v3155
        %v3157 = vpop.f32.mrb[0].mxu0
        %v3158 = vadd.f32 %v3074, %v3157
        %3159 = vdwg.mxu0
        %v3160 = vand.u32 %v1935, 4294901760
        %3161 = vmatprep.subr.mxu0 %v3160
        %v3162 = vand.u32 %v1934, 4294901760
        %3163 = vmatpush1.msra.mxu0 %v3162
        %v3164 = vand.u32 %v1941, 4294901760
        %3165 = vmatprep.subr.mxu0 %v3164
        %v3166 = vand.u32 %v1940, 4294901760
        %3167 = vmatpush1.msra.mxu0 %v3166
        %v3168 = vand.u32 %v1947, 4294901760
        %3169 = vmatprep.subr.mxu0 %v3168
        %v3170 = vand.u32 %v1946, 4294901760
        %3171 = vmatpush1.msra.mxu0 %v3170
        %v3172 = vand.u32 %v1953, 4294901760
        %3173 = vmatprep.subr.mxu0 %v3172
        %v3174 = vand.u32 %v1952, 4294901760
        %3175 = vmatpush1.msra.mxu0 %v3174
        %v3176 = vand.u32 %v1959, 4294901760
        %3177 = vmatprep.subr.mxu0 %v3176
        %v3178 = vand.u32 %v1958, 4294901760
        %3179 = vmatpush1.msra.mxu0 %v3178
        %v3180 = vand.u32 %v1965, 4294901760
        %3181 = vmatprep.subr.mxu0 %v3180
        %v3182 = vand.u32 %v1964, 4294901760
        %3183 = vmatpush1.msra.mxu0 %v3182
        %3184 = vmatprep.subr.mxu0 0.0
        %3185 = vmatpush1.msra.mxu0 0.0
        %3186 = vmatprep.subr.mxu0 0.0
        %3187 = vmatpush1.msra.mxu0 0.0
        %3188 = vmatprep.subr.mxu0 0.0
        %3189 = vmatpush1.msra.mxu0 0.0
        %3190 = vmatprep.subr.mxu0 0.0
        %3191 = vmatpush1.msra.mxu0 0.0
        %3192 = vmatprep.subr.mxu0 0.0
        %3193 = vmatpush1.msra.mxu0 0.0
        %3194 = vmatprep.subr.mxu0 0.0
        %3195 = vmatpush1.msra.mxu0 0.0
        %3196 = vmatprep.subr.mxu0 0.0
        %3197 = vmatpush1.msra.mxu0 0.0
        %3198 = vmatprep.subr.mxu0 0.0
        %3199 = vmatpush1.msra.mxu0 0.0
        %3200 = vmatprep.subr.mxu0 0.0
        %3201 = vmatpush1.msra.mxu0 0.0
        %3202 = vmatprep.subr.mxu0 0.0
        %3203 = vmatpush1.msra.mxu0 0.0
        %3204 = vmatprep.subr.mxu0 0.0
        %3205 = vmatpush1.msra.mxu0 0.0
        %3206 = vmatprep.subr.mxu0 0.0
        %3207 = vmatpush1.msra.mxu0 0.0
        %3208 = vmatprep.subr.mxu0 0.0
        %3209 = vmatpush1.msra.mxu0 0.0
        %3210 = vmatprep.subr.mxu0 0.0
        %3211 = vmatpush1.msra.mxu0 0.0
        %3212 = vmatprep.subr.mxu0 0.0
        %3213 = vmatpush1.msra.mxu0 0.0
        %3214 = vmatprep.subr.mxu0 0.0
        %3215 = vmatpush1.msra.mxu0 0.0
        %3216 = vmatprep.subr.mxu0 0.0
        %3217 = vmatpush1.msra.mxu0 0.0
        %3218 = vmatprep.subr.mxu0 0.0
        %3219 = vmatpush1.msra.mxu0 0.0
        %3220 = vmatprep.subr.mxu0 0.0
        %3221 = vmatpush1.msra.mxu0 0.0
        %3222 = vmatprep.subr.mxu0 0.0
        %3223 = vmatpush1.msra.mxu0 0.0
        %3224 = vmatprep.subr.mxu0 0.0
        %3225 = vmatpush1.msra.mxu0 0.0
        %3226 = vmatprep.subr.mxu0 0.0
        %3227 = vmatpush1.msra.mxu0 0.0
        %3228 = vmatprep.subr.mxu0 0.0
        %3229 = vmatpush1.msra.mxu0 0.0
        %3230 = vmatprep.subr.mxu0 0.0
        %3231 = vmatpush1.msra.mxu0 0.0
        %3232 = vmatprep.subr.mxu0 0.0
        %3233 = vmatpush1.msra.mxu0 0.0
        %3234 = vmatprep.subr.mxu0 0.0
        %3235 = vmatpush1.msra.mxu0 0.0
        %3236 = vmatprep.mubr.f32.mxu0 0.0
        %v3237 = vand.u32 %v1968, 4294901760
        %v3238 = vsub.f32 %v1968, %v3237
        %v3239 = vand.u32 %v3238, 4294901760
        %v3240 = vsub.f32 %v3238, %v3239
        %v3241 = vand.u32 %v3240, 4294901760
        %3242 = vmatmul.mubr.f32.gmra.mrb[0].mxu0 %v3241
        %v3243 = vpop.f32.mrb[0].mxu0
        %v3244 = vadd.f32 0.0, %v3243
        %v3245 = vpop.f32.mrb[0].mxu0
        %v3246 = vadd.f32 0.0, %v3245
        %3247 = vdwg.mxu0
        %v3248 = vand.u32 %v1935, 4294901760
        %v3249 = vsub.f32 %v1935, %v3248
        %v3250 = vand.u32 %v3249, 4294901760
        %v3251 = vsub.f32 %v3249, %v3250
        %v3252 = vand.u32 %v3251, 4294901760
        %3253 = vmatprep.subr.mxu0 %v3252
        %v3254 = vand.u32 %v1934, 4294901760
        %v3255 = vsub.f32 %v1934, %v3254
        %v3256 = vand.u32 %v3255, 4294901760
        %v3257 = vsub.f32 %v3255, %v3256
        %v3258 = vand.u32 %v3257, 4294901760
        %3259 = vmatpush1.msra.mxu0 %v3258
        %v3260 = vand.u32 %v1941, 4294901760
        %v3261 = vsub.f32 %v1941, %v3260
        %v3262 = vand.u32 %v3261, 4294901760
        %v3263 = vsub.f32 %v3261, %v3262
        %v3264 = vand.u32 %v3263, 4294901760
        %3265 = vmatprep.subr.mxu0 %v3264
        %v3266 = vand.u32 %v1940, 4294901760
        %v3267 = vsub.f32 %v1940, %v3266
        %v3268 = vand.u32 %v3267, 4294901760
        %v3269 = vsub.f32 %v3267, %v3268
        %v3270 = vand.u32 %v3269, 4294901760
        %3271 = vmatpush1.msra.mxu0 %v3270
        %v3272 = vand.u32 %v1947, 4294901760
        %v3273 = vsub.f32 %v1947, %v3272
        %v3274 = vand.u32 %v3273, 4294901760
        %v3275 = vsub.f32 %v3273, %v3274
        %v3276 = vand.u32 %v3275, 4294901760
        %3277 = vmatprep.subr.mxu0 %v3276
        %v3278 = vand.u32 %v1946, 4294901760
        %v3279 = vsub.f32 %v1946, %v3278
        %v3280 = vand.u32 %v3279, 4294901760
        %v3281 = vsub.f32 %v3279, %v3280
        %v3282 = vand.u32 %v3281, 4294901760
        %3283 = vmatpush1.msra.mxu0 %v3282
        %v3284 = vand.u32 %v1953, 4294901760
        %v3285 = vsub.f32 %v1953, %v3284
        %v3286 = vand.u32 %v3285, 4294901760
        %v3287 = vsub.f32 %v3285, %v3286
        %v3288 = vand.u32 %v3287, 4294901760
        %3289 = vmatprep.subr.mxu0 %v3288
        %v3290 = vand.u32 %v1952, 4294901760
        %v3291 = vsub.f32 %v1952, %v3290
        %v3292 = vand.u32 %v3291, 4294901760
        %v3293 = vsub.f32 %v3291, %v3292
        %v3294 = vand.u32 %v3293, 4294901760
        %3295 = vmatpush1.msra.mxu0 %v3294
        %v3296 = vand.u32 %v1959, 4294901760
        %v3297 = vsub.f32 %v1959, %v3296
        %v3298 = vand.u32 %v3297, 4294901760
        %v3299 = vsub.f32 %v3297, %v3298
        %v3300 = vand.u32 %v3299, 4294901760
        %3301 = vmatprep.subr.mxu0 %v3300
        %v3302 = vand.u32 %v1958, 4294901760
        %v3303 = vsub.f32 %v1958, %v3302
        %v3304 = vand.u32 %v3303, 4294901760
        %v3305 = vsub.f32 %v3303, %v3304
        %v3306 = vand.u32 %v3305, 4294901760
        %3307 = vmatpush1.msra.mxu0 %v3306
        %v3308 = vand.u32 %v1965, 4294901760
        %v3309 = vsub.f32 %v1965, %v3308
        %v3310 = vand.u32 %v3309, 4294901760
        %v3311 = vsub.f32 %v3309, %v3310
        %v3312 = vand.u32 %v3311, 4294901760
        %3313 = vmatprep.subr.mxu0 %v3312
        %v3314 = vand.u32 %v1964, 4294901760
        %v3315 = vsub.f32 %v1964, %v3314
        %v3316 = vand.u32 %v3315, 4294901760
        %v3317 = vsub.f32 %v3315, %v3316
        %v3318 = vand.u32 %v3317, 4294901760
        %3319 = vmatpush1.msra.mxu0 %v3318
        %3320 = vmatprep.subr.mxu0 0.0
        %3321 = vmatpush1.msra.mxu0 0.0
        %3322 = vmatprep.subr.mxu0 0.0
        %3323 = vmatpush1.msra.mxu0 0.0
        %3324 = vmatprep.subr.mxu0 0.0
        %3325 = vmatpush1.msra.mxu0 0.0
        %3326 = vmatprep.subr.mxu0 0.0
        %3327 = vmatpush1.msra.mxu0 0.0
        %3328 = vmatprep.subr.mxu0 0.0
        %3329 = vmatpush1.msra.mxu0 0.0
        %3330 = vmatprep.subr.mxu0 0.0
        %3331 = vmatpush1.msra.mxu0 0.0
        %3332 = vmatprep.subr.mxu0 0.0
        %3333 = vmatpush1.msra.mxu0 0.0
        %3334 = vmatprep.subr.mxu0 0.0
        %3335 = vmatpush1.msra.mxu0 0.0
        %3336 = vmatprep.subr.mxu0 0.0
        %3337 = vmatpush1.msra.mxu0 0.0
        %3338 = vmatprep.subr.mxu0 0.0
        %3339 = vmatpush1.msra.mxu0 0.0
        %3340 = vmatprep.subr.mxu0 0.0
        %3341 = vmatpush1.msra.mxu0 0.0
        %3342 = vmatprep.subr.mxu0 0.0
        %3343 = vmatpush1.msra.mxu0 0.0
        %3344 = vmatprep.subr.mxu0 0.0
        %3345 = vmatpush1.msra.mxu0 0.0
        %3346 = vmatprep.subr.mxu0 0.0
        %3347 = vmatpush1.msra.mxu0 0.0
        %3348 = vmatprep.subr.mxu0 0.0
        %3349 = vmatpush1.msra.mxu0 0.0
        %3350 = vmatprep.subr.mxu0 0.0
        %3351 = vmatpush1.msra.mxu0 0.0
        %3352 = vmatprep.subr.mxu0 0.0
        %3353 = vmatpush1.msra.mxu0 0.0
        %3354 = vmatprep.subr.mxu0 0.0
        %3355 = vmatpush1.msra.mxu0 0.0
        %3356 = vmatprep.subr.mxu0 0.0
        %3357 = vmatpush1.msra.mxu0 0.0
        %3358 = vmatprep.subr.mxu0 0.0
        %3359 = vmatpush1.msra.mxu0 0.0
        %3360 = vmatprep.subr.mxu0 0.0
        %3361 = vmatpush1.msra.mxu0 0.0
        %3362 = vmatprep.subr.mxu0 0.0
        %3363 = vmatpush1.msra.mxu0 0.0
        %3364 = vmatprep.subr.mxu0 0.0
        %3365 = vmatpush1.msra.mxu0 0.0
        %3366 = vmatprep.subr.mxu0 0.0
        %3367 = vmatpush1.msra.mxu0 0.0
        %3368 = vmatprep.subr.mxu0 0.0
        %3369 = vmatpush1.msra.mxu0 0.0
        %3370 = vmatprep.subr.mxu0 0.0
        %3371 = vmatpush1.msra.mxu0 0.0
        %3372 = vmatprep.mubr.f32.mxu0 0.0
        %v3373 = vand.u32 %v1968, 4294901760
        %3374 = vmatmul.mubr.f32.gmra.mrb[0].mxu0 %v3373
        %v3375 = vpop.f32.mrb[0].mxu0
        %v3376 = vadd.f32 %v3244, %v3375
        %v3377 = vpop.f32.mrb[0].mxu0
        %v3378 = vadd.f32 %v3246, %v3377
        %3379 = vdwg.mxu0
        %v3380 = vand.u32 %v1935, 4294901760
        %v3381 = vsub.f32 %v1935, %v3380
        %3382 = vmatprep.subr.mxu0 %v3381
        %v3383 = vand.u32 %v1934, 4294901760
        %v3384 = vsub.f32 %v1934, %v3383
        %3385 = vmatpush1.msra.mxu0 %v3384
        %v3386 = vand.u32 %v1941, 4294901760
        %v3387 = vsub.f32 %v1941, %v3386
        %3388 = vmatprep.subr.mxu0 %v3387
        %v3389 = vand.u32 %v1940, 4294901760
        %v3390 = vsub.f32 %v1940, %v3389
        %3391 = vmatpush1.msra.mxu0 %v3390
        %v3392 = vand.u32 %v1947, 4294901760
        %v3393 = vsub.f32 %v1947, %v3392
        %3394 = vmatprep.subr.mxu0 %v3393
        %v3395 = vand.u32 %v1946, 4294901760
        %v3396 = vsub.f32 %v1946, %v3395
        %3397 = vmatpush1.msra.mxu0 %v3396
        %v3398 = vand.u32 %v1953, 4294901760
        %v3399 = vsub.f32 %v1953, %v3398
        %3400 = vmatprep.subr.mxu0 %v3399
        %v3401 = vand.u32 %v1952, 4294901760
        %v3402 = vsub.f32 %v1952, %v3401
        %3403 = vmatpush1.msra.mxu0 %v3402
        %v3404 = vand.u32 %v1959, 4294901760
        %v3405 = vsub.f32 %v1959, %v3404
        %3406 = vmatprep.subr.mxu0 %v3405
        %v3407 = vand.u32 %v1958, 4294901760
        %v3408 = vsub.f32 %v1958, %v3407
        %3409 = vmatpush1.msra.mxu0 %v3408
        %v3410 = vand.u32 %v1965, 4294901760
        %v3411 = vsub.f32 %v1965, %v3410
        %3412 = vmatprep.subr.mxu0 %v3411
        %v3413 = vand.u32 %v1964, 4294901760
        %v3414 = vsub.f32 %v1964, %v3413
        %3415 = vmatpush1.msra.mxu0 %v3414
        %3416 = vmatprep.subr.mxu0 0.0
        %3417 = vmatpush1.msra.mxu0 0.0
        %3418 = vmatprep.subr.mxu0 0.0
        %3419 = vmatpush1.msra.mxu0 0.0
        %3420 = vmatprep.subr.mxu0 0.0
        %3421 = vmatpush1.msra.mxu0 0.0
        %3422 = vmatprep.subr.mxu0 0.0
        %3423 = vmatpush1.msra.mxu0 0.0
        %3424 = vmatprep.subr.mxu0 0.0
        %3425 = vmatpush1.msra.mxu0 0.0
        %3426 = vmatprep.subr.mxu0 0.0
        %3427 = vmatpush1.msra.mxu0 0.0
        %3428 = vmatprep.subr.mxu0 0.0
        %3429 = vmatpush1.msra.mxu0 0.0
        %3430 = vmatprep.subr.mxu0 0.0
        %3431 = vmatpush1.msra.mxu0 0.0
        %3432 = vmatprep.subr.mxu0 0.0
        %3433 = vmatpush1.msra.mxu0 0.0
        %3434 = vmatprep.subr.mxu0 0.0
        %3435 = vmatpush1.msra.mxu0 0.0
        %3436 = vmatprep.subr.mxu0 0.0
        %3437 = vmatpush1.msra.mxu0 0.0
        %3438 = vmatprep.subr.mxu0 0.0
        %3439 = vmatpush1.msra.mxu0 0.0
        %3440 = vmatprep.subr.mxu0 0.0
        %3441 = vmatpush1.msra.mxu0 0.0
        %3442 = vmatprep.subr.mxu0 0.0
        %3443 = vmatpush1.msra.mxu0 0.0
        %3444 = vmatprep.subr.mxu0 0.0
        %3445 = vmatpush1.msra.mxu0 0.0
        %3446 = vmatprep.subr.mxu0 0.0
        %3447 = vmatpush1.msra.mxu0 0.0
        %3448 = vmatprep.subr.mxu0 0.0
        %3449 = vmatpush1.msra.mxu0 0.0
        %3450 = vmatprep.subr.mxu0 0.0
        %3451 = vmatpush1.msra.mxu0 0.0
        %3452 = vmatprep.subr.mxu0 0.0
        %3453 = vmatpush1.msra.mxu0 0.0
        %3454 = vmatprep.subr.mxu0 0.0
        %3455 = vmatpush1.msra.mxu0 0.0
        %3456 = vmatprep.subr.mxu0 0.0
        %3457 = vmatpush1.msra.mxu0 0.0
        %3458 = vmatprep.subr.mxu0 0.0
        %3459 = vmatpush1.msra.mxu0 0.0
        %3460 = vmatprep.subr.mxu0 0.0
        %3461 = vmatpush1.msra.mxu0 0.0
        %3462 = vmatprep.subr.mxu0 0.0
        %3463 = vmatpush1.msra.mxu0 0.0
        %3464 = vmatprep.subr.mxu0 0.0
        %3465 = vmatpush1.msra.mxu0 0.0
        %3466 = vmatprep.subr.mxu0 0.0
        %3467 = vmatpush1.msra.mxu0 0.0
        %3468 = vmatprep.mubr.f32.mxu0 0.0
        %v3469 = vand.u32 %v1968, 4294901760
        %v3470 = vsub.f32 %v1968, %v3469
        %3471 = vmatmul.mubr.f32.gmra.mrb[0].mxu0 %v3470
        %v3472 = vpop.f32.mrb[0].mxu0
        %v3473 = vadd.f32 %v3376, %v3472
        %v3474 = vpop.f32.mrb[0].mxu0
        %v3475 = vadd.f32 %v3378, %v3474
        %3476 = vdwg.mxu0
        %v3477 = vand.u32 %v1935, 4294901760
        %3478 = vmatprep.subr.mxu0 %v3477
        %v3479 = vand.u32 %v1934, 4294901760
        %3480 = vmatpush1.msra.mxu0 %v3479
        %v3481 = vand.u32 %v1941, 4294901760
        %3482 = vmatprep.subr.mxu0 %v3481
        %v3483 = vand.u32 %v1940, 4294901760
        %3484 = vmatpush1.msra.mxu0 %v3483
        %v3485 = vand.u32 %v1947, 4294901760
        %3486 = vmatprep.subr.mxu0 %v3485
        %v3487 = vand.u32 %v1946, 4294901760
        %3488 = vmatpush1.msra.mxu0 %v3487
        %v3489 = vand.u32 %v1953, 4294901760
        %3490 = vmatprep.subr.mxu0 %v3489
        %v3491 = vand.u32 %v1952, 4294901760
        %3492 = vmatpush1.msra.mxu0 %v3491
        %v3493 = vand.u32 %v1959, 4294901760
        %3494 = vmatprep.subr.mxu0 %v3493
        %v3495 = vand.u32 %v1958, 4294901760
        %3496 = vmatpush1.msra.mxu0 %v3495
        %v3497 = vand.u32 %v1965, 4294901760
        %3498 = vmatprep.subr.mxu0 %v3497
        %v3499 = vand.u32 %v1964, 4294901760
        %3500 = vmatpush1.msra.mxu0 %v3499
        %3501 = vmatprep.subr.mxu0 0.0
        %3502 = vmatpush1.msra.mxu0 0.0
        %3503 = vmatprep.subr.mxu0 0.0
        %3504 = vmatpush1.msra.mxu0 0.0
        %3505 = vmatprep.subr.mxu0 0.0
        %3506 = vmatpush1.msra.mxu0 0.0
        %3507 = vmatprep.subr.mxu0 0.0
        %3508 = vmatpush1.msra.mxu0 0.0
        %3509 = vmatprep.subr.mxu0 0.0
        %3510 = vmatpush1.msra.mxu0 0.0
        %3511 = vmatprep.subr.mxu0 0.0
        %3512 = vmatpush1.msra.mxu0 0.0
        %3513 = vmatprep.subr.mxu0 0.0
        %3514 = vmatpush1.msra.mxu0 0.0
        %3515 = vmatprep.subr.mxu0 0.0
        %3516 = vmatpush1.msra.mxu0 0.0
        %3517 = vmatprep.subr.mxu0 0.0
        %3518 = vmatpush1.msra.mxu0 0.0
        %3519 = vmatprep.subr.mxu0 0.0
        %3520 = vmatpush1.msra.mxu0 0.0
        %3521 = vmatprep.subr.mxu0 0.0
        %3522 = vmatpush1.msra.mxu0 0.0
        %3523 = vmatprep.subr.mxu0 0.0
        %3524 = vmatpush1.msra.mxu0 0.0
        %3525 = vmatprep.subr.mxu0 0.0
        %3526 = vmatpush1.msra.mxu0 0.0
        %3527 = vmatprep.subr.mxu0 0.0
        %3528 = vmatpush1.msra.mxu0 0.0
        %3529 = vmatprep.subr.mxu0 0.0
        %3530 = vmatpush1.msra.mxu0 0.0
        %3531 = vmatprep.subr.mxu0 0.0
        %3532 = vmatpush1.msra.mxu0 0.0
        %3533 = vmatprep.subr.mxu0 0.0
        %3534 = vmatpush1.msra.mxu0 0.0
        %3535 = vmatprep.subr.mxu0 0.0
        %3536 = vmatpush1.msra.mxu0 0.0
        %3537 = vmatprep.subr.mxu0 0.0
        %3538 = vmatpush1.msra.mxu0 0.0
        %3539 = vmatprep.subr.mxu0 0.0
        %3540 = vmatpush1.msra.mxu0 0.0
        %3541 = vmatprep.subr.mxu0 0.0
        %3542 = vmatpush1.msra.mxu0 0.0
        %3543 = vmatprep.subr.mxu0 0.0
        %3544 = vmatpush1.msra.mxu0 0.0
        %3545 = vmatprep.subr.mxu0 0.0
        %3546 = vmatpush1.msra.mxu0 0.0
        %3547 = vmatprep.subr.mxu0 0.0
        %3548 = vmatpush1.msra.mxu0 0.0
        %3549 = vmatprep.subr.mxu0 0.0
        %3550 = vmatpush1.msra.mxu0 0.0
        %3551 = vmatprep.subr.mxu0 0.0
        %3552 = vmatpush1.msra.mxu0 0.0
        %3553 = vmatprep.mubr.f32.mxu0 0.0
        %v3554 = vand.u32 %v1968, 4294901760
        %v3555 = vsub.f32 %v1968, %v3554
        %v3556 = vand.u32 %v3555, 4294901760
        %3557 = vmatmul.mubr.f32.gmra.mrb[0].mxu0 %v3556
        %v3558 = vpop.f32.mrb[0].mxu0
        %v3559 = vadd.f32 %v3473, %v3558
        %v3560 = vpop.f32.mrb[0].mxu0
        %v3561 = vadd.f32 %v3475, %v3560
        %3562 = vdwg.mxu0
        %v3563 = vand.u32 %v1935, 4294901760
        %v3564 = vsub.f32 %v1935, %v3563
        %v3565 = vand.u32 %v3564, 4294901760
        %3566 = vmatprep.subr.mxu0 %v3565
        %v3567 = vand.u32 %v1934, 4294901760
        %v3568 = vsub.f32 %v1934, %v3567
        %v3569 = vand.u32 %v3568, 4294901760
        %3570 = vmatpush1.msra.mxu0 %v3569
        %v3571 = vand.u32 %v1941, 4294901760
        %v3572 = vsub.f32 %v1941, %v3571
        %v3573 = vand.u32 %v3572, 4294901760
        %3574 = vmatprep.subr.mxu0 %v3573
        %v3575 = vand.u32 %v1940, 4294901760
        %v3576 = vsub.f32 %v1940, %v3575
        %v3577 = vand.u32 %v3576, 4294901760
        %3578 = vmatpush1.msra.mxu0 %v3577
        %v3579 = vand.u32 %v1947, 4294901760
        %v3580 = vsub.f32 %v1947, %v3579
        %v3581 = vand.u32 %v3580, 4294901760
        %3582 = vmatprep.subr.mxu0 %v3581
        %v3583 = vand.u32 %v1946, 4294901760
        %v3584 = vsub.f32 %v1946, %v3583
        %v3585 = vand.u32 %v3584, 4294901760
        %3586 = vmatpush1.msra.mxu0 %v3585
        %v3587 = vand.u32 %v1953, 4294901760
        %v3588 = vsub.f32 %v1953, %v3587
        %v3589 = vand.u32 %v3588, 4294901760
        %3590 = vmatprep.subr.mxu0 %v3589
        %v3591 = vand.u32 %v1952, 4294901760
        %v3592 = vsub.f32 %v1952, %v3591
        %v3593 = vand.u32 %v3592, 4294901760
        %3594 = vmatpush1.msra.mxu0 %v3593
        %v3595 = vand.u32 %v1959, 4294901760
        %v3596 = vsub.f32 %v1959, %v3595
        %v3597 = vand.u32 %v3596, 4294901760
        %3598 = vmatprep.subr.mxu0 %v3597
        %v3599 = vand.u32 %v1958, 4294901760
        %v3600 = vsub.f32 %v1958, %v3599
        %v3601 = vand.u32 %v3600, 4294901760
        %3602 = vmatpush1.msra.mxu0 %v3601
        %v3603 = vand.u32 %v1965, 4294901760
        %v3604 = vsub.f32 %v1965, %v3603
        %v3605 = vand.u32 %v3604, 4294901760
        %3606 = vmatprep.subr.mxu0 %v3605
        %v3607 = vand.u32 %v1964, 4294901760
        %v3608 = vsub.f32 %v1964, %v3607
        %v3609 = vand.u32 %v3608, 4294901760
        %3610 = vmatpush1.msra.mxu0 %v3609
        %3611 = vmatprep.subr.mxu0 0.0
        %3612 = vmatpush1.msra.mxu0 0.0
        %3613 = vmatprep.subr.mxu0 0.0
        %3614 = vmatpush1.msra.mxu0 0.0
        %3615 = vmatprep.subr.mxu0 0.0
        %3616 = vmatpush1.msra.mxu0 0.0
        %3617 = vmatprep.subr.mxu0 0.0
        %3618 = vmatpush1.msra.mxu0 0.0
        %3619 = vmatprep.subr.mxu0 0.0
        %3620 = vmatpush1.msra.mxu0 0.0
        %3621 = vmatprep.subr.mxu0 0.0
        %3622 = vmatpush1.msra.mxu0 0.0
        %3623 = vmatprep.subr.mxu0 0.0
        %3624 = vmatpush1.msra.mxu0 0.0
        %3625 = vmatprep.subr.mxu0 0.0
        %3626 = vmatpush1.msra.mxu0 0.0
        %3627 = vmatprep.subr.mxu0 0.0
        %3628 = vmatpush1.msra.mxu0 0.0
        %3629 = vmatprep.subr.mxu0 0.0
        %3630 = vmatpush1.msra.mxu0 0.0
        %3631 = vmatprep.subr.mxu0 0.0
        %3632 = vmatpush1.msra.mxu0 0.0
        %3633 = vmatprep.subr.mxu0 0.0
        %3634 = vmatpush1.msra.mxu0 0.0
        %3635 = vmatprep.subr.mxu0 0.0
        %3636 = vmatpush1.msra.mxu0 0.0
        %3637 = vmatprep.subr.mxu0 0.0
        %3638 = vmatpush1.msra.mxu0 0.0
        %3639 = vmatprep.subr.mxu0 0.0
        %3640 = vmatpush1.msra.mxu0 0.0
        %3641 = vmatprep.subr.mxu0 0.0
        %3642 = vmatpush1.msra.mxu0 0.0
        %3643 = vmatprep.subr.mxu0 0.0
        %3644 = vmatpush1.msra.mxu0 0.0
        %3645 = vmatprep.subr.mxu0 0.0
        %3646 = vmatpush1.msra.mxu0 0.0
        %3647 = vmatprep.subr.mxu0 0.0
        %3648 = vmatpush1.msra.mxu0 0.0
        %3649 = vmatprep.subr.mxu0 0.0
        %3650 = vmatpush1.msra.mxu0 0.0
        %3651 = vmatprep.subr.mxu0 0.0
        %3652 = vmatpush1.msra.mxu0 0.0
        %3653 = vmatprep.subr.mxu0 0.0
        %3654 = vmatpush1.msra.mxu0 0.0
        %3655 = vmatprep.subr.mxu0 0.0
        %3656 = vmatpush1.msra.mxu0 0.0
        %3657 = vmatprep.subr.mxu0 0.0
        %3658 = vmatpush1.msra.mxu0 0.0
        %3659 = vmatprep.subr.mxu0 0.0
        %3660 = vmatpush1.msra.mxu0 0.0
        %3661 = vmatprep.subr.mxu0 0.0
        %3662 = vmatpush1.msra.mxu0 0.0
        %3663 = vmatprep.mubr.f32.mxu0 0.0
        %v3664 = vand.u32 %v1968, 4294901760
        %3665 = vmatmul.mubr.f32.gmra.mrb[0].mxu0 %v3664
        %v3666 = vpop.f32.mrb[0].mxu0
        %v3667 = vadd.f32 %v3559, %v3666
        %v3668 = vpop.f32.mrb[0].mxu0
        %v3669 = vadd.f32 %v3561, %v3668
        %3670 = vdwg.mxu0
        %v3671 = vand.u32 %v1935, 4294901760
        %3672 = vmatprep.subr.mxu0 %v3671
        %v3673 = vand.u32 %v1934, 4294901760
        %3674 = vmatpush1.msra.mxu0 %v3673
        %v3675 = vand.u32 %v1941, 4294901760
        %3676 = vmatprep.subr.mxu0 %v3675
        %v3677 = vand.u32 %v1940, 4294901760
        %3678 = vmatpush1.msra.mxu0 %v3677
        %v3679 = vand.u32 %v1947, 4294901760
        %3680 = vmatprep.subr.mxu0 %v3679
        %v3681 = vand.u32 %v1946, 4294901760
        %3682 = vmatpush1.msra.mxu0 %v3681
        %v3683 = vand.u32 %v1953, 4294901760
        %3684 = vmatprep.subr.mxu0 %v3683
        %v3685 = vand.u32 %v1952, 4294901760
        %3686 = vmatpush1.msra.mxu0 %v3685
        %v3687 = vand.u32 %v1959, 4294901760
        %3688 = vmatprep.subr.mxu0 %v3687
        %v3689 = vand.u32 %v1958, 4294901760
        %3690 = vmatpush1.msra.mxu0 %v3689
        %v3691 = vand.u32 %v1965, 4294901760
        %3692 = vmatprep.subr.mxu0 %v3691
        %v3693 = vand.u32 %v1964, 4294901760
        %3694 = vmatpush1.msra.mxu0 %v3693
        %3695 = vmatprep.subr.mxu0 0.0
        %3696 = vmatpush1.msra.mxu0 0.0
        %3697 = vmatprep.subr.mxu0 0.0
        %3698 = vmatpush1.msra.mxu0 0.0
        %3699 = vmatprep.subr.mxu0 0.0
        %3700 = vmatpush1.msra.mxu0 0.0
        %3701 = vmatprep.subr.mxu0 0.0
        %3702 = vmatpush1.msra.mxu0 0.0
        %3703 = vmatprep.subr.mxu0 0.0
        %3704 = vmatpush1.msra.mxu0 0.0
        %3705 = vmatprep.subr.mxu0 0.0
        %3706 = vmatpush1.msra.mxu0 0.0
        %3707 = vmatprep.subr.mxu0 0.0
        %3708 = vmatpush1.msra.mxu0 0.0
        %3709 = vmatprep.subr.mxu0 0.0
        %3710 = vmatpush1.msra.mxu0 0.0
        %3711 = vmatprep.subr.mxu0 0.0
        %3712 = vmatpush1.msra.mxu0 0.0
        %3713 = vmatprep.subr.mxu0 0.0
        %3714 = vmatpush1.msra.mxu0 0.0
        %3715 = vmatprep.subr.mxu0 0.0
        %3716 = vmatpush1.msra.mxu0 0.0
        %3717 = vmatprep.subr.mxu0 0.0
        %3718 = vmatpush1.msra.mxu0 0.0
        %3719 = vmatprep.subr.mxu0 0.0
        %3720 = vmatpush1.msra.mxu0 0.0
        %3721 = vmatprep.subr.mxu0 0.0
        %3722 = vmatpush1.msra.mxu0 0.0
        %3723 = vmatprep.subr.mxu0 0.0
        %3724 = vmatpush1.msra.mxu0 0.0
        %3725 = vmatprep.subr.mxu0 0.0
        %3726 = vmatpush1.msra.mxu0 0.0
        %3727 = vmatprep.subr.mxu0 0.0
        %3728 = vmatpush1.msra.mxu0 0.0
        %3729 = vmatprep.subr.mxu0 0.0
        %3730 = vmatpush1.msra.mxu0 0.0
        %3731 = vmatprep.subr.mxu0 0.0
        %3732 = vmatpush1.msra.mxu0 0.0
        %3733 = vmatprep.subr.mxu0 0.0
        %3734 = vmatpush1.msra.mxu0 0.0
        %3735 = vmatprep.subr.mxu0 0.0
        %3736 = vmatpush1.msra.mxu0 0.0
        %3737 = vmatprep.subr.mxu0 0.0
        %3738 = vmatpush1.msra.mxu0 0.0
        %3739 = vmatprep.subr.mxu0 0.0
        %3740 = vmatpush1.msra.mxu0 0.0
        %3741 = vmatprep.subr.mxu0 0.0
        %3742 = vmatpush1.msra.mxu0 0.0
        %3743 = vmatprep.subr.mxu0 0.0
        %3744 = vmatpush1.msra.mxu0 0.0
        %3745 = vmatprep.subr.mxu0 0.0
        %3746 = vmatpush1.msra.mxu0 0.0
        %3747 = vmatprep.mubr.f32.mxu0 0.0
        %v3748 = vand.u32 %v1968, 4294901760
        %3749 = vmatmul.mubr.f32.gmra.mrb[0].mxu0 %v3748
        %v3750 = vpop.f32.mrb[0].mxu0
        %v3751 = vadd.f32 %v3667, %v3750
        %v3752 = vpop.f32.mrb[0].mxu0
        %v3753 = vadd.f32 %v3669, %v3752
        %3754 = vdwg.mxu0
        %v3755 = vld [vmem:[%s460] sm:$0xff]
        %v3756 = vld [vmem:[%s460 + $0x8] sm:$0xff]
        %v3757 = vld [vmem:[%s460 + $0x10] sm:$0xff]
        %v3758 = vld [vmem:[%s460 + $0x18] sm:$0xff]
        %v3759 = vld [vmem:[%s460 + $0x20] sm:$0xff]
        %v3760 = vld [vmem:[%s460 + $0x28] sm:$0xff]
        %v3761 = vld [vmem:[%s460 + $0x30] sm:$0xff]
        %v3762 = vld [vmem:[%s460 + $0x38] sm:$0xff]
        %v3763 = vld [vmem:[%s460 + $0x40] sm:$0xff]
        %v3764 = vld [vmem:[%s460 + $0x48] sm:$0xff]
        %v3765 = vld [vmem:[%s460 + $0x50] sm:$0xff]
        %v3766 = vld [vmem:[%s460 + $0x58] sm:$0xff]
        %v3767 = vld [vmem:[%s460 + $0x60] sm:$0xff]
        %v3768 = vld [vmem:[%s460 + $0x68] sm:$0xff]
        %v3769 = vld [vmem:[%s460 + $0x70] sm:$0xff]
        %v3770 = vld [vmem:[%s460 + $0x78] sm:$0xff]
        %v3771 = vunpack.c.l.bf16 %v3755
        %v3772 = vunpack.c.h.bf16 %v3755
        %v3773 = vunpack.c.l.bf16 %v3756
        %v3774 = vunpack.c.h.bf16 %v3756
        %v3775 = vunpack.c.l.bf16 %v3757
        %v3776 = vunpack.c.h.bf16 %v3757
        %v3777 = vunpack.c.l.bf16 %v3758
        %v3778 = vunpack.c.h.bf16 %v3758
        %v3779 = vunpack.c.l.bf16 %v3759
        %v3780 = vunpack.c.h.bf16 %v3759
        %v3781 = vunpack.c.l.bf16 %v3760
        %v3782 = vunpack.c.h.bf16 %v3760
        %v3783 = vunpack.c.l.bf16 %v3761
        %v3784 = vunpack.c.h.bf16 %v3761
        %v3785 = vunpack.c.l.bf16 %v3762
        %v3786 = vunpack.c.h.bf16 %v3762
        %v3787 = vunpack.c.l.bf16 %v3763
        %v3788 = vunpack.c.h.bf16 %v3763
        %v3789 = vunpack.c.l.bf16 %v3764
        %v3790 = vunpack.c.h.bf16 %v3764
        %v3791 = vunpack.c.l.bf16 %v3765
        %v3792 = vunpack.c.h.bf16 %v3765
        %v3793 = vunpack.c.l.bf16 %v3766
        %v3794 = vunpack.c.h.bf16 %v3766
        %v3795 = vunpack.c.l.bf16 %v3767
        %v3796 = vunpack.c.h.bf16 %v3767
        %v3797 = vunpack.c.l.bf16 %v3768
        %v3798 = vunpack.c.h.bf16 %v3768
        %v3799 = vunpack.c.l.bf16 %v3769
        %v3800 = vunpack.c.h.bf16 %v3769
        %v3801 = vunpack.c.l.bf16 %v3770
        %v3802 = vunpack.c.h.bf16 %v3770
        %v3803 = vld [vmem:[%s9] sm:$0xff]
        %v3804 = vld [vmem:[%s9 + $0x8] sm:$0xff]
        %v3805 = vld [vmem:[%s9 + $0x10] sm:$0xff]
        %v3806 = vld [vmem:[%s9 + $0x18] sm:$0xff]
        %v3807 = vld [vmem:[%s9 + $0x20] sm:$0xff]
        %v3808 = vld [vmem:[%s9 + $0x28] sm:$0xff]
        %v3809 = vld [vmem:[%s9 + $0x30] sm:$0xff]
        %v3810 = vld [vmem:[%s9 + $0x38] sm:$0xff]
        %v3811 = vld [vmem:[%s9 + $0x40] sm:$0xff]
        %v3812 = vld [vmem:[%s9 + $0x48] sm:$0xff]
        %v3813 = vld [vmem:[%s9 + $0x50] sm:$0xff]
        %v3814 = vld [vmem:[%s9 + $0x58] sm:$0xff]
        %v3815 = vld [vmem:[%s9 + $0x60] sm:$0xff]
        %v3816 = vld [vmem:[%s9 + $0x68] sm:$0xff]
        %v3817 = vld [vmem:[%s9 + $0x70] sm:$0xff]
        %v3818 = vld [vmem:[%s9 + $0x78] sm:$0xff]
        %v3819 = vld [vmem:[%s9 + $0x80] sm:$0xff]
        %v3820 = vld [vmem:[%s9 + $0x88] sm:$0xff]
        %v3821 = vld [vmem:[%s9 + $0x90] sm:$0xff]
        %v3822 = vld [vmem:[%s9 + $0x98] sm:$0xff]
        %v3823 = vld [vmem:[%s9 + $0xa0] sm:$0xff]
        %v3824 = vld [vmem:[%s9 + $0xa8] sm:$0xff]
        %v3825 = vld [vmem:[%s9 + $0xb0] sm:$0xff]
        %v3826 = vld [vmem:[%s9 + $0xb8] sm:$0xff]
        %v3827 = vld [vmem:[%s9 + $0xc0] sm:$0xff]
        %v3828 = vld [vmem:[%s9 + $0xc8] sm:$0xff]
        %v3829 = vld [vmem:[%s9 + $0xd0] sm:$0xff]
        %v3830 = vld [vmem:[%s9 + $0xd8] sm:$0xff]
        %v3831 = vld [vmem:[%s9 + $0xe0] sm:$0xff]
        %v3832 = vld [vmem:[%s9 + $0xe8] sm:$0xff]
        %v3833 = vld [vmem:[%s9 + $0xf0] sm:$0xff]
        %v3834 = vld [vmem:[%s9 + $0xf8] sm:$0xff]
        %v3835 = vlaneseq
        %v3836 = vshrl.u32 %v3835, 7
        %v3837 = vsub.s32 0, %v3836
        %v3838 = vrot.slane %v1926, %v3837
        %3840 = vbcast.lane.b32.xlu0 %v3838, 256
        %v3841 = vpop.permute.xlu0 %3840
        %s3843 = sor.u32 256, 8
        %3844 = vbcast.lane.b32.xlu0 %v3838, %s3843
        %v3845 = vpop.permute.xlu0 %3844
        %v3846 = vlaneseq
        %v3847 = vshrl.u32 %v3846, 7
        %v3848 = vsub.s32 1, %v3847
        %v3849 = vrot.slane %v1926, %v3848
        %3851 = vbcast.lane.b32.xlu0 %v3849, 256
        %v3852 = vpop.permute.xlu0 %3851
        %s3854 = sor.u32 256, 8
        %3855 = vbcast.lane.b32.xlu0 %v3849, %s3854
        %v3856 = vpop.permute.xlu0 %3855
        %v3857 = vlaneseq
        %v3858 = vshrl.u32 %v3857, 7
        %v3859 = vsub.s32 2, %v3858
        %v3860 = vrot.slane %v1926, %v3859
        %3862 = vbcast.lane.b32.xlu0 %v3860, 256
        %v3863 = vpop.permute.xlu0 %3862
        %s3865 = sor.u32 256, 8
        %3866 = vbcast.lane.b32.xlu0 %v3860, %s3865
        %v3867 = vpop.permute.xlu0 %3866
        %v3868 = vlaneseq
        %v3869 = vshrl.u32 %v3868, 7
        %v3870 = vsub.s32 3, %v3869
        %v3871 = vrot.slane %v1926, %v3870
        %3873 = vbcast.lane.b32.xlu0 %v3871, 256
        %v3874 = vpop.permute.xlu0 %3873
        %s3876 = sor.u32 256, 8
        %3877 = vbcast.lane.b32.xlu0 %v3871, %s3876
        %v3878 = vpop.permute.xlu0 %3877
        %v3879 = vlaneseq
        %v3880 = vshrl.u32 %v3879, 7
        %v3881 = vsub.s32 4, %v3880
        %v3882 = vrot.slane %v1926, %v3881
        %3884 = vbcast.lane.b32.xlu0 %v3882, 256
        %v3885 = vpop.permute.xlu0 %3884
        %s3887 = sor.u32 256, 8
        %3888 = vbcast.lane.b32.xlu0 %v3882, %s3887
        %v3889 = vpop.permute.xlu0 %3888
        %v3890 = vlaneseq
        %v3891 = vshrl.u32 %v3890, 7
        %v3892 = vsub.s32 5, %v3891
        %v3893 = vrot.slane %v1926, %v3892
        %3895 = vbcast.lane.b32.xlu0 %v3893, 256
        %v3896 = vpop.permute.xlu0 %3895
        %s3898 = sor.u32 256, 8
        %3899 = vbcast.lane.b32.xlu0 %v3893, %s3898
        %v3900 = vpop.permute.xlu0 %3899
        %v3901 = vlaneseq
        %v3902 = vshrl.u32 %v3901, 7
        %v3903 = vsub.s32 6, %v3902
        %v3904 = vrot.slane %v1926, %v3903
        %3906 = vbcast.lane.b32.xlu0 %v3904, 256
        %v3907 = vpop.permute.xlu0 %3906
        %s3909 = sor.u32 256, 8
        %3910 = vbcast.lane.b32.xlu0 %v3904, %s3909
        %v3911 = vpop.permute.xlu0 %3910
        %v3912 = vlaneseq
        %v3913 = vshrl.u32 %v3912, 7
        %v3914 = vsub.s32 7, %v3913
        %v3915 = vrot.slane %v1926, %v3914
        %3917 = vbcast.lane.b32.xlu0 %v3915, 256
        %v3918 = vpop.permute.xlu0 %3917
        %s3920 = sor.u32 256, 8
        %3921 = vbcast.lane.b32.xlu0 %v3915, %s3920
        %v3922 = vpop.permute.xlu0 %3921
        %v3923 = vmul.f32 %v3771, %v3841
        %v3924 = vmul.f32 %v3772, %v3841
        %v3925 = vmul.f32 %v3773, %v3845
        %v3926 = vmul.f32 %v3774, %v3845
        %v3927 = vmul.f32 %v3775, %v3852
        %v3928 = vmul.f32 %v3776, %v3852
        %v3929 = vmul.f32 %v3777, %v3856
        %v3930 = vmul.f32 %v3778, %v3856
        %v3931 = vmul.f32 %v3779, %v3863
        %v3932 = vmul.f32 %v3780, %v3863
        %v3933 = vmul.f32 %v3781, %v3867
        %v3934 = vmul.f32 %v3782, %v3867
        %v3935 = vmul.f32 %v3783, %v3874
        %v3936 = vmul.f32 %v3784, %v3874
        %v3937 = vmul.f32 %v3785, %v3878
        %v3938 = vmul.f32 %v3786, %v3878
        %v3939 = vmul.f32 %v3787, %v3885
        %v3940 = vmul.f32 %v3788, %v3885
        %v3941 = vmul.f32 %v3789, %v3889
        %v3942 = vmul.f32 %v3790, %v3889
        %v3943 = vmul.f32 %v3791, %v3896
        %v3944 = vmul.f32 %v3792, %v3896
        %v3945 = vmul.f32 %v3793, %v3900
        %v3946 = vmul.f32 %v3794, %v3900
        %v3947 = vmul.f32 %v3795, %v3907
        %v3948 = vmul.f32 %v3796, %v3907
        %v3949 = vmul.f32 %v3797, %v3911
        %v3950 = vmul.f32 %v3798, %v3911
        %v3951 = vmul.f32 %v3799, %v3918
        %v3952 = vmul.f32 %v3800, %v3918
        %v3953 = vmul.f32 %v3801, %v3922
        %v3954 = vmul.f32 %v3802, %v3922
        %v3955 = vadd.f32 %v3923, %v3925
        %v3956 = vrot.slane %v3955, 4
        %v3957 = vadd.f32 %v3955, %v3956
        %v3958 = vrot.slane %v3957, 2
        %v3959 = vadd.f32 %v3957, %v3958
        %v3960 = vrot.slane %v3959, 1
        %v3961 = vadd.f32 %v3959, %v3960
        %v3962 = vadd.f32 %v3924, %v3926
        %v3963 = vrot.slane %v3962, 4
        %v3964 = vadd.f32 %v3962, %v3963
        %v3965 = vrot.slane %v3964, 2
        %v3966 = vadd.f32 %v3964, %v3965
        %v3967 = vrot.slane %v3966, 1
        %v3968 = vadd.f32 %v3966, %v3967
        %v3969 = vadd.f32 %v3927, %v3929
        %v3970 = vrot.slane %v3969, 4
        %v3971 = vadd.f32 %v3969, %v3970
        %v3972 = vrot.slane %v3971, 2
        %v3973 = vadd.f32 %v3971, %v3972
        %v3974 = vrot.slane %v3973, 1
        %v3975 = vadd.f32 %v3973, %v3974
        %v3976 = vadd.f32 %v3928, %v3930
        %v3977 = vrot.slane %v3976, 4
        %v3978 = vadd.f32 %v3976, %v3977
        %v3979 = vrot.slane %v3978, 2
        %v3980 = vadd.f32 %v3978, %v3979
        %v3981 = vrot.slane %v3980, 1
        %v3982 = vadd.f32 %v3980, %v3981
        %v3983 = vadd.f32 %v3931, %v3933
        %v3984 = vrot.slane %v3983, 4
        %v3985 = vadd.f32 %v3983, %v3984
        %v3986 = vrot.slane %v3985, 2
        %v3987 = vadd.f32 %v3985, %v3986
        %v3988 = vrot.slane %v3987, 1
        %v3989 = vadd.f32 %v3987, %v3988
        %v3990 = vadd.f32 %v3932, %v3934
        %v3991 = vrot.slane %v3990, 4
        %v3992 = vadd.f32 %v3990, %v3991
        %v3993 = vrot.slane %v3992, 2
        %v3994 = vadd.f32 %v3992, %v3993
        %v3995 = vrot.slane %v3994, 1
        %v3996 = vadd.f32 %v3994, %v3995
        %v3997 = vadd.f32 %v3935, %v3937
        %v3998 = vrot.slane %v3997, 4
        %v3999 = vadd.f32 %v3997, %v3998
        %v4000 = vrot.slane %v3999, 2
        %v4001 = vadd.f32 %v3999, %v4000
        %v4002 = vrot.slane %v4001, 1
        %v4003 = vadd.f32 %v4001, %v4002
        %v4004 = vadd.f32 %v3936, %v3938
        %v4005 = vrot.slane %v4004, 4
        %v4006 = vadd.f32 %v4004, %v4005
        %v4007 = vrot.slane %v4006, 2
        %v4008 = vadd.f32 %v4006, %v4007
        %v4009 = vrot.slane %v4008, 1
        %v4010 = vadd.f32 %v4008, %v4009
        %v4011 = vadd.f32 %v3939, %v3941
        %v4012 = vrot.slane %v4011, 4
        %v4013 = vadd.f32 %v4011, %v4012
        %v4014 = vrot.slane %v4013, 2
        %v4015 = vadd.f32 %v4013, %v4014
        %v4016 = vrot.slane %v4015, 1
        %v4017 = vadd.f32 %v4015, %v4016
        %v4018 = vadd.f32 %v3940, %v3942
        %v4019 = vrot.slane %v4018, 4
        %v4020 = vadd.f32 %v4018, %v4019
        %v4021 = vrot.slane %v4020, 2
        %v4022 = vadd.f32 %v4020, %v4021
        %v4023 = vrot.slane %v4022, 1
        %v4024 = vadd.f32 %v4022, %v4023
        %v4025 = vadd.f32 %v3943, %v3945
        %v4026 = vrot.slane %v4025, 4
        %v4027 = vadd.f32 %v4025, %v4026
        %v4028 = vrot.slane %v4027, 2
        %v4029 = vadd.f32 %v4027, %v4028
        %v4030 = vrot.slane %v4029, 1
        %v4031 = vadd.f32 %v4029, %v4030
        %v4032 = vadd.f32 %v3944, %v3946
        %v4033 = vrot.slane %v4032, 4
        %v4034 = vadd.f32 %v4032, %v4033
        %v4035 = vrot.slane %v4034, 2
        %v4036 = vadd.f32 %v4034, %v4035
        %v4037 = vrot.slane %v4036, 1
        %v4038 = vadd.f32 %v4036, %v4037
        %v4039 = vadd.f32 %v3947, %v3949
        %v4040 = vrot.slane %v4039, 4
        %v4041 = vadd.f32 %v4039, %v4040
        %v4042 = vrot.slane %v4041, 2
        %v4043 = vadd.f32 %v4041, %v4042
        %v4044 = vrot.slane %v4043, 1
        %v4045 = vadd.f32 %v4043, %v4044
        %v4046 = vadd.f32 %v3948, %v3950
        %v4047 = vrot.slane %v4046, 4
        %v4048 = vadd.f32 %v4046, %v4047
        %v4049 = vrot.slane %v4048, 2
        %v4050 = vadd.f32 %v4048, %v4049
        %v4051 = vrot.slane %v4050, 1
        %v4052 = vadd.f32 %v4050, %v4051
        %v4053 = vadd.f32 %v3951, %v3953
        %v4054 = vrot.slane %v4053, 4
        %v4055 = vadd.f32 %v4053, %v4054
        %v4056 = vrot.slane %v4055, 2
        %v4057 = vadd.f32 %v4055, %v4056
        %v4058 = vrot.slane %v4057, 1
        %v4059 = vadd.f32 %v4057, %v4058
        %v4060 = vadd.f32 %v3952, %v3954
        %v4061 = vrot.slane %v4060, 4
        %v4062 = vadd.f32 %v4060, %v4061
        %v4063 = vrot.slane %v4062, 2
        %v4064 = vadd.f32 %v4062, %v4063
        %v4065 = vrot.slane %v4064, 1
        %v4066 = vadd.f32 %v4064, %v4065
        %v4069 = vrot.slane %v2561, 1
        %v4070 = vrot.slane %v2563, 1
        %v4071 = vrot.slane %v2561, 2
        %v4072 = vrot.slane %v2563, 2
        %v4073 = vrot.slane %v2561, 3
        %v4074 = vrot.slane %v2563, 3
        %v4075 = vrot.slane %v2561, 4
        %v4076 = vrot.slane %v2563, 4
        %v4077 = vrot.slane %v2561, 5
        %v4078 = vrot.slane %v2563, 5
        %v4079 = vrot.slane %v2561, 6
        %v4080 = vrot.slane %v2563, 6
        %v4081 = vrot.slane %v2561, 7
        %v4082 = vrot.slane %v2563, 7
        %v4099 = vmul.f32 %v3961, %v2561
        %v4100 = vmul.f32 %v3968, %v2563
        %v4101 = vmul.f32 %v3975, %v4069
        %v4102 = vmul.f32 %v3982, %v4070
        %v4103 = vmul.f32 %v3989, %v4071
        %v4104 = vmul.f32 %v3996, %v4072
        %v4105 = vmul.f32 %v4003, %v4073
        %v4106 = vmul.f32 %v4010, %v4074
        %v4107 = vmul.f32 %v4017, %v4075
        %v4108 = vmul.f32 %v4024, %v4076
        %v4109 = vmul.f32 %v4031, %v4077
        %v4110 = vmul.f32 %v4038, %v4078
        %v4111 = vmul.f32 %v4045, %v4079
        %v4112 = vmul.f32 %v4052, %v4080
        %v4113 = vmul.f32 %v4059, %v4081
        %v4114 = vmul.f32 %v4066, %v4082
        %v4131 = vrot.slane %v4101, 7
        %vm4132 = vcmask 1041409
        %v4133 = vsel %vm4132, %v4131, %v4099
        %v4134 = vrot.slane %v4103, 6
        %vm4135 = vcmask 1042434
        %v4136 = vsel %vm4135, %v4134, %v4133
        %v4137 = vrot.slane %v4105, 5
        %vm4138 = vcmask 1043459
        %v4139 = vsel %vm4138, %v4137, %v4136
        %v4140 = vrot.slane %v4107, 4
        %vm4141 = vcmask 1044484
        %v4142 = vsel %vm4141, %v4140, %v4139
        %v4143 = vrot.slane %v4109, 3
        %vm4144 = vcmask 1045509
        %v4145 = vsel %vm4144, %v4143, %v4142
        %v4146 = vrot.slane %v4111, 2
        %vm4147 = vcmask 1046534
        %v4148 = vsel %vm4147, %v4146, %v4145
        %v4149 = vrot.slane %v4113, 1
        %vm4150 = vcmask 1047559
        %v4151 = vsel %vm4150, %v4149, %v4148
        %v4152 = vrot.slane %v4102, 7
        %v4153 = vsel %vm4132, %v4152, %v4100
        %v4154 = vrot.slane %v4104, 6
        %v4155 = vsel %vm4135, %v4154, %v4153
        %v4156 = vrot.slane %v4106, 5
        %v4157 = vsel %vm4138, %v4156, %v4155
        %v4158 = vrot.slane %v4108, 4
        %v4159 = vsel %vm4141, %v4158, %v4157
        %v4160 = vrot.slane %v4110, 3
        %v4161 = vsel %vm4144, %v4160, %v4159
        %v4162 = vrot.slane %v4112, 2
        %v4163 = vsel %vm4147, %v4162, %v4161
        %v4164 = vrot.slane %v4114, 1
        %v4165 = vsel %vm4150, %v4164, %v4163
        %4168 = vmatprep.subr.mxu0 0.0
        %v4169 = vand.u32 %v3803, 4294901760
        %4170 = vmatpush1.msra.mxu0 %v4169
        %4171 = vmatprep.subr.mxu0 0.0
        %v4172 = vand.u32 %v3804, 4294901760
        %4173 = vmatpush1.msra.mxu0 %v4172
        %4174 = vmatprep.subr.mxu0 0.0
        %v4175 = vand.u32 %v3805, 4294901760
        %4176 = vmatpush1.msra.mxu0 %v4175
        %4177 = vmatprep.subr.mxu0 0.0
        %v4178 = vand.u32 %v3806, 4294901760
        %4179 = vmatpush1.msra.mxu0 %v4178
        %4180 = vmatprep.subr.mxu0 0.0
        %v4181 = vand.u32 %v3807, 4294901760
        %4182 = vmatpush1.msra.mxu0 %v4181
        %4183 = vmatprep.subr.mxu0 0.0
        %v4184 = vand.u32 %v3808, 4294901760
        %4185 = vmatpush1.msra.mxu0 %v4184
        %4186 = vmatprep.subr.mxu0 0.0
        %v4187 = vand.u32 %v3809, 4294901760
        %4188 = vmatpush1.msra.mxu0 %v4187
        %4189 = vmatprep.subr.mxu0 0.0
        %v4190 = vand.u32 %v3810, 4294901760
        %4191 = vmatpush1.msra.mxu0 %v4190
        %4192 = vmatprep.subr.mxu0 0.0
        %v4193 = vand.u32 %v3811, 4294901760
        %4194 = vmatpush1.msra.mxu0 %v4193
        %4195 = vmatprep.subr.mxu0 0.0
        %v4196 = vand.u32 %v3812, 4294901760
        %4197 = vmatpush1.msra.mxu0 %v4196
        %4198 = vmatprep.subr.mxu0 0.0
        %v4199 = vand.u32 %v3813, 4294901760
        %4200 = vmatpush1.msra.mxu0 %v4199
        %4201 = vmatprep.subr.mxu0 0.0
        %v4202 = vand.u32 %v3814, 4294901760
        %4203 = vmatpush1.msra.mxu0 %v4202
        %4204 = vmatprep.subr.mxu0 0.0
        %v4205 = vand.u32 %v3815, 4294901760
        %4206 = vmatpush1.msra.mxu0 %v4205
        %4207 = vmatprep.subr.mxu0 0.0
        %v4208 = vand.u32 %v3816, 4294901760
        %4209 = vmatpush1.msra.mxu0 %v4208
        %4210 = vmatprep.subr.mxu0 0.0
        %v4211 = vand.u32 %v3817, 4294901760
        %4212 = vmatpush1.msra.mxu0 %v4211
        %4213 = vmatprep.subr.mxu0 0.0
        %v4214 = vand.u32 %v3818, 4294901760
        %4215 = vmatpush1.msra.mxu0 %v4214
        %4216 = vmatprep.subr.mxu0 0.0
        %v4217 = vand.u32 %v3819, 4294901760
        %4218 = vmatpush1.msra.mxu0 %v4217
        %4219 = vmatprep.subr.mxu0 0.0
        %v4220 = vand.u32 %v3820, 4294901760
        %4221 = vmatpush1.msra.mxu0 %v4220
        %4222 = vmatprep.subr.mxu0 0.0
        %v4223 = vand.u32 %v3821, 4294901760
        %4224 = vmatpush1.msra.mxu0 %v4223
        %4225 = vmatprep.subr.mxu0 0.0
        %v4226 = vand.u32 %v3822, 4294901760
        %4227 = vmatpush1.msra.mxu0 %v4226
        %4228 = vmatprep.subr.mxu0 0.0
        %v4229 = vand.u32 %v3823, 4294901760
        %4230 = vmatpush1.msra.mxu0 %v4229
        %4231 = vmatprep.subr.mxu0 0.0
        %v4232 = vand.u32 %v3824, 4294901760
        %4233 = vmatpush1.msra.mxu0 %v4232
        %4234 = vmatprep.subr.mxu0 0.0
        %v4235 = vand.u32 %v3825, 4294901760
        %4236 = vmatpush1.msra.mxu0 %v4235
        %4237 = vmatprep.subr.mxu0 0.0
        %v4238 = vand.u32 %v3826, 4294901760
        %4239 = vmatpush1.msra.mxu0 %v4238
        %4240 = vmatprep.subr.mxu0 0.0
        %v4241 = vand.u32 %v3827, 4294901760
        %4242 = vmatpush1.msra.mxu0 %v4241
        %4243 = vmatprep.subr.mxu0 0.0
        %v4244 = vand.u32 %v3828, 4294901760
        %4245 = vmatpush1.msra.mxu0 %v4244
        %4246 = vmatprep.subr.mxu0 0.0
        %v4247 = vand.u32 %v3829, 4294901760
        %4248 = vmatpush1.msra.mxu0 %v4247
        %4249 = vmatprep.subr.mxu0 0.0
        %v4250 = vand.u32 %v3830, 4294901760
        %4251 = vmatpush1.msra.mxu0 %v4250
        %4252 = vmatprep.subr.mxu0 0.0
        %v4253 = vand.u32 %v3831, 4294901760
        %4254 = vmatpush1.msra.mxu0 %v4253
        %4255 = vmatprep.subr.mxu0 0.0
        %v4256 = vand.u32 %v3832, 4294901760
        %4257 = vmatpush1.msra.mxu0 %v4256
        %4258 = vmatprep.subr.mxu0 0.0
        %v4259 = vand.u32 %v3833, 4294901760
        %4260 = vmatpush1.msra.mxu0 %v4259
        %4261 = vmatprep.subr.mxu0 0.0
        %v4262 = vand.u32 %v3834, 4294901760
        %4263 = vmatpush1.msra.mxu0 %v4262
        %v4264 = vand.u32 %v4165, 4294901760
        %v4265 = vsub.f32 %v4165, %v4264
        %v4266 = vand.u32 %v4265, 4294901760
        %v4267 = vsub.f32 %v4265, %v4266
        %v4268 = vand.u32 %v4267, 4294901760
        %4269 = vmatprep.mubr.f32.mxu0 %v4268
        %v4270 = vand.u32 %v4151, 4294901760
        %v4271 = vsub.f32 %v4151, %v4270
        %v4272 = vand.u32 %v4271, 4294901760
        %v4273 = vsub.f32 %v4271, %v4272
        %v4274 = vand.u32 %v4273, 4294901760
        %4275 = vmatmul.mubr.f32.gmra.mrb[0].mxu0 %v4274
        %v4276 = vpop.f32.mrb[0].mxu0
        %v4277 = vadd.f32 0.0, %v4276
        %v4278 = vpop.f32.mrb[0].mxu0
        %4279 = vdwg.mxu0
        %4280 = vmatprep.subr.mxu0 0.0
        %v4281 = vand.u32 %v3803, 4294901760
        %v4282 = vsub.f32 %v3803, %v4281
        %v4283 = vand.u32 %v4282, 4294901760
        %v4284 = vsub.f32 %v4282, %v4283
        %v4285 = vand.u32 %v4284, 4294901760
        %4286 = vmatpush1.msra.mxu0 %v4285
        %4287 = vmatprep.subr.mxu0 0.0
        %v4288 = vand.u32 %v3804, 4294901760
        %v4289 = vsub.f32 %v3804, %v4288
        %v4290 = vand.u32 %v4289, 4294901760
        %v4291 = vsub.f32 %v4289, %v4290
        %v4292 = vand.u32 %v4291, 4294901760
        %4293 = vmatpush1.msra.mxu0 %v4292
        %4294 = vmatprep.subr.mxu0 0.0
        %v4295 = vand.u32 %v3805, 4294901760
        %v4296 = vsub.f32 %v3805, %v4295
        %v4297 = vand.u32 %v4296, 4294901760
        %v4298 = vsub.f32 %v4296, %v4297
        %v4299 = vand.u32 %v4298, 4294901760
        %4300 = vmatpush1.msra.mxu0 %v4299
        %4301 = vmatprep.subr.mxu0 0.0
        %v4302 = vand.u32 %v3806, 4294901760
        %v4303 = vsub.f32 %v3806, %v4302
        %v4304 = vand.u32 %v4303, 4294901760
        %v4305 = vsub.f32 %v4303, %v4304
        %v4306 = vand.u32 %v4305, 4294901760
        %4307 = vmatpush1.msra.mxu0 %v4306
        %4308 = vmatprep.subr.mxu0 0.0
        %v4309 = vand.u32 %v3807, 4294901760
        %v4310 = vsub.f32 %v3807, %v4309
        %v4311 = vand.u32 %v4310, 4294901760
        %v4312 = vsub.f32 %v4310, %v4311
        %v4313 = vand.u32 %v4312, 4294901760
        %4314 = vmatpush1.msra.mxu0 %v4313
        %4315 = vmatprep.subr.mxu0 0.0
        %v4316 = vand.u32 %v3808, 4294901760
        %v4317 = vsub.f32 %v3808, %v4316
        %v4318 = vand.u32 %v4317, 4294901760
        %v4319 = vsub.f32 %v4317, %v4318
        %v4320 = vand.u32 %v4319, 4294901760
        %4321 = vmatpush1.msra.mxu0 %v4320
        %4322 = vmatprep.subr.mxu0 0.0
        %v4323 = vand.u32 %v3809, 4294901760
        %v4324 = vsub.f32 %v3809, %v4323
        %v4325 = vand.u32 %v4324, 4294901760
        %v4326 = vsub.f32 %v4324, %v4325
        %v4327 = vand.u32 %v4326, 4294901760
        %4328 = vmatpush1.msra.mxu0 %v4327
        %4329 = vmatprep.subr.mxu0 0.0
        %v4330 = vand.u32 %v3810, 4294901760
        %v4331 = vsub.f32 %v3810, %v4330
        %v4332 = vand.u32 %v4331, 4294901760
        %v4333 = vsub.f32 %v4331, %v4332
        %v4334 = vand.u32 %v4333, 4294901760
        %4335 = vmatpush1.msra.mxu0 %v4334
        %4336 = vmatprep.subr.mxu0 0.0
        %v4337 = vand.u32 %v3811, 4294901760
        %v4338 = vsub.f32 %v3811, %v4337
        %v4339 = vand.u32 %v4338, 4294901760
        %v4340 = vsub.f32 %v4338, %v4339
        %v4341 = vand.u32 %v4340, 4294901760
        %4342 = vmatpush1.msra.mxu0 %v4341
        %4343 = vmatprep.subr.mxu0 0.0
        %v4344 = vand.u32 %v3812, 4294901760
        %v4345 = vsub.f32 %v3812, %v4344
        %v4346 = vand.u32 %v4345, 4294901760
        %v4347 = vsub.f32 %v4345, %v4346
        %v4348 = vand.u32 %v4347, 4294901760
        %4349 = vmatpush1.msra.mxu0 %v4348
        %4350 = vmatprep.subr.mxu0 0.0
        %v4351 = vand.u32 %v3813, 4294901760
        %v4352 = vsub.f32 %v3813, %v4351
        %v4353 = vand.u32 %v4352, 4294901760
        %v4354 = vsub.f32 %v4352, %v4353
        %v4355 = vand.u32 %v4354, 4294901760
        %4356 = vmatpush1.msra.mxu0 %v4355
        %4357 = vmatprep.subr.mxu0 0.0
        %v4358 = vand.u32 %v3814, 4294901760
        %v4359 = vsub.f32 %v3814, %v4358
        %v4360 = vand.u32 %v4359, 4294901760
        %v4361 = vsub.f32 %v4359, %v4360
        %v4362 = vand.u32 %v4361, 4294901760
        %4363 = vmatpush1.msra.mxu0 %v4362
        %4364 = vmatprep.subr.mxu0 0.0
        %v4365 = vand.u32 %v3815, 4294901760
        %v4366 = vsub.f32 %v3815, %v4365
        %v4367 = vand.u32 %v4366, 4294901760
        %v4368 = vsub.f32 %v4366, %v4367
        %v4369 = vand.u32 %v4368, 4294901760
        %4370 = vmatpush1.msra.mxu0 %v4369
        %4371 = vmatprep.subr.mxu0 0.0
        %v4372 = vand.u32 %v3816, 4294901760
        %v4373 = vsub.f32 %v3816, %v4372
        %v4374 = vand.u32 %v4373, 4294901760
        %v4375 = vsub.f32 %v4373, %v4374
        %v4376 = vand.u32 %v4375, 4294901760
        %4377 = vmatpush1.msra.mxu0 %v4376
        %4378 = vmatprep.subr.mxu0 0.0
        %v4379 = vand.u32 %v3817, 4294901760
        %v4380 = vsub.f32 %v3817, %v4379
        %v4381 = vand.u32 %v4380, 4294901760
        %v4382 = vsub.f32 %v4380, %v4381
        %v4383 = vand.u32 %v4382, 4294901760
        %4384 = vmatpush1.msra.mxu0 %v4383
        %4385 = vmatprep.subr.mxu0 0.0
        %v4386 = vand.u32 %v3818, 4294901760
        %v4387 = vsub.f32 %v3818, %v4386
        %v4388 = vand.u32 %v4387, 4294901760
        %v4389 = vsub.f32 %v4387, %v4388
        %v4390 = vand.u32 %v4389, 4294901760
        %4391 = vmatpush1.msra.mxu0 %v4390
        %4392 = vmatprep.subr.mxu0 0.0
        %v4393 = vand.u32 %v3819, 4294901760
        %v4394 = vsub.f32 %v3819, %v4393
        %v4395 = vand.u32 %v4394, 4294901760
        %v4396 = vsub.f32 %v4394, %v4395
        %v4397 = vand.u32 %v4396, 4294901760
        %4398 = vmatpush1.msra.mxu0 %v4397
        %4399 = vmatprep.subr.mxu0 0.0
        %v4400 = vand.u32 %v3820, 4294901760
        %v4401 = vsub.f32 %v3820, %v4400
        %v4402 = vand.u32 %v4401, 4294901760
        %v4403 = vsub.f32 %v4401, %v4402
        %v4404 = vand.u32 %v4403, 4294901760
        %4405 = vmatpush1.msra.mxu0 %v4404
        %4406 = vmatprep.subr.mxu0 0.0
        %v4407 = vand.u32 %v3821, 4294901760
        %v4408 = vsub.f32 %v3821, %v4407
        %v4409 = vand.u32 %v4408, 4294901760
        %v4410 = vsub.f32 %v4408, %v4409
        %v4411 = vand.u32 %v4410, 4294901760
        %4412 = vmatpush1.msra.mxu0 %v4411
        %4413 = vmatprep.subr.mxu0 0.0
        %v4414 = vand.u32 %v3822, 4294901760
        %v4415 = vsub.f32 %v3822, %v4414
        %v4416 = vand.u32 %v4415, 4294901760
        %v4417 = vsub.f32 %v4415, %v4416
        %v4418 = vand.u32 %v4417, 4294901760
        %4419 = vmatpush1.msra.mxu0 %v4418
        %4420 = vmatprep.subr.mxu0 0.0
        %v4421 = vand.u32 %v3823, 4294901760
        %v4422 = vsub.f32 %v3823, %v4421
        %v4423 = vand.u32 %v4422, 4294901760
        %v4424 = vsub.f32 %v4422, %v4423
        %v4425 = vand.u32 %v4424, 4294901760
        %4426 = vmatpush1.msra.mxu0 %v4425
        %4427 = vmatprep.subr.mxu0 0.0
        %v4428 = vand.u32 %v3824, 4294901760
        %v4429 = vsub.f32 %v3824, %v4428
        %v4430 = vand.u32 %v4429, 4294901760
        %v4431 = vsub.f32 %v4429, %v4430
        %v4432 = vand.u32 %v4431, 4294901760
        %4433 = vmatpush1.msra.mxu0 %v4432
        %4434 = vmatprep.subr.mxu0 0.0
        %v4435 = vand.u32 %v3825, 4294901760
        %v4436 = vsub.f32 %v3825, %v4435
        %v4437 = vand.u32 %v4436, 4294901760
        %v4438 = vsub.f32 %v4436, %v4437
        %v4439 = vand.u32 %v4438, 4294901760
        %4440 = vmatpush1.msra.mxu0 %v4439
        %4441 = vmatprep.subr.mxu0 0.0
        %v4442 = vand.u32 %v3826, 4294901760
        %v4443 = vsub.f32 %v3826, %v4442
        %v4444 = vand.u32 %v4443, 4294901760
        %v4445 = vsub.f32 %v4443, %v4444
        %v4446 = vand.u32 %v4445, 4294901760
        %4447 = vmatpush1.msra.mxu0 %v4446
        %4448 = vmatprep.subr.mxu0 0.0
        %v4449 = vand.u32 %v3827, 4294901760
        %v4450 = vsub.f32 %v3827, %v4449
        %v4451 = vand.u32 %v4450, 4294901760
        %v4452 = vsub.f32 %v4450, %v4451
        %v4453 = vand.u32 %v4452, 4294901760
        %4454 = vmatpush1.msra.mxu0 %v4453
        %4455 = vmatprep.subr.mxu0 0.0
        %v4456 = vand.u32 %v3828, 4294901760
        %v4457 = vsub.f32 %v3828, %v4456
        %v4458 = vand.u32 %v4457, 4294901760
        %v4459 = vsub.f32 %v4457, %v4458
        %v4460 = vand.u32 %v4459, 4294901760
        %4461 = vmatpush1.msra.mxu0 %v4460
        %4462 = vmatprep.subr.mxu0 0.0
        %v4463 = vand.u32 %v3829, 4294901760
        %v4464 = vsub.f32 %v3829, %v4463
        %v4465 = vand.u32 %v4464, 4294901760
        %v4466 = vsub.f32 %v4464, %v4465
        %v4467 = vand.u32 %v4466, 4294901760
        %4468 = vmatpush1.msra.mxu0 %v4467
        %4469 = vmatprep.subr.mxu0 0.0
        %v4470 = vand.u32 %v3830, 4294901760
        %v4471 = vsub.f32 %v3830, %v4470
        %v4472 = vand.u32 %v4471, 4294901760
        %v4473 = vsub.f32 %v4471, %v4472
        %v4474 = vand.u32 %v4473, 4294901760
        %4475 = vmatpush1.msra.mxu0 %v4474
        %4476 = vmatprep.subr.mxu0 0.0
        %v4477 = vand.u32 %v3831, 4294901760
        %v4478 = vsub.f32 %v3831, %v4477
        %v4479 = vand.u32 %v4478, 4294901760
        %v4480 = vsub.f32 %v4478, %v4479
        %v4481 = vand.u32 %v4480, 4294901760
        %4482 = vmatpush1.msra.mxu0 %v4481
        %4483 = vmatprep.subr.mxu0 0.0
        %v4484 = vand.u32 %v3832, 4294901760
        %v4485 = vsub.f32 %v3832, %v4484
        %v4486 = vand.u32 %v4485, 4294901760
        %v4487 = vsub.f32 %v4485, %v4486
        %v4488 = vand.u32 %v4487, 4294901760
        %4489 = vmatpush1.msra.mxu0 %v4488
        %4490 = vmatprep.subr.mxu0 0.0
        %v4491 = vand.u32 %v3833, 4294901760
        %v4492 = vsub.f32 %v3833, %v4491
        %v4493 = vand.u32 %v4492, 4294901760
        %v4494 = vsub.f32 %v4492, %v4493
        %v4495 = vand.u32 %v4494, 4294901760
        %4496 = vmatpush1.msra.mxu0 %v4495
        %4497 = vmatprep.subr.mxu0 0.0
        %v4498 = vand.u32 %v3834, 4294901760
        %v4499 = vsub.f32 %v3834, %v4498
        %v4500 = vand.u32 %v4499, 4294901760
        %v4501 = vsub.f32 %v4499, %v4500
        %v4502 = vand.u32 %v4501, 4294901760
        %4503 = vmatpush1.msra.mxu0 %v4502
        %v4504 = vand.u32 %v4165, 4294901760
        %4505 = vmatprep.mubr.f32.mxu0 %v4504
        %v4506 = vand.u32 %v4151, 4294901760
        %4507 = vmatmul.mubr.f32.gmra.mrb[0].mxu0 %v4506
        %v4508 = vpop.f32.mrb[0].mxu0
        %v4509 = vadd.f32 %v4277, %v4508
        %v4510 = vpop.f32.mrb[0].mxu0
        %4511 = vdwg.mxu0
        %4512 = vmatprep.subr.mxu0 0.0
        %v4513 = vand.u32 %v3803, 4294901760
        %v4514 = vsub.f32 %v3803, %v4513
        %4515 = vmatpush1.msra.mxu0 %v4514
        %4516 = vmatprep.subr.mxu0 0.0
        %v4517 = vand.u32 %v3804, 4294901760
        %v4518 = vsub.f32 %v3804, %v4517
        %4519 = vmatpush1.msra.mxu0 %v4518
        %4520 = vmatprep.subr.mxu0 0.0
        %v4521 = vand.u32 %v3805, 4294901760
        %v4522 = vsub.f32 %v3805, %v4521
        %4523 = vmatpush1.msra.mxu0 %v4522
        %4524 = vmatprep.subr.mxu0 0.0
        %v4525 = vand.u32 %v3806, 4294901760
        %v4526 = vsub.f32 %v3806, %v4525
        %4527 = vmatpush1.msra.mxu0 %v4526
        %4528 = vmatprep.subr.mxu0 0.0
        %v4529 = vand.u32 %v3807, 4294901760
        %v4530 = vsub.f32 %v3807, %v4529
        %4531 = vmatpush1.msra.mxu0 %v4530
        %4532 = vmatprep.subr.mxu0 0.0
        %v4533 = vand.u32 %v3808, 4294901760
        %v4534 = vsub.f32 %v3808, %v4533
        %4535 = vmatpush1.msra.mxu0 %v4534
        %4536 = vmatprep.subr.mxu0 0.0
        %v4537 = vand.u32 %v3809, 4294901760
        %v4538 = vsub.f32 %v3809, %v4537
        %4539 = vmatpush1.msra.mxu0 %v4538
        %4540 = vmatprep.subr.mxu0 0.0
        %v4541 = vand.u32 %v3810, 4294901760
        %v4542 = vsub.f32 %v3810, %v4541
        %4543 = vmatpush1.msra.mxu0 %v4542
        %4544 = vmatprep.subr.mxu0 0.0
        %v4545 = vand.u32 %v3811, 4294901760
        %v4546 = vsub.f32 %v3811, %v4545
        %4547 = vmatpush1.msra.mxu0 %v4546
        %4548 = vmatprep.subr.mxu0 0.0
        %v4549 = vand.u32 %v3812, 4294901760
        %v4550 = vsub.f32 %v3812, %v4549
        %4551 = vmatpush1.msra.mxu0 %v4550
        %4552 = vmatprep.subr.mxu0 0.0
        %v4553 = vand.u32 %v3813, 4294901760
        %v4554 = vsub.f32 %v3813, %v4553
        %4555 = vmatpush1.msra.mxu0 %v4554
        %4556 = vmatprep.subr.mxu0 0.0
        %v4557 = vand.u32 %v3814, 4294901760
        %v4558 = vsub.f32 %v3814, %v4557
        %4559 = vmatpush1.msra.mxu0 %v4558
        %4560 = vmatprep.subr.mxu0 0.0
        %v4561 = vand.u32 %v3815, 4294901760
        %v4562 = vsub.f32 %v3815, %v4561
        %4563 = vmatpush1.msra.mxu0 %v4562
        %4564 = vmatprep.subr.mxu0 0.0
        %v4565 = vand.u32 %v3816, 4294901760
        %v4566 = vsub.f32 %v3816, %v4565
        %4567 = vmatpush1.msra.mxu0 %v4566
        %4568 = vmatprep.subr.mxu0 0.0
        %v4569 = vand.u32 %v3817, 4294901760
        %v4570 = vsub.f32 %v3817, %v4569
        %4571 = vmatpush1.msra.mxu0 %v4570
        %4572 = vmatprep.subr.mxu0 0.0
        %v4573 = vand.u32 %v3818, 4294901760
        %v4574 = vsub.f32 %v3818, %v4573
        %4575 = vmatpush1.msra.mxu0 %v4574
        %4576 = vmatprep.subr.mxu0 0.0
        %v4577 = vand.u32 %v3819, 4294901760
        %v4578 = vsub.f32 %v3819, %v4577
        %4579 = vmatpush1.msra.mxu0 %v4578
        %4580 = vmatprep.subr.mxu0 0.0
        %v4581 = vand.u32 %v3820, 4294901760
        %v4582 = vsub.f32 %v3820, %v4581
        %4583 = vmatpush1.msra.mxu0 %v4582
        %4584 = vmatprep.subr.mxu0 0.0
        %v4585 = vand.u32 %v3821, 4294901760
        %v4586 = vsub.f32 %v3821, %v4585
        %4587 = vmatpush1.msra.mxu0 %v4586
        %4588 = vmatprep.subr.mxu0 0.0
        %v4589 = vand.u32 %v3822, 4294901760
        %v4590 = vsub.f32 %v3822, %v4589
        %4591 = vmatpush1.msra.mxu0 %v4590
        %4592 = vmatprep.subr.mxu0 0.0
        %v4593 = vand.u32 %v3823, 4294901760
        %v4594 = vsub.f32 %v3823, %v4593
        %4595 = vmatpush1.msra.mxu0 %v4594
        %4596 = vmatprep.subr.mxu0 0.0
        %v4597 = vand.u32 %v3824, 4294901760
        %v4598 = vsub.f32 %v3824, %v4597
        %4599 = vmatpush1.msra.mxu0 %v4598
        %4600 = vmatprep.subr.mxu0 0.0
        %v4601 = vand.u32 %v3825, 4294901760
        %v4602 = vsub.f32 %v3825, %v4601
        %4603 = vmatpush1.msra.mxu0 %v4602
        %4604 = vmatprep.subr.mxu0 0.0
        %v4605 = vand.u32 %v3826, 4294901760
        %v4606 = vsub.f32 %v3826, %v4605
        %4607 = vmatpush1.msra.mxu0 %v4606
        %4608 = vmatprep.subr.mxu0 0.0
        %v4609 = vand.u32 %v3827, 4294901760
        %v4610 = vsub.f32 %v3827, %v4609
        %4611 = vmatpush1.msra.mxu0 %v4610
        %4612 = vmatprep.subr.mxu0 0.0
        %v4613 = vand.u32 %v3828, 4294901760
        %v4614 = vsub.f32 %v3828, %v4613
        %4615 = vmatpush1.msra.mxu0 %v4614
        %4616 = vmatprep.subr.mxu0 0.0
        %v4617 = vand.u32 %v3829, 4294901760
        %v4618 = vsub.f32 %v3829, %v4617
        %4619 = vmatpush1.msra.mxu0 %v4618
        %4620 = vmatprep.subr.mxu0 0.0
        %v4621 = vand.u32 %v3830, 4294901760
        %v4622 = vsub.f32 %v3830, %v4621
        %4623 = vmatpush1.msra.mxu0 %v4622
        %4624 = vmatprep.subr.mxu0 0.0
        %v4625 = vand.u32 %v3831, 4294901760
        %v4626 = vsub.f32 %v3831, %v4625
        %4627 = vmatpush1.msra.mxu0 %v4626
        %4628 = vmatprep.subr.mxu0 0.0
        %v4629 = vand.u32 %v3832, 4294901760
        %v4630 = vsub.f32 %v3832, %v4629
        %4631 = vmatpush1.msra.mxu0 %v4630
        %4632 = vmatprep.subr.mxu0 0.0
        %v4633 = vand.u32 %v3833, 4294901760
        %v4634 = vsub.f32 %v3833, %v4633
        %4635 = vmatpush1.msra.mxu0 %v4634
        %4636 = vmatprep.subr.mxu0 0.0
        %v4637 = vand.u32 %v3834, 4294901760
        %v4638 = vsub.f32 %v3834, %v4637
        %4639 = vmatpush1.msra.mxu0 %v4638
        %v4640 = vand.u32 %v4165, 4294901760
        %v4641 = vsub.f32 %v4165, %v4640
        %4642 = vmatprep.mubr.f32.mxu0 %v4641
        %v4643 = vand.u32 %v4151, 4294901760
        %v4644 = vsub.f32 %v4151, %v4643
        %4645 = vmatmul.mubr.f32.gmra.mrb[0].mxu0 %v4644
        %v4646 = vpop.f32.mrb[0].mxu0
        %v4647 = vadd.f32 %v4509, %v4646
        %v4648 = vpop.f32.mrb[0].mxu0
        %4649 = vdwg.mxu0
        %4650 = vmatprep.subr.mxu0 0.0
        %v4651 = vand.u32 %v3803, 4294901760
        %4652 = vmatpush1.msra.mxu0 %v4651
        %4653 = vmatprep.subr.mxu0 0.0
        %v4654 = vand.u32 %v3804, 4294901760
        %4655 = vmatpush1.msra.mxu0 %v4654
        %4656 = vmatprep.subr.mxu0 0.0
        %v4657 = vand.u32 %v3805, 4294901760
        %4658 = vmatpush1.msra.mxu0 %v4657
        %4659 = vmatprep.subr.mxu0 0.0
        %v4660 = vand.u32 %v3806, 4294901760
        %4661 = vmatpush1.msra.mxu0 %v4660
        %4662 = vmatprep.subr.mxu0 0.0
        %v4663 = vand.u32 %v3807, 4294901760
        %4664 = vmatpush1.msra.mxu0 %v4663
        %4665 = vmatprep.subr.mxu0 0.0
        %v4666 = vand.u32 %v3808, 4294901760
        %4667 = vmatpush1.msra.mxu0 %v4666
        %4668 = vmatprep.subr.mxu0 0.0
        %v4669 = vand.u32 %v3809, 4294901760
        %4670 = vmatpush1.msra.mxu0 %v4669
        %4671 = vmatprep.subr.mxu0 0.0
        %v4672 = vand.u32 %v3810, 4294901760
        %4673 = vmatpush1.msra.mxu0 %v4672
        %4674 = vmatprep.subr.mxu0 0.0
        %v4675 = vand.u32 %v3811, 4294901760
        %4676 = vmatpush1.msra.mxu0 %v4675
        %4677 = vmatprep.subr.mxu0 0.0
        %v4678 = vand.u32 %v3812, 4294901760
        %4679 = vmatpush1.msra.mxu0 %v4678
        %4680 = vmatprep.subr.mxu0 0.0
        %v4681 = vand.u32 %v3813, 4294901760
        %4682 = vmatpush1.msra.mxu0 %v4681
        %4683 = vmatprep.subr.mxu0 0.0
        %v4684 = vand.u32 %v3814, 4294901760
        %4685 = vmatpush1.msra.mxu0 %v4684
        %4686 = vmatprep.subr.mxu0 0.0
        %v4687 = vand.u32 %v3815, 4294901760
        %4688 = vmatpush1.msra.mxu0 %v4687
        %4689 = vmatprep.subr.mxu0 0.0
        %v4690 = vand.u32 %v3816, 4294901760
        %4691 = vmatpush1.msra.mxu0 %v4690
        %4692 = vmatprep.subr.mxu0 0.0
        %v4693 = vand.u32 %v3817, 4294901760
        %4694 = vmatpush1.msra.mxu0 %v4693
        %4695 = vmatprep.subr.mxu0 0.0
        %v4696 = vand.u32 %v3818, 4294901760
        %4697 = vmatpush1.msra.mxu0 %v4696
        %4698 = vmatprep.subr.mxu0 0.0
        %v4699 = vand.u32 %v3819, 4294901760
        %4700 = vmatpush1.msra.mxu0 %v4699
        %4701 = vmatprep.subr.mxu0 0.0
        %v4702 = vand.u32 %v3820, 4294901760
        %4703 = vmatpush1.msra.mxu0 %v4702
        %4704 = vmatprep.subr.mxu0 0.0
        %v4705 = vand.u32 %v3821, 4294901760
        %4706 = vmatpush1.msra.mxu0 %v4705
        %4707 = vmatprep.subr.mxu0 0.0
        %v4708 = vand.u32 %v3822, 4294901760
        %4709 = vmatpush1.msra.mxu0 %v4708
        %4710 = vmatprep.subr.mxu0 0.0
        %v4711 = vand.u32 %v3823, 4294901760
        %4712 = vmatpush1.msra.mxu0 %v4711
        %4713 = vmatprep.subr.mxu0 0.0
        %v4714 = vand.u32 %v3824, 4294901760
        %4715 = vmatpush1.msra.mxu0 %v4714
        %4716 = vmatprep.subr.mxu0 0.0
        %v4717 = vand.u32 %v3825, 4294901760
        %4718 = vmatpush1.msra.mxu0 %v4717
        %4719 = vmatprep.subr.mxu0 0.0
        %v4720 = vand.u32 %v3826, 4294901760
        %4721 = vmatpush1.msra.mxu0 %v4720
        %4722 = vmatprep.subr.mxu0 0.0
        %v4723 = vand.u32 %v3827, 4294901760
        %4724 = vmatpush1.msra.mxu0 %v4723
        %4725 = vmatprep.subr.mxu0 0.0
        %v4726 = vand.u32 %v3828, 4294901760
        %4727 = vmatpush1.msra.mxu0 %v4726
        %4728 = vmatprep.subr.mxu0 0.0
        %v4729 = vand.u32 %v3829, 4294901760
        %4730 = vmatpush1.msra.mxu0 %v4729
        %4731 = vmatprep.subr.mxu0 0.0
        %v4732 = vand.u32 %v3830, 4294901760
        %4733 = vmatpush1.msra.mxu0 %v4732
        %4734 = vmatprep.subr.mxu0 0.0
        %v4735 = vand.u32 %v3831, 4294901760
        %4736 = vmatpush1.msra.mxu0 %v4735
        %4737 = vmatprep.subr.mxu0 0.0
        %v4738 = vand.u32 %v3832, 4294901760
        %4739 = vmatpush1.msra.mxu0 %v4738
        %4740 = vmatprep.subr.mxu0 0.0
        %v4741 = vand.u32 %v3833, 4294901760
        %4742 = vmatpush1.msra.mxu0 %v4741
        %4743 = vmatprep.subr.mxu0 0.0
        %v4744 = vand.u32 %v3834, 4294901760
        %4745 = vmatpush1.msra.mxu0 %v4744
        %v4746 = vand.u32 %v4165, 4294901760
        %v4747 = vsub.f32 %v4165, %v4746
        %v4748 = vand.u32 %v4747, 4294901760
        %4749 = vmatprep.mubr.f32.mxu0 %v4748
        %v4750 = vand.u32 %v4151, 4294901760
        %v4751 = vsub.f32 %v4151, %v4750
        %v4752 = vand.u32 %v4751, 4294901760
        %4753 = vmatmul.mubr.f32.gmra.mrb[0].mxu0 %v4752
        %v4754 = vpop.f32.mrb[0].mxu0
        %v4755 = vadd.f32 %v4647, %v4754
        %v4756 = vpop.f32.mrb[0].mxu0
        %4757 = vdwg.mxu0
        %4758 = vmatprep.subr.mxu0 0.0
        %v4759 = vand.u32 %v3803, 4294901760
        %v4760 = vsub.f32 %v3803, %v4759
        %v4761 = vand.u32 %v4760, 4294901760
        %4762 = vmatpush1.msra.mxu0 %v4761
        %4763 = vmatprep.subr.mxu0 0.0
        %v4764 = vand.u32 %v3804, 4294901760
        %v4765 = vsub.f32 %v3804, %v4764
        %v4766 = vand.u32 %v4765, 4294901760
        %4767 = vmatpush1.msra.mxu0 %v4766
        %4768 = vmatprep.subr.mxu0 0.0
        %v4769 = vand.u32 %v3805, 4294901760
        %v4770 = vsub.f32 %v3805, %v4769
        %v4771 = vand.u32 %v4770, 4294901760
        %4772 = vmatpush1.msra.mxu0 %v4771
        %4773 = vmatprep.subr.mxu0 0.0
        %v4774 = vand.u32 %v3806, 4294901760
        %v4775 = vsub.f32 %v3806, %v4774
        %v4776 = vand.u32 %v4775, 4294901760
        %4777 = vmatpush1.msra.mxu0 %v4776
        %4778 = vmatprep.subr.mxu0 0.0
        %v4779 = vand.u32 %v3807, 4294901760
        %v4780 = vsub.f32 %v3807, %v4779
        %v4781 = vand.u32 %v4780, 4294901760
        %4782 = vmatpush1.msra.mxu0 %v4781
        %4783 = vmatprep.subr.mxu0 0.0
        %v4784 = vand.u32 %v3808, 4294901760
        %v4785 = vsub.f32 %v3808, %v4784
        %v4786 = vand.u32 %v4785, 4294901760
        %4787 = vmatpush1.msra.mxu0 %v4786
        %4788 = vmatprep.subr.mxu0 0.0
        %v4789 = vand.u32 %v3809, 4294901760
        %v4790 = vsub.f32 %v3809, %v4789
        %v4791 = vand.u32 %v4790, 4294901760
        %4792 = vmatpush1.msra.mxu0 %v4791
        %4793 = vmatprep.subr.mxu0 0.0
        %v4794 = vand.u32 %v3810, 4294901760
        %v4795 = vsub.f32 %v3810, %v4794
        %v4796 = vand.u32 %v4795, 4294901760
        %4797 = vmatpush1.msra.mxu0 %v4796
        %4798 = vmatprep.subr.mxu0 0.0
        %v4799 = vand.u32 %v3811, 4294901760
        %v4800 = vsub.f32 %v3811, %v4799
        %v4801 = vand.u32 %v4800, 4294901760
        %4802 = vmatpush1.msra.mxu0 %v4801
        %4803 = vmatprep.subr.mxu0 0.0
        %v4804 = vand.u32 %v3812, 4294901760
        %v4805 = vsub.f32 %v3812, %v4804
        %v4806 = vand.u32 %v4805, 4294901760
        %4807 = vmatpush1.msra.mxu0 %v4806
        %4808 = vmatprep.subr.mxu0 0.0
        %v4809 = vand.u32 %v3813, 4294901760
        %v4810 = vsub.f32 %v3813, %v4809
        %v4811 = vand.u32 %v4810, 4294901760
        %4812 = vmatpush1.msra.mxu0 %v4811
        %4813 = vmatprep.subr.mxu0 0.0
        %v4814 = vand.u32 %v3814, 4294901760
        %v4815 = vsub.f32 %v3814, %v4814
        %v4816 = vand.u32 %v4815, 4294901760
        %4817 = vmatpush1.msra.mxu0 %v4816
        %4818 = vmatprep.subr.mxu0 0.0
        %v4819 = vand.u32 %v3815, 4294901760
        %v4820 = vsub.f32 %v3815, %v4819
        %v4821 = vand.u32 %v4820, 4294901760
        %4822 = vmatpush1.msra.mxu0 %v4821
        %4823 = vmatprep.subr.mxu0 0.0
        %v4824 = vand.u32 %v3816, 4294901760
        %v4825 = vsub.f32 %v3816, %v4824
        %v4826 = vand.u32 %v4825, 4294901760
        %4827 = vmatpush1.msra.mxu0 %v4826
        %4828 = vmatprep.subr.mxu0 0.0
        %v4829 = vand.u32 %v3817, 4294901760
        %v4830 = vsub.f32 %v3817, %v4829
        %v4831 = vand.u32 %v4830, 4294901760
        %4832 = vmatpush1.msra.mxu0 %v4831
        %4833 = vmatprep.subr.mxu0 0.0
        %v4834 = vand.u32 %v3818, 4294901760
        %v4835 = vsub.f32 %v3818, %v4834
        %v4836 = vand.u32 %v4835, 4294901760
        %4837 = vmatpush1.msra.mxu0 %v4836
        %4838 = vmatprep.subr.mxu0 0.0
        %v4839 = vand.u32 %v3819, 4294901760
        %v4840 = vsub.f32 %v3819, %v4839
        %v4841 = vand.u32 %v4840, 4294901760
        %4842 = vmatpush1.msra.mxu0 %v4841
        %4843 = vmatprep.subr.mxu0 0.0
        %v4844 = vand.u32 %v3820, 4294901760
        %v4845 = vsub.f32 %v3820, %v4844
        %v4846 = vand.u32 %v4845, 4294901760
        %4847 = vmatpush1.msra.mxu0 %v4846
        %4848 = vmatprep.subr.mxu0 0.0
        %v4849 = vand.u32 %v3821, 4294901760
        %v4850 = vsub.f32 %v3821, %v4849
        %v4851 = vand.u32 %v4850, 4294901760
        %4852 = vmatpush1.msra.mxu0 %v4851
        %4853 = vmatprep.subr.mxu0 0.0
        %v4854 = vand.u32 %v3822, 4294901760
        %v4855 = vsub.f32 %v3822, %v4854
        %v4856 = vand.u32 %v4855, 4294901760
        %4857 = vmatpush1.msra.mxu0 %v4856
        %4858 = vmatprep.subr.mxu0 0.0
        %v4859 = vand.u32 %v3823, 4294901760
        %v4860 = vsub.f32 %v3823, %v4859
        %v4861 = vand.u32 %v4860, 4294901760
        %4862 = vmatpush1.msra.mxu0 %v4861
        %4863 = vmatprep.subr.mxu0 0.0
        %v4864 = vand.u32 %v3824, 4294901760
        %v4865 = vsub.f32 %v3824, %v4864
        %v4866 = vand.u32 %v4865, 4294901760
        %4867 = vmatpush1.msra.mxu0 %v4866
        %4868 = vmatprep.subr.mxu0 0.0
        %v4869 = vand.u32 %v3825, 4294901760
        %v4870 = vsub.f32 %v3825, %v4869
        %v4871 = vand.u32 %v4870, 4294901760
        %4872 = vmatpush1.msra.mxu0 %v4871
        %4873 = vmatprep.subr.mxu0 0.0
        %v4874 = vand.u32 %v3826, 4294901760
        %v4875 = vsub.f32 %v3826, %v4874
        %v4876 = vand.u32 %v4875, 4294901760
        %4877 = vmatpush1.msra.mxu0 %v4876
        %4878 = vmatprep.subr.mxu0 0.0
        %v4879 = vand.u32 %v3827, 4294901760
        %v4880 = vsub.f32 %v3827, %v4879
        %v4881 = vand.u32 %v4880, 4294901760
        %4882 = vmatpush1.msra.mxu0 %v4881
        %4883 = vmatprep.subr.mxu0 0.0
        %v4884 = vand.u32 %v3828, 4294901760
        %v4885 = vsub.f32 %v3828, %v4884
        %v4886 = vand.u32 %v4885, 4294901760
        %4887 = vmatpush1.msra.mxu0 %v4886
        %4888 = vmatprep.subr.mxu0 0.0
        %v4889 = vand.u32 %v3829, 4294901760
        %v4890 = vsub.f32 %v3829, %v4889
        %v4891 = vand.u32 %v4890, 4294901760
        %4892 = vmatpush1.msra.mxu0 %v4891
        %4893 = vmatprep.subr.mxu0 0.0
        %v4894 = vand.u32 %v3830, 4294901760
        %v4895 = vsub.f32 %v3830, %v4894
        %v4896 = vand.u32 %v4895, 4294901760
        %4897 = vmatpush1.msra.mxu0 %v4896
        %4898 = vmatprep.subr.mxu0 0.0
        %v4899 = vand.u32 %v3831, 4294901760
        %v4900 = vsub.f32 %v3831, %v4899
        %v4901 = vand.u32 %v4900, 4294901760
        %4902 = vmatpush1.msra.mxu0 %v4901
        %4903 = vmatprep.subr.mxu0 0.0
        %v4904 = vand.u32 %v3832, 4294901760
        %v4905 = vsub.f32 %v3832, %v4904
        %v4906 = vand.u32 %v4905, 4294901760
        %4907 = vmatpush1.msra.mxu0 %v4906
        %4908 = vmatprep.subr.mxu0 0.0
        %v4909 = vand.u32 %v3833, 4294901760
        %v4910 = vsub.f32 %v3833, %v4909
        %v4911 = vand.u32 %v4910, 4294901760
        %4912 = vmatpush1.msra.mxu0 %v4911
        %4913 = vmatprep.subr.mxu0 0.0
        %v4914 = vand.u32 %v3834, 4294901760
        %v4915 = vsub.f32 %v3834, %v4914
        %v4916 = vand.u32 %v4915, 4294901760
        %4917 = vmatpush1.msra.mxu0 %v4916
        %v4918 = vand.u32 %v4165, 4294901760
        %4919 = vmatprep.mubr.f32.mxu0 %v4918
        %v4920 = vand.u32 %v4151, 4294901760
        %4921 = vmatmul.mubr.f32.gmra.mrb[0].mxu0 %v4920
        %v4922 = vpop.f32.mrb[0].mxu0
        %v4923 = vadd.f32 %v4755, %v4922
        %v4924 = vpop.f32.mrb[0].mxu0
        %4925 = vdwg.mxu0
        %4926 = vmatprep.subr.mxu0 0.0
        %v4927 = vand.u32 %v3803, 4294901760
        %4928 = vmatpush1.msra.mxu0 %v4927
        %4929 = vmatprep.subr.mxu0 0.0
        %v4930 = vand.u32 %v3804, 4294901760
        %4931 = vmatpush1.msra.mxu0 %v4930
        %4932 = vmatprep.subr.mxu0 0.0
        %v4933 = vand.u32 %v3805, 4294901760
        %4934 = vmatpush1.msra.mxu0 %v4933
        %4935 = vmatprep.subr.mxu0 0.0
        %v4936 = vand.u32 %v3806, 4294901760
        %4937 = vmatpush1.msra.mxu0 %v4936
        %4938 = vmatprep.subr.mxu0 0.0
        %v4939 = vand.u32 %v3807, 4294901760
        %4940 = vmatpush1.msra.mxu0 %v4939
        %4941 = vmatprep.subr.mxu0 0.0
        %v4942 = vand.u32 %v3808, 4294901760
        %4943 = vmatpush1.msra.mxu0 %v4942
        %4944 = vmatprep.subr.mxu0 0.0
        %v4945 = vand.u32 %v3809, 4294901760
        %4946 = vmatpush1.msra.mxu0 %v4945
        %4947 = vmatprep.subr.mxu0 0.0
        %v4948 = vand.u32 %v3810, 4294901760
        %4949 = vmatpush1.msra.mxu0 %v4948
        %4950 = vmatprep.subr.mxu0 0.0
        %v4951 = vand.u32 %v3811, 4294901760
        %4952 = vmatpush1.msra.mxu0 %v4951
        %4953 = vmatprep.subr.mxu0 0.0
        %v4954 = vand.u32 %v3812, 4294901760
        %4955 = vmatpush1.msra.mxu0 %v4954
        %4956 = vmatprep.subr.mxu0 0.0
        %v4957 = vand.u32 %v3813, 4294901760
        %4958 = vmatpush1.msra.mxu0 %v4957
        %4959 = vmatprep.subr.mxu0 0.0
        %v4960 = vand.u32 %v3814, 4294901760
        %4961 = vmatpush1.msra.mxu0 %v4960
        %4962 = vmatprep.subr.mxu0 0.0
        %v4963 = vand.u32 %v3815, 4294901760
        %4964 = vmatpush1.msra.mxu0 %v4963
        %4965 = vmatprep.subr.mxu0 0.0
        %v4966 = vand.u32 %v3816, 4294901760
        %4967 = vmatpush1.msra.mxu0 %v4966
        %4968 = vmatprep.subr.mxu0 0.0
        %v4969 = vand.u32 %v3817, 4294901760
        %4970 = vmatpush1.msra.mxu0 %v4969
        %4971 = vmatprep.subr.mxu0 0.0
        %v4972 = vand.u32 %v3818, 4294901760
        %4973 = vmatpush1.msra.mxu0 %v4972
        %4974 = vmatprep.subr.mxu0 0.0
        %v4975 = vand.u32 %v3819, 4294901760
        %4976 = vmatpush1.msra.mxu0 %v4975
        %4977 = vmatprep.subr.mxu0 0.0
        %v4978 = vand.u32 %v3820, 4294901760
        %4979 = vmatpush1.msra.mxu0 %v4978
        %4980 = vmatprep.subr.mxu0 0.0
        %v4981 = vand.u32 %v3821, 4294901760
        %4982 = vmatpush1.msra.mxu0 %v4981
        %4983 = vmatprep.subr.mxu0 0.0
        %v4984 = vand.u32 %v3822, 4294901760
        %4985 = vmatpush1.msra.mxu0 %v4984
        %4986 = vmatprep.subr.mxu0 0.0
        %v4987 = vand.u32 %v3823, 4294901760
        %4988 = vmatpush1.msra.mxu0 %v4987
        %4989 = vmatprep.subr.mxu0 0.0
        %v4990 = vand.u32 %v3824, 4294901760
        %4991 = vmatpush1.msra.mxu0 %v4990
        %4992 = vmatprep.subr.mxu0 0.0
        %v4993 = vand.u32 %v3825, 4294901760
        %4994 = vmatpush1.msra.mxu0 %v4993
        %4995 = vmatprep.subr.mxu0 0.0
        %v4996 = vand.u32 %v3826, 4294901760
        %4997 = vmatpush1.msra.mxu0 %v4996
        %4998 = vmatprep.subr.mxu0 0.0
        %v4999 = vand.u32 %v3827, 4294901760
        %5000 = vmatpush1.msra.mxu0 %v4999
        %5001 = vmatprep.subr.mxu0 0.0
        %v5002 = vand.u32 %v3828, 4294901760
        %5003 = vmatpush1.msra.mxu0 %v5002
        %5004 = vmatprep.subr.mxu0 0.0
        %v5005 = vand.u32 %v3829, 4294901760
        %5006 = vmatpush1.msra.mxu0 %v5005
        %5007 = vmatprep.subr.mxu0 0.0
        %v5008 = vand.u32 %v3830, 4294901760
        %5009 = vmatpush1.msra.mxu0 %v5008
        %5010 = vmatprep.subr.mxu0 0.0
        %v5011 = vand.u32 %v3831, 4294901760
        %5012 = vmatpush1.msra.mxu0 %v5011
        %5013 = vmatprep.subr.mxu0 0.0
        %v5014 = vand.u32 %v3832, 4294901760
        %5015 = vmatpush1.msra.mxu0 %v5014
        %5016 = vmatprep.subr.mxu0 0.0
        %v5017 = vand.u32 %v3833, 4294901760
        %5018 = vmatpush1.msra.mxu0 %v5017
        %5019 = vmatprep.subr.mxu0 0.0
        %v5020 = vand.u32 %v3834, 4294901760
        %5021 = vmatpush1.msra.mxu0 %v5020
        %v5022 = vand.u32 %v4165, 4294901760
        %5023 = vmatprep.mubr.f32.mxu0 %v5022
        %v5024 = vand.u32 %v4151, 4294901760
        %5025 = vmatmul.mubr.f32.gmra.mrb[0].mxu0 %v5024
        %v5026 = vpop.f32.mrb[0].mxu0
        %v5027 = vadd.f32 %v4923, %v5026
        %v5028 = vpop.f32.mrb[0].mxu0
        %5029 = vdwg.mxu0
        %vm5030 = vcmask 130048
        %v5031 = vsel %vm5030, %v5027, 0.0
        %5032 = vadd.xlane.f32.xlu0 %v5031
        %v5033 = vpop.xlane.xlu0 %5032
        %v5034 = vrcp.pop 16.0
        %v5035 = vmul.f32 %v5033, %v5034
        %v5036 = vsub.f32 %v5027, %v5035
        %v5037 = vmul.f32 %v5036, %v5036
        %v5038 = vsel %vm5030, %v5037, 0.0
        %5039 = vadd.xlane.f32.xlu0 %v5038
        %v5040 = vpop.xlane.xlu0 %5039
        %v5041 = vrcp.pop 15.0
        %v5042 = vmul.f32 %v5040, %v5041
        %v5043 = vrsqrt.pop %v5042
        %v5044 = vmul.f32 %v5042, %v5043
        %vm5045 = vcmp.eq.f32.partialorder %v5042, inf
        %v5046 = vsel %vm5045, %v5042, %v5044
        %vm5047 = vcmp.eq.f32.partialorder %v5042, 0.0
        %v5048 = vand.u32 %v5042, 2147483648
        %v5049 = vsel %vm5047, %v5048, %v5046
        %v5050 = vadd.f32 %v5049, 1e-06
        %v5051 = vrcp.pop %v5050
        %v5052 = vmul.f32 %v5036, %v5051
        %v5053 = vld [vmem:[#allocation11] sm:$0x1]
        %v5055 = vlaneseq
        %v5056 = vshrl.u32 %v5055, 7
        %v5057 = vsub.s32 0, %v5056
        %v5058 = vrot.slane %v5053, %v5057
        %v5060 = vmul.f32 %v5052, %v5058
        %v5061 = vld [vmem:[#allocation13] sm:$0x1]
        %v5063 = vlaneseq
        %v5064 = vshrl.u32 %v5063, 7
        %v5065 = vsub.s32 0, %v5064
        %v5066 = vrot.slane %v5061, %v5065
        %v5068 = vadd.f32 %v5060, %v5066
        %v5069 = vlaneseq
        %v5070 = vshrl.u32 %v5069, 7
        %v5071 = vsub.s32 0, %v5070
        %v5072 = vrot.slane %v5068, %v5071
        %5074 = vbcast.lane.b32.xlu0 %v5072, 256
        %v5075 = vpop.permute.xlu0 %5074
        %s5077 = sor.u32 256, 8
        %5078 = vbcast.lane.b32.xlu0 %v5072, %s5077
        %v5079 = vpop.permute.xlu0 %5078
        %v5080 = vlaneseq
        %v5081 = vshrl.u32 %v5080, 7
        %v5082 = vsub.s32 1, %v5081
        %v5083 = vrot.slane %v5068, %v5082
        %5085 = vbcast.lane.b32.xlu0 %v5083, 256
        %v5086 = vpop.permute.xlu0 %5085
        %s5088 = sor.u32 256, 8
        %5089 = vbcast.lane.b32.xlu0 %v5083, %s5088
        %v5090 = vpop.permute.xlu0 %5089
        %v5091 = vlaneseq
        %v5092 = vshrl.u32 %v5091, 7
        %v5093 = vsub.s32 2, %v5092
        %v5094 = vrot.slane %v5068, %v5093
        %5096 = vbcast.lane.b32.xlu0 %v5094, 256
        %v5097 = vpop.permute.xlu0 %5096
        %s5099 = sor.u32 256, 8
        %5100 = vbcast.lane.b32.xlu0 %v5094, %s5099
        %v5101 = vpop.permute.xlu0 %5100
        %v5102 = vlaneseq
        %v5103 = vshrl.u32 %v5102, 7
        %v5104 = vsub.s32 3, %v5103
        %v5105 = vrot.slane %v5068, %v5104
        %5107 = vbcast.lane.b32.xlu0 %v5105, 256
        %v5108 = vpop.permute.xlu0 %5107
        %s5110 = sor.u32 256, 8
        %5111 = vbcast.lane.b32.xlu0 %v5105, %s5110
        %v5112 = vpop.permute.xlu0 %5111
        %v5113 = vlaneseq
        %v5114 = vshrl.u32 %v5113, 7
        %v5115 = vsub.s32 4, %v5114
        %v5116 = vrot.slane %v5068, %v5115
        %5118 = vbcast.lane.b32.xlu0 %v5116, 256
        %v5119 = vpop.permute.xlu0 %5118
        %s5121 = sor.u32 256, 8
        %5122 = vbcast.lane.b32.xlu0 %v5116, %s5121
        %v5123 = vpop.permute.xlu0 %5122
        %v5124 = vlaneseq
        %v5125 = vshrl.u32 %v5124, 7
        %v5126 = vsub.s32 5, %v5125
        %v5127 = vrot.slane %v5068, %v5126
        %5129 = vbcast.lane.b32.xlu0 %v5127, 256
        %v5130 = vpop.permute.xlu0 %5129
        %s5132 = sor.u32 256, 8
        %5133 = vbcast.lane.b32.xlu0 %v5127, %s5132
        %v5134 = vpop.permute.xlu0 %5133
        %v5135 = vlaneseq
        %v5136 = vshrl.u32 %v5135, 7
        %v5137 = vsub.s32 6, %v5136
        %v5138 = vrot.slane %v5068, %v5137
        %5140 = vbcast.lane.b32.xlu0 %v5138, 256
        %v5141 = vpop.permute.xlu0 %5140
        %s5143 = sor.u32 256, 8
        %5144 = vbcast.lane.b32.xlu0 %v5138, %s5143
        %v5145 = vpop.permute.xlu0 %5144
        %v5146 = vlaneseq
        %v5147 = vshrl.u32 %v5146, 7
        %v5148 = vsub.s32 7, %v5147
        %v5149 = vrot.slane %v5068, %v5148
        %5151 = vbcast.lane.b32.xlu0 %v5149, 256
        %v5152 = vpop.permute.xlu0 %5151
        %s5154 = sor.u32 256, 8
        %5155 = vbcast.lane.b32.xlu0 %v5149, %s5154
        %v5156 = vpop.permute.xlu0 %5155
        %v5157 = vmul.f32 %v3771, %v5075
        %v5158 = vmul.f32 %v3772, %v5075
        %v5159 = vmul.f32 %v3773, %v5079
        %v5160 = vmul.f32 %v3774, %v5079
        %v5161 = vmul.f32 %v3775, %v5086
        %v5162 = vmul.f32 %v3776, %v5086
        %v5163 = vmul.f32 %v3777, %v5090
        %v5164 = vmul.f32 %v3778, %v5090
        %v5165 = vmul.f32 %v3779, %v5097
        %v5166 = vmul.f32 %v3780, %v5097
        %v5167 = vmul.f32 %v3781, %v5101
        %v5168 = vmul.f32 %v3782, %v5101
        %v5169 = vmul.f32 %v3783, %v5108
        %v5170 = vmul.f32 %v3784, %v5108
        %v5171 = vmul.f32 %v3785, %v5112
        %v5172 = vmul.f32 %v3786, %v5112
        %v5173 = vmul.f32 %v3787, %v5119
        %v5174 = vmul.f32 %v3788, %v5119
        %v5175 = vmul.f32 %v3789, %v5123
        %v5176 = vmul.f32 %v3790, %v5123
        %v5177 = vmul.f32 %v3791, %v5130
        %v5178 = vmul.f32 %v3792, %v5130
        %v5179 = vmul.f32 %v3793, %v5134
        %v5180 = vmul.f32 %v3794, %v5134
        %v5181 = vmul.f32 %v3795, %v5141
        %v5182 = vmul.f32 %v3796, %v5141
        %v5183 = vmul.f32 %v3797, %v5145
        %v5184 = vmul.f32 %v3798, %v5145
        %v5185 = vmul.f32 %v3799, %v5152
        %v5186 = vmul.f32 %v3800, %v5152
        %v5187 = vmul.f32 %v3801, %v5156
        %v5188 = vmul.f32 %v3802, %v5156
        %v5189 = vadd.f32 %v5157, %v5159
        %v5190 = vrot.slane %v5189, 4
        %v5191 = vadd.f32 %v5189, %v5190
        %v5192 = vrot.slane %v5191, 2
        %v5193 = vadd.f32 %v5191, %v5192
        %v5194 = vrot.slane %v5193, 1
        %v5195 = vadd.f32 %v5193, %v5194
        %v5196 = vadd.f32 %v5158, %v5160
        %v5197 = vrot.slane %v5196, 4
        %v5198 = vadd.f32 %v5196, %v5197
        %v5199 = vrot.slane %v5198, 2
        %v5200 = vadd.f32 %v5198, %v5199
        %v5201 = vrot.slane %v5200, 1
        %v5202 = vadd.f32 %v5200, %v5201
        %v5203 = vadd.f32 %v5161, %v5163
        %v5204 = vrot.slane %v5203, 4
        %v5205 = vadd.f32 %v5203, %v5204
        %v5206 = vrot.slane %v5205, 2
        %v5207 = vadd.f32 %v5205, %v5206
        %v5208 = vrot.slane %v5207, 1
        %v5209 = vadd.f32 %v5207, %v5208
        %v5210 = vadd.f32 %v5162, %v5164
        %v5211 = vrot.slane %v5210, 4
        %v5212 = vadd.f32 %v5210, %v5211
        %v5213 = vrot.slane %v5212, 2
        %v5214 = vadd.f32 %v5212, %v5213
        %v5215 = vrot.slane %v5214, 1
        %v5216 = vadd.f32 %v5214, %v5215
        %v5217 = vadd.f32 %v5165, %v5167
        %v5218 = vrot.slane %v5217, 4
        %v5219 = vadd.f32 %v5217, %v5218
        %v5220 = vrot.slane %v5219, 2
        %v5221 = vadd.f32 %v5219, %v5220
        %v5222 = vrot.slane %v5221, 1
        %v5223 = vadd.f32 %v5221, %v5222
        %v5224 = vadd.f32 %v5166, %v5168
        %v5225 = vrot.slane %v5224, 4
        %v5226 = vadd.f32 %v5224, %v5225
        %v5227 = vrot.slane %v5226, 2
        %v5228 = vadd.f32 %v5226, %v5227
        %v5229 = vrot.slane %v5228, 1
        %v5230 = vadd.f32 %v5228, %v5229
        %v5231 = vadd.f32 %v5169, %v5171
        %v5232 = vrot.slane %v5231, 4
        %v5233 = vadd.f32 %v5231, %v5232
        %v5234 = vrot.slane %v5233, 2
        %v5235 = vadd.f32 %v5233, %v5234
        %v5236 = vrot.slane %v5235, 1
        %v5237 = vadd.f32 %v5235, %v5236
        %v5238 = vadd.f32 %v5170, %v5172
        %v5239 = vrot.slane %v5238, 4
        %v5240 = vadd.f32 %v5238, %v5239
        %v5241 = vrot.slane %v5240, 2
        %v5242 = vadd.f32 %v5240, %v5241
        %v5243 = vrot.slane %v5242, 1
        %v5244 = vadd.f32 %v5242, %v5243
        %v5245 = vadd.f32 %v5173, %v5175
        %v5246 = vrot.slane %v5245, 4
        %v5247 = vadd.f32 %v5245, %v5246
        %v5248 = vrot.slane %v5247, 2
        %v5249 = vadd.f32 %v5247, %v5248
        %v5250 = vrot.slane %v5249, 1
        %v5251 = vadd.f32 %v5249, %v5250
        %v5252 = vadd.f32 %v5174, %v5176
        %v5253 = vrot.slane %v5252, 4
        %v5254 = vadd.f32 %v5252, %v5253
        %v5255 = vrot.slane %v5254, 2
        %v5256 = vadd.f32 %v5254, %v5255
        %v5257 = vrot.slane %v5256, 1
        %v5258 = vadd.f32 %v5256, %v5257
        %v5259 = vadd.f32 %v5177, %v5179
        %v5260 = vrot.slane %v5259, 4
        %v5261 = vadd.f32 %v5259, %v5260
        %v5262 = vrot.slane %v5261, 2
        %v5263 = vadd.f32 %v5261, %v5262
        %v5264 = vrot.slane %v5263, 1
        %v5265 = vadd.f32 %v5263, %v5264
        %v5266 = vadd.f32 %v5178, %v5180
        %v5267 = vrot.slane %v5266, 4
        %v5268 = vadd.f32 %v5266, %v5267
        %v5269 = vrot.slane %v5268, 2
        %v5270 = vadd.f32 %v5268, %v5269
        %v5271 = vrot.slane %v5270, 1
        %v5272 = vadd.f32 %v5270, %v5271
        %v5273 = vadd.f32 %v5181, %v5183
        %v5274 = vrot.slane %v5273, 4
        %v5275 = vadd.f32 %v5273, %v5274
        %v5276 = vrot.slane %v5275, 2
        %v5277 = vadd.f32 %v5275, %v5276
        %v5278 = vrot.slane %v5277, 1
        %v5279 = vadd.f32 %v5277, %v5278
        %v5280 = vadd.f32 %v5182, %v5184
        %v5281 = vrot.slane %v5280, 4
        %v5282 = vadd.f32 %v5280, %v5281
        %v5283 = vrot.slane %v5282, 2
        %v5284 = vadd.f32 %v5282, %v5283
        %v5285 = vrot.slane %v5284, 1
        %v5286 = vadd.f32 %v5284, %v5285
        %v5287 = vadd.f32 %v5185, %v5187
        %v5288 = vrot.slane %v5287, 4
        %v5289 = vadd.f32 %v5287, %v5288
        %v5290 = vrot.slane %v5289, 2
        %v5291 = vadd.f32 %v5289, %v5290
        %v5292 = vrot.slane %v5291, 1
        %v5293 = vadd.f32 %v5291, %v5292
        %v5294 = vadd.f32 %v5186, %v5188
        %v5295 = vrot.slane %v5294, 4
        %v5296 = vadd.f32 %v5294, %v5295
        %v5297 = vrot.slane %v5296, 2
        %v5298 = vadd.f32 %v5296, %v5297
        %v5299 = vrot.slane %v5298, 1
        %v5300 = vadd.f32 %v5298, %v5299
        %v5303 = vrot.slane %v3156, 1
        %v5304 = vrot.slane %v3158, 1
        %v5305 = vrot.slane %v3156, 2
        %v5306 = vrot.slane %v3158, 2
        %v5307 = vrot.slane %v3156, 3
        %v5308 = vrot.slane %v3158, 3
        %v5309 = vrot.slane %v3156, 4
        %v5310 = vrot.slane %v3158, 4
        %v5311 = vrot.slane %v3156, 5
        %v5312 = vrot.slane %v3158, 5
        %v5313 = vrot.slane %v3156, 6
        %v5314 = vrot.slane %v3158, 6
        %v5315 = vrot.slane %v3156, 7
        %v5316 = vrot.slane %v3158, 7
        %v5333 = vmul.f32 %v5195, %v3156
        %v5334 = vmul.f32 %v5202, %v3158
        %v5335 = vmul.f32 %v5209, %v5303
        %v5336 = vmul.f32 %v5216, %v5304
        %v5337 = vmul.f32 %v5223, %v5305
        %v5338 = vmul.f32 %v5230, %v5306
        %v5339 = vmul.f32 %v5237, %v5307
        %v5340 = vmul.f32 %v5244, %v5308
        %v5341 = vmul.f32 %v5251, %v5309
        %v5342 = vmul.f32 %v5258, %v5310
        %v5343 = vmul.f32 %v5265, %v5311
        %v5344 = vmul.f32 %v5272, %v5312
        %v5345 = vmul.f32 %v5279, %v5313
        %v5346 = vmul.f32 %v5286, %v5314
        %v5347 = vmul.f32 %v5293, %v5315
        %v5348 = vmul.f32 %v5300, %v5316
        %v5365 = vrot.slane %v5335, 7
        %v5366 = vsel %vm4132, %v5365, %v5333
        %v5367 = vrot.slane %v5337, 6
        %v5368 = vsel %vm4135, %v5367, %v5366
        %v5369 = vrot.slane %v5339, 5
        %v5370 = vsel %vm4138, %v5369, %v5368
        %v5371 = vrot.slane %v5341, 4
        %v5372 = vsel %vm4141, %v5371, %v5370
        %v5373 = vrot.slane %v5343, 3
        %v5374 = vsel %vm4144, %v5373, %v5372
        %v5375 = vrot.slane %v5345, 2
        %v5376 = vsel %vm4147, %v5375, %v5374
        %v5377 = vrot.slane %v5347, 1
        %v5378 = vsel %vm4150, %v5377, %v5376
        %v5379 = vrot.slane %v5336, 7
        %v5380 = vsel %vm4132, %v5379, %v5334
        %v5381 = vrot.slane %v5338, 6
        %v5382 = vsel %vm4135, %v5381, %v5380
        %v5383 = vrot.slane %v5340, 5
        %v5384 = vsel %vm4138, %v5383, %v5382
        %v5385 = vrot.slane %v5342, 4
        %v5386 = vsel %vm4141, %v5385, %v5384
        %v5387 = vrot.slane %v5344, 3
        %v5388 = vsel %vm4144, %v5387, %v5386
        %v5389 = vrot.slane %v5346, 2
        %v5390 = vsel %vm4147, %v5389, %v5388
        %v5391 = vrot.slane %v5348, 1
        %v5392 = vsel %vm4150, %v5391, %v5390
        %5395 = vmatprep.subr.mxu0 0.0
        %v5396 = vand.u32 %v3803, 4294901760
        %5397 = vmatpush1.msra.mxu0 %v5396
        %5398 = vmatprep.subr.mxu0 0.0
        %v5399 = vand.u32 %v3804, 4294901760
        %5400 = vmatpush1.msra.mxu0 %v5399
        %5401 = vmatprep.subr.mxu0 0.0
        %v5402 = vand.u32 %v3805, 4294901760
        %5403 = vmatpush1.msra.mxu0 %v5402
        %5404 = vmatprep.subr.mxu0 0.0
        %v5405 = vand.u32 %v3806, 4294901760
        %5406 = vmatpush1.msra.mxu0 %v5405
        %5407 = vmatprep.subr.mxu0 0.0
        %v5408 = vand.u32 %v3807, 4294901760
        %5409 = vmatpush1.msra.mxu0 %v5408
        %5410 = vmatprep.subr.mxu0 0.0
        %v5411 = vand.u32 %v3808, 4294901760
        %5412 = vmatpush1.msra.mxu0 %v5411
        %5413 = vmatprep.subr.mxu0 0.0
        %v5414 = vand.u32 %v3809, 4294901760
        %5415 = vmatpush1.msra.mxu0 %v5414
        %5416 = vmatprep.subr.mxu0 0.0
        %v5417 = vand.u32 %v3810, 4294901760
        %5418 = vmatpush1.msra.mxu0 %v5417
        %5419 = vmatprep.subr.mxu0 0.0
        %v5420 = vand.u32 %v3811, 4294901760
        %5421 = vmatpush1.msra.mxu0 %v5420
        %5422 = vmatprep.subr.mxu0 0.0
        %v5423 = vand.u32 %v3812, 4294901760
        %5424 = vmatpush1.msra.mxu0 %v5423
        %5425 = vmatprep.subr.mxu0 0.0
        %v5426 = vand.u32 %v3813, 4294901760
        %5427 = vmatpush1.msra.mxu0 %v5426
        %5428 = vmatprep.subr.mxu0 0.0
        %v5429 = vand.u32 %v3814, 4294901760
        %5430 = vmatpush1.msra.mxu0 %v5429
        %5431 = vmatprep.subr.mxu0 0.0
        %v5432 = vand.u32 %v3815, 4294901760
        %5433 = vmatpush1.msra.mxu0 %v5432
        %5434 = vmatprep.subr.mxu0 0.0
        %v5435 = vand.u32 %v3816, 4294901760
        %5436 = vmatpush1.msra.mxu0 %v5435
        %5437 = vmatprep.subr.mxu0 0.0
        %v5438 = vand.u32 %v3817, 4294901760
        %5439 = vmatpush1.msra.mxu0 %v5438
        %5440 = vmatprep.subr.mxu0 0.0
        %v5441 = vand.u32 %v3818, 4294901760
        %5442 = vmatpush1.msra.mxu0 %v5441
        %5443 = vmatprep.subr.mxu0 0.0
        %v5444 = vand.u32 %v3819, 4294901760
        %5445 = vmatpush1.msra.mxu0 %v5444
        %5446 = vmatprep.subr.mxu0 0.0
        %v5447 = vand.u32 %v3820, 4294901760
        %5448 = vmatpush1.msra.mxu0 %v5447
        %5449 = vmatprep.subr.mxu0 0.0
        %v5450 = vand.u32 %v3821, 4294901760
        %5451 = vmatpush1.msra.mxu0 %v5450
        %5452 = vmatprep.subr.mxu0 0.0
        %v5453 = vand.u32 %v3822, 4294901760
        %5454 = vmatpush1.msra.mxu0 %v5453
        %5455 = vmatprep.subr.mxu0 0.0
        %v5456 = vand.u32 %v3823, 4294901760
        %5457 = vmatpush1.msra.mxu0 %v5456
        %5458 = vmatprep.subr.mxu0 0.0
        %v5459 = vand.u32 %v3824, 4294901760
        %5460 = vmatpush1.msra.mxu0 %v5459
        %5461 = vmatprep.subr.mxu0 0.0
        %v5462 = vand.u32 %v3825, 4294901760
        %5463 = vmatpush1.msra.mxu0 %v5462
        %5464 = vmatprep.subr.mxu0 0.0
        %v5465 = vand.u32 %v3826, 4294901760
        %5466 = vmatpush1.msra.mxu0 %v5465
        %5467 = vmatprep.subr.mxu0 0.0
        %v5468 = vand.u32 %v3827, 4294901760
        %5469 = vmatpush1.msra.mxu0 %v5468
        %5470 = vmatprep.subr.mxu0 0.0
        %v5471 = vand.u32 %v3828, 4294901760
        %5472 = vmatpush1.msra.mxu0 %v5471
        %5473 = vmatprep.subr.mxu0 0.0
        %v5474 = vand.u32 %v3829, 4294901760
        %5475 = vmatpush1.msra.mxu0 %v5474
        %5476 = vmatprep.subr.mxu0 0.0
        %v5477 = vand.u32 %v3830, 4294901760
        %5478 = vmatpush1.msra.mxu0 %v5477
        %5479 = vmatprep.subr.mxu0 0.0
        %v5480 = vand.u32 %v3831, 4294901760
        %5481 = vmatpush1.msra.mxu0 %v5480
        %5482 = vmatprep.subr.mxu0 0.0
        %v5483 = vand.u32 %v3832, 4294901760
        %5484 = vmatpush1.msra.mxu0 %v5483
        %5485 = vmatprep.subr.mxu0 0.0
        %v5486 = vand.u32 %v3833, 4294901760
        %5487 = vmatpush1.msra.mxu0 %v5486
        %5488 = vmatprep.subr.mxu0 0.0
        %v5489 = vand.u32 %v3834, 4294901760
        %5490 = vmatpush1.msra.mxu0 %v5489
        %v5491 = vand.u32 %v5392, 4294901760
        %v5492 = vsub.f32 %v5392, %v5491
        %v5493 = vand.u32 %v5492, 4294901760
        %v5494 = vsub.f32 %v5492, %v5493
        %v5495 = vand.u32 %v5494, 4294901760
        %5496 = vmatprep.mubr.f32.mxu0 %v5495
        %v5497 = vand.u32 %v5378, 4294901760
        %v5498 = vsub.f32 %v5378, %v5497
        %v5499 = vand.u32 %v5498, 4294901760
        %v5500 = vsub.f32 %v5498, %v5499
        %v5501 = vand.u32 %v5500, 4294901760
        %5502 = vmatmul.mubr.f32.gmra.mrb[0].mxu0 %v5501
        %v5503 = vpop.f32.mrb[0].mxu0
        %v5504 = vadd.f32 0.0, %v5503
        %v5505 = vpop.f32.mrb[0].mxu0
        %5506 = vdwg.mxu0
        %5507 = vmatprep.subr.mxu0 0.0
        %v5508 = vand.u32 %v3803, 4294901760
        %v5509 = vsub.f32 %v3803, %v5508
        %v5510 = vand.u32 %v5509, 4294901760
        %v5511 = vsub.f32 %v5509, %v5510
        %v5512 = vand.u32 %v5511, 4294901760
        %5513 = vmatpush1.msra.mxu0 %v5512
        %5514 = vmatprep.subr.mxu0 0.0
        %v5515 = vand.u32 %v3804, 4294901760
        %v5516 = vsub.f32 %v3804, %v5515
        %v5517 = vand.u32 %v5516, 4294901760
        %v5518 = vsub.f32 %v5516, %v5517
        %v5519 = vand.u32 %v5518, 4294901760
        %5520 = vmatpush1.msra.mxu0 %v5519
        %5521 = vmatprep.subr.mxu0 0.0
        %v5522 = vand.u32 %v3805, 4294901760
        %v5523 = vsub.f32 %v3805, %v5522
        %v5524 = vand.u32 %v5523, 4294901760
        %v5525 = vsub.f32 %v5523, %v5524
        %v5526 = vand.u32 %v5525, 4294901760
        %5527 = vmatpush1.msra.mxu0 %v5526
        %5528 = vmatprep.subr.mxu0 0.0
        %v5529 = vand.u32 %v3806, 4294901760
        %v5530 = vsub.f32 %v3806, %v5529
        %v5531 = vand.u32 %v5530, 4294901760
        %v5532 = vsub.f32 %v5530, %v5531
        %v5533 = vand.u32 %v5532, 4294901760
        %5534 = vmatpush1.msra.mxu0 %v5533
        %5535 = vmatprep.subr.mxu0 0.0
        %v5536 = vand.u32 %v3807, 4294901760
        %v5537 = vsub.f32 %v3807, %v5536
        %v5538 = vand.u32 %v5537, 4294901760
        %v5539 = vsub.f32 %v5537, %v5538
        %v5540 = vand.u32 %v5539, 4294901760
        %5541 = vmatpush1.msra.mxu0 %v5540
        %5542 = vmatprep.subr.mxu0 0.0
        %v5543 = vand.u32 %v3808, 4294901760
        %v5544 = vsub.f32 %v3808, %v5543
        %v5545 = vand.u32 %v5544, 4294901760
        %v5546 = vsub.f32 %v5544, %v5545
        %v5547 = vand.u32 %v5546, 4294901760
        %5548 = vmatpush1.msra.mxu0 %v5547
        %5549 = vmatprep.subr.mxu0 0.0
        %v5550 = vand.u32 %v3809, 4294901760
        %v5551 = vsub.f32 %v3809, %v5550
        %v5552 = vand.u32 %v5551, 4294901760
        %v5553 = vsub.f32 %v5551, %v5552
        %v5554 = vand.u32 %v5553, 4294901760
        %5555 = vmatpush1.msra.mxu0 %v5554
        %5556 = vmatprep.subr.mxu0 0.0
        %v5557 = vand.u32 %v3810, 4294901760
        %v5558 = vsub.f32 %v3810, %v5557
        %v5559 = vand.u32 %v5558, 4294901760
        %v5560 = vsub.f32 %v5558, %v5559
        %v5561 = vand.u32 %v5560, 4294901760
        %5562 = vmatpush1.msra.mxu0 %v5561
        %5563 = vmatprep.subr.mxu0 0.0
        %v5564 = vand.u32 %v3811, 4294901760
        %v5565 = vsub.f32 %v3811, %v5564
        %v5566 = vand.u32 %v5565, 4294901760
        %v5567 = vsub.f32 %v5565, %v5566
        %v5568 = vand.u32 %v5567, 4294901760
        %5569 = vmatpush1.msra.mxu0 %v5568
        %5570 = vmatprep.subr.mxu0 0.0
        %v5571 = vand.u32 %v3812, 4294901760
        %v5572 = vsub.f32 %v3812, %v5571
        %v5573 = vand.u32 %v5572, 4294901760
        %v5574 = vsub.f32 %v5572, %v5573
        %v5575 = vand.u32 %v5574, 4294901760
        %5576 = vmatpush1.msra.mxu0 %v5575
        %5577 = vmatprep.subr.mxu0 0.0
        %v5578 = vand.u32 %v3813, 4294901760
        %v5579 = vsub.f32 %v3813, %v5578
        %v5580 = vand.u32 %v5579, 4294901760
        %v5581 = vsub.f32 %v5579, %v5580
        %v5582 = vand.u32 %v5581, 4294901760
        %5583 = vmatpush1.msra.mxu0 %v5582
        %5584 = vmatprep.subr.mxu0 0.0
        %v5585 = vand.u32 %v3814, 4294901760
        %v5586 = vsub.f32 %v3814, %v5585
        %v5587 = vand.u32 %v5586, 4294901760
        %v5588 = vsub.f32 %v5586, %v5587
        %v5589 = vand.u32 %v5588, 4294901760
        %5590 = vmatpush1.msra.mxu0 %v5589
        %5591 = vmatprep.subr.mxu0 0.0
        %v5592 = vand.u32 %v3815, 4294901760
        %v5593 = vsub.f32 %v3815, %v5592
        %v5594 = vand.u32 %v5593, 4294901760
        %v5595 = vsub.f32 %v5593, %v5594
        %v5596 = vand.u32 %v5595, 4294901760
        %5597 = vmatpush1.msra.mxu0 %v5596
        %5598 = vmatprep.subr.mxu0 0.0
        %v5599 = vand.u32 %v3816, 4294901760
        %v5600 = vsub.f32 %v3816, %v5599
        %v5601 = vand.u32 %v5600, 4294901760
        %v5602 = vsub.f32 %v5600, %v5601
        %v5603 = vand.u32 %v5602, 4294901760
        %5604 = vmatpush1.msra.mxu0 %v5603
        %5605 = vmatprep.subr.mxu0 0.0
        %v5606 = vand.u32 %v3817, 4294901760
        %v5607 = vsub.f32 %v3817, %v5606
        %v5608 = vand.u32 %v5607, 4294901760
        %v5609 = vsub.f32 %v5607, %v5608
        %v5610 = vand.u32 %v5609, 4294901760
        %5611 = vmatpush1.msra.mxu0 %v5610
        %5612 = vmatprep.subr.mxu0 0.0
        %v5613 = vand.u32 %v3818, 4294901760
        %v5614 = vsub.f32 %v3818, %v5613
        %v5615 = vand.u32 %v5614, 4294901760
        %v5616 = vsub.f32 %v5614, %v5615
        %v5617 = vand.u32 %v5616, 4294901760
        %5618 = vmatpush1.msra.mxu0 %v5617
        %5619 = vmatprep.subr.mxu0 0.0
        %v5620 = vand.u32 %v3819, 4294901760
        %v5621 = vsub.f32 %v3819, %v5620
        %v5622 = vand.u32 %v5621, 4294901760
        %v5623 = vsub.f32 %v5621, %v5622
        %v5624 = vand.u32 %v5623, 4294901760
        %5625 = vmatpush1.msra.mxu0 %v5624
        %5626 = vmatprep.subr.mxu0 0.0
        %v5627 = vand.u32 %v3820, 4294901760
        %v5628 = vsub.f32 %v3820, %v5627
        %v5629 = vand.u32 %v5628, 4294901760
        %v5630 = vsub.f32 %v5628, %v5629
        %v5631 = vand.u32 %v5630, 4294901760
        %5632 = vmatpush1.msra.mxu0 %v5631
        %5633 = vmatprep.subr.mxu0 0.0
        %v5634 = vand.u32 %v3821, 4294901760
        %v5635 = vsub.f32 %v3821, %v5634
        %v5636 = vand.u32 %v5635, 4294901760
        %v5637 = vsub.f32 %v5635, %v5636
        %v5638 = vand.u32 %v5637, 4294901760
        %5639 = vmatpush1.msra.mxu0 %v5638
        %5640 = vmatprep.subr.mxu0 0.0
        %v5641 = vand.u32 %v3822, 4294901760
        %v5642 = vsub.f32 %v3822, %v5641
        %v5643 = vand.u32 %v5642, 4294901760
        %v5644 = vsub.f32 %v5642, %v5643
        %v5645 = vand.u32 %v5644, 4294901760
        %5646 = vmatpush1.msra.mxu0 %v5645
        %5647 = vmatprep.subr.mxu0 0.0
        %v5648 = vand.u32 %v3823, 4294901760
        %v5649 = vsub.f32 %v3823, %v5648
        %v5650 = vand.u32 %v5649, 4294901760
        %v5651 = vsub.f32 %v5649, %v5650
        %v5652 = vand.u32 %v5651, 4294901760
        %5653 = vmatpush1.msra.mxu0 %v5652
        %5654 = vmatprep.subr.mxu0 0.0
        %v5655 = vand.u32 %v3824, 4294901760
        %v5656 = vsub.f32 %v3824, %v5655
        %v5657 = vand.u32 %v5656, 4294901760
        %v5658 = vsub.f32 %v5656, %v5657
        %v5659 = vand.u32 %v5658, 4294901760
        %5660 = vmatpush1.msra.mxu0 %v5659
        %5661 = vmatprep.subr.mxu0 0.0
        %v5662 = vand.u32 %v3825, 4294901760
        %v5663 = vsub.f32 %v3825, %v5662
        %v5664 = vand.u32 %v5663, 4294901760
        %v5665 = vsub.f32 %v5663, %v5664
        %v5666 = vand.u32 %v5665, 4294901760
        %5667 = vmatpush1.msra.mxu0 %v5666
        %5668 = vmatprep.subr.mxu0 0.0
        %v5669 = vand.u32 %v3826, 4294901760
        %v5670 = vsub.f32 %v3826, %v5669
        %v5671 = vand.u32 %v5670, 4294901760
        %v5672 = vsub.f32 %v5670, %v5671
        %v5673 = vand.u32 %v5672, 4294901760
        %5674 = vmatpush1.msra.mxu0 %v5673
        %5675 = vmatprep.subr.mxu0 0.0
        %v5676 = vand.u32 %v3827, 4294901760
        %v5677 = vsub.f32 %v3827, %v5676
        %v5678 = vand.u32 %v5677, 4294901760
        %v5679 = vsub.f32 %v5677, %v5678
        %v5680 = vand.u32 %v5679, 4294901760
        %5681 = vmatpush1.msra.mxu0 %v5680
        %5682 = vmatprep.subr.mxu0 0.0
        %v5683 = vand.u32 %v3828, 4294901760
        %v5684 = vsub.f32 %v3828, %v5683
        %v5685 = vand.u32 %v5684, 4294901760
        %v5686 = vsub.f32 %v5684, %v5685
        %v5687 = vand.u32 %v5686, 4294901760
        %5688 = vmatpush1.msra.mxu0 %v5687
        %5689 = vmatprep.subr.mxu0 0.0
        %v5690 = vand.u32 %v3829, 4294901760
        %v5691 = vsub.f32 %v3829, %v5690
        %v5692 = vand.u32 %v5691, 4294901760
        %v5693 = vsub.f32 %v5691, %v5692
        %v5694 = vand.u32 %v5693, 4294901760
        %5695 = vmatpush1.msra.mxu0 %v5694
        %5696 = vmatprep.subr.mxu0 0.0
        %v5697 = vand.u32 %v3830, 4294901760
        %v5698 = vsub.f32 %v3830, %v5697
        %v5699 = vand.u32 %v5698, 4294901760
        %v5700 = vsub.f32 %v5698, %v5699
        %v5701 = vand.u32 %v5700, 4294901760
        %5702 = vmatpush1.msra.mxu0 %v5701
        %5703 = vmatprep.subr.mxu0 0.0
        %v5704 = vand.u32 %v3831, 4294901760
        %v5705 = vsub.f32 %v3831, %v5704
        %v5706 = vand.u32 %v5705, 4294901760
        %v5707 = vsub.f32 %v5705, %v5706
        %v5708 = vand.u32 %v5707, 4294901760
        %5709 = vmatpush1.msra.mxu0 %v5708
        %5710 = vmatprep.subr.mxu0 0.0
        %v5711 = vand.u32 %v3832, 4294901760
        %v5712 = vsub.f32 %v3832, %v5711
        %v5713 = vand.u32 %v5712, 4294901760
        %v5714 = vsub.f32 %v5712, %v5713
        %v5715 = vand.u32 %v5714, 4294901760
        %5716 = vmatpush1.msra.mxu0 %v5715
        %5717 = vmatprep.subr.mxu0 0.0
        %v5718 = vand.u32 %v3833, 4294901760
        %v5719 = vsub.f32 %v3833, %v5718
        %v5720 = vand.u32 %v5719, 4294901760
        %v5721 = vsub.f32 %v5719, %v5720
        %v5722 = vand.u32 %v5721, 4294901760
        %5723 = vmatpush1.msra.mxu0 %v5722
        %5724 = vmatprep.subr.mxu0 0.0
        %v5725 = vand.u32 %v3834, 4294901760
        %v5726 = vsub.f32 %v3834, %v5725
        %v5727 = vand.u32 %v5726, 4294901760
        %v5728 = vsub.f32 %v5726, %v5727
        %v5729 = vand.u32 %v5728, 4294901760
        %5730 = vmatpush1.msra.mxu0 %v5729
        %v5731 = vand.u32 %v5392, 4294901760
        %5732 = vmatprep.mubr.f32.mxu0 %v5731
        %v5733 = vand.u32 %v5378, 4294901760
        %5734 = vmatmul.mubr.f32.gmra.mrb[0].mxu0 %v5733
        %v5735 = vpop.f32.mrb[0].mxu0
        %v5736 = vadd.f32 %v5504, %v5735
        %v5737 = vpop.f32.mrb[0].mxu0
        %5738 = vdwg.mxu0
        %5739 = vmatprep.subr.mxu0 0.0
        %v5740 = vand.u32 %v3803, 4294901760
        %v5741 = vsub.f32 %v3803, %v5740
        %5742 = vmatpush1.msra.mxu0 %v5741
        %5743 = vmatprep.subr.mxu0 0.0
        %v5744 = vand.u32 %v3804, 4294901760
        %v5745 = vsub.f32 %v3804, %v5744
        %5746 = vmatpush1.msra.mxu0 %v5745
        %5747 = vmatprep.subr.mxu0 0.0
        %v5748 = vand.u32 %v3805, 4294901760
        %v5749 = vsub.f32 %v3805, %v5748
        %5750 = vmatpush1.msra.mxu0 %v5749
        %5751 = vmatprep.subr.mxu0 0.0
        %v5752 = vand.u32 %v3806, 4294901760
        %v5753 = vsub.f32 %v3806, %v5752
        %5754 = vmatpush1.msra.mxu0 %v5753
        %5755 = vmatprep.subr.mxu0 0.0
        %v5756 = vand.u32 %v3807, 4294901760
        %v5757 = vsub.f32 %v3807, %v5756
        %5758 = vmatpush1.msra.mxu0 %v5757
        %5759 = vmatprep.subr.mxu0 0.0
        %v5760 = vand.u32 %v3808, 4294901760
        %v5761 = vsub.f32 %v3808, %v5760
        %5762 = vmatpush1.msra.mxu0 %v5761
        %5763 = vmatprep.subr.mxu0 0.0
        %v5764 = vand.u32 %v3809, 4294901760
        %v5765 = vsub.f32 %v3809, %v5764
        %5766 = vmatpush1.msra.mxu0 %v5765
        %5767 = vmatprep.subr.mxu0 0.0
        %v5768 = vand.u32 %v3810, 4294901760
        %v5769 = vsub.f32 %v3810, %v5768
        %5770 = vmatpush1.msra.mxu0 %v5769
        %5771 = vmatprep.subr.mxu0 0.0
        %v5772 = vand.u32 %v3811, 4294901760
        %v5773 = vsub.f32 %v3811, %v5772
        %5774 = vmatpush1.msra.mxu0 %v5773
        %5775 = vmatprep.subr.mxu0 0.0
        %v5776 = vand.u32 %v3812, 4294901760
        %v5777 = vsub.f32 %v3812, %v5776
        %5778 = vmatpush1.msra.mxu0 %v5777
        %5779 = vmatprep.subr.mxu0 0.0
        %v5780 = vand.u32 %v3813, 4294901760
        %v5781 = vsub.f32 %v3813, %v5780
        %5782 = vmatpush1.msra.mxu0 %v5781
        %5783 = vmatprep.subr.mxu0 0.0
        %v5784 = vand.u32 %v3814, 4294901760
        %v5785 = vsub.f32 %v3814, %v5784
        %5786 = vmatpush1.msra.mxu0 %v5785
        %5787 = vmatprep.subr.mxu0 0.0
        %v5788 = vand.u32 %v3815, 4294901760
        %v5789 = vsub.f32 %v3815, %v5788
        %5790 = vmatpush1.msra.mxu0 %v5789
        %5791 = vmatprep.subr.mxu0 0.0
        %v5792 = vand.u32 %v3816, 4294901760
        %v5793 = vsub.f32 %v3816, %v5792
        %5794 = vmatpush1.msra.mxu0 %v5793
        %5795 = vmatprep.subr.mxu0 0.0
        %v5796 = vand.u32 %v3817, 4294901760
        %v5797 = vsub.f32 %v3817, %v5796
        %5798 = vmatpush1.msra.mxu0 %v5797
        %5799 = vmatprep.subr.mxu0 0.0
        %v5800 = vand.u32 %v3818, 4294901760
        %v5801 = vsub.f32 %v3818, %v5800
        %5802 = vmatpush1.msra.mxu0 %v5801
        %5803 = vmatprep.subr.mxu0 0.0
        %v5804 = vand.u32 %v3819, 4294901760
        %v5805 = vsub.f32 %v3819, %v5804
        %5806 = vmatpush1.msra.mxu0 %v5805
        %5807 = vmatprep.subr.mxu0 0.0
        %v5808 = vand.u32 %v3820, 4294901760
        %v5809 = vsub.f32 %v3820, %v5808
        %5810 = vmatpush1.msra.mxu0 %v5809
        %5811 = vmatprep.subr.mxu0 0.0
        %v5812 = vand.u32 %v3821, 4294901760
        %v5813 = vsub.f32 %v3821, %v5812
        %5814 = vmatpush1.msra.mxu0 %v5813
        %5815 = vmatprep.subr.mxu0 0.0
        %v5816 = vand.u32 %v3822, 4294901760
        %v5817 = vsub.f32 %v3822, %v5816
        %5818 = vmatpush1.msra.mxu0 %v5817
        %5819 = vmatprep.subr.mxu0 0.0
        %v5820 = vand.u32 %v3823, 4294901760
        %v5821 = vsub.f32 %v3823, %v5820
        %5822 = vmatpush1.msra.mxu0 %v5821
        %5823 = vmatprep.subr.mxu0 0.0
        %v5824 = vand.u32 %v3824, 4294901760
        %v5825 = vsub.f32 %v3824, %v5824
        %5826 = vmatpush1.msra.mxu0 %v5825
        %5827 = vmatprep.subr.mxu0 0.0
        %v5828 = vand.u32 %v3825, 4294901760
        %v5829 = vsub.f32 %v3825, %v5828
        %5830 = vmatpush1.msra.mxu0 %v5829
        %5831 = vmatprep.subr.mxu0 0.0
        %v5832 = vand.u32 %v3826, 4294901760
        %v5833 = vsub.f32 %v3826, %v5832
        %5834 = vmatpush1.msra.mxu0 %v5833
        %5835 = vmatprep.subr.mxu0 0.0
        %v5836 = vand.u32 %v3827, 4294901760
        %v5837 = vsub.f32 %v3827, %v5836
        %5838 = vmatpush1.msra.mxu0 %v5837
        %5839 = vmatprep.subr.mxu0 0.0
        %v5840 = vand.u32 %v3828, 4294901760
        %v5841 = vsub.f32 %v3828, %v5840
        %5842 = vmatpush1.msra.mxu0 %v5841
        %5843 = vmatprep.subr.mxu0 0.0
        %v5844 = vand.u32 %v3829, 4294901760
        %v5845 = vsub.f32 %v3829, %v5844
        %5846 = vmatpush1.msra.mxu0 %v5845
        %5847 = vmatprep.subr.mxu0 0.0
        %v5848 = vand.u32 %v3830, 4294901760
        %v5849 = vsub.f32 %v3830, %v5848
        %5850 = vmatpush1.msra.mxu0 %v5849
        %5851 = vmatprep.subr.mxu0 0.0
        %v5852 = vand.u32 %v3831, 4294901760
        %v5853 = vsub.f32 %v3831, %v5852
        %5854 = vmatpush1.msra.mxu0 %v5853
        %5855 = vmatprep.subr.mxu0 0.0
        %v5856 = vand.u32 %v3832, 4294901760
        %v5857 = vsub.f32 %v3832, %v5856
        %5858 = vmatpush1.msra.mxu0 %v5857
        %5859 = vmatprep.subr.mxu0 0.0
        %v5860 = vand.u32 %v3833, 4294901760
        %v5861 = vsub.f32 %v3833, %v5860
        %5862 = vmatpush1.msra.mxu0 %v5861
        %5863 = vmatprep.subr.mxu0 0.0
        %v5864 = vand.u32 %v3834, 4294901760
        %v5865 = vsub.f32 %v3834, %v5864
        %5866 = vmatpush1.msra.mxu0 %v5865
        %v5867 = vand.u32 %v5392, 4294901760
        %v5868 = vsub.f32 %v5392, %v5867
        %5869 = vmatprep.mubr.f32.mxu0 %v5868
        %v5870 = vand.u32 %v5378, 4294901760
        %v5871 = vsub.f32 %v5378, %v5870
        %5872 = vmatmul.mubr.f32.gmra.mrb[0].mxu0 %v5871
        %v5873 = vpop.f32.mrb[0].mxu0
        %v5874 = vadd.f32 %v5736, %v5873
        %v5875 = vpop.f32.mrb[0].mxu0
        %5876 = vdwg.mxu0
        %5877 = vmatprep.subr.mxu0 0.0
        %v5878 = vand.u32 %v3803, 4294901760
        %5879 = vmatpush1.msra.mxu0 %v5878
        %5880 = vmatprep.subr.mxu0 0.0
        %v5881 = vand.u32 %v3804, 4294901760
        %5882 = vmatpush1.msra.mxu0 %v5881
        %5883 = vmatprep.subr.mxu0 0.0
        %v5884 = vand.u32 %v3805, 4294901760
        %5885 = vmatpush1.msra.mxu0 %v5884
        %5886 = vmatprep.subr.mxu0 0.0
        %v5887 = vand.u32 %v3806, 4294901760
        %5888 = vmatpush1.msra.mxu0 %v5887
        %5889 = vmatprep.subr.mxu0 0.0
        %v5890 = vand.u32 %v3807, 4294901760
        %5891 = vmatpush1.msra.mxu0 %v5890
        %5892 = vmatprep.subr.mxu0 0.0
        %v5893 = vand.u32 %v3808, 4294901760
        %5894 = vmatpush1.msra.mxu0 %v5893
        %5895 = vmatprep.subr.mxu0 0.0
        %v5896 = vand.u32 %v3809, 4294901760
        %5897 = vmatpush1.msra.mxu0 %v5896
        %5898 = vmatprep.subr.mxu0 0.0
        %v5899 = vand.u32 %v3810, 4294901760
        %5900 = vmatpush1.msra.mxu0 %v5899
        %5901 = vmatprep.subr.mxu0 0.0
        %v5902 = vand.u32 %v3811, 4294901760
        %5903 = vmatpush1.msra.mxu0 %v5902
        %5904 = vmatprep.subr.mxu0 0.0
        %v5905 = vand.u32 %v3812, 4294901760
        %5906 = vmatpush1.msra.mxu0 %v5905
        %5907 = vmatprep.subr.mxu0 0.0
        %v5908 = vand.u32 %v3813, 4294901760
        %5909 = vmatpush1.msra.mxu0 %v5908
        %5910 = vmatprep.subr.mxu0 0.0
        %v5911 = vand.u32 %v3814, 4294901760
        %5912 = vmatpush1.msra.mxu0 %v5911
        %5913 = vmatprep.subr.mxu0 0.0
        %v5914 = vand.u32 %v3815, 4294901760
        %5915 = vmatpush1.msra.mxu0 %v5914
        %5916 = vmatprep.subr.mxu0 0.0
        %v5917 = vand.u32 %v3816, 4294901760
        %5918 = vmatpush1.msra.mxu0 %v5917
        %5919 = vmatprep.subr.mxu0 0.0
        %v5920 = vand.u32 %v3817, 4294901760
        %5921 = vmatpush1.msra.mxu0 %v5920
        %5922 = vmatprep.subr.mxu0 0.0
        %v5923 = vand.u32 %v3818, 4294901760
        %5924 = vmatpush1.msra.mxu0 %v5923
        %5925 = vmatprep.subr.mxu0 0.0
        %v5926 = vand.u32 %v3819, 4294901760
        %5927 = vmatpush1.msra.mxu0 %v5926
        %5928 = vmatprep.subr.mxu0 0.0
        %v5929 = vand.u32 %v3820, 4294901760
        %5930 = vmatpush1.msra.mxu0 %v5929
        %5931 = vmatprep.subr.mxu0 0.0
        %v5932 = vand.u32 %v3821, 4294901760
        %5933 = vmatpush1.msra.mxu0 %v5932
        %5934 = vmatprep.subr.mxu0 0.0
        %v5935 = vand.u32 %v3822, 4294901760
        %5936 = vmatpush1.msra.mxu0 %v5935
        %5937 = vmatprep.subr.mxu0 0.0
        %v5938 = vand.u32 %v3823, 4294901760
        %5939 = vmatpush1.msra.mxu0 %v5938
        %5940 = vmatprep.subr.mxu0 0.0
        %v5941 = vand.u32 %v3824, 4294901760
        %5942 = vmatpush1.msra.mxu0 %v5941
        %5943 = vmatprep.subr.mxu0 0.0
        %v5944 = vand.u32 %v3825, 4294901760
        %5945 = vmatpush1.msra.mxu0 %v5944
        %5946 = vmatprep.subr.mxu0 0.0
        %v5947 = vand.u32 %v3826, 4294901760
        %5948 = vmatpush1.msra.mxu0 %v5947
        %5949 = vmatprep.subr.mxu0 0.0
        %v5950 = vand.u32 %v3827, 4294901760
        %5951 = vmatpush1.msra.mxu0 %v5950
        %5952 = vmatprep.subr.mxu0 0.0
        %v5953 = vand.u32 %v3828, 4294901760
        %5954 = vmatpush1.msra.mxu0 %v5953
        %5955 = vmatprep.subr.mxu0 0.0
        %v5956 = vand.u32 %v3829, 4294901760
        %5957 = vmatpush1.msra.mxu0 %v5956
        %5958 = vmatprep.subr.mxu0 0.0
        %v5959 = vand.u32 %v3830, 4294901760
        %5960 = vmatpush1.msra.mxu0 %v5959
        %5961 = vmatprep.subr.mxu0 0.0
        %v5962 = vand.u32 %v3831, 4294901760
        %5963 = vmatpush1.msra.mxu0 %v5962
        %5964 = vmatprep.subr.mxu0 0.0
        %v5965 = vand.u32 %v3832, 4294901760
        %5966 = vmatpush1.msra.mxu0 %v5965
        %5967 = vmatprep.subr.mxu0 0.0
        %v5968 = vand.u32 %v3833, 4294901760
        %5969 = vmatpush1.msra.mxu0 %v5968
        %5970 = vmatprep.subr.mxu0 0.0
        %v5971 = vand.u32 %v3834, 4294901760
        %5972 = vmatpush1.msra.mxu0 %v5971
        %v5973 = vand.u32 %v5392, 4294901760
        %v5974 = vsub.f32 %v5392, %v5973
        %v5975 = vand.u32 %v5974, 4294901760
        %5976 = vmatprep.mubr.f32.mxu0 %v5975
        %v5977 = vand.u32 %v5378, 4294901760
        %v5978 = vsub.f32 %v5378, %v5977
        %v5979 = vand.u32 %v5978, 4294901760
        %5980 = vmatmul.mubr.f32.gmra.mrb[0].mxu0 %v5979
        %v5981 = vpop.f32.mrb[0].mxu0
        %v5982 = vadd.f32 %v5874, %v5981
        %v5983 = vpop.f32.mrb[0].mxu0
        %5984 = vdwg.mxu0
        %5985 = vmatprep.subr.mxu0 0.0
        %v5986 = vand.u32 %v3803, 4294901760
        %v5987 = vsub.f32 %v3803, %v5986
        %v5988 = vand.u32 %v5987, 4294901760
        %5989 = vmatpush1.msra.mxu0 %v5988
        %5990 = vmatprep.subr.mxu0 0.0
        %v5991 = vand.u32 %v3804, 4294901760
        %v5992 = vsub.f32 %v3804, %v5991
        %v5993 = vand.u32 %v5992, 4294901760
        %5994 = vmatpush1.msra.mxu0 %v5993
        %5995 = vmatprep.subr.mxu0 0.0
        %v5996 = vand.u32 %v3805, 4294901760
        %v5997 = vsub.f32 %v3805, %v5996
        %v5998 = vand.u32 %v5997, 4294901760
        %5999 = vmatpush1.msra.mxu0 %v5998
        %6000 = vmatprep.subr.mxu0 0.0
        %v6001 = vand.u32 %v3806, 4294901760
        %v6002 = vsub.f32 %v3806, %v6001
        %v6003 = vand.u32 %v6002, 4294901760
        %6004 = vmatpush1.msra.mxu0 %v6003
        %6005 = vmatprep.subr.mxu0 0.0
        %v6006 = vand.u32 %v3807, 4294901760
        %v6007 = vsub.f32 %v3807, %v6006
        %v6008 = vand.u32 %v6007, 4294901760
        %6009 = vmatpush1.msra.mxu0 %v6008
        %6010 = vmatprep.subr.mxu0 0.0
        %v6011 = vand.u32 %v3808, 4294901760
        %v6012 = vsub.f32 %v3808, %v6011
        %v6013 = vand.u32 %v6012, 4294901760
        %6014 = vmatpush1.msra.mxu0 %v6013
        %6015 = vmatprep.subr.mxu0 0.0
        %v6016 = vand.u32 %v3809, 4294901760
        %v6017 = vsub.f32 %v3809, %v6016
        %v6018 = vand.u32 %v6017, 4294901760
        %6019 = vmatpush1.msra.mxu0 %v6018
        %6020 = vmatprep.subr.mxu0 0.0
        %v6021 = vand.u32 %v3810, 4294901760
        %v6022 = vsub.f32 %v3810, %v6021
        %v6023 = vand.u32 %v6022, 4294901760
        %6024 = vmatpush1.msra.mxu0 %v6023
        %6025 = vmatprep.subr.mxu0 0.0
        %v6026 = vand.u32 %v3811, 4294901760
        %v6027 = vsub.f32 %v3811, %v6026
        %v6028 = vand.u32 %v6027, 4294901760
        %6029 = vmatpush1.msra.mxu0 %v6028
        %6030 = vmatprep.subr.mxu0 0.0
        %v6031 = vand.u32 %v3812, 4294901760
        %v6032 = vsub.f32 %v3812, %v6031
        %v6033 = vand.u32 %v6032, 4294901760
        %6034 = vmatpush1.msra.mxu0 %v6033
        %6035 = vmatprep.subr.mxu0 0.0
        %v6036 = vand.u32 %v3813, 4294901760
        %v6037 = vsub.f32 %v3813, %v6036
        %v6038 = vand.u32 %v6037, 4294901760
        %6039 = vmatpush1.msra.mxu0 %v6038
        %6040 = vmatprep.subr.mxu0 0.0
        %v6041 = vand.u32 %v3814, 4294901760
        %v6042 = vsub.f32 %v3814, %v6041
        %v6043 = vand.u32 %v6042, 4294901760
        %6044 = vmatpush1.msra.mxu0 %v6043
        %6045 = vmatprep.subr.mxu0 0.0
        %v6046 = vand.u32 %v3815, 4294901760
        %v6047 = vsub.f32 %v3815, %v6046
        %v6048 = vand.u32 %v6047, 4294901760
        %6049 = vmatpush1.msra.mxu0 %v6048
        %6050 = vmatprep.subr.mxu0 0.0
        %v6051 = vand.u32 %v3816, 4294901760
        %v6052 = vsub.f32 %v3816, %v6051
        %v6053 = vand.u32 %v6052, 4294901760
        %6054 = vmatpush1.msra.mxu0 %v6053
        %6055 = vmatprep.subr.mxu0 0.0
        %v6056 = vand.u32 %v3817, 4294901760
        %v6057 = vsub.f32 %v3817, %v6056
        %v6058 = vand.u32 %v6057, 4294901760
        %6059 = vmatpush1.msra.mxu0 %v6058
        %6060 = vmatprep.subr.mxu0 0.0
        %v6061 = vand.u32 %v3818, 4294901760
        %v6062 = vsub.f32 %v3818, %v6061
        %v6063 = vand.u32 %v6062, 4294901760
        %6064 = vmatpush1.msra.mxu0 %v6063
        %6065 = vmatprep.subr.mxu0 0.0
        %v6066 = vand.u32 %v3819, 4294901760
        %v6067 = vsub.f32 %v3819, %v6066
        %v6068 = vand.u32 %v6067, 4294901760
        %6069 = vmatpush1.msra.mxu0 %v6068
        %6070 = vmatprep.subr.mxu0 0.0
        %v6071 = vand.u32 %v3820, 4294901760
        %v6072 = vsub.f32 %v3820, %v6071
        %v6073 = vand.u32 %v6072, 4294901760
        %6074 = vmatpush1.msra.mxu0 %v6073
        %6075 = vmatprep.subr.mxu0 0.0
        %v6076 = vand.u32 %v3821, 4294901760
        %v6077 = vsub.f32 %v3821, %v6076
        %v6078 = vand.u32 %v6077, 4294901760
        %6079 = vmatpush1.msra.mxu0 %v6078
        %6080 = vmatprep.subr.mxu0 0.0
        %v6081 = vand.u32 %v3822, 4294901760
        %v6082 = vsub.f32 %v3822, %v6081
        %v6083 = vand.u32 %v6082, 4294901760
        %6084 = vmatpush1.msra.mxu0 %v6083
        %6085 = vmatprep.subr.mxu0 0.0
        %v6086 = vand.u32 %v3823, 4294901760
        %v6087 = vsub.f32 %v3823, %v6086
        %v6088 = vand.u32 %v6087, 4294901760
        %6089 = vmatpush1.msra.mxu0 %v6088
        %6090 = vmatprep.subr.mxu0 0.0
        %v6091 = vand.u32 %v3824, 4294901760
        %v6092 = vsub.f32 %v3824, %v6091
        %v6093 = vand.u32 %v6092, 4294901760
        %6094 = vmatpush1.msra.mxu0 %v6093
        %6095 = vmatprep.subr.mxu0 0.0
        %v6096 = vand.u32 %v3825, 4294901760
        %v6097 = vsub.f32 %v3825, %v6096
        %v6098 = vand.u32 %v6097, 4294901760
        %6099 = vmatpush1.msra.mxu0 %v6098
        %6100 = vmatprep.subr.mxu0 0.0
        %v6101 = vand.u32 %v3826, 4294901760
        %v6102 = vsub.f32 %v3826, %v6101
        %v6103 = vand.u32 %v6102, 4294901760
        %6104 = vmatpush1.msra.mxu0 %v6103
        %6105 = vmatprep.subr.mxu0 0.0
        %v6106 = vand.u32 %v3827, 4294901760
        %v6107 = vsub.f32 %v3827, %v6106
        %v6108 = vand.u32 %v6107, 4294901760
        %6109 = vmatpush1.msra.mxu0 %v6108
        %6110 = vmatprep.subr.mxu0 0.0
        %v6111 = vand.u32 %v3828, 4294901760
        %v6112 = vsub.f32 %v3828, %v6111
        %v6113 = vand.u32 %v6112, 4294901760
        %6114 = vmatpush1.msra.mxu0 %v6113
        %6115 = vmatprep.subr.mxu0 0.0
        %v6116 = vand.u32 %v3829, 4294901760
        %v6117 = vsub.f32 %v3829, %v6116
        %v6118 = vand.u32 %v6117, 4294901760
        %6119 = vmatpush1.msra.mxu0 %v6118
        %6120 = vmatprep.subr.mxu0 0.0
        %v6121 = vand.u32 %v3830, 4294901760
        %v6122 = vsub.f32 %v3830, %v6121
        %v6123 = vand.u32 %v6122, 4294901760
        %6124 = vmatpush1.msra.mxu0 %v6123
        %6125 = vmatprep.subr.mxu0 0.0
        %v6126 = vand.u32 %v3831, 4294901760
        %v6127 = vsub.f32 %v3831, %v6126
        %v6128 = vand.u32 %v6127, 4294901760
        %6129 = vmatpush1.msra.mxu0 %v6128
        %6130 = vmatprep.subr.mxu0 0.0
        %v6131 = vand.u32 %v3832, 4294901760
        %v6132 = vsub.f32 %v3832, %v6131
        %v6133 = vand.u32 %v6132, 4294901760
        %6134 = vmatpush1.msra.mxu0 %v6133
        %6135 = vmatprep.subr.mxu0 0.0
        %v6136 = vand.u32 %v3833, 4294901760
        %v6137 = vsub.f32 %v3833, %v6136
        %v6138 = vand.u32 %v6137, 4294901760
        %6139 = vmatpush1.msra.mxu0 %v6138
        %6140 = vmatprep.subr.mxu0 0.0
        %v6141 = vand.u32 %v3834, 4294901760
        %v6142 = vsub.f32 %v3834, %v6141
        %v6143 = vand.u32 %v6142, 4294901760
        %6144 = vmatpush1.msra.mxu0 %v6143
        %v6145 = vand.u32 %v5392, 4294901760
        %6146 = vmatprep.mubr.f32.mxu0 %v6145
        %v6147 = vand.u32 %v5378, 4294901760
        %6148 = vmatmul.mubr.f32.gmra.mrb[0].mxu0 %v6147
        %v6149 = vpop.f32.mrb[0].mxu0
        %v6150 = vadd.f32 %v5982, %v6149
        %v6151 = vpop.f32.mrb[0].mxu0
        %6152 = vdwg.mxu0
        %6153 = vmatprep.subr.mxu0 0.0
        %v6154 = vand.u32 %v3803, 4294901760
        %6155 = vmatpush1.msra.mxu0 %v6154
        %6156 = vmatprep.subr.mxu0 0.0
        %v6157 = vand.u32 %v3804, 4294901760
        %6158 = vmatpush1.msra.mxu0 %v6157
        %6159 = vmatprep.subr.mxu0 0.0
        %v6160 = vand.u32 %v3805, 4294901760
        %6161 = vmatpush1.msra.mxu0 %v6160
        %6162 = vmatprep.subr.mxu0 0.0
        %v6163 = vand.u32 %v3806, 4294901760
        %6164 = vmatpush1.msra.mxu0 %v6163
        %6165 = vmatprep.subr.mxu0 0.0
        %v6166 = vand.u32 %v3807, 4294901760
        %6167 = vmatpush1.msra.mxu0 %v6166
        %6168 = vmatprep.subr.mxu0 0.0
        %v6169 = vand.u32 %v3808, 4294901760
        %6170 = vmatpush1.msra.mxu0 %v6169
        %6171 = vmatprep.subr.mxu0 0.0
        %v6172 = vand.u32 %v3809, 4294901760
        %6173 = vmatpush1.msra.mxu0 %v6172
        %6174 = vmatprep.subr.mxu0 0.0
        %v6175 = vand.u32 %v3810, 4294901760
        %6176 = vmatpush1.msra.mxu0 %v6175
        %6177 = vmatprep.subr.mxu0 0.0
        %v6178 = vand.u32 %v3811, 4294901760
        %6179 = vmatpush1.msra.mxu0 %v6178
        %6180 = vmatprep.subr.mxu0 0.0
        %v6181 = vand.u32 %v3812, 4294901760
        %6182 = vmatpush1.msra.mxu0 %v6181
        %6183 = vmatprep.subr.mxu0 0.0
        %v6184 = vand.u32 %v3813, 4294901760
        %6185 = vmatpush1.msra.mxu0 %v6184
        %6186 = vmatprep.subr.mxu0 0.0
        %v6187 = vand.u32 %v3814, 4294901760
        %6188 = vmatpush1.msra.mxu0 %v6187
        %6189 = vmatprep.subr.mxu0 0.0
        %v6190 = vand.u32 %v3815, 4294901760
        %6191 = vmatpush1.msra.mxu0 %v6190
        %6192 = vmatprep.subr.mxu0 0.0
        %v6193 = vand.u32 %v3816, 4294901760
        %6194 = vmatpush1.msra.mxu0 %v6193
        %6195 = vmatprep.subr.mxu0 0.0
        %v6196 = vand.u32 %v3817, 4294901760
        %6197 = vmatpush1.msra.mxu0 %v6196
        %6198 = vmatprep.subr.mxu0 0.0
        %v6199 = vand.u32 %v3818, 4294901760
        %6200 = vmatpush1.msra.mxu0 %v6199
        %6201 = vmatprep.subr.mxu0 0.0
        %v6202 = vand.u32 %v3819, 4294901760
        %6203 = vmatpush1.msra.mxu0 %v6202
        %6204 = vmatprep.subr.mxu0 0.0
        %v6205 = vand.u32 %v3820, 4294901760
        %6206 = vmatpush1.msra.mxu0 %v6205
        %6207 = vmatprep.subr.mxu0 0.0
        %v6208 = vand.u32 %v3821, 4294901760
        %6209 = vmatpush1.msra.mxu0 %v6208
        %6210 = vmatprep.subr.mxu0 0.0
        %v6211 = vand.u32 %v3822, 4294901760
        %6212 = vmatpush1.msra.mxu0 %v6211
        %6213 = vmatprep.subr.mxu0 0.0
        %v6214 = vand.u32 %v3823, 4294901760
        %6215 = vmatpush1.msra.mxu0 %v6214
        %6216 = vmatprep.subr.mxu0 0.0
        %v6217 = vand.u32 %v3824, 4294901760
        %6218 = vmatpush1.msra.mxu0 %v6217
        %6219 = vmatprep.subr.mxu0 0.0
        %v6220 = vand.u32 %v3825, 4294901760
        %6221 = vmatpush1.msra.mxu0 %v6220
        %6222 = vmatprep.subr.mxu0 0.0
        %v6223 = vand.u32 %v3826, 4294901760
        %6224 = vmatpush1.msra.mxu0 %v6223
        %6225 = vmatprep.subr.mxu0 0.0
        %v6226 = vand.u32 %v3827, 4294901760
        %6227 = vmatpush1.msra.mxu0 %v6226
        %6228 = vmatprep.subr.mxu0 0.0
        %v6229 = vand.u32 %v3828, 4294901760
        %6230 = vmatpush1.msra.mxu0 %v6229
        %6231 = vmatprep.subr.mxu0 0.0
        %v6232 = vand.u32 %v3829, 4294901760
        %6233 = vmatpush1.msra.mxu0 %v6232
        %6234 = vmatprep.subr.mxu0 0.0
        %v6235 = vand.u32 %v3830, 4294901760
        %6236 = vmatpush1.msra.mxu0 %v6235
        %6237 = vmatprep.subr.mxu0 0.0
        %v6238 = vand.u32 %v3831, 4294901760
        %6239 = vmatpush1.msra.mxu0 %v6238
        %6240 = vmatprep.subr.mxu0 0.0
        %v6241 = vand.u32 %v3832, 4294901760
        %6242 = vmatpush1.msra.mxu0 %v6241
        %6243 = vmatprep.subr.mxu0 0.0
        %v6244 = vand.u32 %v3833, 4294901760
        %6245 = vmatpush1.msra.mxu0 %v6244
        %6246 = vmatprep.subr.mxu0 0.0
        %v6247 = vand.u32 %v3834, 4294901760
        %6248 = vmatpush1.msra.mxu0 %v6247
        %v6249 = vand.u32 %v5392, 4294901760
        %6250 = vmatprep.mubr.f32.mxu0 %v6249
        %v6251 = vand.u32 %v5378, 4294901760
        %6252 = vmatmul.mubr.f32.gmra.mrb[0].mxu0 %v6251
        %v6253 = vpop.f32.mrb[0].mxu0
        %v6254 = vadd.f32 %v6150, %v6253
        %v6255 = vpop.f32.mrb[0].mxu0
        %6256 = vdwg.mxu0
        %v6257 = vsel %vm5030, %v6254, 0.0
        %6258 = vadd.xlane.f32.xlu0 %v6257
        %v6259 = vpop.xlane.xlu0 %6258
        %v6260 = vmul.f32 %v6259, %v5034
        %v6261 = vsub.f32 %v6254, %v6260
        %v6262 = vmul.f32 %v6261, %v6261
        %v6263 = vsel %vm5030, %v6262, 0.0
        %6264 = vadd.xlane.f32.xlu0 %v6263
        %v6265 = vpop.xlane.xlu0 %6264
        %v6266 = vmul.f32 %v6265, %v5041
        %v6267 = vrsqrt.pop %v6266
        %v6268 = vmul.f32 %v6266, %v6267
        %vm6269 = vcmp.eq.f32.partialorder %v6266, inf
        %v6270 = vsel %vm6269, %v6266, %v6268
        %vm6271 = vcmp.eq.f32.partialorder %v6266, 0.0
        %v6272 = vand.u32 %v6266, 2147483648
        %v6273 = vsel %vm6271, %v6272, %v6270
        %v6274 = vadd.f32 %v6273, 1e-06
        %v6275 = vrcp.pop %v6274
        %v6276 = vmul.f32 %v6261, %v6275
        %s6277 = scalar_lea.vmem [#allocation11], 1
        %v6278 = vld [vmem:[%s6277] sm:$0x1]
        %v6280 = vlaneseq
        %v6281 = vshrl.u32 %v6280, 7
        %v6282 = vsub.s32 0, %v6281
        %v6283 = vrot.slane %v6278, %v6282
        %v6285 = vmul.f32 %v6276, %v6283
        %s6286 = scalar_lea.vmem [#allocation13], 1
        %v6287 = vld [vmem:[%s6286] sm:$0x1]
        %v6289 = vlaneseq
        %v6290 = vshrl.u32 %v6289, 7
        %v6291 = vsub.s32 0, %v6290
        %v6292 = vrot.slane %v6287, %v6291
        %v6294 = vadd.f32 %v6285, %v6292
        %v6295 = vlaneseq
        %v6296 = vshrl.u32 %v6295, 7
        %v6297 = vsub.s32 0, %v6296
        %v6298 = vrot.slane %v6294, %v6297
        %6300 = vbcast.lane.b32.xlu0 %v6298, 256
        %v6301 = vpop.permute.xlu0 %6300
        %s6303 = sor.u32 256, 8
        %6304 = vbcast.lane.b32.xlu0 %v6298, %s6303
        %v6305 = vpop.permute.xlu0 %6304
        %v6306 = vlaneseq
        %v6307 = vshrl.u32 %v6306, 7
        %v6308 = vsub.s32 1, %v6307
        %v6309 = vrot.slane %v6294, %v6308
        %6311 = vbcast.lane.b32.xlu0 %v6309, 256
        %v6312 = vpop.permute.xlu0 %6311
        %s6314 = sor.u32 256, 8
        %6315 = vbcast.lane.b32.xlu0 %v6309, %s6314
        %v6316 = vpop.permute.xlu0 %6315
        %v6317 = vlaneseq
        %v6318 = vshrl.u32 %v6317, 7
        %v6319 = vsub.s32 2, %v6318
        %v6320 = vrot.slane %v6294, %v6319
        %6322 = vbcast.lane.b32.xlu0 %v6320, 256
        %v6323 = vpop.permute.xlu0 %6322
        %s6325 = sor.u32 256, 8
        %6326 = vbcast.lane.b32.xlu0 %v6320, %s6325
        %v6327 = vpop.permute.xlu0 %6326
        %v6328 = vlaneseq
        %v6329 = vshrl.u32 %v6328, 7
        %v6330 = vsub.s32 3, %v6329
        %v6331 = vrot.slane %v6294, %v6330
        %6333 = vbcast.lane.b32.xlu0 %v6331, 256
        %v6334 = vpop.permute.xlu0 %6333
        %s6336 = sor.u32 256, 8
        %6337 = vbcast.lane.b32.xlu0 %v6331, %s6336
        %v6338 = vpop.permute.xlu0 %6337
        %v6339 = vlaneseq
        %v6340 = vshrl.u32 %v6339, 7
        %v6341 = vsub.s32 4, %v6340
        %v6342 = vrot.slane %v6294, %v6341
        %6344 = vbcast.lane.b32.xlu0 %v6342, 256
        %v6345 = vpop.permute.xlu0 %6344
        %s6347 = sor.u32 256, 8
        %6348 = vbcast.lane.b32.xlu0 %v6342, %s6347
        %v6349 = vpop.permute.xlu0 %6348
        %v6350 = vlaneseq
        %v6351 = vshrl.u32 %v6350, 7
        %v6352 = vsub.s32 5, %v6351
        %v6353 = vrot.slane %v6294, %v6352
        %6355 = vbcast.lane.b32.xlu0 %v6353, 256
        %v6356 = vpop.permute.xlu0 %6355
        %s6358 = sor.u32 256, 8
        %6359 = vbcast.lane.b32.xlu0 %v6353, %s6358
        %v6360 = vpop.permute.xlu0 %6359
        %v6361 = vlaneseq
        %v6362 = vshrl.u32 %v6361, 7
        %v6363 = vsub.s32 6, %v6362
        %v6364 = vrot.slane %v6294, %v6363
        %6366 = vbcast.lane.b32.xlu0 %v6364, 256
        %v6367 = vpop.permute.xlu0 %6366
        %s6369 = sor.u32 256, 8
        %6370 = vbcast.lane.b32.xlu0 %v6364, %s6369
        %v6371 = vpop.permute.xlu0 %6370
        %v6372 = vlaneseq
        %v6373 = vshrl.u32 %v6372, 7
        %v6374 = vsub.s32 7, %v6373
        %v6375 = vrot.slane %v6294, %v6374
        %6377 = vbcast.lane.b32.xlu0 %v6375, 256
        %v6378 = vpop.permute.xlu0 %6377
        %s6380 = sor.u32 256, 8
        %6381 = vbcast.lane.b32.xlu0 %v6375, %s6380
        %v6382 = vpop.permute.xlu0 %6381
        %v6383 = vmul.f32 %v3771, %v6301
        %v6384 = vmul.f32 %v3772, %v6301
        %v6385 = vmul.f32 %v3773, %v6305
        %v6386 = vmul.f32 %v3774, %v6305
        %v6387 = vmul.f32 %v3775, %v6312
        %v6388 = vmul.f32 %v3776, %v6312
        %v6389 = vmul.f32 %v3777, %v6316
        %v6390 = vmul.f32 %v3778, %v6316
        %v6391 = vmul.f32 %v3779, %v6323
        %v6392 = vmul.f32 %v3780, %v6323
        %v6393 = vmul.f32 %v3781, %v6327
        %v6394 = vmul.f32 %v3782, %v6327
        %v6395 = vmul.f32 %v3783, %v6334
        %v6396 = vmul.f32 %v3784, %v6334
        %v6397 = vmul.f32 %v3785, %v6338
        %v6398 = vmul.f32 %v3786, %v6338
        %v6399 = vmul.f32 %v3787, %v6345
        %v6400 = vmul.f32 %v3788, %v6345
        %v6401 = vmul.f32 %v3789, %v6349
        %v6402 = vmul.f32 %v3790, %v6349
        %v6403 = vmul.f32 %v3791, %v6356
        %v6404 = vmul.f32 %v3792, %v6356
        %v6405 = vmul.f32 %v3793, %v6360
        %v6406 = vmul.f32 %v3794, %v6360
        %v6407 = vmul.f32 %v3795, %v6367
        %v6408 = vmul.f32 %v3796, %v6367
        %v6409 = vmul.f32 %v3797, %v6371
        %v6410 = vmul.f32 %v3798, %v6371
        %v6411 = vmul.f32 %v3799, %v6378
        %v6412 = vmul.f32 %v3800, %v6378
        %v6413 = vmul.f32 %v3801, %v6382
        %v6414 = vmul.f32 %v3802, %v6382
        %v6415 = vadd.f32 %v6383, %v6385
        %v6416 = vrot.slane %v6415, 4
        %v6417 = vadd.f32 %v6415, %v6416
        %v6418 = vrot.slane %v6417, 2
        %v6419 = vadd.f32 %v6417, %v6418
        %v6420 = vrot.slane %v6419, 1
        %v6421 = vadd.f32 %v6419, %v6420
        %v6422 = vadd.f32 %v6384, %v6386
        %v6423 = vrot.slane %v6422, 4
        %v6424 = vadd.f32 %v6422, %v6423
        %v6425 = vrot.slane %v6424, 2
        %v6426 = vadd.f32 %v6424, %v6425
        %v6427 = vrot.slane %v6426, 1
        %v6428 = vadd.f32 %v6426, %v6427
        %v6429 = vadd.f32 %v6387, %v6389
        %v6430 = vrot.slane %v6429, 4
        %v6431 = vadd.f32 %v6429, %v6430
        %v6432 = vrot.slane %v6431, 2
        %v6433 = vadd.f32 %v6431, %v6432
        %v6434 = vrot.slane %v6433, 1
        %v6435 = vadd.f32 %v6433, %v6434
        %v6436 = vadd.f32 %v6388, %v6390
        %v6437 = vrot.slane %v6436, 4
        %v6438 = vadd.f32 %v6436, %v6437
        %v6439 = vrot.slane %v6438, 2
        %v6440 = vadd.f32 %v6438, %v6439
        %v6441 = vrot.slane %v6440, 1
        %v6442 = vadd.f32 %v6440, %v6441
        %v6443 = vadd.f32 %v6391, %v6393
        %v6444 = vrot.slane %v6443, 4
        %v6445 = vadd.f32 %v6443, %v6444
        %v6446 = vrot.slane %v6445, 2
        %v6447 = vadd.f32 %v6445, %v6446
        %v6448 = vrot.slane %v6447, 1
        %v6449 = vadd.f32 %v6447, %v6448
        %v6450 = vadd.f32 %v6392, %v6394
        %v6451 = vrot.slane %v6450, 4
        %v6452 = vadd.f32 %v6450, %v6451
        %v6453 = vrot.slane %v6452, 2
        %v6454 = vadd.f32 %v6452, %v6453
        %v6455 = vrot.slane %v6454, 1
        %v6456 = vadd.f32 %v6454, %v6455
        %v6457 = vadd.f32 %v6395, %v6397
        %v6458 = vrot.slane %v6457, 4
        %v6459 = vadd.f32 %v6457, %v6458
        %v6460 = vrot.slane %v6459, 2
        %v6461 = vadd.f32 %v6459, %v6460
        %v6462 = vrot.slane %v6461, 1
        %v6463 = vadd.f32 %v6461, %v6462
        %v6464 = vadd.f32 %v6396, %v6398
        %v6465 = vrot.slane %v6464, 4
        %v6466 = vadd.f32 %v6464, %v6465
        %v6467 = vrot.slane %v6466, 2
        %v6468 = vadd.f32 %v6466, %v6467
        %v6469 = vrot.slane %v6468, 1
        %v6470 = vadd.f32 %v6468, %v6469
        %v6471 = vadd.f32 %v6399, %v6401
        %v6472 = vrot.slane %v6471, 4
        %v6473 = vadd.f32 %v6471, %v6472
        %v6474 = vrot.slane %v6473, 2
        %v6475 = vadd.f32 %v6473, %v6474
        %v6476 = vrot.slane %v6475, 1
        %v6477 = vadd.f32 %v6475, %v6476
        %v6478 = vadd.f32 %v6400, %v6402
        %v6479 = vrot.slane %v6478, 4
        %v6480 = vadd.f32 %v6478, %v6479
        %v6481 = vrot.slane %v6480, 2
        %v6482 = vadd.f32 %v6480, %v6481
        %v6483 = vrot.slane %v6482, 1
        %v6484 = vadd.f32 %v6482, %v6483
        %v6485 = vadd.f32 %v6403, %v6405
        %v6486 = vrot.slane %v6485, 4
        %v6487 = vadd.f32 %v6485, %v6486
        %v6488 = vrot.slane %v6487, 2
        %v6489 = vadd.f32 %v6487, %v6488
        %v6490 = vrot.slane %v6489, 1
        %v6491 = vadd.f32 %v6489, %v6490
        %v6492 = vadd.f32 %v6404, %v6406
        %v6493 = vrot.slane %v6492, 4
        %v6494 = vadd.f32 %v6492, %v6493
        %v6495 = vrot.slane %v6494, 2
        %v6496 = vadd.f32 %v6494, %v6495
        %v6497 = vrot.slane %v6496, 1
        %v6498 = vadd.f32 %v6496, %v6497
        %v6499 = vadd.f32 %v6407, %v6409
        %v6500 = vrot.slane %v6499, 4
        %v6501 = vadd.f32 %v6499, %v6500
        %v6502 = vrot.slane %v6501, 2
        %v6503 = vadd.f32 %v6501, %v6502
        %v6504 = vrot.slane %v6503, 1
        %v6505 = vadd.f32 %v6503, %v6504
        %v6506 = vadd.f32 %v6408, %v6410
        %v6507 = vrot.slane %v6506, 4
        %v6508 = vadd.f32 %v6506, %v6507
        %v6509 = vrot.slane %v6508, 2
        %v6510 = vadd.f32 %v6508, %v6509
        %v6511 = vrot.slane %v6510, 1
        %v6512 = vadd.f32 %v6510, %v6511
        %v6513 = vadd.f32 %v6411, %v6413
        %v6514 = vrot.slane %v6513, 4
        %v6515 = vadd.f32 %v6513, %v6514
        %v6516 = vrot.slane %v6515, 2
        %v6517 = vadd.f32 %v6515, %v6516
        %v6518 = vrot.slane %v6517, 1
        %v6519 = vadd.f32 %v6517, %v6518
        %v6520 = vadd.f32 %v6412, %v6414
        %v6521 = vrot.slane %v6520, 4
        %v6522 = vadd.f32 %v6520, %v6521
        %v6523 = vrot.slane %v6522, 2
        %v6524 = vadd.f32 %v6522, %v6523
        %v6525 = vrot.slane %v6524, 1
        %v6526 = vadd.f32 %v6524, %v6525
        %v6529 = vrot.slane %v3751, 1
        %v6530 = vrot.slane %v3753, 1
        %v6531 = vrot.slane %v3751, 2
        %v6532 = vrot.slane %v3753, 2
        %v6533 = vrot.slane %v3751, 3
        %v6534 = vrot.slane %v3753, 3
        %v6535 = vrot.slane %v3751, 4
        %v6536 = vrot.slane %v3753, 4
        %v6537 = vrot.slane %v3751, 5
        %v6538 = vrot.slane %v3753, 5
        %v6539 = vrot.slane %v3751, 6
        %v6540 = vrot.slane %v3753, 6
        %v6541 = vrot.slane %v3751, 7
        %v6542 = vrot.slane %v3753, 7
        %v6559 = vmul.f32 %v6421, %v3751
        %v6560 = vmul.f32 %v6428, %v3753
        %v6561 = vmul.f32 %v6435, %v6529
        %v6562 = vmul.f32 %v6442, %v6530
        %v6563 = vmul.f32 %v6449, %v6531
        %v6564 = vmul.f32 %v6456, %v6532
        %v6565 = vmul.f32 %v6463, %v6533
        %v6566 = vmul.f32 %v6470, %v6534
        %v6567 = vmul.f32 %v6477, %v6535
        %v6568 = vmul.f32 %v6484, %v6536
        %v6569 = vmul.f32 %v6491, %v6537
        %v6570 = vmul.f32 %v6498, %v6538
        %v6571 = vmul.f32 %v6505, %v6539
        %v6572 = vmul.f32 %v6512, %v6540
        %v6573 = vmul.f32 %v6519, %v6541
        %v6574 = vmul.f32 %v6526, %v6542
        %v6591 = vrot.slane %v6561, 7
        %v6592 = vsel %vm4132, %v6591, %v6559
        %v6593 = vrot.slane %v6563, 6
        %v6594 = vsel %vm4135, %v6593, %v6592
        %v6595 = vrot.slane %v6565, 5
        %v6596 = vsel %vm4138, %v6595, %v6594
        %v6597 = vrot.slane %v6567, 4
        %v6598 = vsel %vm4141, %v6597, %v6596
        %v6599 = vrot.slane %v6569, 3
        %v6600 = vsel %vm4144, %v6599, %v6598
        %v6601 = vrot.slane %v6571, 2
        %v6602 = vsel %vm4147, %v6601, %v6600
        %v6603 = vrot.slane %v6573, 1
        %v6604 = vsel %vm4150, %v6603, %v6602
        %v6605 = vrot.slane %v6562, 7
        %v6606 = vsel %vm4132, %v6605, %v6560
        %v6607 = vrot.slane %v6564, 6
        %v6608 = vsel %vm4135, %v6607, %v6606
        %v6609 = vrot.slane %v6566, 5
        %v6610 = vsel %vm4138, %v6609, %v6608
        %v6611 = vrot.slane %v6568, 4
        %v6612 = vsel %vm4141, %v6611, %v6610
        %v6613 = vrot.slane %v6570, 3
        %v6614 = vsel %vm4144, %v6613, %v6612
        %v6615 = vrot.slane %v6572, 2
        %v6616 = vsel %vm4147, %v6615, %v6614
        %v6617 = vrot.slane %v6574, 1
        %v6618 = vsel %vm4150, %v6617, %v6616
        %6621 = vmatprep.subr.mxu0 0.0
        %v6622 = vand.u32 %v3803, 4294901760
        %6623 = vmatpush1.msra.mxu0 %v6622
        %6624 = vmatprep.subr.mxu0 0.0
        %v6625 = vand.u32 %v3804, 4294901760
        %6626 = vmatpush1.msra.mxu0 %v6625
        %6627 = vmatprep.subr.mxu0 0.0
        %v6628 = vand.u32 %v3805, 4294901760
        %6629 = vmatpush1.msra.mxu0 %v6628
        %6630 = vmatprep.subr.mxu0 0.0
        %v6631 = vand.u32 %v3806, 4294901760
        %6632 = vmatpush1.msra.mxu0 %v6631
        %6633 = vmatprep.subr.mxu0 0.0
        %v6634 = vand.u32 %v3807, 4294901760
        %6635 = vmatpush1.msra.mxu0 %v6634
        %6636 = vmatprep.subr.mxu0 0.0
        %v6637 = vand.u32 %v3808, 4294901760
        %6638 = vmatpush1.msra.mxu0 %v6637
        %6639 = vmatprep.subr.mxu0 0.0
        %v6640 = vand.u32 %v3809, 4294901760
        %6641 = vmatpush1.msra.mxu0 %v6640
        %6642 = vmatprep.subr.mxu0 0.0
        %v6643 = vand.u32 %v3810, 4294901760
        %6644 = vmatpush1.msra.mxu0 %v6643
        %6645 = vmatprep.subr.mxu0 0.0
        %v6646 = vand.u32 %v3811, 4294901760
        %6647 = vmatpush1.msra.mxu0 %v6646
        %6648 = vmatprep.subr.mxu0 0.0
        %v6649 = vand.u32 %v3812, 4294901760
        %6650 = vmatpush1.msra.mxu0 %v6649
        %6651 = vmatprep.subr.mxu0 0.0
        %v6652 = vand.u32 %v3813, 4294901760
        %6653 = vmatpush1.msra.mxu0 %v6652
        %6654 = vmatprep.subr.mxu0 0.0
        %v6655 = vand.u32 %v3814, 4294901760
        %6656 = vmatpush1.msra.mxu0 %v6655
        %6657 = vmatprep.subr.mxu0 0.0
        %v6658 = vand.u32 %v3815, 4294901760
        %6659 = vmatpush1.msra.mxu0 %v6658
        %6660 = vmatprep.subr.mxu0 0.0
        %v6661 = vand.u32 %v3816, 4294901760
        %6662 = vmatpush1.msra.mxu0 %v6661
        %6663 = vmatprep.subr.mxu0 0.0
        %v6664 = vand.u32 %v3817, 4294901760
        %6665 = vmatpush1.msra.mxu0 %v6664
        %6666 = vmatprep.subr.mxu0 0.0
        %v6667 = vand.u32 %v3818, 4294901760
        %6668 = vmatpush1.msra.mxu0 %v6667
        %6669 = vmatprep.subr.mxu0 0.0
        %v6670 = vand.u32 %v3819, 4294901760
        %6671 = vmatpush1.msra.mxu0 %v6670
        %6672 = vmatprep.subr.mxu0 0.0
        %v6673 = vand.u32 %v3820, 4294901760
        %6674 = vmatpush1.msra.mxu0 %v6673
        %6675 = vmatprep.subr.mxu0 0.0
        %v6676 = vand.u32 %v3821, 4294901760
        %6677 = vmatpush1.msra.mxu0 %v6676
        %6678 = vmatprep.subr.mxu0 0.0
        %v6679 = vand.u32 %v3822, 4294901760
        %6680 = vmatpush1.msra.mxu0 %v6679
        %6681 = vmatprep.subr.mxu0 0.0
        %v6682 = vand.u32 %v3823, 4294901760
        %6683 = vmatpush1.msra.mxu0 %v6682
        %6684 = vmatprep.subr.mxu0 0.0
        %v6685 = vand.u32 %v3824, 4294901760
        %6686 = vmatpush1.msra.mxu0 %v6685
        %6687 = vmatprep.subr.mxu0 0.0
        %v6688 = vand.u32 %v3825, 4294901760
        %6689 = vmatpush1.msra.mxu0 %v6688
        %6690 = vmatprep.subr.mxu0 0.0
        %v6691 = vand.u32 %v3826, 4294901760
        %6692 = vmatpush1.msra.mxu0 %v6691
        %6693 = vmatprep.subr.mxu0 0.0
        %v6694 = vand.u32 %v3827, 4294901760
        %6695 = vmatpush1.msra.mxu0 %v6694
        %6696 = vmatprep.subr.mxu0 0.0
        %v6697 = vand.u32 %v3828, 4294901760
        %6698 = vmatpush1.msra.mxu0 %v6697
        %6699 = vmatprep.subr.mxu0 0.0
        %v6700 = vand.u32 %v3829, 4294901760
        %6701 = vmatpush1.msra.mxu0 %v6700
        %6702 = vmatprep.subr.mxu0 0.0
        %v6703 = vand.u32 %v3830, 4294901760
        %6704 = vmatpush1.msra.mxu0 %v6703
        %6705 = vmatprep.subr.mxu0 0.0
        %v6706 = vand.u32 %v3831, 4294901760
        %6707 = vmatpush1.msra.mxu0 %v6706
        %6708 = vmatprep.subr.mxu0 0.0
        %v6709 = vand.u32 %v3832, 4294901760
        %6710 = vmatpush1.msra.mxu0 %v6709
        %6711 = vmatprep.subr.mxu0 0.0
        %v6712 = vand.u32 %v3833, 4294901760
        %6713 = vmatpush1.msra.mxu0 %v6712
        %6714 = vmatprep.subr.mxu0 0.0
        %v6715 = vand.u32 %v3834, 4294901760
        %6716 = vmatpush1.msra.mxu0 %v6715
        %v6717 = vand.u32 %v6618, 4294901760
        %v6718 = vsub.f32 %v6618, %v6717
        %v6719 = vand.u32 %v6718, 4294901760
        %v6720 = vsub.f32 %v6718, %v6719
        %v6721 = vand.u32 %v6720, 4294901760
        %6722 = vmatprep.mubr.f32.mxu0 %v6721
        %v6723 = vand.u32 %v6604, 4294901760
        %v6724 = vsub.f32 %v6604, %v6723
        %v6725 = vand.u32 %v6724, 4294901760
        %v6726 = vsub.f32 %v6724, %v6725
        %v6727 = vand.u32 %v6726, 4294901760
        %6728 = vmatmul.mubr.f32.gmra.mrb[0].mxu0 %v6727
        %v6729 = vpop.f32.mrb[0].mxu0
        %v6730 = vadd.f32 0.0, %v6729
        %v6731 = vpop.f32.mrb[0].mxu0
        %6732 = vdwg.mxu0
        %6733 = vmatprep.subr.mxu0 0.0
        %v6734 = vand.u32 %v3803, 4294901760
        %v6735 = vsub.f32 %v3803, %v6734
        %v6736 = vand.u32 %v6735, 4294901760
        %v6737 = vsub.f32 %v6735, %v6736
        %v6738 = vand.u32 %v6737, 4294901760
        %6739 = vmatpush1.msra.mxu0 %v6738
        %6740 = vmatprep.subr.mxu0 0.0
        %v6741 = vand.u32 %v3804, 4294901760
        %v6742 = vsub.f32 %v3804, %v6741
        %v6743 = vand.u32 %v6742, 4294901760
        %v6744 = vsub.f32 %v6742, %v6743
        %v6745 = vand.u32 %v6744, 4294901760
        %6746 = vmatpush1.msra.mxu0 %v6745
        %6747 = vmatprep.subr.mxu0 0.0
        %v6748 = vand.u32 %v3805, 4294901760
        %v6749 = vsub.f32 %v3805, %v6748
        %v6750 = vand.u32 %v6749, 4294901760
        %v6751 = vsub.f32 %v6749, %v6750
        %v6752 = vand.u32 %v6751, 4294901760
        %6753 = vmatpush1.msra.mxu0 %v6752
        %6754 = vmatprep.subr.mxu0 0.0
        %v6755 = vand.u32 %v3806, 4294901760
        %v6756 = vsub.f32 %v3806, %v6755
        %v6757 = vand.u32 %v6756, 4294901760
        %v6758 = vsub.f32 %v6756, %v6757
        %v6759 = vand.u32 %v6758, 4294901760
        %6760 = vmatpush1.msra.mxu0 %v6759
        %6761 = vmatprep.subr.mxu0 0.0
        %v6762 = vand.u32 %v3807, 4294901760
        %v6763 = vsub.f32 %v3807, %v6762
        %v6764 = vand.u32 %v6763, 4294901760
        %v6765 = vsub.f32 %v6763, %v6764
        %v6766 = vand.u32 %v6765, 4294901760
        %6767 = vmatpush1.msra.mxu0 %v6766
        %6768 = vmatprep.subr.mxu0 0.0
        %v6769 = vand.u32 %v3808, 4294901760
        %v6770 = vsub.f32 %v3808, %v6769
        %v6771 = vand.u32 %v6770, 4294901760
        %v6772 = vsub.f32 %v6770, %v6771
        %v6773 = vand.u32 %v6772, 4294901760
        %6774 = vmatpush1.msra.mxu0 %v6773
        %6775 = vmatprep.subr.mxu0 0.0
        %v6776 = vand.u32 %v3809, 4294901760
        %v6777 = vsub.f32 %v3809, %v6776
        %v6778 = vand.u32 %v6777, 4294901760
        %v6779 = vsub.f32 %v6777, %v6778
        %v6780 = vand.u32 %v6779, 4294901760
        %6781 = vmatpush1.msra.mxu0 %v6780
        %6782 = vmatprep.subr.mxu0 0.0
        %v6783 = vand.u32 %v3810, 4294901760
        %v6784 = vsub.f32 %v3810, %v6783
        %v6785 = vand.u32 %v6784, 4294901760
        %v6786 = vsub.f32 %v6784, %v6785
        %v6787 = vand.u32 %v6786, 4294901760
        %6788 = vmatpush1.msra.mxu0 %v6787
        %6789 = vmatprep.subr.mxu0 0.0
        %v6790 = vand.u32 %v3811, 4294901760
        %v6791 = vsub.f32 %v3811, %v6790
        %v6792 = vand.u32 %v6791, 4294901760
        %v6793 = vsub.f32 %v6791, %v6792
        %v6794 = vand.u32 %v6793, 4294901760
        %6795 = vmatpush1.msra.mxu0 %v6794
        %6796 = vmatprep.subr.mxu0 0.0
        %v6797 = vand.u32 %v3812, 4294901760
        %v6798 = vsub.f32 %v3812, %v6797
        %v6799 = vand.u32 %v6798, 4294901760
        %v6800 = vsub.f32 %v6798, %v6799
        %v6801 = vand.u32 %v6800, 4294901760
        %6802 = vmatpush1.msra.mxu0 %v6801
        %6803 = vmatprep.subr.mxu0 0.0
        %v6804 = vand.u32 %v3813, 4294901760
        %v6805 = vsub.f32 %v3813, %v6804
        %v6806 = vand.u32 %v6805, 4294901760
        %v6807 = vsub.f32 %v6805, %v6806
        %v6808 = vand.u32 %v6807, 4294901760
        %6809 = vmatpush1.msra.mxu0 %v6808
        %6810 = vmatprep.subr.mxu0 0.0
        %v6811 = vand.u32 %v3814, 4294901760
        %v6812 = vsub.f32 %v3814, %v6811
        %v6813 = vand.u32 %v6812, 4294901760
        %v6814 = vsub.f32 %v6812, %v6813
        %v6815 = vand.u32 %v6814, 4294901760
        %6816 = vmatpush1.msra.mxu0 %v6815
        %6817 = vmatprep.subr.mxu0 0.0
        %v6818 = vand.u32 %v3815, 4294901760
        %v6819 = vsub.f32 %v3815, %v6818
        %v6820 = vand.u32 %v6819, 4294901760
        %v6821 = vsub.f32 %v6819, %v6820
        %v6822 = vand.u32 %v6821, 4294901760
        %6823 = vmatpush1.msra.mxu0 %v6822
        %6824 = vmatprep.subr.mxu0 0.0
        %v6825 = vand.u32 %v3816, 4294901760
        %v6826 = vsub.f32 %v3816, %v6825
        %v6827 = vand.u32 %v6826, 4294901760
        %v6828 = vsub.f32 %v6826, %v6827
        %v6829 = vand.u32 %v6828, 4294901760
        %6830 = vmatpush1.msra.mxu0 %v6829
        %6831 = vmatprep.subr.mxu0 0.0
        %v6832 = vand.u32 %v3817, 4294901760
        %v6833 = vsub.f32 %v3817, %v6832
        %v6834 = vand.u32 %v6833, 4294901760
        %v6835 = vsub.f32 %v6833, %v6834
        %v6836 = vand.u32 %v6835, 4294901760
        %6837 = vmatpush1.msra.mxu0 %v6836
        %6838 = vmatprep.subr.mxu0 0.0
        %v6839 = vand.u32 %v3818, 4294901760
        %v6840 = vsub.f32 %v3818, %v6839
        %v6841 = vand.u32 %v6840, 4294901760
        %v6842 = vsub.f32 %v6840, %v6841
        %v6843 = vand.u32 %v6842, 4294901760
        %6844 = vmatpush1.msra.mxu0 %v6843
        %6845 = vmatprep.subr.mxu0 0.0
        %v6846 = vand.u32 %v3819, 4294901760
        %v6847 = vsub.f32 %v3819, %v6846
        %v6848 = vand.u32 %v6847, 4294901760
        %v6849 = vsub.f32 %v6847, %v6848
        %v6850 = vand.u32 %v6849, 4294901760
        %6851 = vmatpush1.msra.mxu0 %v6850
        %6852 = vmatprep.subr.mxu0 0.0
        %v6853 = vand.u32 %v3820, 4294901760
        %v6854 = vsub.f32 %v3820, %v6853
        %v6855 = vand.u32 %v6854, 4294901760
        %v6856 = vsub.f32 %v6854, %v6855
        %v6857 = vand.u32 %v6856, 4294901760
        %6858 = vmatpush1.msra.mxu0 %v6857
        %6859 = vmatprep.subr.mxu0 0.0
        %v6860 = vand.u32 %v3821, 4294901760
        %v6861 = vsub.f32 %v3821, %v6860
        %v6862 = vand.u32 %v6861, 4294901760
        %v6863 = vsub.f32 %v6861, %v6862
        %v6864 = vand.u32 %v6863, 4294901760
        %6865 = vmatpush1.msra.mxu0 %v6864
        %6866 = vmatprep.subr.mxu0 0.0
        %v6867 = vand.u32 %v3822, 4294901760
        %v6868 = vsub.f32 %v3822, %v6867
        %v6869 = vand.u32 %v6868, 4294901760
        %v6870 = vsub.f32 %v6868, %v6869
        %v6871 = vand.u32 %v6870, 4294901760
        %6872 = vmatpush1.msra.mxu0 %v6871
        %6873 = vmatprep.subr.mxu0 0.0
        %v6874 = vand.u32 %v3823, 4294901760
        %v6875 = vsub.f32 %v3823, %v6874
        %v6876 = vand.u32 %v6875, 4294901760
        %v6877 = vsub.f32 %v6875, %v6876
        %v6878 = vand.u32 %v6877, 4294901760
        %6879 = vmatpush1.msra.mxu0 %v6878
        %6880 = vmatprep.subr.mxu0 0.0
        %v6881 = vand.u32 %v3824, 4294901760
        %v6882 = vsub.f32 %v3824, %v6881
        %v6883 = vand.u32 %v6882, 4294901760
        %v6884 = vsub.f32 %v6882, %v6883
        %v6885 = vand.u32 %v6884, 4294901760
        %6886 = vmatpush1.msra.mxu0 %v6885
        %6887 = vmatprep.subr.mxu0 0.0
        %v6888 = vand.u32 %v3825, 4294901760
        %v6889 = vsub.f32 %v3825, %v6888
        %v6890 = vand.u32 %v6889, 4294901760
        %v6891 = vsub.f32 %v6889, %v6890
        %v6892 = vand.u32 %v6891, 4294901760
        %6893 = vmatpush1.msra.mxu0 %v6892
        %6894 = vmatprep.subr.mxu0 0.0
        %v6895 = vand.u32 %v3826, 4294901760
        %v6896 = vsub.f32 %v3826, %v6895
        %v6897 = vand.u32 %v6896, 4294901760
        %v6898 = vsub.f32 %v6896, %v6897
        %v6899 = vand.u32 %v6898, 4294901760
        %6900 = vmatpush1.msra.mxu0 %v6899
        %6901 = vmatprep.subr.mxu0 0.0
        %v6902 = vand.u32 %v3827, 4294901760
        %v6903 = vsub.f32 %v3827, %v6902
        %v6904 = vand.u32 %v6903, 4294901760
        %v6905 = vsub.f32 %v6903, %v6904
        %v6906 = vand.u32 %v6905, 4294901760
        %6907 = vmatpush1.msra.mxu0 %v6906
        %6908 = vmatprep.subr.mxu0 0.0
        %v6909 = vand.u32 %v3828, 4294901760
        %v6910 = vsub.f32 %v3828, %v6909
        %v6911 = vand.u32 %v6910, 4294901760
        %v6912 = vsub.f32 %v6910, %v6911
        %v6913 = vand.u32 %v6912, 4294901760
        %6914 = vmatpush1.msra.mxu0 %v6913
        %6915 = vmatprep.subr.mxu0 0.0
        %v6916 = vand.u32 %v3829, 4294901760
        %v6917 = vsub.f32 %v3829, %v6916
        %v6918 = vand.u32 %v6917, 4294901760
        %v6919 = vsub.f32 %v6917, %v6918
        %v6920 = vand.u32 %v6919, 4294901760
        %6921 = vmatpush1.msra.mxu0 %v6920
        %6922 = vmatprep.subr.mxu0 0.0
        %v6923 = vand.u32 %v3830, 4294901760
        %v6924 = vsub.f32 %v3830, %v6923
        %v6925 = vand.u32 %v6924, 4294901760
        %v6926 = vsub.f32 %v6924, %v6925
        %v6927 = vand.u32 %v6926, 4294901760
        %6928 = vmatpush1.msra.mxu0 %v6927
        %6929 = vmatprep.subr.mxu0 0.0
        %v6930 = vand.u32 %v3831, 4294901760
        %v6931 = vsub.f32 %v3831, %v6930
        %v6932 = vand.u32 %v6931, 4294901760
        %v6933 = vsub.f32 %v6931, %v6932
        %v6934 = vand.u32 %v6933, 4294901760
        %6935 = vmatpush1.msra.mxu0 %v6934
        %6936 = vmatprep.subr.mxu0 0.0
        %v6937 = vand.u32 %v3832, 4294901760
        %v6938 = vsub.f32 %v3832, %v6937
        %v6939 = vand.u32 %v6938, 4294901760
        %v6940 = vsub.f32 %v6938, %v6939
        %v6941 = vand.u32 %v6940, 4294901760
        %6942 = vmatpush1.msra.mxu0 %v6941
        %6943 = vmatprep.subr.mxu0 0.0
        %v6944 = vand.u32 %v3833, 4294901760
        %v6945 = vsub.f32 %v3833, %v6944
        %v6946 = vand.u32 %v6945, 4294901760
        %v6947 = vsub.f32 %v6945, %v6946
        %v6948 = vand.u32 %v6947, 4294901760
        %6949 = vmatpush1.msra.mxu0 %v6948
        %6950 = vmatprep.subr.mxu0 0.0
        %v6951 = vand.u32 %v3834, 4294901760
        %v6952 = vsub.f32 %v3834, %v6951
        %v6953 = vand.u32 %v6952, 4294901760
        %v6954 = vsub.f32 %v6952, %v6953
        %v6955 = vand.u32 %v6954, 4294901760
        %6956 = vmatpush1.msra.mxu0 %v6955
        %v6957 = vand.u32 %v6618, 4294901760
        %6958 = vmatprep.mubr.f32.mxu0 %v6957
        %v6959 = vand.u32 %v6604, 4294901760
        %6960 = vmatmul.mubr.f32.gmra.mrb[0].mxu0 %v6959
        %v6961 = vpop.f32.mrb[0].mxu0
        %v6962 = vadd.f32 %v6730, %v6961
        %v6963 = vpop.f32.mrb[0].mxu0
        %6964 = vdwg.mxu0
        %6965 = vmatprep.subr.mxu0 0.0
        %v6966 = vand.u32 %v3803, 4294901760
        %v6967 = vsub.f32 %v3803, %v6966
        %6968 = vmatpush1.msra.mxu0 %v6967
        %6969 = vmatprep.subr.mxu0 0.0
        %v6970 = vand.u32 %v3804, 4294901760
        %v6971 = vsub.f32 %v3804, %v6970
        %6972 = vmatpush1.msra.mxu0 %v6971
        %6973 = vmatprep.subr.mxu0 0.0
        %v6974 = vand.u32 %v3805, 4294901760
        %v6975 = vsub.f32 %v3805, %v6974
        %6976 = vmatpush1.msra.mxu0 %v6975
        %6977 = vmatprep.subr.mxu0 0.0
        %v6978 = vand.u32 %v3806, 4294901760
        %v6979 = vsub.f32 %v3806, %v6978
        %6980 = vmatpush1.msra.mxu0 %v6979
        %6981 = vmatprep.subr.mxu0 0.0
        %v6982 = vand.u32 %v3807, 4294901760
        %v6983 = vsub.f32 %v3807, %v6982
        %6984 = vmatpush1.msra.mxu0 %v6983
        %6985 = vmatprep.subr.mxu0 0.0
        %v6986 = vand.u32 %v3808, 4294901760
        %v6987 = vsub.f32 %v3808, %v6986
        %6988 = vmatpush1.msra.mxu0 %v6987
        %6989 = vmatprep.subr.mxu0 0.0
        %v6990 = vand.u32 %v3809, 4294901760
        %v6991 = vsub.f32 %v3809, %v6990
        %6992 = vmatpush1.msra.mxu0 %v6991
        %6993 = vmatprep.subr.mxu0 0.0
        %v6994 = vand.u32 %v3810, 4294901760
        %v6995 = vsub.f32 %v3810, %v6994
        %6996 = vmatpush1.msra.mxu0 %v6995
        %6997 = vmatprep.subr.mxu0 0.0
        %v6998 = vand.u32 %v3811, 4294901760
        %v6999 = vsub.f32 %v3811, %v6998
        %7000 = vmatpush1.msra.mxu0 %v6999
        %7001 = vmatprep.subr.mxu0 0.0
        %v7002 = vand.u32 %v3812, 4294901760
        %v7003 = vsub.f32 %v3812, %v7002
        %7004 = vmatpush1.msra.mxu0 %v7003
        %7005 = vmatprep.subr.mxu0 0.0
        %v7006 = vand.u32 %v3813, 4294901760
        %v7007 = vsub.f32 %v3813, %v7006
        %7008 = vmatpush1.msra.mxu0 %v7007
        %7009 = vmatprep.subr.mxu0 0.0
        %v7010 = vand.u32 %v3814, 4294901760
        %v7011 = vsub.f32 %v3814, %v7010
        %7012 = vmatpush1.msra.mxu0 %v7011
        %7013 = vmatprep.subr.mxu0 0.0
        %v7014 = vand.u32 %v3815, 4294901760
        %v7015 = vsub.f32 %v3815, %v7014
        %7016 = vmatpush1.msra.mxu0 %v7015
        %7017 = vmatprep.subr.mxu0 0.0
        %v7018 = vand.u32 %v3816, 4294901760
        %v7019 = vsub.f32 %v3816, %v7018
        %7020 = vmatpush1.msra.mxu0 %v7019
        %7021 = vmatprep.subr.mxu0 0.0
        %v7022 = vand.u32 %v3817, 4294901760
        %v7023 = vsub.f32 %v3817, %v7022
        %7024 = vmatpush1.msra.mxu0 %v7023
        %7025 = vmatprep.subr.mxu0 0.0
        %v7026 = vand.u32 %v3818, 4294901760
        %v7027 = vsub.f32 %v3818, %v7026
        %7028 = vmatpush1.msra.mxu0 %v7027
        %7029 = vmatprep.subr.mxu0 0.0
        %v7030 = vand.u32 %v3819, 4294901760
        %v7031 = vsub.f32 %v3819, %v7030
        %7032 = vmatpush1.msra.mxu0 %v7031
        %7033 = vmatprep.subr.mxu0 0.0
        %v7034 = vand.u32 %v3820, 4294901760
        %v7035 = vsub.f32 %v3820, %v7034
        %7036 = vmatpush1.msra.mxu0 %v7035
        %7037 = vmatprep.subr.mxu0 0.0
        %v7038 = vand.u32 %v3821, 4294901760
        %v7039 = vsub.f32 %v3821, %v7038
        %7040 = vmatpush1.msra.mxu0 %v7039
        %7041 = vmatprep.subr.mxu0 0.0
        %v7042 = vand.u32 %v3822, 4294901760
        %v7043 = vsub.f32 %v3822, %v7042
        %7044 = vmatpush1.msra.mxu0 %v7043
        %7045 = vmatprep.subr.mxu0 0.0
        %v7046 = vand.u32 %v3823, 4294901760
        %v7047 = vsub.f32 %v3823, %v7046
        %7048 = vmatpush1.msra.mxu0 %v7047
        %7049 = vmatprep.subr.mxu0 0.0
        %v7050 = vand.u32 %v3824, 4294901760
        %v7051 = vsub.f32 %v3824, %v7050
        %7052 = vmatpush1.msra.mxu0 %v7051
        %7053 = vmatprep.subr.mxu0 0.0
        %v7054 = vand.u32 %v3825, 4294901760
        %v7055 = vsub.f32 %v3825, %v7054
        %7056 = vmatpush1.msra.mxu0 %v7055
        %7057 = vmatprep.subr.mxu0 0.0
        %v7058 = vand.u32 %v3826, 4294901760
        %v7059 = vsub.f32 %v3826, %v7058
        %7060 = vmatpush1.msra.mxu0 %v7059
        %7061 = vmatprep.subr.mxu0 0.0
        %v7062 = vand.u32 %v3827, 4294901760
        %v7063 = vsub.f32 %v3827, %v7062
        %7064 = vmatpush1.msra.mxu0 %v7063
        %7065 = vmatprep.subr.mxu0 0.0
        %v7066 = vand.u32 %v3828, 4294901760
        %v7067 = vsub.f32 %v3828, %v7066
        %7068 = vmatpush1.msra.mxu0 %v7067
        %7069 = vmatprep.subr.mxu0 0.0
        %v7070 = vand.u32 %v3829, 4294901760
        %v7071 = vsub.f32 %v3829, %v7070
        %7072 = vmatpush1.msra.mxu0 %v7071
        %7073 = vmatprep.subr.mxu0 0.0
        %v7074 = vand.u32 %v3830, 4294901760
        %v7075 = vsub.f32 %v3830, %v7074
        %7076 = vmatpush1.msra.mxu0 %v7075
        %7077 = vmatprep.subr.mxu0 0.0
        %v7078 = vand.u32 %v3831, 4294901760
        %v7079 = vsub.f32 %v3831, %v7078
        %7080 = vmatpush1.msra.mxu0 %v7079
        %7081 = vmatprep.subr.mxu0 0.0
        %v7082 = vand.u32 %v3832, 4294901760
        %v7083 = vsub.f32 %v3832, %v7082
        %7084 = vmatpush1.msra.mxu0 %v7083
        %7085 = vmatprep.subr.mxu0 0.0
        %v7086 = vand.u32 %v3833, 4294901760
        %v7087 = vsub.f32 %v3833, %v7086
        %7088 = vmatpush1.msra.mxu0 %v7087
        %7089 = vmatprep.subr.mxu0 0.0
        %v7090 = vand.u32 %v3834, 4294901760
        %v7091 = vsub.f32 %v3834, %v7090
        %7092 = vmatpush1.msra.mxu0 %v7091
        %v7093 = vand.u32 %v6618, 4294901760
        %v7094 = vsub.f32 %v6618, %v7093
        %7095 = vmatprep.mubr.f32.mxu0 %v7094
        %v7096 = vand.u32 %v6604, 4294901760
        %v7097 = vsub.f32 %v6604, %v7096
        %7098 = vmatmul.mubr.f32.gmra.mrb[0].mxu0 %v7097
        %v7099 = vpop.f32.mrb[0].mxu0
        %v7100 = vadd.f32 %v6962, %v7099
        %v7101 = vpop.f32.mrb[0].mxu0
        %7102 = vdwg.mxu0
        %7103 = vmatprep.subr.mxu0 0.0
        %v7104 = vand.u32 %v3803, 4294901760
        %7105 = vmatpush1.msra.mxu0 %v7104
        %7106 = vmatprep.subr.mxu0 0.0
        %v7107 = vand.u32 %v3804, 4294901760
        %7108 = vmatpush1.msra.mxu0 %v7107
        %7109 = vmatprep.subr.mxu0 0.0
        %v7110 = vand.u32 %v3805, 4294901760
        %7111 = vmatpush1.msra.mxu0 %v7110
        %7112 = vmatprep.subr.mxu0 0.0
        %v7113 = vand.u32 %v3806, 4294901760
        %7114 = vmatpush1.msra.mxu0 %v7113
        %7115 = vmatprep.subr.mxu0 0.0
        %v7116 = vand.u32 %v3807, 4294901760
        %7117 = vmatpush1.msra.mxu0 %v7116
        %7118 = vmatprep.subr.mxu0 0.0
        %v7119 = vand.u32 %v3808, 4294901760
        %7120 = vmatpush1.msra.mxu0 %v7119
        %7121 = vmatprep.subr.mxu0 0.0
        %v7122 = vand.u32 %v3809, 4294901760
        %7123 = vmatpush1.msra.mxu0 %v7122
        %7124 = vmatprep.subr.mxu0 0.0
        %v7125 = vand.u32 %v3810, 4294901760
        %7126 = vmatpush1.msra.mxu0 %v7125
        %7127 = vmatprep.subr.mxu0 0.0
        %v7128 = vand.u32 %v3811, 4294901760
        %7129 = vmatpush1.msra.mxu0 %v7128
        %7130 = vmatprep.subr.mxu0 0.0
        %v7131 = vand.u32 %v3812, 4294901760
        %7132 = vmatpush1.msra.mxu0 %v7131
        %7133 = vmatprep.subr.mxu0 0.0
        %v7134 = vand.u32 %v3813, 4294901760
        %7135 = vmatpush1.msra.mxu0 %v7134
        %7136 = vmatprep.subr.mxu0 0.0
        %v7137 = vand.u32 %v3814, 4294901760
        %7138 = vmatpush1.msra.mxu0 %v7137
        %7139 = vmatprep.subr.mxu0 0.0
        %v7140 = vand.u32 %v3815, 4294901760
        %7141 = vmatpush1.msra.mxu0 %v7140
        %7142 = vmatprep.subr.mxu0 0.0
        %v7143 = vand.u32 %v3816, 4294901760
        %7144 = vmatpush1.msra.mxu0 %v7143
        %7145 = vmatprep.subr.mxu0 0.0
        %v7146 = vand.u32 %v3817, 4294901760
        %7147 = vmatpush1.msra.mxu0 %v7146
        %7148 = vmatprep.subr.mxu0 0.0
        %v7149 = vand.u32 %v3818, 4294901760
        %7150 = vmatpush1.msra.mxu0 %v7149
        %7151 = vmatprep.subr.mxu0 0.0
        %v7152 = vand.u32 %v3819, 4294901760
        %7153 = vmatpush1.msra.mxu0 %v7152
        %7154 = vmatprep.subr.mxu0 0.0
        %v7155 = vand.u32 %v3820, 4294901760
        %7156 = vmatpush1.msra.mxu0 %v7155
        %7157 = vmatprep.subr.mxu0 0.0
        %v7158 = vand.u32 %v3821, 4294901760
        %7159 = vmatpush1.msra.mxu0 %v7158
        %7160 = vmatprep.subr.mxu0 0.0
        %v7161 = vand.u32 %v3822, 4294901760
        %7162 = vmatpush1.msra.mxu0 %v7161
        %7163 = vmatprep.subr.mxu0 0.0
        %v7164 = vand.u32 %v3823, 4294901760
        %7165 = vmatpush1.msra.mxu0 %v7164
        %7166 = vmatprep.subr.mxu0 0.0
        %v7167 = vand.u32 %v3824, 4294901760
        %7168 = vmatpush1.msra.mxu0 %v7167
        %7169 = vmatprep.subr.mxu0 0.0
        %v7170 = vand.u32 %v3825, 4294901760
        %7171 = vmatpush1.msra.mxu0 %v7170
        %7172 = vmatprep.subr.mxu0 0.0
        %v7173 = vand.u32 %v3826, 4294901760
        %7174 = vmatpush1.msra.mxu0 %v7173
        %7175 = vmatprep.subr.mxu0 0.0
        %v7176 = vand.u32 %v3827, 4294901760
        %7177 = vmatpush1.msra.mxu0 %v7176
        %7178 = vmatprep.subr.mxu0 0.0
        %v7179 = vand.u32 %v3828, 4294901760
        %7180 = vmatpush1.msra.mxu0 %v7179
        %7181 = vmatprep.subr.mxu0 0.0
        %v7182 = vand.u32 %v3829, 4294901760
        %7183 = vmatpush1.msra.mxu0 %v7182
        %7184 = vmatprep.subr.mxu0 0.0
        %v7185 = vand.u32 %v3830, 4294901760
        %7186 = vmatpush1.msra.mxu0 %v7185
        %7187 = vmatprep.subr.mxu0 0.0
        %v7188 = vand.u32 %v3831, 4294901760
        %7189 = vmatpush1.msra.mxu0 %v7188
        %7190 = vmatprep.subr.mxu0 0.0
        %v7191 = vand.u32 %v3832, 4294901760
        %7192 = vmatpush1.msra.mxu0 %v7191
        %7193 = vmatprep.subr.mxu0 0.0
        %v7194 = vand.u32 %v3833, 4294901760
        %7195 = vmatpush1.msra.mxu0 %v7194
        %7196 = vmatprep.subr.mxu0 0.0
        %v7197 = vand.u32 %v3834, 4294901760
        %7198 = vmatpush1.msra.mxu0 %v7197
        %v7199 = vand.u32 %v6618, 4294901760
        %v7200 = vsub.f32 %v6618, %v7199
        %v7201 = vand.u32 %v7200, 4294901760
        %7202 = vmatprep.mubr.f32.mxu0 %v7201
        %v7203 = vand.u32 %v6604, 4294901760
        %v7204 = vsub.f32 %v6604, %v7203
        %v7205 = vand.u32 %v7204, 4294901760
        %7206 = vmatmul.mubr.f32.gmra.mrb[0].mxu0 %v7205
        %v7207 = vpop.f32.mrb[0].mxu0
        %v7208 = vadd.f32 %v7100, %v7207
        %v7209 = vpop.f32.mrb[0].mxu0
        %7210 = vdwg.mxu0
        %7211 = vmatprep.subr.mxu0 0.0
        %v7212 = vand.u32 %v3803, 4294901760
        %v7213 = vsub.f32 %v3803, %v7212
        %v7214 = vand.u32 %v7213, 4294901760
        %7215 = vmatpush1.msra.mxu0 %v7214
        %7216 = vmatprep.subr.mxu0 0.0
        %v7217 = vand.u32 %v3804, 4294901760
        %v7218 = vsub.f32 %v3804, %v7217
        %v7219 = vand.u32 %v7218, 4294901760
        %7220 = vmatpush1.msra.mxu0 %v7219
        %7221 = vmatprep.subr.mxu0 0.0
        %v7222 = vand.u32 %v3805, 4294901760
        %v7223 = vsub.f32 %v3805, %v7222
        %v7224 = vand.u32 %v7223, 4294901760
        %7225 = vmatpush1.msra.mxu0 %v7224
        %7226 = vmatprep.subr.mxu0 0.0
        %v7227 = vand.u32 %v3806, 4294901760
        %v7228 = vsub.f32 %v3806, %v7227
        %v7229 = vand.u32 %v7228, 4294901760
        %7230 = vmatpush1.msra.mxu0 %v7229
        %7231 = vmatprep.subr.mxu0 0.0
        %v7232 = vand.u32 %v3807, 4294901760
        %v7233 = vsub.f32 %v3807, %v7232
        %v7234 = vand.u32 %v7233, 4294901760
        %7235 = vmatpush1.msra.mxu0 %v7234
        %7236 = vmatprep.subr.mxu0 0.0
        %v7237 = vand.u32 %v3808, 4294901760
        %v7238 = vsub.f32 %v3808, %v7237
        %v7239 = vand.u32 %v7238, 4294901760
        %7240 = vmatpush1.msra.mxu0 %v7239
        %7241 = vmatprep.subr.mxu0 0.0
        %v7242 = vand.u32 %v3809, 4294901760
        %v7243 = vsub.f32 %v3809, %v7242
        %v7244 = vand.u32 %v7243, 4294901760
        %7245 = vmatpush1.msra.mxu0 %v7244
        %7246 = vmatprep.subr.mxu0 0.0
        %v7247 = vand.u32 %v3810, 4294901760
        %v7248 = vsub.f32 %v3810, %v7247
        %v7249 = vand.u32 %v7248, 4294901760
        %7250 = vmatpush1.msra.mxu0 %v7249
        %7251 = vmatprep.subr.mxu0 0.0
        %v7252 = vand.u32 %v3811, 4294901760
        %v7253 = vsub.f32 %v3811, %v7252
        %v7254 = vand.u32 %v7253, 4294901760
        %7255 = vmatpush1.msra.mxu0 %v7254
        %7256 = vmatprep.subr.mxu0 0.0
        %v7257 = vand.u32 %v3812, 4294901760
        %v7258 = vsub.f32 %v3812, %v7257
        %v7259 = vand.u32 %v7258, 4294901760
        %7260 = vmatpush1.msra.mxu0 %v7259
        %7261 = vmatprep.subr.mxu0 0.0
        %v7262 = vand.u32 %v3813, 4294901760
        %v7263 = vsub.f32 %v3813, %v7262
        %v7264 = vand.u32 %v7263, 4294901760
        %7265 = vmatpush1.msra.mxu0 %v7264
        %7266 = vmatprep.subr.mxu0 0.0
        %v7267 = vand.u32 %v3814, 4294901760
        %v7268 = vsub.f32 %v3814, %v7267
        %v7269 = vand.u32 %v7268, 4294901760
        %7270 = vmatpush1.msra.mxu0 %v7269
        %7271 = vmatprep.subr.mxu0 0.0
        %v7272 = vand.u32 %v3815, 4294901760
        %v7273 = vsub.f32 %v3815, %v7272
        %v7274 = vand.u32 %v7273, 4294901760
        %7275 = vmatpush1.msra.mxu0 %v7274
        %7276 = vmatprep.subr.mxu0 0.0
        %v7277 = vand.u32 %v3816, 4294901760
        %v7278 = vsub.f32 %v3816, %v7277
        %v7279 = vand.u32 %v7278, 4294901760
        %7280 = vmatpush1.msra.mxu0 %v7279
        %7281 = vmatprep.subr.mxu0 0.0
        %v7282 = vand.u32 %v3817, 4294901760
        %v7283 = vsub.f32 %v3817, %v7282
        %v7284 = vand.u32 %v7283, 4294901760
        %7285 = vmatpush1.msra.mxu0 %v7284
        %7286 = vmatprep.subr.mxu0 0.0
        %v7287 = vand.u32 %v3818, 4294901760
        %v7288 = vsub.f32 %v3818, %v7287
        %v7289 = vand.u32 %v7288, 4294901760
        %7290 = vmatpush1.msra.mxu0 %v7289
        %7291 = vmatprep.subr.mxu0 0.0
        %v7292 = vand.u32 %v3819, 4294901760
        %v7293 = vsub.f32 %v3819, %v7292
        %v7294 = vand.u32 %v7293, 4294901760
        %7295 = vmatpush1.msra.mxu0 %v7294
        %7296 = vmatprep.subr.mxu0 0.0
        %v7297 = vand.u32 %v3820, 4294901760
        %v7298 = vsub.f32 %v3820, %v7297
        %v7299 = vand.u32 %v7298, 4294901760
        %7300 = vmatpush1.msra.mxu0 %v7299
        %7301 = vmatprep.subr.mxu0 0.0
        %v7302 = vand.u32 %v3821, 4294901760
        %v7303 = vsub.f32 %v3821, %v7302
        %v7304 = vand.u32 %v7303, 4294901760
        %7305 = vmatpush1.msra.mxu0 %v7304
        %7306 = vmatprep.subr.mxu0 0.0
        %v7307 = vand.u32 %v3822, 4294901760
        %v7308 = vsub.f32 %v3822, %v7307
        %v7309 = vand.u32 %v7308, 4294901760
        %7310 = vmatpush1.msra.mxu0 %v7309
        %7311 = vmatprep.subr.mxu0 0.0
        %v7312 = vand.u32 %v3823, 4294901760
        %v7313 = vsub.f32 %v3823, %v7312
        %v7314 = vand.u32 %v7313, 4294901760
        %7315 = vmatpush1.msra.mxu0 %v7314
        %7316 = vmatprep.subr.mxu0 0.0
        %v7317 = vand.u32 %v3824, 4294901760
        %v7318 = vsub.f32 %v3824, %v7317
        %v7319 = vand.u32 %v7318, 4294901760
        %7320 = vmatpush1.msra.mxu0 %v7319
        %7321 = vmatprep.subr.mxu0 0.0
        %v7322 = vand.u32 %v3825, 4294901760
        %v7323 = vsub.f32 %v3825, %v7322
        %v7324 = vand.u32 %v7323, 4294901760
        %7325 = vmatpush1.msra.mxu0 %v7324
        %7326 = vmatprep.subr.mxu0 0.0
        %v7327 = vand.u32 %v3826, 4294901760
        %v7328 = vsub.f32 %v3826, %v7327
        %v7329 = vand.u32 %v7328, 4294901760
        %7330 = vmatpush1.msra.mxu0 %v7329
        %7331 = vmatprep.subr.mxu0 0.0
        %v7332 = vand.u32 %v3827, 4294901760
        %v7333 = vsub.f32 %v3827, %v7332
        %v7334 = vand.u32 %v7333, 4294901760
        %7335 = vmatpush1.msra.mxu0 %v7334
        %7336 = vmatprep.subr.mxu0 0.0
        %v7337 = vand.u32 %v3828, 4294901760
        %v7338 = vsub.f32 %v3828, %v7337
        %v7339 = vand.u32 %v7338, 4294901760
        %7340 = vmatpush1.msra.mxu0 %v7339
        %7341 = vmatprep.subr.mxu0 0.0
        %v7342 = vand.u32 %v3829, 4294901760
        %v7343 = vsub.f32 %v3829, %v7342
        %v7344 = vand.u32 %v7343, 4294901760
        %7345 = vmatpush1.msra.mxu0 %v7344
        %7346 = vmatprep.subr.mxu0 0.0
        %v7347 = vand.u32 %v3830, 4294901760
        %v7348 = vsub.f32 %v3830, %v7347
        %v7349 = vand.u32 %v7348, 4294901760
        %7350 = vmatpush1.msra.mxu0 %v7349
        %7351 = vmatprep.subr.mxu0 0.0
        %v7352 = vand.u32 %v3831, 4294901760
        %v7353 = vsub.f32 %v3831, %v7352
        %v7354 = vand.u32 %v7353, 4294901760
        %7355 = vmatpush1.msra.mxu0 %v7354
        %7356 = vmatprep.subr.mxu0 0.0
        %v7357 = vand.u32 %v3832, 4294901760
        %v7358 = vsub.f32 %v3832, %v7357
        %v7359 = vand.u32 %v7358, 4294901760
        %7360 = vmatpush1.msra.mxu0 %v7359
        %7361 = vmatprep.subr.mxu0 0.0
        %v7362 = vand.u32 %v3833, 4294901760
        %v7363 = vsub.f32 %v3833, %v7362
        %v7364 = vand.u32 %v7363, 4294901760
        %7365 = vmatpush1.msra.mxu0 %v7364
        %7366 = vmatprep.subr.mxu0 0.0
        %v7367 = vand.u32 %v3834, 4294901760
        %v7368 = vsub.f32 %v3834, %v7367
        %v7369 = vand.u32 %v7368, 4294901760
        %7370 = vmatpush1.msra.mxu0 %v7369
        %v7371 = vand.u32 %v6618, 4294901760
        %7372 = vmatprep.mubr.f32.mxu0 %v7371
        %v7373 = vand.u32 %v6604, 4294901760
        %7374 = vmatmul.mubr.f32.gmra.mrb[0].mxu0 %v7373
        %v7375 = vpop.f32.mrb[0].mxu0
        %v7376 = vadd.f32 %v7208, %v7375
        %v7377 = vpop.f32.mrb[0].mxu0
        %7378 = vdwg.mxu0
        %7379 = vmatprep.subr.mxu0 0.0
        %v7380 = vand.u32 %v3803, 4294901760
        %7381 = vmatpush1.msra.mxu0 %v7380
        %7382 = vmatprep.subr.mxu0 0.0
        %v7383 = vand.u32 %v3804, 4294901760
        %7384 = vmatpush1.msra.mxu0 %v7383
        %7385 = vmatprep.subr.mxu0 0.0
        %v7386 = vand.u32 %v3805, 4294901760
        %7387 = vmatpush1.msra.mxu0 %v7386
        %7388 = vmatprep.subr.mxu0 0.0
        %v7389 = vand.u32 %v3806, 4294901760
        %7390 = vmatpush1.msra.mxu0 %v7389
        %7391 = vmatprep.subr.mxu0 0.0
        %v7392 = vand.u32 %v3807, 4294901760
        %7393 = vmatpush1.msra.mxu0 %v7392
        %7394 = vmatprep.subr.mxu0 0.0
        %v7395 = vand.u32 %v3808, 4294901760
        %7396 = vmatpush1.msra.mxu0 %v7395
        %7397 = vmatprep.subr.mxu0 0.0
        %v7398 = vand.u32 %v3809, 4294901760
        %7399 = vmatpush1.msra.mxu0 %v7398
        %7400 = vmatprep.subr.mxu0 0.0
        %v7401 = vand.u32 %v3810, 4294901760
        %7402 = vmatpush1.msra.mxu0 %v7401
        %7403 = vmatprep.subr.mxu0 0.0
        %v7404 = vand.u32 %v3811, 4294901760
        %7405 = vmatpush1.msra.mxu0 %v7404
        %7406 = vmatprep.subr.mxu0 0.0
        %v7407 = vand.u32 %v3812, 4294901760
        %7408 = vmatpush1.msra.mxu0 %v7407
        %7409 = vmatprep.subr.mxu0 0.0
        %v7410 = vand.u32 %v3813, 4294901760
        %7411 = vmatpush1.msra.mxu0 %v7410
        %7412 = vmatprep.subr.mxu0 0.0
        %v7413 = vand.u32 %v3814, 4294901760
        %7414 = vmatpush1.msra.mxu0 %v7413
        %7415 = vmatprep.subr.mxu0 0.0
        %v7416 = vand.u32 %v3815, 4294901760
        %7417 = vmatpush1.msra.mxu0 %v7416
        %7418 = vmatprep.subr.mxu0 0.0
        %v7419 = vand.u32 %v3816, 4294901760
        %7420 = vmatpush1.msra.mxu0 %v7419
        %7421 = vmatprep.subr.mxu0 0.0
        %v7422 = vand.u32 %v3817, 4294901760
        %7423 = vmatpush1.msra.mxu0 %v7422
        %7424 = vmatprep.subr.mxu0 0.0
        %v7425 = vand.u32 %v3818, 4294901760
        %7426 = vmatpush1.msra.mxu0 %v7425
        %7427 = vmatprep.subr.mxu0 0.0
        %v7428 = vand.u32 %v3819, 4294901760
        %7429 = vmatpush1.msra.mxu0 %v7428
        %7430 = vmatprep.subr.mxu0 0.0
        %v7431 = vand.u32 %v3820, 4294901760
        %7432 = vmatpush1.msra.mxu0 %v7431
        %7433 = vmatprep.subr.mxu0 0.0
        %v7434 = vand.u32 %v3821, 4294901760
        %7435 = vmatpush1.msra.mxu0 %v7434
        %7436 = vmatprep.subr.mxu0 0.0
        %v7437 = vand.u32 %v3822, 4294901760
        %7438 = vmatpush1.msra.mxu0 %v7437
        %7439 = vmatprep.subr.mxu0 0.0
        %v7440 = vand.u32 %v3823, 4294901760
        %7441 = vmatpush1.msra.mxu0 %v7440
        %7442 = vmatprep.subr.mxu0 0.0
        %v7443 = vand.u32 %v3824, 4294901760
        %7444 = vmatpush1.msra.mxu0 %v7443
        %7445 = vmatprep.subr.mxu0 0.0
        %v7446 = vand.u32 %v3825, 4294901760
        %7447 = vmatpush1.msra.mxu0 %v7446
        %7448 = vmatprep.subr.mxu0 0.0
        %v7449 = vand.u32 %v3826, 4294901760
        %7450 = vmatpush1.msra.mxu0 %v7449
        %7451 = vmatprep.subr.mxu0 0.0
        %v7452 = vand.u32 %v3827, 4294901760
        %7453 = vmatpush1.msra.mxu0 %v7452
        %7454 = vmatprep.subr.mxu0 0.0
        %v7455 = vand.u32 %v3828, 4294901760
        %7456 = vmatpush1.msra.mxu0 %v7455
        %7457 = vmatprep.subr.mxu0 0.0
        %v7458 = vand.u32 %v3829, 4294901760
        %7459 = vmatpush1.msra.mxu0 %v7458
        %7460 = vmatprep.subr.mxu0 0.0
        %v7461 = vand.u32 %v3830, 4294901760
        %7462 = vmatpush1.msra.mxu0 %v7461
        %7463 = vmatprep.subr.mxu0 0.0
        %v7464 = vand.u32 %v3831, 4294901760
        %7465 = vmatpush1.msra.mxu0 %v7464
        %7466 = vmatprep.subr.mxu0 0.0
        %v7467 = vand.u32 %v3832, 4294901760
        %7468 = vmatpush1.msra.mxu0 %v7467
        %7469 = vmatprep.subr.mxu0 0.0
        %v7470 = vand.u32 %v3833, 4294901760
        %7471 = vmatpush1.msra.mxu0 %v7470
        %7472 = vmatprep.subr.mxu0 0.0
        %v7473 = vand.u32 %v3834, 4294901760
        %7474 = vmatpush1.msra.mxu0 %v7473
        %v7475 = vand.u32 %v6618, 4294901760
        %7476 = vmatprep.mubr.f32.mxu0 %v7475
        %v7477 = vand.u32 %v6604, 4294901760
        %7478 = vmatmul.mubr.f32.gmra.mrb[0].mxu0 %v7477
        %v7479 = vpop.f32.mrb[0].mxu0
        %v7480 = vadd.f32 %v7376, %v7479
        %v7481 = vpop.f32.mrb[0].mxu0
        %7482 = vdwg.mxu0
        %v7483 = vsel %vm5030, %v7480, 0.0
        %7484 = vadd.xlane.f32.xlu0 %v7483
        %v7485 = vpop.xlane.xlu0 %7484
        %v7486 = vmul.f32 %v7485, %v5034
        %v7487 = vsub.f32 %v7480, %v7486
        %v7488 = vmul.f32 %v7487, %v7487
        %v7489 = vsel %vm5030, %v7488, 0.0
        %7490 = vadd.xlane.f32.xlu0 %v7489
        %v7491 = vpop.xlane.xlu0 %7490
        %v7492 = vmul.f32 %v7491, %v5041
        %v7493 = vrsqrt.pop %v7492
        %v7494 = vmul.f32 %v7492, %v7493
        %vm7495 = vcmp.eq.f32.partialorder %v7492, inf
        %v7496 = vsel %vm7495, %v7492, %v7494
        %vm7497 = vcmp.eq.f32.partialorder %v7492, 0.0
        %v7498 = vand.u32 %v7492, 2147483648
        %v7499 = vsel %vm7497, %v7498, %v7496
        %v7500 = vadd.f32 %v7499, 1e-06
        %v7501 = vrcp.pop %v7500
        %v7502 = vmul.f32 %v7487, %v7501
        %s7503 = scalar_lea.vmem [#allocation11], 2
        %v7504 = vld [vmem:[%s7503] sm:$0x1]
        %v7506 = vlaneseq
        %v7507 = vshrl.u32 %v7506, 7
        %v7508 = vsub.s32 0, %v7507
        %v7509 = vrot.slane %v7504, %v7508
        %v7511 = vmul.f32 %v7502, %v7509
        %s7512 = scalar_lea.vmem [#allocation13], 2
        %v7513 = vld [vmem:[%s7512] sm:$0x1]
        %v7515 = vlaneseq
        %v7516 = vshrl.u32 %v7515, 7
        %v7517 = vsub.s32 0, %v7516
        %v7518 = vrot.slane %v7513, %v7517
        %v7520 = vadd.f32 %v7511, %v7518
        %v7521 = vadd.f32 %v5068, %v6294
        %v7522 = vadd.f32 %v7521, %v7520
        %v7523 = vld [vmem:[#allocation14] sm:$0xff]
        %v7524 = vld [vmem:[#allocation14 + $0x8] sm:$0xff]
        %v7526 = vsel %vm5030, %v7522, 0
        %7528 = vmatprep.subr.mxu0 0.0
        %v7529 = vand.u32 %v7523, 4294901760
        %7530 = vmatpush1.msra.mxu0 %v7529
        %7531 = vmatprep.subr.mxu0 0.0
        %v7532 = vand.u32 %v7524, 4294901760
        %7533 = vmatpush1.msra.mxu0 %v7532
        %7534 = vmatprep.subr.mxu0 0.0
        %7535 = vmatpush1.msra.mxu0 0.0
        %7536 = vmatprep.subr.mxu0 0.0
        %7537 = vmatpush1.msra.mxu0 0.0
        %7538 = vmatprep.subr.mxu0 0.0
        %7539 = vmatpush1.msra.mxu0 0.0
        %7540 = vmatprep.subr.mxu0 0.0
        %7541 = vmatpush1.msra.mxu0 0.0
        %7542 = vmatprep.subr.mxu0 0.0
        %7543 = vmatpush1.msra.mxu0 0.0
        %7544 = vmatprep.subr.mxu0 0.0
        %7545 = vmatpush1.msra.mxu0 0.0
        %7546 = vmatprep.subr.mxu0 0.0
        %7547 = vmatpush1.msra.mxu0 0.0
        %7548 = vmatprep.subr.mxu0 0.0
        %7549 = vmatpush1.msra.mxu0 0.0
        %7550 = vmatprep.subr.mxu0 0.0
        %7551 = vmatpush1.msra.mxu0 0.0
        %7552 = vmatprep.subr.mxu0 0.0
        %7553 = vmatpush1.msra.mxu0 0.0
        %7554 = vmatprep.subr.mxu0 0.0
        %7555 = vmatpush1.msra.mxu0 0.0
        %7556 = vmatprep.subr.mxu0 0.0
        %7557 = vmatpush1.msra.mxu0 0.0
        %7558 = vmatprep.subr.mxu0 0.0
        %7559 = vmatpush1.msra.mxu0 0.0
        %7560 = vmatprep.subr.mxu0 0.0
        %7561 = vmatpush1.msra.mxu0 0.0
        %7562 = vmatprep.subr.mxu0 0.0
        %7563 = vmatpush1.msra.mxu0 0.0
        %7564 = vmatprep.subr.mxu0 0.0
        %7565 = vmatpush1.msra.mxu0 0.0
        %7566 = vmatprep.subr.mxu0 0.0
        %7567 = vmatpush1.msra.mxu0 0.0
        %7568 = vmatprep.subr.mxu0 0.0
        %7569 = vmatpush1.msra.mxu0 0.0
        %7570 = vmatprep.subr.mxu0 0.0
        %7571 = vmatpush1.msra.mxu0 0.0
        %7572 = vmatprep.subr.mxu0 0.0
        %7573 = vmatpush1.msra.mxu0 0.0
        %7574 = vmatprep.subr.mxu0 0.0
        %7575 = vmatpush1.msra.mxu0 0.0
        %7576 = vmatprep.subr.mxu0 0.0
        %7577 = vmatpush1.msra.mxu0 0.0
        %7578 = vmatprep.subr.mxu0 0.0
        %7579 = vmatpush1.msra.mxu0 0.0
        %7580 = vmatprep.subr.mxu0 0.0
        %7581 = vmatpush1.msra.mxu0 0.0
        %7582 = vmatprep.subr.mxu0 0.0
        %7583 = vmatpush1.msra.mxu0 0.0
        %7584 = vmatprep.subr.mxu0 0.0
        %7585 = vmatpush1.msra.mxu0 0.0
        %7586 = vmatprep.subr.mxu0 0.0
        %7587 = vmatpush1.msra.mxu0 0.0
        %7588 = vmatprep.subr.mxu0 0.0
        %7589 = vmatpush1.msra.mxu0 0.0
        %7590 = vmatprep.subr.mxu0 0.0
        %7591 = vmatpush1.msra.mxu0 0.0
        %7592 = vmatprep.subr.mxu0 0.0
        %7593 = vmatpush1.msra.mxu0 0.0
        %7594 = vmatprep.mubr.f32.mxu0 0.0
        %v7595 = vand.u32 %v7526, 4294901760
        %v7596 = vsub.f32 %v7526, %v7595
        %v7597 = vand.u32 %v7596, 4294901760
        %v7598 = vsub.f32 %v7596, %v7597
        %v7599 = vand.u32 %v7598, 4294901760
        %7600 = vmatmul.mubr.f32.gmra.mrb[0].mxu0 %v7599
        %v7601 = vpop.f32.mrb[0].mxu0
        %v7602 = vadd.f32 0.0, %v7601
        %v7603 = vpop.f32.mrb[0].mxu0
        %7604 = vdwg.mxu0
        %7605 = vmatprep.subr.mxu0 0.0
        %v7606 = vand.u32 %v7523, 4294901760
        %v7607 = vsub.f32 %v7523, %v7606
        %v7608 = vand.u32 %v7607, 4294901760
        %v7609 = vsub.f32 %v7607, %v7608
        %v7610 = vand.u32 %v7609, 4294901760
        %7611 = vmatpush1.msra.mxu0 %v7610
        %7612 = vmatprep.subr.mxu0 0.0
        %v7613 = vand.u32 %v7524, 4294901760
        %v7614 = vsub.f32 %v7524, %v7613
        %v7615 = vand.u32 %v7614, 4294901760
        %v7616 = vsub.f32 %v7614, %v7615
        %v7617 = vand.u32 %v7616, 4294901760
        %7618 = vmatpush1.msra.mxu0 %v7617
        %7619 = vmatprep.subr.mxu0 0.0
        %7620 = vmatpush1.msra.mxu0 0.0
        %7621 = vmatprep.subr.mxu0 0.0
        %7622 = vmatpush1.msra.mxu0 0.0
        %7623 = vmatprep.subr.mxu0 0.0
        %7624 = vmatpush1.msra.mxu0 0.0
        %7625 = vmatprep.subr.mxu0 0.0
        %7626 = vmatpush1.msra.mxu0 0.0
        %7627 = vmatprep.subr.mxu0 0.0
        %7628 = vmatpush1.msra.mxu0 0.0
        %7629 = vmatprep.subr.mxu0 0.0
        %7630 = vmatpush1.msra.mxu0 0.0
        %7631 = vmatprep.subr.mxu0 0.0
        %7632 = vmatpush1.msra.mxu0 0.0
        %7633 = vmatprep.subr.mxu0 0.0
        %7634 = vmatpush1.msra.mxu0 0.0
        %7635 = vmatprep.subr.mxu0 0.0
        %7636 = vmatpush1.msra.mxu0 0.0
        %7637 = vmatprep.subr.mxu0 0.0
        %7638 = vmatpush1.msra.mxu0 0.0
        %7639 = vmatprep.subr.mxu0 0.0
        %7640 = vmatpush1.msra.mxu0 0.0
        %7641 = vmatprep.subr.mxu0 0.0
        %7642 = vmatpush1.msra.mxu0 0.0
        %7643 = vmatprep.subr.mxu0 0.0
        %7644 = vmatpush1.msra.mxu0 0.0
        %7645 = vmatprep.subr.mxu0 0.0
        %7646 = vmatpush1.msra.mxu0 0.0
        %7647 = vmatprep.subr.mxu0 0.0
        %7648 = vmatpush1.msra.mxu0 0.0
        %7649 = vmatprep.subr.mxu0 0.0
        %7650 = vmatpush1.msra.mxu0 0.0
        %7651 = vmatprep.subr.mxu0 0.0
        %7652 = vmatpush1.msra.mxu0 0.0
        %7653 = vmatprep.subr.mxu0 0.0
        %7654 = vmatpush1.msra.mxu0 0.0
        %7655 = vmatprep.subr.mxu0 0.0
        %7656 = vmatpush1.msra.mxu0 0.0
        %7657 = vmatprep.subr.mxu0 0.0
        %7658 = vmatpush1.msra.mxu0 0.0
        %7659 = vmatprep.subr.mxu0 0.0
        %7660 = vmatpush1.msra.mxu0 0.0
        %7661 = vmatprep.subr.mxu0 0.0
        %7662 = vmatpush1.msra.mxu0 0.0
        %7663 = vmatprep.subr.mxu0 0.0
        %7664 = vmatpush1.msra.mxu0 0.0
        %7665 = vmatprep.subr.mxu0 0.0
        %7666 = vmatpush1.msra.mxu0 0.0
        %7667 = vmatprep.subr.mxu0 0.0
        %7668 = vmatpush1.msra.mxu0 0.0
        %7669 = vmatprep.subr.mxu0 0.0
        %7670 = vmatpush1.msra.mxu0 0.0
        %7671 = vmatprep.subr.mxu0 0.0
        %7672 = vmatpush1.msra.mxu0 0.0
        %7673 = vmatprep.subr.mxu0 0.0
        %7674 = vmatpush1.msra.mxu0 0.0
        %7675 = vmatprep.subr.mxu0 0.0
        %7676 = vmatpush1.msra.mxu0 0.0
        %7677 = vmatprep.subr.mxu0 0.0
        %7678 = vmatpush1.msra.mxu0 0.0
        %7679 = vmatprep.mubr.f32.mxu0 0.0
        %v7680 = vand.u32 %v7526, 4294901760
        %7681 = vmatmul.mubr.f32.gmra.mrb[0].mxu0 %v7680
        %v7682 = vpop.f32.mrb[0].mxu0
        %v7683 = vadd.f32 %v7602, %v7682
        %v7684 = vpop.f32.mrb[0].mxu0
        %7685 = vdwg.mxu0
        %7686 = vmatprep.subr.mxu0 0.0
        %v7687 = vand.u32 %v7523, 4294901760
        %v7688 = vsub.f32 %v7523, %v7687
        %7689 = vmatpush1.msra.mxu0 %v7688
        %7690 = vmatprep.subr.mxu0 0.0
        %v7691 = vand.u32 %v7524, 4294901760
        %v7692 = vsub.f32 %v7524, %v7691
        %7693 = vmatpush1.msra.mxu0 %v7692
        %7694 = vmatprep.subr.mxu0 0.0
        %7695 = vmatpush1.msra.mxu0 0.0
        %7696 = vmatprep.subr.mxu0 0.0
        %7697 = vmatpush1.msra.mxu0 0.0
        %7698 = vmatprep.subr.mxu0 0.0
        %7699 = vmatpush1.msra.mxu0 0.0
        %7700 = vmatprep.subr.mxu0 0.0
        %7701 = vmatpush1.msra.mxu0 0.0
        %7702 = vmatprep.subr.mxu0 0.0
        %7703 = vmatpush1.msra.mxu0 0.0
        %7704 = vmatprep.subr.mxu0 0.0
        %7705 = vmatpush1.msra.mxu0 0.0
        %7706 = vmatprep.subr.mxu0 0.0
        %7707 = vmatpush1.msra.mxu0 0.0
        %7708 = vmatprep.subr.mxu0 0.0
        %7709 = vmatpush1.msra.mxu0 0.0
        %7710 = vmatprep.subr.mxu0 0.0
        %7711 = vmatpush1.msra.mxu0 0.0
        %7712 = vmatprep.subr.mxu0 0.0
        %7713 = vmatpush1.msra.mxu0 0.0
        %7714 = vmatprep.subr.mxu0 0.0
        %7715 = vmatpush1.msra.mxu0 0.0
        %7716 = vmatprep.subr.mxu0 0.0
        %7717 = vmatpush1.msra.mxu0 0.0
        %7718 = vmatprep.subr.mxu0 0.0
        %7719 = vmatpush1.msra.mxu0 0.0
        %7720 = vmatprep.subr.mxu0 0.0
        %7721 = vmatpush1.msra.mxu0 0.0
        %7722 = vmatprep.subr.mxu0 0.0
        %7723 = vmatpush1.msra.mxu0 0.0
        %7724 = vmatprep.subr.mxu0 0.0
        %7725 = vmatpush1.msra.mxu0 0.0
        %7726 = vmatprep.subr.mxu0 0.0
        %7727 = vmatpush1.msra.mxu0 0.0
        %7728 = vmatprep.subr.mxu0 0.0
        %7729 = vmatpush1.msra.mxu0 0.0
        %7730 = vmatprep.subr.mxu0 0.0
        %7731 = vmatpush1.msra.mxu0 0.0
        %7732 = vmatprep.subr.mxu0 0.0
        %7733 = vmatpush1.msra.mxu0 0.0
        %7734 = vmatprep.subr.mxu0 0.0
        %7735 = vmatpush1.msra.mxu0 0.0
        %7736 = vmatprep.subr.mxu0 0.0
        %7737 = vmatpush1.msra.mxu0 0.0
        %7738 = vmatprep.subr.mxu0 0.0
        %7739 = vmatpush1.msra.mxu0 0.0
        %7740 = vmatprep.subr.mxu0 0.0
        %7741 = vmatpush1.msra.mxu0 0.0
        %7742 = vmatprep.subr.mxu0 0.0
        %7743 = vmatpush1.msra.mxu0 0.0
        %7744 = vmatprep.subr.mxu0 0.0
        %7745 = vmatpush1.msra.mxu0 0.0
        %7746 = vmatprep.subr.mxu0 0.0
        %7747 = vmatpush1.msra.mxu0 0.0
        %7748 = vmatprep.subr.mxu0 0.0
        %7749 = vmatpush1.msra.mxu0 0.0
        %7750 = vmatprep.subr.mxu0 0.0
        %7751 = vmatpush1.msra.mxu0 0.0
        %7752 = vmatprep.subr.mxu0 0.0
        %7753 = vmatpush1.msra.mxu0 0.0
        %7754 = vmatprep.mubr.f32.mxu0 0.0
        %v7755 = vand.u32 %v7526, 4294901760
        %v7756 = vsub.f32 %v7526, %v7755
        %7757 = vmatmul.mubr.f32.gmra.mrb[0].mxu0 %v7756
        %v7758 = vpop.f32.mrb[0].mxu0
        %v7759 = vadd.f32 %v7683, %v7758
        %v7760 = vpop.f32.mrb[0].mxu0
        %7761 = vdwg.mxu0
        %7762 = vmatprep.subr.mxu0 0.0
        %v7763 = vand.u32 %v7523, 4294901760
        %7764 = vmatpush1.msra.mxu0 %v7763
        %7765 = vmatprep.subr.mxu0 0.0
        %v7766 = vand.u32 %v7524, 4294901760
        %7767 = vmatpush1.msra.mxu0 %v7766
        %7768 = vmatprep.subr.mxu0 0.0
        %7769 = vmatpush1.msra.mxu0 0.0
        %7770 = vmatprep.subr.mxu0 0.0
        %7771 = vmatpush1.msra.mxu0 0.0
        %7772 = vmatprep.subr.mxu0 0.0
        %7773 = vmatpush1.msra.mxu0 0.0
        %7774 = vmatprep.subr.mxu0 0.0
        %7775 = vmatpush1.msra.mxu0 0.0
        %7776 = vmatprep.subr.mxu0 0.0
        %7777 = vmatpush1.msra.mxu0 0.0
        %7778 = vmatprep.subr.mxu0 0.0
        %7779 = vmatpush1.msra.mxu0 0.0
        %7780 = vmatprep.subr.mxu0 0.0
        %7781 = vmatpush1.msra.mxu0 0.0
        %7782 = vmatprep.subr.mxu0 0.0
        %7783 = vmatpush1.msra.mxu0 0.0
        %7784 = vmatprep.subr.mxu0 0.0
        %7785 = vmatpush1.msra.mxu0 0.0
        %7786 = vmatprep.subr.mxu0 0.0
        %7787 = vmatpush1.msra.mxu0 0.0
        %7788 = vmatprep.subr.mxu0 0.0
        %7789 = vmatpush1.msra.mxu0 0.0
        %7790 = vmatprep.subr.mxu0 0.0
        %7791 = vmatpush1.msra.mxu0 0.0
        %7792 = vmatprep.subr.mxu0 0.0
        %7793 = vmatpush1.msra.mxu0 0.0
        %7794 = vmatprep.subr.mxu0 0.0
        %7795 = vmatpush1.msra.mxu0 0.0
        %7796 = vmatprep.subr.mxu0 0.0
        %7797 = vmatpush1.msra.mxu0 0.0
        %7798 = vmatprep.subr.mxu0 0.0
        %7799 = vmatpush1.msra.mxu0 0.0
        %7800 = vmatprep.subr.mxu0 0.0
        %7801 = vmatpush1.msra.mxu0 0.0
        %7802 = vmatprep.subr.mxu0 0.0
        %7803 = vmatpush1.msra.mxu0 0.0
        %7804 = vmatprep.subr.mxu0 0.0
        %7805 = vmatpush1.msra.mxu0 0.0
        %7806 = vmatprep.subr.mxu0 0.0
        %7807 = vmatpush1.msra.mxu0 0.0
        %7808 = vmatprep.subr.mxu0 0.0
        %7809 = vmatpush1.msra.mxu0 0.0
        %7810 = vmatprep.subr.mxu0 0.0
        %7811 = vmatpush1.msra.mxu0 0.0
        %7812 = vmatprep.subr.mxu0 0.0
        %7813 = vmatpush1.msra.mxu0 0.0
        %7814 = vmatprep.subr.mxu0 0.0
        %7815 = vmatpush1.msra.mxu0 0.0
        %7816 = vmatprep.subr.mxu0 0.0
        %7817 = vmatpush1.msra.mxu0 0.0
        %7818 = vmatprep.subr.mxu0 0.0
        %7819 = vmatpush1.msra.mxu0 0.0
        %7820 = vmatprep.subr.mxu0 0.0
        %7821 = vmatpush1.msra.mxu0 0.0
        %7822 = vmatprep.subr.mxu0 0.0
        %7823 = vmatpush1.msra.mxu0 0.0
        %7824 = vmatprep.subr.mxu0 0.0
        %7825 = vmatpush1.msra.mxu0 0.0
        %7826 = vmatprep.subr.mxu0 0.0
        %7827 = vmatpush1.msra.mxu0 0.0
        %7828 = vmatprep.mubr.f32.mxu0 0.0
        %v7829 = vand.u32 %v7526, 4294901760
        %v7830 = vsub.f32 %v7526, %v7829
        %v7831 = vand.u32 %v7830, 4294901760
        %7832 = vmatmul.mubr.f32.gmra.mrb[0].mxu0 %v7831
        %v7833 = vpop.f32.mrb[0].mxu0
        %v7834 = vadd.f32 %v7759, %v7833
        %v7835 = vpop.f32.mrb[0].mxu0
        %7836 = vdwg.mxu0
        %7837 = vmatprep.subr.mxu0 0.0
        %v7838 = vand.u32 %v7523, 4294901760
        %v7839 = vsub.f32 %v7523, %v7838
        %v7840 = vand.u32 %v7839, 4294901760
        %7841 = vmatpush1.msra.mxu0 %v7840
        %7842 = vmatprep.subr.mxu0 0.0
        %v7843 = vand.u32 %v7524, 4294901760
        %v7844 = vsub.f32 %v7524, %v7843
        %v7845 = vand.u32 %v7844, 4294901760
        %7846 = vmatpush1.msra.mxu0 %v7845
        %7847 = vmatprep.subr.mxu0 0.0
        %7848 = vmatpush1.msra.mxu0 0.0
        %7849 = vmatprep.subr.mxu0 0.0
        %7850 = vmatpush1.msra.mxu0 0.0
        %7851 = vmatprep.subr.mxu0 0.0
        %7852 = vmatpush1.msra.mxu0 0.0
        %7853 = vmatprep.subr.mxu0 0.0
        %7854 = vmatpush1.msra.mxu0 0.0
        %7855 = vmatprep.subr.mxu0 0.0
        %7856 = vmatpush1.msra.mxu0 0.0
        %7857 = vmatprep.subr.mxu0 0.0
        %7858 = vmatpush1.msra.mxu0 0.0
        %7859 = vmatprep.subr.mxu0 0.0
        %7860 = vmatpush1.msra.mxu0 0.0
        %7861 = vmatprep.subr.mxu0 0.0
        %7862 = vmatpush1.msra.mxu0 0.0
        %7863 = vmatprep.subr.mxu0 0.0
        %7864 = vmatpush1.msra.mxu0 0.0
        %7865 = vmatprep.subr.mxu0 0.0
        %7866 = vmatpush1.msra.mxu0 0.0
        %7867 = vmatprep.subr.mxu0 0.0
        %7868 = vmatpush1.msra.mxu0 0.0
        %7869 = vmatprep.subr.mxu0 0.0
        %7870 = vmatpush1.msra.mxu0 0.0
        %7871 = vmatprep.subr.mxu0 0.0
        %7872 = vmatpush1.msra.mxu0 0.0
        %7873 = vmatprep.subr.mxu0 0.0
        %7874 = vmatpush1.msra.mxu0 0.0
        %7875 = vmatprep.subr.mxu0 0.0
        %7876 = vmatpush1.msra.mxu0 0.0
        %7877 = vmatprep.subr.mxu0 0.0
        %7878 = vmatpush1.msra.mxu0 0.0
        %7879 = vmatprep.subr.mxu0 0.0
        %7880 = vmatpush1.msra.mxu0 0.0
        %7881 = vmatprep.subr.mxu0 0.0
        %7882 = vmatpush1.msra.mxu0 0.0
        %7883 = vmatprep.subr.mxu0 0.0
        %7884 = vmatpush1.msra.mxu0 0.0
        %7885 = vmatprep.subr.mxu0 0.0
        %7886 = vmatpush1.msra.mxu0 0.0
        %7887 = vmatprep.subr.mxu0 0.0
        %7888 = vmatpush1.msra.mxu0 0.0
        %7889 = vmatprep.subr.mxu0 0.0
        %7890 = vmatpush1.msra.mxu0 0.0
        %7891 = vmatprep.subr.mxu0 0.0
        %7892 = vmatpush1.msra.mxu0 0.0
        %7893 = vmatprep.subr.mxu0 0.0
        %7894 = vmatpush1.msra.mxu0 0.0
        %7895 = vmatprep.subr.mxu0 0.0
        %7896 = vmatpush1.msra.mxu0 0.0
        %7897 = vmatprep.subr.mxu0 0.0
        %7898 = vmatpush1.msra.mxu0 0.0
        %7899 = vmatprep.subr.mxu0 0.0
        %7900 = vmatpush1.msra.mxu0 0.0
        %7901 = vmatprep.subr.mxu0 0.0
        %7902 = vmatpush1.msra.mxu0 0.0
        %7903 = vmatprep.subr.mxu0 0.0
        %7904 = vmatpush1.msra.mxu0 0.0
        %7905 = vmatprep.subr.mxu0 0.0
        %7906 = vmatpush1.msra.mxu0 0.0
        %7907 = vmatprep.mubr.f32.mxu0 0.0
        %v7908 = vand.u32 %v7526, 4294901760
        %7909 = vmatmul.mubr.f32.gmra.mrb[0].mxu0 %v7908
        %v7910 = vpop.f32.mrb[0].mxu0
        %v7911 = vadd.f32 %v7834, %v7910
        %v7912 = vpop.f32.mrb[0].mxu0
        %7913 = vdwg.mxu0
        %7914 = vmatprep.subr.mxu0 0.0
        %v7915 = vand.u32 %v7523, 4294901760
        %7916 = vmatpush1.msra.mxu0 %v7915
        %7917 = vmatprep.subr.mxu0 0.0
        %v7918 = vand.u32 %v7524, 4294901760
        %7919 = vmatpush1.msra.mxu0 %v7918
        %7920 = vmatprep.subr.mxu0 0.0
        %7921 = vmatpush1.msra.mxu0 0.0
        %7922 = vmatprep.subr.mxu0 0.0
        %7923 = vmatpush1.msra.mxu0 0.0
        %7924 = vmatprep.subr.mxu0 0.0
        %7925 = vmatpush1.msra.mxu0 0.0
        %7926 = vmatprep.subr.mxu0 0.0
        %7927 = vmatpush1.msra.mxu0 0.0
        %7928 = vmatprep.subr.mxu0 0.0
        %7929 = vmatpush1.msra.mxu0 0.0
        %7930 = vmatprep.subr.mxu0 0.0
        %7931 = vmatpush1.msra.mxu0 0.0
        %7932 = vmatprep.subr.mxu0 0.0
        %7933 = vmatpush1.msra.mxu0 0.0
        %7934 = vmatprep.subr.mxu0 0.0
        %7935 = vmatpush1.msra.mxu0 0.0
        %7936 = vmatprep.subr.mxu0 0.0
        %7937 = vmatpush1.msra.mxu0 0.0
        %7938 = vmatprep.subr.mxu0 0.0
        %7939 = vmatpush1.msra.mxu0 0.0
        %7940 = vmatprep.subr.mxu0 0.0
        %7941 = vmatpush1.msra.mxu0 0.0
        %7942 = vmatprep.subr.mxu0 0.0
        %7943 = vmatpush1.msra.mxu0 0.0
        %7944 = vmatprep.subr.mxu0 0.0
        %7945 = vmatpush1.msra.mxu0 0.0
        %7946 = vmatprep.subr.mxu0 0.0
        %7947 = vmatpush1.msra.mxu0 0.0
        %7948 = vmatprep.subr.mxu0 0.0
        %7949 = vmatpush1.msra.mxu0 0.0
        %7950 = vmatprep.subr.mxu0 0.0
        %7951 = vmatpush1.msra.mxu0 0.0
        %7952 = vmatprep.subr.mxu0 0.0
        %7953 = vmatpush1.msra.mxu0 0.0
        %7954 = vmatprep.subr.mxu0 0.0
        %7955 = vmatpush1.msra.mxu0 0.0
        %7956 = vmatprep.subr.mxu0 0.0
        %7957 = vmatpush1.msra.mxu0 0.0
        %7958 = vmatprep.subr.mxu0 0.0
        %7959 = vmatpush1.msra.mxu0 0.0
        %7960 = vmatprep.subr.mxu0 0.0
        %7961 = vmatpush1.msra.mxu0 0.0
        %7962 = vmatprep.subr.mxu0 0.0
        %7963 = vmatpush1.msra.mxu0 0.0
        %7964 = vmatprep.subr.mxu0 0.0
        %7965 = vmatpush1.msra.mxu0 0.0
        %7966 = vmatprep.subr.mxu0 0.0
        %7967 = vmatpush1.msra.mxu0 0.0
        %7968 = vmatprep.subr.mxu0 0.0
        %7969 = vmatpush1.msra.mxu0 0.0
        %7970 = vmatprep.subr.mxu0 0.0
        %7971 = vmatpush1.msra.mxu0 0.0
        %7972 = vmatprep.subr.mxu0 0.0
        %7973 = vmatpush1.msra.mxu0 0.0
        %7974 = vmatprep.subr.mxu0 0.0
        %7975 = vmatpush1.msra.mxu0 0.0
        %7976 = vmatprep.subr.mxu0 0.0
        %7977 = vmatpush1.msra.mxu0 0.0
        %7978 = vmatprep.subr.mxu0 0.0
        %7979 = vmatpush1.msra.mxu0 0.0
        %7980 = vmatprep.mubr.f32.mxu0 0.0
        %v7981 = vand.u32 %v7526, 4294901760
        %7982 = vmatmul.mubr.f32.gmra.mrb[0].mxu0 %v7981
        %v7983 = vpop.f32.mrb[0].mxu0
        %v7984 = vadd.f32 %v7911, %v7983
        %v7985 = vpop.f32.mrb[0].mxu0
        %7986 = vdwg.mxu0
        %7987 = vst [vmem:[%s527] sm:$0xff] %v7984
        %s7988 = sand.u32 %s283, 1
        %s7989 = scalar_lea.sflag [#allocation4], %s7988
        %s7990 = sand.u32 %s283, 1
        %s7991 = smul.addr %s7990, 8
        %s7992 = scalar_lea.vmem [#allocation16], %s7991
        // Predicated region
        $region97: #{tpu_custom_call.1} parent=63 // pred_check
          %p7993 = pneg %p293
        $region98: #{tpu_custom_call.1} parent=63 // pred_check_branch
          %7995 = sbr.rel (%p7993) target = $region100
        $region99: #{tpu_custom_call.1} parent=63 // pred_region
          %s7997 = ssub.s32 128, 128
          %7998 = vsyncadd %s7989, %s7997
          %s7999 = smul.addr %s34, 128
          %s8000 = scalar_lea.hbm %s11, %s7999
          %s8002 = sshll.u32 %s7992, 4
          %s8003 = int_to_ptr.vmem [resolvable:$true] %s8002
          %8005 = dma.vmem_to_hbm [thread:$0]  %s8003, 128, %s8000, %s7989
        $region100: #{tpu_custom_call.1} parent=63 // pred_fallthru
          _
      $region64: #{tpu_custom_call.1} parent=5 // pred_fallthru
        _
      %p8006 = scmp.le.s32.totalorder 2, %s29
      // Predicated region
      $region101: #{tpu_custom_call.1} parent=5 // pred_check
        %p8007 = pneg %p8006
      $region102: #{tpu_custom_call.1} parent=5 // pred_check_branch
        %8009 = sbr.rel (%p8007) target = $region104
      $region103: #{tpu_custom_call.1} parent=5 // pred_region
        %s8010 = ssub.s32 %s29, 2
        // Predicated region
        $region105: #{tpu_custom_call.1} parent=103 // pred_check
          %p8011 = pneg %p299
        $region106: #{tpu_custom_call.1} parent=103 // pred_check_branch
          %8013 = sbr.rel (%p8011) target = $region108
        $region107: #{tpu_custom_call.1} parent=103 // pred_region
          %s8014 = sand.u32 %s284, 1
          %s8015 = scalar_lea.sflag [#allocation4], %s8014
          %s8016 = sand.u32 %s284, 1
          %s8017 = smul.addr %s8016, 8
          %s8018 = scalar_lea.vmem [#allocation16], %s8017
          %8019 = dma.done %s8015, 128
        $region108: #{tpu_custom_call.1} parent=103 // pred_fallthru
          _
      $region104: #{tpu_custom_call.1} parent=5 // pred_fallthru
        _
    $region6: #{tpu_custom_call.1} parent=1 // loop_footer
      %s33 = sadd.s32 1, %s29
    $region7: #{tpu_custom_call.1} parent=1 // loop_footer_branch
      %28 = sbr.rel target = $region3
    $region8: #{tpu_custom_call.1} parent=1 // loop_exit
      _
    %8020 = vsyncpa [#allocation3], 1
    %s8021 = scalar_lea.sflag [#allocation3], 1
    %8022 = vsyncpa %s8021, 1
    %8023 = vsyncpa [#allocation6], 1
    %s8024 = scalar_lea.sflag [#allocation6], 1
    %8025 = vsyncpa %s8024, 1
    %8026 = vsyncpa [#allocation9], 1
    %8027 = vsyncpa [#allocation12], 1
    %8028 = vsyncpa [#allocation15], 1
    %8029 = vsyncpa [#allocation4], 1
    %s8030 = scalar_lea.sflag [#allocation4], 1
    %8031 = vsyncpa %s8030, 1

</llo_original>
